<compile_context>
chip_gen: v6e
topology: v6e:2x2x1
jax: 0.10.0
libtpu: 0.0.40
codegen_flags: <defaults>
</compile_context>

<pallas_src>
import jax
import jax.numpy as jnp
from jax.experimental import pallas as pl
from jax.experimental.pallas import tpu as pltpu

LATENT_DIM = 32
POSE6D_SIZE = 16 * 6      # 96
MANO_POSE_SIZE = 16 * 3   # 48
SHAPE_SIZE = 10
HEAD_PAD = 128            # fused pose+shape head padded to a full lane width
BN_EPS = 1e-5
NEG_SLOPE = 0.2

# hidden widths of fc1..fc5 and their (128-aligned) offsets in the packed
# gamma/beta array (total 2944 = 23 * 128).
_DIMS = (1024, 1024, 512, 256, 128)
_OFFS = (0, 1024, 2048, 2560, 2816)
_GB_TOTAL = sum(_DIMS)


def decoder_mlp_kernel(z_ref, w1_ref, gb_ref, bh_ref,
                       w2_hbm, w3_hbm, w4_hbm, w5_hbm, wh_hbm,
                       out_ref,
                       w2_buf, w3_buf, w4_buf, w5_buf, wh_buf, sem):
    """fc1..fc5 (+BN train-mode +LeakyReLU 0.2) + fused pose/shape head.

    w2..w5/wh arrive as raw HBM refs; their DMAs into VMEM scratch are all
    issued up front and each one is waited on only just before it is consumed,
    so weight DMA overlaps the earlier layers' MXU work.
    """
    copies = []
    for i, (src, dst) in enumerate(((w2_hbm, w2_buf), (w3_hbm, w3_buf),
                                    (w4_hbm, w4_buf), (w5_hbm, w5_buf),
                                    (wh_hbm, wh_buf))):
        cp = pltpu.make_async_copy(src, dst, sem.at[i])
        cp.start()
        copies.append(cp)

    inv_b = 1.0 / z_ref.shape[0]

    def layer(x_bf16, w, off, n):
        # bf16 x bf16 -> f32 accumulate on the MXU. fc bias omitted: the BN
        # batch-mean subtraction below cancels it exactly.
        y = jnp.dot(x_bf16, w, preferred_element_type=jnp.float32)
        gamma = gb_ref[0:1, off:off + n]
        beta = gb_ref[1:2, off:off + n]
        # One-pass biased batch statistics, affine folded to scale/shift rows.
        mean = jnp.sum(y, axis=0, keepdims=True) * inv_b
        ex2 = jnp.sum(y * y, axis=0, keepdims=True) * inv_b
        var = ex2 - mean * mean
        scale = gamma * jax.lax.rsqrt(var + BN_EPS)
        shift = beta - mean * scale
        y = y * scale + shift
        # LeakyReLU(0.2), emitted in bf16 so the next matmul consumes directly.
        return jnp.maximum(y, NEG_SLOPE * y).astype(jnp.bfloat16)

    x = layer(z_ref[...].astype(jnp.bfloat16), w1_ref[...], _OFFS[0], _DIMS[0])
    copies[0].wait()
    x = layer(x, w2_buf[...], _OFFS[1], _DIMS[1])
    copies[1].wait()
    x = layer(x, w3_buf[...], _OFFS[2], _DIMS[2])
    copies[2].wait()
    x = layer(x, w4_buf[...], _OFFS[3], _DIMS[3])
    copies[3].wait()
    x = layer(x, w5_buf[...], _OFFS[4], _DIMS[4])
    copies[4].wait()
    # fused [pose_reg | shape_reg | zero-pad] head -> single lane-dense store.
    out_ref[...] = (jnp.dot(x, wh_buf[...], preferred_element_type=jnp.float32)
                    + bh_ref[...])


def _linear_init(key, fan_in, fan_out):
    """PyTorch nn.Linear default init, stored as (in, out)."""
    kw, kb = jax.random.split(key)
    bound = 1.0 / jnp.sqrt(jnp.float32(fan_in))
    w = jax.random.uniform(kw, (fan_in, fan_out), jnp.float32, -bound, bound)
    b = jax.random.uniform(kb, (fan_out,), jnp.float32, -bound, bound)
    return w, b


def make_params(key, latent_dim=LATENT_DIM):
    """Returns (w1..w5, wh, gb, bh); matmul weights in bf16, vectors packed."""
    dims = [(latent_dim, _DIMS[0])] + list(zip(_DIMS[:-1], _DIMS[1:]))
    keys = jax.random.split(key, len(dims) + 2)

    weights = []
    for k, (fi, fo) in zip(keys[:len(dims)], dims):
        w, _b = _linear_init(k, fi, fo)   # fc bias cancelled by training-mode BN
        weights.append(w.astype(jnp.bfloat16))

    # BN default init: gamma=1, beta=0, packed as (2, sum(dims)) f32.
    gb = jnp.concatenate(
        [jnp.ones((1, _GB_TOTAL), jnp.float32),
         jnp.zeros((1, _GB_TOTAL), jnp.float32)], axis=0)

    # Fused pose_reg (128x96) + shape_reg (128x10), zero-padded to 128 lanes.
    wp, bp = _linear_init(keys[-2], _DIMS[-1], POSE6D_SIZE)
    ws, bs = _linear_init(keys[-1], _DIMS[-1], SHAPE_SIZE)
    pad_w = HEAD_PAD - POSE6D_SIZE - SHAPE_SIZE
    wh = jnp.concatenate(
        [wp, ws, jnp.zeros((_DIMS[-1], pad_w), jnp.float32)], axis=1
    ).astype(jnp.bfloat16)
    bh = jnp.concatenate(
        [bp, bs, jnp.zeros((pad_w,), jnp.float32)], axis=0
    ).reshape(1, HEAD_PAD)

    return weights + [wh, gb, bh]


def decoder_mlp(z, params):
    w1, w2, w3, w4, w5, wh, gb, bh = params
    B, latent = z.shape
    vmem = pl.BlockSpec(memory_space=pltpu.MemorySpace.VMEM)
    hbm = pl.BlockSpec(memory_space=pl.ANY)

    # Advisory cost so XLA can overlap this call with surrounding glue ops.
    total_mm = (latent * _DIMS[0]
                + sum(a * b for a, b in zip(_DIMS[:-1], _DIMS[1:]))
                + _DIMS[-1] * HEAD_PAD)
    cost = pl.CostEstimate(
        flops=2 * B * total_mm,
        bytes_accessed=int(2 * total_mm
                           + 4 * (B * latent + B * HEAD_PAD
                                  + 2 * _GB_TOTAL + HEAD_PAD)),
        transcendentals=_GB_TOTAL,          # one rsqrt lane per BN feature
    )

    return pl.pallas_call(
        decoder_mlp_kernel,
        out_shape=jax.ShapeDtypeStruct((B, HEAD_PAD), jnp.float32),
        in_specs=[vmem, vmem, vmem, vmem,     # z, w1, gb, bh (needed at entry)
                  hbm, hbm, hbm, hbm, hbm],   # w2..w5, wh (manual overlapped DMA)
        out_specs=vmem,
        scratch_shapes=[
            pltpu.VMEM((_DIMS[0], _DIMS[1]), jnp.bfloat16),   # w2 buffer
            pltpu.VMEM((_DIMS[1], _DIMS[2]), jnp.bfloat16),   # w3 buffer
            pltpu.VMEM((_DIMS[2], _DIMS[3]), jnp.bfloat16),   # w4 buffer
            pltpu.VMEM((_DIMS[3], _DIMS[4]), jnp.bfloat16),   # w5 buffer
            pltpu.VMEM((_DIMS[4], HEAD_PAD), jnp.bfloat16),   # wh buffer
            pltpu.SemaphoreType.DMA((5,)),
        ],
        cost_estimate=cost,
    )(z, w1, gb, bh, w2, w3, w4, w5, wh)


# ---------------- plain-JAX glue (cheap post-processing) ----------------

def rot6d2mat(x):
    """x: (N, 6) -> (N, 3, 3) rotation matrices (Gram-Schmidt, columns b1,b2,b3)."""
    a1, a2 = x[:, 0:3], x[:, 3:6]
    b1 = a1 / jnp.maximum(jnp.linalg.norm(a1, axis=-1, keepdims=True), 1e-8)
    b2 = a2 - jnp.sum(b1 * a2, axis=-1, keepdims=True) * b1
    b2 = b2 / jnp.maximum(jnp.linalg.norm(b2, axis=-1, keepdims=True), 1e-8)
    b3 = jnp.cross(b1, b2)
    return jnp.stack((b1, b2, b3), axis=-1)


def mat2aa(R):
    """R: (N, 3, 3) -> (N, 3) axis-angle (small-angle safe; theta~pi not handled)."""
    trace = R[:, 0, 0] + R[:, 1, 1] + R[:, 2, 2]
    cos_t = jnp.clip((trace - 1.0) * 0.5, -1.0, 1.0)
    theta = jnp.arccos(cos_t)
    r = jnp.stack([R[:, 2, 1] - R[:, 1, 2],
                   R[:, 0, 2] - R[:, 2, 0],
                   R[:, 1, 0] - R[:, 0, 1]], axis=-1)
    sin_t = jnp.sin(theta)
    scale = jnp.where(sin_t > 1e-6, theta / (2.0 * sin_t), 0.5)
    return r * scale[:, None]


def decoder_forward(z, params):
    head = decoder_mlp(z, params)                 # (B, 128) lane-dense
    pose6d = head[:, :POSE6D_SIZE]                # (B, 96)
    mano_shape = head[:, POSE6D_SIZE:POSE6D_SIZE + SHAPE_SIZE]   # (B, 10)
    B = z.shape[0]
    rotmat = rot6d2mat(pose6d.reshape(-1, 6)).reshape(B, 16, 3, 3)
    mano_pose_aa = mat2aa(rotmat.reshape(-1, 3, 3)).reshape(B, MANO_POSE_SIZE)
    # TODO(synk): mano.layer (MANO hand model) needs external MANO_RIGHT.pkl
    # assets; verts3d / joints3d are not reproducible in-script.
    return {
        "mano_shape": mano_shape,          # (B, 10)
        "mano_pose": rotmat,               # (B, 16, 3, 3)
        "mano_pose_aa": mano_pose_aa,      # (B, 48)
    }


if __name__ == "__main__":
    key = jax.random.PRNGKey(0)
    kz, kp = jax.random.split(key)
    B = 8
    z = jax.random.normal(kz, (B, LATENT_DIM), jnp.float32)
    params = make_params(kp, LATENT_DIM)

    out = decoder_forward(z, params)
    jax.block_until_ready(out)

    assert out["mano_shape"].shape == (B, SHAPE_SIZE)
    assert out["mano_pose"].shape == (B, 16, 3, 3)
    assert out["mano_pose_aa"].shape == (B, MANO_POSE_SIZE)
    assert bool(jnp.all(jnp.isfinite(out["mano_pose_aa"])))
    assert bool(jnp.all(jnp.isfinite(out["mano_shape"])))
    print("KERNEL_OK")
</pallas_src>

<mosaic_0001>
module attributes {stable_mosaic.version = 11 : i64} {
  func.func @decoder_mlp_kernel(%arg0: memref<8x32xf32, #tpu.memory_space<vmem>>, %arg1: memref<32x1024xbf16, #tpu.memory_space<vmem>>, %arg2: memref<2x2944xf32, #tpu.memory_space<vmem>>, %arg3: memref<1x128xf32, #tpu.memory_space<vmem>>, %arg4: memref<1024x1024xbf16, #tpu.memory_space<any>>, %arg5: memref<1024x512xbf16, #tpu.memory_space<any>>, %arg6: memref<512x256xbf16, #tpu.memory_space<any>>, %arg7: memref<256x128xbf16, #tpu.memory_space<any>>, %arg8: memref<128x128xbf16, #tpu.memory_space<any>>, %arg9: memref<8x128xf32, #tpu.memory_space<vmem>>, %arg10: memref<1024x1024xbf16, #tpu.memory_space<vmem>>, %arg11: memref<1024x512xbf16, #tpu.memory_space<vmem>>, %arg12: memref<512x256xbf16, #tpu.memory_space<vmem>>, %arg13: memref<256x128xbf16, #tpu.memory_space<vmem>>, %arg14: memref<128x128xbf16, #tpu.memory_space<vmem>>, %arg15: memref<5x!tpu.dma_semaphore, #tpu.memory_space<semaphore_mem>>) attributes {dimension_semantics = [], scalar_prefetch = 0 : i64, scratch_operands = 6 : i64, tpu.core_type = #tpu.core_type<tc>} {
    %c0_i32 = arith.constant 0 : i32
    %0 = tpu.memref_slice %arg15[%c0_i32] : memref<5x!tpu.dma_semaphore, #tpu.memory_space<semaphore_mem>> -> memref<1x!tpu.dma_semaphore, #tpu.memory_space<semaphore_mem>>
    %1 = tpu.memref_squeeze %0 : memref<1x!tpu.dma_semaphore, #tpu.memory_space<semaphore_mem>> -> memref<!tpu.dma_semaphore, #tpu.memory_space<semaphore_mem>>
    tpu.enqueue_dma source(%arg4 : memref<1024x1024xbf16, #tpu.memory_space<any>>) target(%arg10 : memref<1024x1024xbf16, #tpu.memory_space<vmem>>) target_semaphore(%1 : memref<!tpu.dma_semaphore, #tpu.memory_space<semaphore_mem>>)
    %c1_i32 = arith.constant 1 : i32
    %2 = tpu.memref_slice %arg15[%c1_i32] : memref<5x!tpu.dma_semaphore, #tpu.memory_space<semaphore_mem>> -> memref<1x!tpu.dma_semaphore, #tpu.memory_space<semaphore_mem>>
    %3 = tpu.memref_squeeze %2 : memref<1x!tpu.dma_semaphore, #tpu.memory_space<semaphore_mem>> -> memref<!tpu.dma_semaphore, #tpu.memory_space<semaphore_mem>>
    tpu.enqueue_dma source(%arg5 : memref<1024x512xbf16, #tpu.memory_space<any>>) target(%arg11 : memref<1024x512xbf16, #tpu.memory_space<vmem>>) target_semaphore(%3 : memref<!tpu.dma_semaphore, #tpu.memory_space<semaphore_mem>>)
    %c2_i32 = arith.constant 2 : i32
    %4 = tpu.memref_slice %arg15[%c2_i32] : memref<5x!tpu.dma_semaphore, #tpu.memory_space<semaphore_mem>> -> memref<1x!tpu.dma_semaphore, #tpu.memory_space<semaphore_mem>>
    %5 = tpu.memref_squeeze %4 : memref<1x!tpu.dma_semaphore, #tpu.memory_space<semaphore_mem>> -> memref<!tpu.dma_semaphore, #tpu.memory_space<semaphore_mem>>
    tpu.enqueue_dma source(%arg6 : memref<512x256xbf16, #tpu.memory_space<any>>) target(%arg12 : memref<512x256xbf16, #tpu.memory_space<vmem>>) target_semaphore(%5 : memref<!tpu.dma_semaphore, #tpu.memory_space<semaphore_mem>>)
    %c3_i32 = arith.constant 3 : i32
    %6 = tpu.memref_slice %arg15[%c3_i32] : memref<5x!tpu.dma_semaphore, #tpu.memory_space<semaphore_mem>> -> memref<1x!tpu.dma_semaphore, #tpu.memory_space<semaphore_mem>>
    %7 = tpu.memref_squeeze %6 : memref<1x!tpu.dma_semaphore, #tpu.memory_space<semaphore_mem>> -> memref<!tpu.dma_semaphore, #tpu.memory_space<semaphore_mem>>
    tpu.enqueue_dma source(%arg7 : memref<256x128xbf16, #tpu.memory_space<any>>) target(%arg13 : memref<256x128xbf16, #tpu.memory_space<vmem>>) target_semaphore(%7 : memref<!tpu.dma_semaphore, #tpu.memory_space<semaphore_mem>>)
    %c4_i32 = arith.constant 4 : i32
    %8 = tpu.memref_slice %arg15[%c4_i32] : memref<5x!tpu.dma_semaphore, #tpu.memory_space<semaphore_mem>> -> memref<1x!tpu.dma_semaphore, #tpu.memory_space<semaphore_mem>>
    %9 = tpu.memref_squeeze %8 : memref<1x!tpu.dma_semaphore, #tpu.memory_space<semaphore_mem>> -> memref<!tpu.dma_semaphore, #tpu.memory_space<semaphore_mem>>
    tpu.enqueue_dma source(%arg8 : memref<128x128xbf16, #tpu.memory_space<any>>) target(%arg14 : memref<128x128xbf16, #tpu.memory_space<vmem>>) target_semaphore(%9 : memref<!tpu.dma_semaphore, #tpu.memory_space<semaphore_mem>>)
    %c0 = arith.constant 0 : index
    %c0_0 = arith.constant 0 : index
    %10 = vector.load %arg0[%c0, %c0_0] : memref<8x32xf32, #tpu.memory_space<vmem>>, vector<8x32xf32>
    %11 = arith.truncf %10 : vector<8x32xf32> to vector<8x32xbf16>
    %c0_1 = arith.constant 0 : index
    %c0_2 = arith.constant 0 : index
    %12 = vector.load %arg1[%c0_1, %c0_2] : memref<32x1024xbf16, #tpu.memory_space<vmem>>, vector<32x1024xbf16>
    %cst = arith.constant dense<0.000000e+00> : vector<8x1024xf32>
    %13 = tpu.matmul %11, %12, %cst {dimension_numbers = #tpu.dot_dimension_numbers<[1], [0], [0], [1], [0, 0, 1, 1], [], []>} : vector<8x32xbf16>, vector<32x1024xbf16>, vector<8x1024xf32> -> vector<8x1024xf32>
    %c0_3 = arith.constant 0 : index
    %c0_4 = arith.constant 0 : index
    %14 = vector.load %arg2[%c0_3, %c0_4] : memref<2x2944xf32, #tpu.memory_space<vmem>>, vector<1x1024xf32>
    %c1 = arith.constant 1 : index
    %c0_5 = arith.constant 0 : index
    %15 = vector.load %arg2[%c1, %c0_5] : memref<2x2944xf32, #tpu.memory_space<vmem>>, vector<1x1024xf32>
    %cst_6 = arith.constant dense<0.000000e+00> : vector<1024xf32>
    %16 = vector.multi_reduction <add>, %13, %cst_6 [0] : vector<8x1024xf32> to vector<1024xf32>
    %17 = vector.shape_cast %16 : vector<1024xf32> to vector<1x1024xf32>
    %cst_7 = arith.constant 1.250000e-01 : f32
    %18 = vector.broadcast %cst_7 : f32 to vector<1x1024xf32>
    %19 = arith.mulf %17, %18 : vector<1x1024xf32>
    %20 = arith.mulf %13, %13 : vector<8x1024xf32>
    %cst_8 = arith.constant dense<0.000000e+00> : vector<1024xf32>
    %21 = vector.multi_reduction <add>, %20, %cst_8 [0] : vector<8x1024xf32> to vector<1024xf32>
    %22 = vector.shape_cast %21 : vector<1024xf32> to vector<1x1024xf32>
    %cst_9 = arith.constant 1.250000e-01 : f32
    %23 = vector.broadcast %cst_9 : f32 to vector<1x1024xf32>
    %24 = arith.mulf %22, %23 : vector<1x1024xf32>
    %25 = arith.mulf %19, %19 : vector<1x1024xf32>
    %26 = arith.subf %24, %25 : vector<1x1024xf32>
    %cst_10 = arith.constant 9.99999974E-6 : f32
    %27 = vector.broadcast %cst_10 : f32 to vector<1x1024xf32>
    %28 = arith.addf %26, %27 : vector<1x1024xf32>
    %29 = math.rsqrt %28 : vector<1x1024xf32>
    %30 = arith.mulf %14, %29 : vector<1x1024xf32>
    %31 = arith.mulf %19, %30 : vector<1x1024xf32>
    %32 = arith.subf %15, %31 : vector<1x1024xf32>
    %33 = vector.broadcast %30 : vector<1x1024xf32> to vector<8x1024xf32>
    %34 = arith.mulf %13, %33 : vector<8x1024xf32>
    %35 = vector.broadcast %32 : vector<1x1024xf32> to vector<8x1024xf32>
    %36 = arith.addf %34, %35 : vector<8x1024xf32>
    %cst_11 = arith.constant 2.000000e-01 : f32
    %37 = vector.broadcast %cst_11 : f32 to vector<8x1024xf32>
    %38 = arith.mulf %37, %36 : vector<8x1024xf32>
    %39 = arith.maximumf %36, %38 : vector<8x1024xf32>
    %40 = arith.truncf %39 : vector<8x1024xf32> to vector<8x1024xbf16>
    %c0_i32_12 = arith.constant 0 : i32
    %41 = tpu.memref_slice %arg15[%c0_i32_12] : memref<5x!tpu.dma_semaphore, #tpu.memory_space<semaphore_mem>> -> memref<1x!tpu.dma_semaphore, #tpu.memory_space<semaphore_mem>>
    %42 = tpu.memref_squeeze %41 : memref<1x!tpu.dma_semaphore, #tpu.memory_space<semaphore_mem>> -> memref<!tpu.dma_semaphore, #tpu.memory_space<semaphore_mem>>
    tpu.wait_dma2 semaphore(%42 : memref<!tpu.dma_semaphore, #tpu.memory_space<semaphore_mem>>) src(%arg4 : memref<1024x1024xbf16, #tpu.memory_space<any>>) dst(%arg10 : memref<1024x1024xbf16, #tpu.memory_space<vmem>>)
    %c0_13 = arith.constant 0 : index
    %c0_14 = arith.constant 0 : index
    %43 = vector.load %arg10[%c0_13, %c0_14] : memref<1024x1024xbf16, #tpu.memory_space<vmem>>, vector<1024x1024xbf16>
    %cst_15 = arith.constant dense<0.000000e+00> : vector<8x1024xf32>
    %44 = tpu.matmul %40, %43, %cst_15 {dimension_numbers = #tpu.dot_dimension_numbers<[1], [0], [0], [1], [0, 0, 1, 1], [], []>} : vector<8x1024xbf16>, vector<1024x1024xbf16>, vector<8x1024xf32> -> vector<8x1024xf32>
    %c0_16 = arith.constant 0 : index
    %c1024 = arith.constant 1024 : index
    %45 = vector.load %arg2[%c0_16, %c1024] : memref<2x2944xf32, #tpu.memory_space<vmem>>, vector<1x1024xf32>
    %c1_17 = arith.constant 1 : index
    %c1024_18 = arith.constant 1024 : index
    %46 = vector.load %arg2[%c1_17, %c1024_18] : memref<2x2944xf32, #tpu.memory_space<vmem>>, vector<1x1024xf32>
    %cst_19 = arith.constant dense<0.000000e+00> : vector<1024xf32>
    %47 = vector.multi_reduction <add>, %44, %cst_19 [0] : vector<8x1024xf32> to vector<1024xf32>
    %48 = vector.shape_cast %47 : vector<1024xf32> to vector<1x1024xf32>
    %cst_20 = arith.constant 1.250000e-01 : f32
    %49 = vector.broadcast %cst_20 : f32 to vector<1x1024xf32>
    %50 = arith.mulf %48, %49 : vector<1x1024xf32>
    %51 = arith.mulf %44, %44 : vector<8x1024xf32>
    %cst_21 = arith.constant dense<0.000000e+00> : vector<1024xf32>
    %52 = vector.multi_reduction <add>, %51, %cst_21 [0] : vector<8x1024xf32> to vector<1024xf32>
    %53 = vector.shape_cast %52 : vector<1024xf32> to vector<1x1024xf32>
    %cst_22 = arith.constant 1.250000e-01 : f32
    %54 = vector.broadcast %cst_22 : f32 to vector<1x1024xf32>
    %55 = arith.mulf %53, %54 : vector<1x1024xf32>
    %56 = arith.mulf %50, %50 : vector<1x1024xf32>
    %57 = arith.subf %55, %56 : vector<1x1024xf32>
    %cst_23 = arith.constant 9.99999974E-6 : f32
    %58 = vector.broadcast %cst_23 : f32 to vector<1x1024xf32>
    %59 = arith.addf %57, %58 : vector<1x1024xf32>
    %60 = math.rsqrt %59 : vector<1x1024xf32>
    %61 = arith.mulf %45, %60 : vector<1x1024xf32>
    %62 = arith.mulf %50, %61 : vector<1x1024xf32>
    %63 = arith.subf %46, %62 : vector<1x1024xf32>
    %64 = vector.broadcast %61 : vector<1x1024xf32> to vector<8x1024xf32>
    %65 = arith.mulf %44, %64 : vector<8x1024xf32>
    %66 = vector.broadcast %63 : vector<1x1024xf32> to vector<8x1024xf32>
    %67 = arith.addf %65, %66 : vector<8x1024xf32>
    %cst_24 = arith.constant 2.000000e-01 : f32
    %68 = vector.broadcast %cst_24 : f32 to vector<8x1024xf32>
    %69 = arith.mulf %68, %67 : vector<8x1024xf32>
    %70 = arith.maximumf %67, %69 : vector<8x1024xf32>
    %71 = arith.truncf %70 : vector<8x1024xf32> to vector<8x1024xbf16>
    %c1_i32_25 = arith.constant 1 : i32
    %72 = tpu.memref_slice %arg15[%c1_i32_25] : memref<5x!tpu.dma_semaphore, #tpu.memory_space<semaphore_mem>> -> memref<1x!tpu.dma_semaphore, #tpu.memory_space<semaphore_mem>>
    %73 = tpu.memref_squeeze %72 : memref<1x!tpu.dma_semaphore, #tpu.memory_space<semaphore_mem>> -> memref<!tpu.dma_semaphore, #tpu.memory_space<semaphore_mem>>
    tpu.wait_dma2 semaphore(%73 : memref<!tpu.dma_semaphore, #tpu.memory_space<semaphore_mem>>) src(%arg5 : memref<1024x512xbf16, #tpu.memory_space<any>>) dst(%arg11 : memref<1024x512xbf16, #tpu.memory_space<vmem>>)
    %c0_26 = arith.constant 0 : index
    %c0_27 = arith.constant 0 : index
    %74 = vector.load %arg11[%c0_26, %c0_27] : memref<1024x512xbf16, #tpu.memory_space<vmem>>, vector<1024x512xbf16>
    %cst_28 = arith.constant dense<0.000000e+00> : vector<8x512xf32>
    %75 = tpu.matmul %71, %74, %cst_28 {dimension_numbers = #tpu.dot_dimension_numbers<[1], [0], [0], [1], [0, 0, 1, 1], [], []>} : vector<8x1024xbf16>, vector<1024x512xbf16>, vector<8x512xf32> -> vector<8x512xf32>
    %c0_29 = arith.constant 0 : index
    %c2048 = arith.constant 2048 : index
    %76 = vector.load %arg2[%c0_29, %c2048] : memref<2x2944xf32, #tpu.memory_space<vmem>>, vector<1x512xf32>
    %c1_30 = arith.constant 1 : index
    %c2048_31 = arith.constant 2048 : index
    %77 = vector.load %arg2[%c1_30, %c2048_31] : memref<2x2944xf32, #tpu.memory_space<vmem>>, vector<1x512xf32>
    %cst_32 = arith.constant dense<0.000000e+00> : vector<512xf32>
    %78 = vector.multi_reduction <add>, %75, %cst_32 [0] : vector<8x512xf32> to vector<512xf32>
    %79 = vector.shape_cast %78 : vector<512xf32> to vector<1x512xf32>
    %cst_33 = arith.constant 1.250000e-01 : f32
    %80 = vector.broadcast %cst_33 : f32 to vector<1x512xf32>
    %81 = arith.mulf %79, %80 : vector<1x512xf32>
    %82 = arith.mulf %75, %75 : vector<8x512xf32>
    %cst_34 = arith.constant dense<0.000000e+00> : vector<512xf32>
    %83 = vector.multi_reduction <add>, %82, %cst_34 [0] : vector<8x512xf32> to vector<512xf32>
    %84 = vector.shape_cast %83 : vector<512xf32> to vector<1x512xf32>
    %cst_35 = arith.constant 1.250000e-01 : f32
    %85 = vector.broadcast %cst_35 : f32 to vector<1x512xf32>
    %86 = arith.mulf %84, %85 : vector<1x512xf32>
    %87 = arith.mulf %81, %81 : vector<1x512xf32>
    %88 = arith.subf %86, %87 : vector<1x512xf32>
    %cst_36 = arith.constant 9.99999974E-6 : f32
    %89 = vector.broadcast %cst_36 : f32 to vector<1x512xf32>
    %90 = arith.addf %88, %89 : vector<1x512xf32>
    %91 = math.rsqrt %90 : vector<1x512xf32>
    %92 = arith.mulf %76, %91 : vector<1x512xf32>
    %93 = arith.mulf %81, %92 : vector<1x512xf32>
    %94 = arith.subf %77, %93 : vector<1x512xf32>
    %95 = vector.broadcast %92 : vector<1x512xf32> to vector<8x512xf32>
    %96 = arith.mulf %75, %95 : vector<8x512xf32>
    %97 = vector.broadcast %94 : vector<1x512xf32> to vector<8x512xf32>
    %98 = arith.addf %96, %97 : vector<8x512xf32>
    %cst_37 = arith.constant 2.000000e-01 : f32
    %99 = vector.broadcast %cst_37 : f32 to vector<8x512xf32>
    %100 = arith.mulf %99, %98 : vector<8x512xf32>
    %101 = arith.maximumf %98, %100 : vector<8x512xf32>
    %102 = arith.truncf %101 : vector<8x512xf32> to vector<8x512xbf16>
    %c2_i32_38 = arith.constant 2 : i32
    %103 = tpu.memref_slice %arg15[%c2_i32_38] : memref<5x!tpu.dma_semaphore, #tpu.memory_space<semaphore_mem>> -> memref<1x!tpu.dma_semaphore, #tpu.memory_space<semaphore_mem>>
    %104 = tpu.memref_squeeze %103 : memref<1x!tpu.dma_semaphore, #tpu.memory_space<semaphore_mem>> -> memref<!tpu.dma_semaphore, #tpu.memory_space<semaphore_mem>>
    tpu.wait_dma2 semaphore(%104 : memref<!tpu.dma_semaphore, #tpu.memory_space<semaphore_mem>>) src(%arg6 : memref<512x256xbf16, #tpu.memory_space<any>>) dst(%arg12 : memref<512x256xbf16, #tpu.memory_space<vmem>>)
    %c0_39 = arith.constant 0 : index
    %c0_40 = arith.constant 0 : index
    %105 = vector.load %arg12[%c0_39, %c0_40] : memref<512x256xbf16, #tpu.memory_space<vmem>>, vector<512x256xbf16>
    %cst_41 = arith.constant dense<0.000000e+00> : vector<8x256xf32>
    %106 = tpu.matmul %102, %105, %cst_41 {dimension_numbers = #tpu.dot_dimension_numbers<[1], [0], [0], [1], [0, 0, 1, 1], [], []>} : vector<8x512xbf16>, vector<512x256xbf16>, vector<8x256xf32> -> vector<8x256xf32>
    %c0_42 = arith.constant 0 : index
    %c2560 = arith.constant 2560 : index
    %107 = vector.load %arg2[%c0_42, %c2560] : memref<2x2944xf32, #tpu.memory_space<vmem>>, vector<1x256xf32>
    %c1_43 = arith.constant 1 : index
    %c2560_44 = arith.constant 2560 : index
    %108 = vector.load %arg2[%c1_43, %c2560_44] : memref<2x2944xf32, #tpu.memory_space<vmem>>, vector<1x256xf32>
    %cst_45 = arith.constant dense<0.000000e+00> : vector<256xf32>
    %109 = vector.multi_reduction <add>, %106, %cst_45 [0] : vector<8x256xf32> to vector<256xf32>
    %110 = vector.shape_cast %109 : vector<256xf32> to vector<1x256xf32>
    %cst_46 = arith.constant 1.250000e-01 : f32
    %111 = vector.broadcast %cst_46 : f32 to vector<1x256xf32>
    %112 = arith.mulf %110, %111 : vector<1x256xf32>
    %113 = arith.mulf %106, %106 : vector<8x256xf32>
    %cst_47 = arith.constant dense<0.000000e+00> : vector<256xf32>
    %114 = vector.multi_reduction <add>, %113, %cst_47 [0] : vector<8x256xf32> to vector<256xf32>
    %115 = vector.shape_cast %114 : vector<256xf32> to vector<1x256xf32>
    %cst_48 = arith.constant 1.250000e-01 : f32
    %116 = vector.broadcast %cst_48 : f32 to vector<1x256xf32>
    %117 = arith.mulf %115, %116 : vector<1x256xf32>
    %118 = arith.mulf %112, %112 : vector<1x256xf32>
    %119 = arith.subf %117, %118 : vector<1x256xf32>
    %cst_49 = arith.constant 9.99999974E-6 : f32
    %120 = vector.broadcast %cst_49 : f32 to vector<1x256xf32>
    %121 = arith.addf %119, %120 : vector<1x256xf32>
    %122 = math.rsqrt %121 : vector<1x256xf32>
    %123 = arith.mulf %107, %122 : vector<1x256xf32>
    %124 = arith.mulf %112, %123 : vector<1x256xf32>
    %125 = arith.subf %108, %124 : vector<1x256xf32>
    %126 = vector.broadcast %123 : vector<1x256xf32> to vector<8x256xf32>
    %127 = arith.mulf %106, %126 : vector<8x256xf32>
    %128 = vector.broadcast %125 : vector<1x256xf32> to vector<8x256xf32>
    %129 = arith.addf %127, %128 : vector<8x256xf32>
    %cst_50 = arith.constant 2.000000e-01 : f32
    %130 = vector.broadcast %cst_50 : f32 to vector<8x256xf32>
    %131 = arith.mulf %130, %129 : vector<8x256xf32>
    %132 = arith.maximumf %129, %131 : vector<8x256xf32>
    %133 = arith.truncf %132 : vector<8x256xf32> to vector<8x256xbf16>
    %c3_i32_51 = arith.constant 3 : i32
    %134 = tpu.memref_slice %arg15[%c3_i32_51] : memref<5x!tpu.dma_semaphore, #tpu.memory_space<semaphore_mem>> -> memref<1x!tpu.dma_semaphore, #tpu.memory_space<semaphore_mem>>
    %135 = tpu.memref_squeeze %134 : memref<1x!tpu.dma_semaphore, #tpu.memory_space<semaphore_mem>> -> memref<!tpu.dma_semaphore, #tpu.memory_space<semaphore_mem>>
    tpu.wait_dma2 semaphore(%135 : memref<!tpu.dma_semaphore, #tpu.memory_space<semaphore_mem>>) src(%arg7 : memref<256x128xbf16, #tpu.memory_space<any>>) dst(%arg13 : memref<256x128xbf16, #tpu.memory_space<vmem>>)
    %c0_52 = arith.constant 0 : index
    %c0_53 = arith.constant 0 : index
    %136 = vector.load %arg13[%c0_52, %c0_53] : memref<256x128xbf16, #tpu.memory_space<vmem>>, vector<256x128xbf16>
    %cst_54 = arith.constant dense<0.000000e+00> : vector<8x128xf32>
    %137 = tpu.matmul %133, %136, %cst_54 {dimension_numbers = #tpu.dot_dimension_numbers<[1], [0], [0], [1], [0, 0, 1, 1], [], []>} : vector<8x256xbf16>, vector<256x128xbf16>, vector<8x128xf32> -> vector<8x128xf32>
    %c0_55 = arith.constant 0 : index
    %c2816 = arith.constant 2816 : index
    %138 = vector.load %arg2[%c0_55, %c2816] : memref<2x2944xf32, #tpu.memory_space<vmem>>, vector<1x128xf32>
    %c1_56 = arith.constant 1 : index
    %c2816_57 = arith.constant 2816 : index
    %139 = vector.load %arg2[%c1_56, %c2816_57] : memref<2x2944xf32, #tpu.memory_space<vmem>>, vector<1x128xf32>
    %cst_58 = arith.constant dense<0.000000e+00> : vector<128xf32>
    %140 = vector.multi_reduction <add>, %137, %cst_58 [0] : vector<8x128xf32> to vector<128xf32>
    %141 = vector.shape_cast %140 : vector<128xf32> to vector<1x128xf32>
    %cst_59 = arith.constant 1.250000e-01 : f32
    %142 = vector.broadcast %cst_59 : f32 to vector<1x128xf32>
    %143 = arith.mulf %141, %142 : vector<1x128xf32>
    %144 = arith.mulf %137, %137 : vector<8x128xf32>
    %cst_60 = arith.constant dense<0.000000e+00> : vector<128xf32>
    %145 = vector.multi_reduction <add>, %144, %cst_60 [0] : vector<8x128xf32> to vector<128xf32>
    %146 = vector.shape_cast %145 : vector<128xf32> to vector<1x128xf32>
    %cst_61 = arith.constant 1.250000e-01 : f32
    %147 = vector.broadcast %cst_61 : f32 to vector<1x128xf32>
    %148 = arith.mulf %146, %147 : vector<1x128xf32>
    %149 = arith.mulf %143, %143 : vector<1x128xf32>
    %150 = arith.subf %148, %149 : vector<1x128xf32>
    %cst_62 = arith.constant 9.99999974E-6 : f32
    %151 = vector.broadcast %cst_62 : f32 to vector<1x128xf32>
    %152 = arith.addf %150, %151 : vector<1x128xf32>
    %153 = math.rsqrt %152 : vector<1x128xf32>
    %154 = arith.mulf %138, %153 : vector<1x128xf32>
    %155 = arith.mulf %143, %154 : vector<1x128xf32>
    %156 = arith.subf %139, %155 : vector<1x128xf32>
    %157 = vector.broadcast %154 : vector<1x128xf32> to vector<8x128xf32>
    %158 = arith.mulf %137, %157 : vector<8x128xf32>
    %159 = vector.broadcast %156 : vector<1x128xf32> to vector<8x128xf32>
    %160 = arith.addf %158, %159 : vector<8x128xf32>
    %cst_63 = arith.constant 2.000000e-01 : f32
    %161 = vector.broadcast %cst_63 : f32 to vector<8x128xf32>
    %162 = arith.mulf %161, %160 : vector<8x128xf32>
    %163 = arith.maximumf %160, %162 : vector<8x128xf32>
    %164 = arith.truncf %163 : vector<8x128xf32> to vector<8x128xbf16>
    %c4_i32_64 = arith.constant 4 : i32
    %165 = tpu.memref_slice %arg15[%c4_i32_64] : memref<5x!tpu.dma_semaphore, #tpu.memory_space<semaphore_mem>> -> memref<1x!tpu.dma_semaphore, #tpu.memory_space<semaphore_mem>>
    %166 = tpu.memref_squeeze %165 : memref<1x!tpu.dma_semaphore, #tpu.memory_space<semaphore_mem>> -> memref<!tpu.dma_semaphore, #tpu.memory_space<semaphore_mem>>
    tpu.wait_dma2 semaphore(%166 : memref<!tpu.dma_semaphore, #tpu.memory_space<semaphore_mem>>) src(%arg8 : memref<128x128xbf16, #tpu.memory_space<any>>) dst(%arg14 : memref<128x128xbf16, #tpu.memory_space<vmem>>)
    %c0_65 = arith.constant 0 : index
    %c0_66 = arith.constant 0 : index
    %167 = vector.load %arg14[%c0_65, %c0_66] : memref<128x128xbf16, #tpu.memory_space<vmem>>, vector<128x128xbf16>
    %cst_67 = arith.constant dense<0.000000e+00> : vector<8x128xf32>
    %168 = tpu.matmul %164, %167, %cst_67 {dimension_numbers = #tpu.dot_dimension_numbers<[1], [0], [0], [1], [0, 0, 1, 1], [], []>} : vector<8x128xbf16>, vector<128x128xbf16>, vector<8x128xf32> -> vector<8x128xf32>
    %c0_68 = arith.constant 0 : index
    %c0_69 = arith.constant 0 : index
    %169 = vector.load %arg3[%c0_68, %c0_69] : memref<1x128xf32, #tpu.memory_space<vmem>>, vector<1x128xf32>
    %170 = vector.broadcast %169 : vector<1x128xf32> to vector<8x128xf32>
    %171 = arith.addf %168, %170 : vector<8x128xf32>
    %c0_70 = arith.constant 0 : index
    %c0_71 = arith.constant 0 : index
    %172 = vector.load %arg9[%c0_70, %c0_71] : memref<8x128xf32, #tpu.memory_space<vmem>>, vector<8x128xf32>
    tpu.vector_store %arg9[%c0_70, %c0_71], %171 {strides = array<i32>} : memref<8x128xf32, #tpu.memory_space<vmem>>, vector<8x128xf32>,
    return
  }
}

</mosaic_0001>

<llo_original>
// kernel: tpu_custom_call.1
$region0: #{tpu_custom_call.1}
  #allocation0 [shape = 'u32[]', space=smem, size = 0x4, offset = 0x4, fixed_abs, tag = 'smem constant byte address 0x4 - core index']
  #allocation1 [shape = 'u32[144,128]{1,0:T(1,128)}', space=vmem, size = 0x12000, scoped, tag = 'internal scratch']
  #allocation2 [shape = 'bf16[1024,1024]{1,0:T(8,128)(2,1)}', space=vmem, size = 0x200000, scoped, tag = 'scratch operand']
  #allocation3 [shape = 'bf16[1024,512]{1,0:T(8,128)(2,1)}', space=vmem, size = 0x100000, scoped, tag = 'scratch operand']
  #allocation4 [shape = 'bf16[512,256]{1,0:T(8,128)(2,1)}', space=vmem, size = 0x40000, scoped, tag = 'scratch operand']
  #allocation5 [shape = 'bf16[256,128]{1,0:T(8,128)(2,1)}', space=vmem, size = 0x10000, scoped, tag = 'scratch operand']
  #allocation6 [shape = 'bf16[128,128]{1,0:T(8,128)(2,1)}', space=vmem, size = 0x8000, scoped, tag = 'scratch operand']
  #allocation7 [shape = 's32[5]{0}', space=sflag, size = 0x14, scoped, tag = 'scratch operand']
  #allocation17 [shape = 's32[]', space=sflag, size = 0x4, offset = 0, fixed_abs, tag = 'sflag constant byte address 0x0 - dummy sync flag']
  #allocation18 [shape = 's32[]', space=sflag, size = 0x4, offset = 0, fixed_abs, tag = 'sflag constant byte address 0x0 - dummy sync flag']
  #allocation19 [shape = 'u32[]', space=smem, size = 0x4, offset = 0x44, fixed_abs, tag = 'smem constant byte address 0x44 - assertion arg 0']
  #allocation20 [shape = 'u32[]', space=smem, size = 0x4, offset = 0x48, fixed_abs, tag = 'smem constant byte address 0x48 - assertion arg 1']
  #allocation21 [shape = 's32[]', space=sflag, size = 0x4, offset = 0, fixed_abs, tag = 'sflag constant byte address 0x0 - dummy sync flag']
  #allocation22 [shape = 's32[]', space=sflag, size = 0x4, offset = 0, fixed_abs, tag = 'sflag constant byte address 0x0 - dummy sync flag']
  #allocation23 [shape = 's32[]', space=sflag, size = 0x4, offset = 0, fixed_abs, tag = 'sflag constant byte address 0x0 - dummy sync flag']
  #allocation24 [shape = 's32[]', space=sflag, size = 0x4, offset = 0, fixed_abs, tag = 'sflag constant byte address 0x0 - dummy sync flag']
  #allocation25 [shape = 's32[]', space=sflag, size = 0x4, offset = 0, fixed_abs, tag = 'sflag constant byte address 0x0 - dummy sync flag']
  #allocation26 [shape = 's32[]', space=sflag, size = 0x4, offset = 0, fixed_abs, tag = 'sflag constant byte address 0x0 - dummy sync flag']
  #allocation27 [shape = 's32[]', space=sflag, size = 0x4, offset = 0, fixed_abs, tag = 'sflag constant byte address 0x0 - dummy sync flag']
  #allocation28 [shape = 's32[]', space=sflag, size = 0x4, offset = 0, fixed_abs, tag = 'sflag constant byte address 0x0 - dummy sync flag']
  %s0 = inlined_call_operand.hbm [shape: f32[8,32], index: 0, kind: input, shape index: {}]
  %s1 = inlined_call_operand.hbm [shape: bf16[32,1024], index: 1, kind: input, shape index: {}]
  %s2 = inlined_call_operand.hbm [shape: f32[2,2944], index: 2, kind: input, shape index: {}]
  %s3 = inlined_call_operand.hbm [shape: f32[1,128], index: 3, kind: input, shape index: {}]
  %s4 = inlined_call_operand.hbm [shape: bf16[1024,1024], index: 4, kind: input, shape index: {}]
  %s5 = inlined_call_operand.hbm [shape: bf16[1024,512], index: 5, kind: input, shape index: {}]
  %s6 = inlined_call_operand.hbm [shape: bf16[512,256], index: 6, kind: input, shape index: {}]
  %s7 = inlined_call_operand.hbm [shape: bf16[256,128], index: 7, kind: input, shape index: {}]
  %s8 = inlined_call_operand.hbm [shape: bf16[128,128], index: 8, kind: input, shape index: {}]
  %s9 = inlined_call_operand.hbm [shape: f32[8,128], index: 9, kind: output, shape index: {}]
  %s10 = sld [smem:[#allocation0]]
  $region62: #{tpu_custom_call.1} parent=0
    _
  %s12 = ssub.s32 1, %s10
  %s13 = scalar_select 0, %s12, %s10
  $region1: #{tpu_custom_call.1} parent=0
    #allocation8 [shape = 'u8[4096]{0}', space=vmem, size = 0x1000, scoped, tag = 'input window, operand 0, single buffered']
    #allocation9 [shape = 's32[1]{0}', space=sflag, size = 0x4, scoped, tag = 'scoped memory for tpu_custom_call.1']
    #allocation10 [shape = 's32[1]{0}', space=sflag, size = 0x4, scoped, tag = 'scoped memory for tpu_custom_call.1']
    #allocation11 [shape = 'u8[65536]{0}', space=vmem, size = 0x10000, scoped, tag = 'input window, operand 1, single buffered']
    #allocation12 [shape = 's32[1]{0}', space=sflag, size = 0x4, scoped, tag = 'scoped memory for tpu_custom_call.1']
    #allocation13 [shape = 'u8[23552]{0}', space=vmem, size = 0x5c00, scoped, tag = 'input window, operand 2, single buffered']
    #allocation14 [shape = 'u8[512]{0}', space=vmem, size = 0x400, scoped, tag = 'input window, operand 3, single buffered']
    #allocation15 [shape = 's32[1]{0}', space=sflag, size = 0x4, scoped, tag = 'scoped memory for tpu_custom_call.1']
    #allocation16 [shape = 'u8[4096]{0}', space=vmem, size = 0x1000, scoped, tag = 'output window, operand 0, single buffered']
    %14 = vsyncpa [#allocation9], 0
    %15 = vsyncpa [#allocation12], 0
    %16 = vsyncpa [#allocation15], 0
    %17 = vsyncpa [#allocation10], 0
    // Predicated region
    $region2: #{tpu_custom_call.1} parent=1 // pred_check
      _
    $region3: #{tpu_custom_call.1} parent=1 // pred_check_branch
      %19 = sbr.rel (0) target = $region5
    $region4: #{tpu_custom_call.1} parent=1 // pred_region
      %s21 = ssub.s32 128, 128
      %22 = vsyncadd [#allocation9], %s21
      %s24 = sshll.u32 [#allocation8], 4
      %s25 = int_to_ptr.vmem [resolvable:$true] %s24
      %27 = dma.hbm_to_vmem [thread:$0]  %s0, 128, %s25, [#allocation9]
    $region5: #{tpu_custom_call.1} parent=1 // pred_fallthru
      _
    // Predicated region
    $region6: #{tpu_custom_call.1} parent=1 // pred_check
      _
    $region7: #{tpu_custom_call.1} parent=1 // pred_check_branch
      %29 = sbr.rel (0) target = $region9
    $region8: #{tpu_custom_call.1} parent=1 // pred_region
      %s31 = ssub.s32 2048, 2048
      %32 = vsyncadd [#allocation12], %s31
      %s33 = sshll.u32 [#allocation11], 4
      %s34 = int_to_ptr.vmem [resolvable:$true] %s33
      %39 = dma.hbm_to_vmem [thread:$0]  %s1, 2048, %s34, [#allocation12], 512, 512, 32
    $region9: #{tpu_custom_call.1} parent=1 // pred_fallthru
      _
    // Predicated region
    $region10: #{tpu_custom_call.1} parent=1 // pred_check
      _
    $region11: #{tpu_custom_call.1} parent=1 // pred_check_branch
      %41 = sbr.rel (0) target = $region13
    $region12: #{tpu_custom_call.1} parent=1 // pred_region
      %s43 = ssub.s32 736, 736
      %44 = vsyncadd [#allocation12], %s43
      %s46 = sshll.u32 [#allocation13], 4
      %s47 = int_to_ptr.vmem [resolvable:$true] %s46
      %49 = dma.hbm_to_vmem [thread:$0]  %s2, 736, %s47, [#allocation12]
    $region13: #{tpu_custom_call.1} parent=1 // pred_fallthru
      _
    // Predicated region
    $region14: #{tpu_custom_call.1} parent=1 // pred_check
      _
    $region15: #{tpu_custom_call.1} parent=1 // pred_check_branch
      %51 = sbr.rel (0) target = $region17
    $region16: #{tpu_custom_call.1} parent=1 // pred_region
      %s53 = ssub.s32 16, 16
      %54 = vsyncadd [#allocation15], %s53
      %s56 = sshll.u32 [#allocation14], 4
      %s57 = int_to_ptr.vmem [resolvable:$true] %s56
      %59 = dma.hbm_to_vmem [thread:$0]  %s3, 16, %s57, [#allocation15]
    $region17: #{tpu_custom_call.1} parent=1 // pred_fallthru
      _
    // Predicated region
    $region18: #{tpu_custom_call.1} parent=1 // pred_check
      _
    $region19: #{tpu_custom_call.1} parent=1 // pred_check_branch
      %61 = sbr.rel (0) target = $region21
    $region20: #{tpu_custom_call.1} parent=1 // pred_region
      %62 = dma.done [#allocation9], 128
    $region21: #{tpu_custom_call.1} parent=1 // pred_fallthru
      _
    // Predicated region
    $region22: #{tpu_custom_call.1} parent=1 // pred_check
      _
    $region23: #{tpu_custom_call.1} parent=1 // pred_check_branch
      %64 = sbr.rel (0) target = $region25
    $region24: #{tpu_custom_call.1} parent=1 // pred_region
      %65 = dma.done [#allocation12], 2048
    $region25: #{tpu_custom_call.1} parent=1 // pred_fallthru
      _
    // Predicated region
    $region26: #{tpu_custom_call.1} parent=1 // pred_check
      _
    $region27: #{tpu_custom_call.1} parent=1 // pred_check_branch
      %67 = sbr.rel (0) target = $region29
    $region28: #{tpu_custom_call.1} parent=1 // pred_region
      %68 = dma.done [#allocation12], 736
    $region29: #{tpu_custom_call.1} parent=1 // pred_fallthru
      _
    // Predicated region
    $region30: #{tpu_custom_call.1} parent=1 // pred_check
      _
    $region31: #{tpu_custom_call.1} parent=1 // pred_check_branch
      %70 = sbr.rel (0) target = $region33
    $region32: #{tpu_custom_call.1} parent=1 // pred_region
      %71 = dma.done [#allocation15], 16
    $region33: #{tpu_custom_call.1} parent=1 // pred_fallthru
      _
    // Predicated region
    $region34: #{tpu_custom_call.1} parent=1 // pred_check
      _
    $region35: #{tpu_custom_call.1} parent=1 // pred_check_branch
      %74 = sbr.rel target = $region37
    $region36: #{tpu_custom_call.1} parent=1 // pred_region
      %75 = sst [smem:[#allocation19]] [#allocation18]
      %76 = sst [smem:[#allocation20]] [#allocation17]
    $region37: #{tpu_custom_call.1} parent=1 // pred_fallthru
      _
    %78 = shalt.err (0)
    %s80 = sshll.u32 [#allocation2], 4
    %s81 = int_to_ptr.vmem [resolvable:$true] %s80
    %83 = dma.hbm_to_vmem [thread:$0]  %s4, 65536, %s81, [#allocation7]
    %s84 = scalar_lea.sflag [#allocation7], 1
    // Predicated region
    $region38: #{tpu_custom_call.1} parent=1 // pred_check
      _
    $region39: #{tpu_custom_call.1} parent=1 // pred_check_branch
      %86 = sbr.rel target = $region41
    $region40: #{tpu_custom_call.1} parent=1 // pred_region
      %87 = sst [smem:[#allocation19]] [#allocation22]
      %88 = sst [smem:[#allocation20]] [#allocation21]
    $region41: #{tpu_custom_call.1} parent=1 // pred_fallthru
      _
    %90 = shalt.err (0)
    %s92 = sshll.u32 [#allocation3], 4
    %s93 = int_to_ptr.vmem [resolvable:$true] %s92
    %95 = dma.hbm_to_vmem [thread:$0]  %s5, 32768, %s93, %s84
    %s96 = scalar_lea.sflag [#allocation7], 2
    // Predicated region
    $region42: #{tpu_custom_call.1} parent=1 // pred_check
      _
    $region43: #{tpu_custom_call.1} parent=1 // pred_check_branch
      %98 = sbr.rel target = $region45
    $region44: #{tpu_custom_call.1} parent=1 // pred_region
      %99 = sst [smem:[#allocation19]] [#allocation24]
      %100 = sst [smem:[#allocation20]] [#allocation23]
    $region45: #{tpu_custom_call.1} parent=1 // pred_fallthru
      _
    %102 = shalt.err (0)
    %s104 = sshll.u32 [#allocation4], 4
    %s105 = int_to_ptr.vmem [resolvable:$true] %s104
    %107 = dma.hbm_to_vmem [thread:$0]  %s6, 8192, %s105, %s96
    %s108 = scalar_lea.sflag [#allocation7], 3
    // Predicated region
    $region46: #{tpu_custom_call.1} parent=1 // pred_check
      _
    $region47: #{tpu_custom_call.1} parent=1 // pred_check_branch
      %110 = sbr.rel target = $region49
    $region48: #{tpu_custom_call.1} parent=1 // pred_region
      %111 = sst [smem:[#allocation19]] [#allocation26]
      %112 = sst [smem:[#allocation20]] [#allocation25]
    $region49: #{tpu_custom_call.1} parent=1 // pred_fallthru
      _
    %114 = shalt.err (0)
    %s116 = sshll.u32 [#allocation5], 4
    %s117 = int_to_ptr.vmem [resolvable:$true] %s116
    %119 = dma.hbm_to_vmem [thread:$0]  %s7, 2048, %s117, %s108
    %s120 = scalar_lea.sflag [#allocation7], 4
    // Predicated region
    $region50: #{tpu_custom_call.1} parent=1 // pred_check
      _
    $region51: #{tpu_custom_call.1} parent=1 // pred_check_branch
      %122 = sbr.rel target = $region53
    $region52: #{tpu_custom_call.1} parent=1 // pred_region
      %123 = sst [smem:[#allocation19]] [#allocation28]
      %124 = sst [smem:[#allocation20]] [#allocation27]
    $region53: #{tpu_custom_call.1} parent=1 // pred_fallthru
      _
    %126 = shalt.err (0)
    %s128 = sshll.u32 [#allocation6], 4
    %s129 = int_to_ptr.vmem [resolvable:$true] %s128
    %131 = dma.hbm_to_vmem [thread:$0]  %s8, 1024, %s129, %s120
    %v132 = vld [vmem:[#allocation8] sm:$0xff]
    %v133 = vpack.c.bf16 %v132, %v132
    %v134 = vld [vmem:[#allocation11] sm:$0xff]
    %v135 = vld [vmem:[#allocation11 + $0x8] sm:$0xff]
    %v136 = vld [vmem:[#allocation11 + $0x10] sm:$0xff]
    %v137 = vld [vmem:[#allocation11 + $0x18] sm:$0xff]
    %v138 = vld [vmem:[#allocation11 + $0x20] sm:$0xff]
    %v139 = vld [vmem:[#allocation11 + $0x28] sm:$0xff]
    %v140 = vld [vmem:[#allocation11 + $0x30] sm:$0xff]
    %v141 = vld [vmem:[#allocation11 + $0x38] sm:$0xff]
    %v142 = vld [vmem:[#allocation11 + $0x40] sm:$0xff]
    %v143 = vld [vmem:[#allocation11 + $0x48] sm:$0xff]
    %v144 = vld [vmem:[#allocation11 + $0x50] sm:$0xff]
    %v145 = vld [vmem:[#allocation11 + $0x58] sm:$0xff]
    %v146 = vld [vmem:[#allocation11 + $0x60] sm:$0xff]
    %v147 = vld [vmem:[#allocation11 + $0x68] sm:$0xff]
    %v148 = vld [vmem:[#allocation11 + $0x70] sm:$0xff]
    %v149 = vld [vmem:[#allocation11 + $0x78] sm:$0xff]
    %v166 = vunpack.c.l.b16 %v134
    %v167 = vunpack.c.h.b16 %v134
    %v168 = vunpack.c.l.b16 %v135
    %v169 = vunpack.c.h.b16 %v135
    %v170 = vunpack.c.l.b16 %v136
    %v171 = vunpack.c.h.b16 %v136
    %v172 = vunpack.c.l.b16 %v137
    %v173 = vunpack.c.h.b16 %v137
    %v174 = vunpack.c.l.b16 %v138
    %v175 = vunpack.c.h.b16 %v138
    %v176 = vunpack.c.l.b16 %v139
    %v177 = vunpack.c.h.b16 %v139
    %v178 = vunpack.c.l.b16 %v140
    %v179 = vunpack.c.h.b16 %v140
    %v180 = vunpack.c.l.b16 %v141
    %v181 = vunpack.c.h.b16 %v141
    %v182 = vunpack.c.l.b16 %v142
    %v183 = vunpack.c.h.b16 %v142
    %v184 = vunpack.c.l.b16 %v143
    %v185 = vunpack.c.h.b16 %v143
    %v186 = vunpack.c.l.b16 %v144
    %v187 = vunpack.c.h.b16 %v144
    %v188 = vunpack.c.l.b16 %v145
    %v189 = vunpack.c.h.b16 %v145
    %v190 = vunpack.c.l.b16 %v146
    %v191 = vunpack.c.h.b16 %v146
    %v192 = vunpack.c.l.b16 %v147
    %v193 = vunpack.c.h.b16 %v147
    %v194 = vunpack.c.l.b16 %v148
    %v195 = vunpack.c.h.b16 %v148
    %v196 = vunpack.c.l.b16 %v149
    %v197 = vunpack.c.h.b16 %v149
    %v198 = vpack.c.b16 %v174, %v166
    %v199 = vpack.c.b16 %v175, %v167
    %v200 = vpack.c.b16 %v176, %v168
    %v201 = vpack.c.b16 %v177, %v169
    %v202 = vpack.c.b16 %v178, %v170
    %v203 = vpack.c.b16 %v179, %v171
    %v204 = vpack.c.b16 %v180, %v172
    %v205 = vpack.c.b16 %v181, %v173
    %v206 = vpack.c.b16 %v190, %v182
    %v207 = vpack.c.b16 %v191, %v183
    %v208 = vpack.c.b16 %v192, %v184
    %v209 = vpack.c.b16 %v193, %v185
    %v210 = vpack.c.b16 %v194, %v186
    %v211 = vpack.c.b16 %v195, %v187
    %v212 = vpack.c.b16 %v196, %v188
    %v213 = vpack.c.b16 %v197, %v189
    %vm230 = vcmask 261120
    %v232 = vsel %vm230, %v133, 0
    %234 = vmatprep.subr.bf16.mxu0 0
    %235 = vmatpush1.bf16.msra.mxu0 0
    %236 = vmatprep.subr.bf16.mxu0 0
    %237 = vmatpush1.bf16.msra.mxu0 0
    %238 = vmatprep.subr.bf16.mxu0 0
    %239 = vmatpush1.bf16.msra.mxu0 0
    %240 = vmatprep.subr.bf16.mxu0 0
    %241 = vmatpush1.bf16.msra.mxu0 0
    %242 = vmatprep.subr.bf16.mxu0 0
    %243 = vmatpush1.bf16.msra.mxu0 0
    %244 = vmatprep.subr.bf16.mxu0 0
    %245 = vmatpush1.bf16.msra.mxu0 0
    %246 = vmatprep.subr.bf16.mxu0 %v207
    %247 = vmatpush1.bf16.msra.mxu0 %v206
    %248 = vmatprep.subr.bf16.mxu0 %v199
    %249 = vmatpush1.bf16.msra.mxu0 %v198
    %250 = vmatprep.subr.bf16.mxu0 0
    %251 = vmatpush2.bf16.msra.mxu0 0
    %252 = vmatprep.subr.bf16.mxu0 0
    %253 = vmatpush2.bf16.msra.mxu0 0
    %254 = vmatprep.subr.bf16.mxu0 0
    %255 = vmatpush2.bf16.msra.mxu0 0
    %256 = vmatprep.subr.bf16.mxu0 0
    %257 = vmatpush2.bf16.msra.mxu0 0
    %258 = vmatprep.subr.bf16.mxu0 0
    %259 = vmatpush2.bf16.msra.mxu0 0
    %260 = vmatprep.subr.bf16.mxu0 0
    %261 = vmatpush2.bf16.msra.mxu0 0
    %262 = vmatprep.subr.bf16.mxu0 0
    %263 = vmatpush2.bf16.msra.mxu0 0
    %264 = vmatprep.subr.bf16.mxu0 0
    %265 = vmatpush2.bf16.msra.mxu0 0
    %266 = vmatprep.mubr.bf16.mxu0 0
    %267 = vmatmul.mubr.bf16.gmra.mxu0 %v232
    %v268 = vpop.f32.mrf.mxu0
    %v269 = vadd.f32 0.0, %v268
    %v270 = vpop.f32.mrf.mxu0
    %v271 = vadd.f32 0.0, %v270
    %v272 = vpop.f32.mrf.mxu0
    %v273 = vpop.f32.mrf.mxu0
    %274 = vdwg.mxu0
    %275 = vmatprep.subr.bf16.mxu0 0
    %276 = vmatpush1.bf16.msra.mxu0 0
    %277 = vmatprep.subr.bf16.mxu0 0
    %278 = vmatpush1.bf16.msra.mxu0 0
    %279 = vmatprep.subr.bf16.mxu0 0
    %280 = vmatpush1.bf16.msra.mxu0 0
    %281 = vmatprep.subr.bf16.mxu0 0
    %282 = vmatpush1.bf16.msra.mxu0 0
    %283 = vmatprep.subr.bf16.mxu0 0
    %284 = vmatpush1.bf16.msra.mxu0 0
    %285 = vmatprep.subr.bf16.mxu0 0
    %286 = vmatpush1.bf16.msra.mxu0 0
    %287 = vmatprep.subr.bf16.mxu0 %v209
    %288 = vmatpush1.bf16.msra.mxu0 %v208
    %289 = vmatprep.subr.bf16.mxu0 %v201
    %290 = vmatpush1.bf16.msra.mxu0 %v200
    %291 = vmatprep.subr.bf16.mxu0 0
    %292 = vmatpush2.bf16.msra.mxu0 0
    %293 = vmatprep.subr.bf16.mxu0 0
    %294 = vmatpush2.bf16.msra.mxu0 0
    %295 = vmatprep.subr.bf16.mxu0 0
    %296 = vmatpush2.bf16.msra.mxu0 0
    %297 = vmatprep.subr.bf16.mxu0 0
    %298 = vmatpush2.bf16.msra.mxu0 0
    %299 = vmatprep.subr.bf16.mxu0 0
    %300 = vmatpush2.bf16.msra.mxu0 0
    %301 = vmatprep.subr.bf16.mxu0 0
    %302 = vmatpush2.bf16.msra.mxu0 0
    %303 = vmatprep.subr.bf16.mxu0 0
    %304 = vmatpush2.bf16.msra.mxu0 0
    %305 = vmatprep.subr.bf16.mxu0 0
    %306 = vmatpush2.bf16.msra.mxu0 0
    %307 = vmatprep.mubr.bf16.mxu0 0
    %308 = vmatmul.mubr.bf16.gmra.mxu0 %v232
    %v309 = vpop.f32.mrf.mxu0
    %v310 = vadd.f32 0.0, %v309
    %v311 = vpop.f32.mrf.mxu0
    %v312 = vadd.f32 0.0, %v311
    %v313 = vpop.f32.mrf.mxu0
    %v314 = vpop.f32.mrf.mxu0
    %315 = vdwg.mxu0
    %316 = vmatprep.subr.bf16.mxu0 0
    %317 = vmatpush1.bf16.msra.mxu0 0
    %318 = vmatprep.subr.bf16.mxu0 0
    %319 = vmatpush1.bf16.msra.mxu0 0
    %320 = vmatprep.subr.bf16.mxu0 0
    %321 = vmatpush1.bf16.msra.mxu0 0
    %322 = vmatprep.subr.bf16.mxu0 0
    %323 = vmatpush1.bf16.msra.mxu0 0
    %324 = vmatprep.subr.bf16.mxu0 0
    %325 = vmatpush1.bf16.msra.mxu0 0
    %326 = vmatprep.subr.bf16.mxu0 0
    %327 = vmatpush1.bf16.msra.mxu0 0
    %328 = vmatprep.subr.bf16.mxu0 %v211
    %329 = vmatpush1.bf16.msra.mxu0 %v210
    %330 = vmatprep.subr.bf16.mxu0 %v203
    %331 = vmatpush1.bf16.msra.mxu0 %v202
    %332 = vmatprep.subr.bf16.mxu0 0
    %333 = vmatpush2.bf16.msra.mxu0 0
    %334 = vmatprep.subr.bf16.mxu0 0
    %335 = vmatpush2.bf16.msra.mxu0 0
    %336 = vmatprep.subr.bf16.mxu0 0
    %337 = vmatpush2.bf16.msra.mxu0 0
    %338 = vmatprep.subr.bf16.mxu0 0
    %339 = vmatpush2.bf16.msra.mxu0 0
    %340 = vmatprep.subr.bf16.mxu0 0
    %341 = vmatpush2.bf16.msra.mxu0 0
    %342 = vmatprep.subr.bf16.mxu0 0
    %343 = vmatpush2.bf16.msra.mxu0 0
    %344 = vmatprep.subr.bf16.mxu0 0
    %345 = vmatpush2.bf16.msra.mxu0 0
    %346 = vmatprep.subr.bf16.mxu0 0
    %347 = vmatpush2.bf16.msra.mxu0 0
    %348 = vmatprep.mubr.bf16.mxu0 0
    %349 = vmatmul.mubr.bf16.gmra.mxu0 %v232
    %v350 = vpop.f32.mrf.mxu0
    %v351 = vadd.f32 0.0, %v350
    %v352 = vpop.f32.mrf.mxu0
    %v353 = vadd.f32 0.0, %v352
    %v354 = vpop.f32.mrf.mxu0
    %v355 = vpop.f32.mrf.mxu0
    %356 = vdwg.mxu0
    %357 = vmatprep.subr.bf16.mxu0 0
    %358 = vmatpush1.bf16.msra.mxu0 0
    %359 = vmatprep.subr.bf16.mxu0 0
    %360 = vmatpush1.bf16.msra.mxu0 0
    %361 = vmatprep.subr.bf16.mxu0 0
    %362 = vmatpush1.bf16.msra.mxu0 0
    %363 = vmatprep.subr.bf16.mxu0 0
    %364 = vmatpush1.bf16.msra.mxu0 0
    %365 = vmatprep.subr.bf16.mxu0 0
    %366 = vmatpush1.bf16.msra.mxu0 0
    %367 = vmatprep.subr.bf16.mxu0 0
    %368 = vmatpush1.bf16.msra.mxu0 0
    %369 = vmatprep.subr.bf16.mxu0 %v213
    %370 = vmatpush1.bf16.msra.mxu0 %v212
    %371 = vmatprep.subr.bf16.mxu0 %v205
    %372 = vmatpush1.bf16.msra.mxu0 %v204
    %373 = vmatprep.subr.bf16.mxu0 0
    %374 = vmatpush2.bf16.msra.mxu0 0
    %375 = vmatprep.subr.bf16.mxu0 0
    %376 = vmatpush2.bf16.msra.mxu0 0
    %377 = vmatprep.subr.bf16.mxu0 0
    %378 = vmatpush2.bf16.msra.mxu0 0
    %379 = vmatprep.subr.bf16.mxu0 0
    %380 = vmatpush2.bf16.msra.mxu0 0
    %381 = vmatprep.subr.bf16.mxu0 0
    %382 = vmatpush2.bf16.msra.mxu0 0
    %383 = vmatprep.subr.bf16.mxu0 0
    %384 = vmatpush2.bf16.msra.mxu0 0
    %385 = vmatprep.subr.bf16.mxu0 0
    %386 = vmatpush2.bf16.msra.mxu0 0
    %387 = vmatprep.subr.bf16.mxu0 0
    %388 = vmatpush2.bf16.msra.mxu0 0
    %389 = vmatprep.mubr.bf16.mxu0 0
    %390 = vmatmul.mubr.bf16.gmra.mxu0 %v232
    %v391 = vpop.f32.mrf.mxu0
    %v392 = vadd.f32 0.0, %v391
    %v393 = vpop.f32.mrf.mxu0
    %v394 = vadd.f32 0.0, %v393
    %v395 = vpop.f32.mrf.mxu0
    %v396 = vpop.f32.mrf.mxu0
    %397 = vdwg.mxu0
    %v398 = vld [vmem:[#allocation13] ss:$2 sm:$0xff]
    %s399 = scalar_lea.vmem [#allocation13], 1
    %v400 = vld [vmem:[%s399] ss:$2 sm:$0xff]
    %v401 = vrot.slane %v269, 4
    %v402 = vadd.f32 %v269, %v401
    %v403 = vrot.slane %v402, 2
    %v404 = vadd.f32 %v402, %v403
    %v405 = vrot.slane %v404, 1
    %v406 = vadd.f32 %v404, %v405
    %v407 = vrot.slane %v271, 4
    %v408 = vadd.f32 %v271, %v407
    %v409 = vrot.slane %v408, 2
    %v410 = vadd.f32 %v408, %v409
    %v411 = vrot.slane %v410, 1
    %v412 = vadd.f32 %v410, %v411
    %v413 = vrot.slane %v310, 4
    %v414 = vadd.f32 %v310, %v413
    %v415 = vrot.slane %v414, 2
    %v416 = vadd.f32 %v414, %v415
    %v417 = vrot.slane %v416, 1
    %v418 = vadd.f32 %v416, %v417
    %v419 = vrot.slane %v312, 4
    %v420 = vadd.f32 %v312, %v419
    %v421 = vrot.slane %v420, 2
    %v422 = vadd.f32 %v420, %v421
    %v423 = vrot.slane %v422, 1
    %v424 = vadd.f32 %v422, %v423
    %v425 = vrot.slane %v351, 4
    %v426 = vadd.f32 %v351, %v425
    %v427 = vrot.slane %v426, 2
    %v428 = vadd.f32 %v426, %v427
    %v429 = vrot.slane %v428, 1
    %v430 = vadd.f32 %v428, %v429
    %v431 = vrot.slane %v353, 4
    %v432 = vadd.f32 %v353, %v431
    %v433 = vrot.slane %v432, 2
    %v434 = vadd.f32 %v432, %v433
    %v435 = vrot.slane %v434, 1
    %v436 = vadd.f32 %v434, %v435
    %v437 = vrot.slane %v392, 4
    %v438 = vadd.f32 %v392, %v437
    %v439 = vrot.slane %v438, 2
    %v440 = vadd.f32 %v438, %v439
    %v441 = vrot.slane %v440, 1
    %v442 = vadd.f32 %v440, %v441
    %v443 = vrot.slane %v394, 4
    %v444 = vadd.f32 %v394, %v443
    %v445 = vrot.slane %v444, 2
    %v446 = vadd.f32 %v444, %v445
    %v447 = vrot.slane %v446, 1
    %v448 = vadd.f32 %v446, %v447
    %v449 = vmul.f32 %v406, 0.125
    %v450 = vmul.f32 %v412, 0.125
    %v451 = vmul.f32 %v418, 0.125
    %v452 = vmul.f32 %v424, 0.125
    %v453 = vmul.f32 %v430, 0.125
    %v454 = vmul.f32 %v436, 0.125
    %v455 = vmul.f32 %v442, 0.125
    %v456 = vmul.f32 %v448, 0.125
    %v457 = vmul.f32 %v269, %v269
    %v458 = vmul.f32 %v271, %v271
    %v459 = vmul.f32 %v310, %v310
    %v460 = vmul.f32 %v312, %v312
    %v461 = vmul.f32 %v351, %v351
    %v462 = vmul.f32 %v353, %v353
    %v463 = vmul.f32 %v392, %v392
    %v464 = vmul.f32 %v394, %v394
    %v465 = vrot.slane %v457, 4
    %v466 = vadd.f32 %v457, %v465
    %v467 = vrot.slane %v466, 2
    %v468 = vadd.f32 %v466, %v467
    %v469 = vrot.slane %v468, 1
    %v470 = vadd.f32 %v468, %v469
    %v471 = vrot.slane %v458, 4
    %v472 = vadd.f32 %v458, %v471
    %v473 = vrot.slane %v472, 2
    %v474 = vadd.f32 %v472, %v473
    %v475 = vrot.slane %v474, 1
    %v476 = vadd.f32 %v474, %v475
    %v477 = vrot.slane %v459, 4
    %v478 = vadd.f32 %v459, %v477
    %v479 = vrot.slane %v478, 2
    %v480 = vadd.f32 %v478, %v479
    %v481 = vrot.slane %v480, 1
    %v482 = vadd.f32 %v480, %v481
    %v483 = vrot.slane %v460, 4
    %v484 = vadd.f32 %v460, %v483
    %v485 = vrot.slane %v484, 2
    %v486 = vadd.f32 %v484, %v485
    %v487 = vrot.slane %v486, 1
    %v488 = vadd.f32 %v486, %v487
    %v489 = vrot.slane %v461, 4
    %v490 = vadd.f32 %v461, %v489
    %v491 = vrot.slane %v490, 2
    %v492 = vadd.f32 %v490, %v491
    %v493 = vrot.slane %v492, 1
    %v494 = vadd.f32 %v492, %v493
    %v495 = vrot.slane %v462, 4
    %v496 = vadd.f32 %v462, %v495
    %v497 = vrot.slane %v496, 2
    %v498 = vadd.f32 %v496, %v497
    %v499 = vrot.slane %v498, 1
    %v500 = vadd.f32 %v498, %v499
    %v501 = vrot.slane %v463, 4
    %v502 = vadd.f32 %v463, %v501
    %v503 = vrot.slane %v502, 2
    %v504 = vadd.f32 %v502, %v503
    %v505 = vrot.slane %v504, 1
    %v506 = vadd.f32 %v504, %v505
    %v507 = vrot.slane %v464, 4
    %v508 = vadd.f32 %v464, %v507
    %v509 = vrot.slane %v508, 2
    %v510 = vadd.f32 %v508, %v509
    %v511 = vrot.slane %v510, 1
    %v512 = vadd.f32 %v510, %v511
    %v513 = vmul.f32 %v470, 0.125
    %v514 = vmul.f32 %v476, 0.125
    %v515 = vmul.f32 %v482, 0.125
    %v516 = vmul.f32 %v488, 0.125
    %v517 = vmul.f32 %v494, 0.125
    %v518 = vmul.f32 %v500, 0.125
    %v519 = vmul.f32 %v506, 0.125
    %v520 = vmul.f32 %v512, 0.125
    %v521 = vmul.f32 %v449, %v449
    %v522 = vmul.f32 %v450, %v450
    %v523 = vmul.f32 %v451, %v451
    %v524 = vmul.f32 %v452, %v452
    %v525 = vmul.f32 %v453, %v453
    %v526 = vmul.f32 %v454, %v454
    %v527 = vmul.f32 %v455, %v455
    %v528 = vmul.f32 %v456, %v456
    %v529 = vsub.f32 %v513, %v521
    %v530 = vsub.f32 %v514, %v522
    %v531 = vsub.f32 %v515, %v523
    %v532 = vsub.f32 %v516, %v524
    %v533 = vsub.f32 %v517, %v525
    %v534 = vsub.f32 %v518, %v526
    %v535 = vsub.f32 %v519, %v527
    %v536 = vsub.f32 %v520, %v528
    %v537 = vadd.f32 %v529, 1e-05
    %v538 = vadd.f32 %v530, 1e-05
    %v539 = vadd.f32 %v531, 1e-05
    %v540 = vadd.f32 %v532, 1e-05
    %v541 = vadd.f32 %v533, 1e-05
    %v542 = vadd.f32 %v534, 1e-05
    %v543 = vadd.f32 %v535, 1e-05
    %v544 = vadd.f32 %v536, 1e-05
    %v545 = vrsqrt.pop %v537
    %v546 = vrsqrt.pop %v538
    %v547 = vrsqrt.pop %v539
    %v548 = vrsqrt.pop %v540
    %v549 = vrsqrt.pop %v541
    %v550 = vrsqrt.pop %v542
    %v551 = vrsqrt.pop %v543
    %v552 = vrsqrt.pop %v544
    %v561 = vcombine.low %v545, %v546
    %v562 = vcombine.low %v547, %v548
    %v563 = vcombine.low %v549, %v550
    %v564 = vcombine.low %v551, %v552
    %v566 = vunpack.c.l.s4 1966171168
    %v567 = vunpack.c.0.s8 %v566
    %v568 = vlaneseq
    %v569 = vshrl.u32 %v568, 7
    %v570 = vsub.s32 %v567, %v569
    %v571 = vrot.slane %v561, %v570
    %v573 = vunpack.c.l.s4 1966171168
    %v574 = vunpack.c.0.s8 %v573
    %v575 = vlaneseq
    %v576 = vshrl.u32 %v575, 7
    %v577 = vsub.s32 %v574, %v576
    %v578 = vrot.slane %v562, %v577
    %v580 = vunpack.c.l.s4 1966171168
    %v581 = vunpack.c.0.s8 %v580
    %v582 = vlaneseq
    %v583 = vshrl.u32 %v582, 7
    %v584 = vsub.s32 %v581, %v583
    %v585 = vrot.slane %v563, %v584
    %v587 = vunpack.c.l.s4 1966171168
    %v588 = vunpack.c.0.s8 %v587
    %v589 = vlaneseq
    %v590 = vshrl.u32 %v589, 7
    %v591 = vsub.s32 %v588, %v590
    %v592 = vrot.slane %v564, %v591
    %v593 = vcombine.low %v571, %v578
    %v594 = vcombine.low %v585, %v592
    %v596 = vunpack.c.l.s4 1966171168
    %v597 = vunpack.c.0.s8 %v596
    %v598 = vlaneseq
    %v599 = vshrl.u32 %v598, 7
    %v600 = vsub.s32 %v597, %v599
    %v601 = vrot.slane %v593, %v600
    %v603 = vunpack.c.l.s4 1966171168
    %v604 = vunpack.c.0.s8 %v603
    %v605 = vlaneseq
    %v606 = vshrl.u32 %v605, 7
    %v607 = vsub.s32 %v604, %v606
    %v608 = vrot.slane %v594, %v607
    %v609 = vcombine.low %v601, %v608
    %v611 = vmul.f32 %v398, %v609
    %v613 = vlaneseq
    %v614 = vshrl.u32 %v613, 7
    %v615 = vsub.s32 0, %v614
    %v616 = vrot.slane %v611, %v615
    %v617 = vlaneseq
    %v618 = vshrl.u32 %v617, 7
    %v619 = vsub.s32 1, %v618
    %v620 = vrot.slane %v611, %v619
    %v621 = vlaneseq
    %v622 = vshrl.u32 %v621, 7
    %v623 = vsub.s32 2, %v622
    %v624 = vrot.slane %v611, %v623
    %v625 = vlaneseq
    %v626 = vshrl.u32 %v625, 7
    %v627 = vsub.s32 3, %v626
    %v628 = vrot.slane %v611, %v627
    %v629 = vlaneseq
    %v630 = vshrl.u32 %v629, 7
    %v631 = vsub.s32 4, %v630
    %v632 = vrot.slane %v611, %v631
    %v633 = vlaneseq
    %v634 = vshrl.u32 %v633, 7
    %v635 = vsub.s32 5, %v634
    %v636 = vrot.slane %v611, %v635
    %v637 = vlaneseq
    %v638 = vshrl.u32 %v637, 7
    %v639 = vsub.s32 6, %v638
    %v640 = vrot.slane %v611, %v639
    %v641 = vlaneseq
    %v642 = vshrl.u32 %v641, 7
    %v643 = vsub.s32 7, %v642
    %v644 = vrot.slane %v611, %v643
    %v653 = vmul.f32 %v449, %v616
    %v654 = vmul.f32 %v450, %v620
    %v655 = vmul.f32 %v451, %v624
    %v656 = vmul.f32 %v452, %v628
    %v657 = vmul.f32 %v453, %v632
    %v658 = vmul.f32 %v454, %v636
    %v659 = vmul.f32 %v455, %v640
    %v660 = vmul.f32 %v456, %v644
    %v669 = vcombine.low %v653, %v654
    %v670 = vcombine.low %v655, %v656
    %v671 = vcombine.low %v657, %v658
    %v672 = vcombine.low %v659, %v660
    %v674 = vunpack.c.l.s4 1966171168
    %v675 = vunpack.c.0.s8 %v674
    %v676 = vlaneseq
    %v677 = vshrl.u32 %v676, 7
    %v678 = vsub.s32 %v675, %v677
    %v679 = vrot.slane %v669, %v678
    %v681 = vunpack.c.l.s4 1966171168
    %v682 = vunpack.c.0.s8 %v681
    %v683 = vlaneseq
    %v684 = vshrl.u32 %v683, 7
    %v685 = vsub.s32 %v682, %v684
    %v686 = vrot.slane %v670, %v685
    %v688 = vunpack.c.l.s4 1966171168
    %v689 = vunpack.c.0.s8 %v688
    %v690 = vlaneseq
    %v691 = vshrl.u32 %v690, 7
    %v692 = vsub.s32 %v689, %v691
    %v693 = vrot.slane %v671, %v692
    %v695 = vunpack.c.l.s4 1966171168
    %v696 = vunpack.c.0.s8 %v695
    %v697 = vlaneseq
    %v698 = vshrl.u32 %v697, 7
    %v699 = vsub.s32 %v696, %v698
    %v700 = vrot.slane %v672, %v699
    %v701 = vcombine.low %v679, %v686
    %v702 = vcombine.low %v693, %v700
    %v704 = vunpack.c.l.s4 1966171168
    %v705 = vunpack.c.0.s8 %v704
    %v706 = vlaneseq
    %v707 = vshrl.u32 %v706, 7
    %v708 = vsub.s32 %v705, %v707
    %v709 = vrot.slane %v701, %v708
    %v711 = vunpack.c.l.s4 1966171168
    %v712 = vunpack.c.0.s8 %v711
    %v713 = vlaneseq
    %v714 = vshrl.u32 %v713, 7
    %v715 = vsub.s32 %v712, %v714
    %v716 = vrot.slane %v702, %v715
    %v717 = vcombine.low %v709, %v716
    %v719 = vsub.f32 %v400, %v717
    %v720 = vmul.f32 %v269, %v616
    %v721 = vmul.f32 %v271, %v620
    %v722 = vmul.f32 %v310, %v624
    %v723 = vmul.f32 %v312, %v628
    %v724 = vmul.f32 %v351, %v632
    %v725 = vmul.f32 %v353, %v636
    %v726 = vmul.f32 %v392, %v640
    %v727 = vmul.f32 %v394, %v644
    %v729 = vlaneseq
    %v730 = vshrl.u32 %v729, 7
    %v731 = vsub.s32 0, %v730
    %v732 = vrot.slane %v719, %v731
    %v733 = vlaneseq
    %v734 = vshrl.u32 %v733, 7
    %v735 = vsub.s32 1, %v734
    %v736 = vrot.slane %v719, %v735
    %v737 = vlaneseq
    %v738 = vshrl.u32 %v737, 7
    %v739 = vsub.s32 2, %v738
    %v740 = vrot.slane %v719, %v739
    %v741 = vlaneseq
    %v742 = vshrl.u32 %v741, 7
    %v743 = vsub.s32 3, %v742
    %v744 = vrot.slane %v719, %v743
    %v745 = vlaneseq
    %v746 = vshrl.u32 %v745, 7
    %v747 = vsub.s32 4, %v746
    %v748 = vrot.slane %v719, %v747
    %v749 = vlaneseq
    %v750 = vshrl.u32 %v749, 7
    %v751 = vsub.s32 5, %v750
    %v752 = vrot.slane %v719, %v751
    %v753 = vlaneseq
    %v754 = vshrl.u32 %v753, 7
    %v755 = vsub.s32 6, %v754
    %v756 = vrot.slane %v719, %v755
    %v757 = vlaneseq
    %v758 = vshrl.u32 %v757, 7
    %v759 = vsub.s32 7, %v758
    %v760 = vrot.slane %v719, %v759
    %v769 = vadd.f32 %v720, %v732
    %v770 = vadd.f32 %v721, %v736
    %v771 = vadd.f32 %v722, %v740
    %v772 = vadd.f32 %v723, %v744
    %v773 = vadd.f32 %v724, %v748
    %v774 = vadd.f32 %v725, %v752
    %v775 = vadd.f32 %v726, %v756
    %v776 = vadd.f32 %v727, %v760
    %v777 = vmul.f32 %v769, 0.2
    %v778 = vmul.f32 %v770, 0.2
    %v779 = vmul.f32 %v771, 0.2
    %v780 = vmul.f32 %v772, 0.2
    %v781 = vmul.f32 %v773, 0.2
    %v782 = vmul.f32 %v774, 0.2
    %v783 = vmul.f32 %v775, 0.2
    %v784 = vmul.f32 %v776, 0.2
    %v785 = vmax.f32 %v769, %v777
    %v786 = vmax.f32 %v770, %v778
    %v787 = vmax.f32 %v771, %v779
    %v788 = vmax.f32 %v772, %v780
    %v789 = vmax.f32 %v773, %v781
    %v790 = vmax.f32 %v774, %v782
    %v791 = vmax.f32 %v775, %v783
    %v792 = vmax.f32 %v776, %v784
    %v793 = vpack.c.bf16 %v785, %v785
    %v794 = vpack.c.bf16 %v786, %v786
    %v795 = vpack.c.bf16 %v787, %v787
    %v796 = vpack.c.bf16 %v788, %v788
    %v797 = vpack.c.bf16 %v789, %v789
    %v798 = vpack.c.bf16 %v790, %v790
    %v799 = vpack.c.bf16 %v791, %v791
    %v800 = vpack.c.bf16 %v792, %v792
    %s801 = smul.u32 4, 128
    %s802 = smul.u32 %s801, 8
    %s803 = sshll.u32 %s802, 4
    %804 = dma.done [#allocation7], %s803
    %v805 = vld [vmem:[#allocation2] sm:$0xff]
    %v806 = vld [vmem:[#allocation2 + $0x8] sm:$0xff]
    %v807 = vld [vmem:[#allocation2 + $0x10] sm:$0xff]
    %v808 = vld [vmem:[#allocation2 + $0x18] sm:$0xff]
    %v809 = vld [vmem:[#allocation2 + $0x20] sm:$0xff]
    %v810 = vld [vmem:[#allocation2 + $0x28] sm:$0xff]
    %v811 = vld [vmem:[#allocation2 + $0x30] sm:$0xff]
    %v812 = vld [vmem:[#allocation2 + $0x38] sm:$0xff]
    %v813 = vld [vmem:[#allocation2 + $0x40] sm:$0xff]
    %v814 = vld [vmem:[#allocation2 + $0x48] sm:$0xff]
    %v815 = vld [vmem:[#allocation2 + $0x50] sm:$0xff]
    %v816 = vld [vmem:[#allocation2 + $0x58] sm:$0xff]
    %v817 = vld [vmem:[#allocation2 + $0x60] sm:$0xff]
    %v818 = vld [vmem:[#allocation2 + $0x68] sm:$0xff]
    %v819 = vld [vmem:[#allocation2 + $0x70] sm:$0xff]
    %v820 = vld [vmem:[#allocation2 + $0x78] sm:$0xff]
    %v821 = vld [vmem:[#allocation2 + $0x80] sm:$0xff]
    %v822 = vld [vmem:[#allocation2 + $0x88] sm:$0xff]
    %v823 = vld [vmem:[#allocation2 + $0x90] sm:$0xff]
    %v824 = vld [vmem:[#allocation2 + $0x98] sm:$0xff]
    %v825 = vld [vmem:[#allocation2 + $0xa0] sm:$0xff]
    %v826 = vld [vmem:[#allocation2 + $0xa8] sm:$0xff]
    %v827 = vld [vmem:[#allocation2 + $0xb0] sm:$0xff]
    %v828 = vld [vmem:[#allocation2 + $0xb8] sm:$0xff]
    %v829 = vld [vmem:[#allocation2 + $0xc0] sm:$0xff]
    %v830 = vld [vmem:[#allocation2 + $0xc8] sm:$0xff]
    %v831 = vld [vmem:[#allocation2 + $0xd0] sm:$0xff]
    %v832 = vld [vmem:[#allocation2 + $0xd8] sm:$0xff]
    %v833 = vld [vmem:[#allocation2 + $0xe0] sm:$0xff]
    %v834 = vld [vmem:[#allocation2 + $0xe8] sm:$0xff]
    %v835 = vld [vmem:[#allocation2 + $0xf0] sm:$0xff]
    %v836 = vld [vmem:[#allocation2 + $0xf8] sm:$0xff]
    %v837 = vld [vmem:[#allocation2 + $0x100] sm:$0xff]
    %v838 = vld [vmem:[#allocation2 + $0x108] sm:$0xff]
    %v839 = vld [vmem:[#allocation2 + $0x110] sm:$0xff]
    %v840 = vld [vmem:[#allocation2 + $0x118] sm:$0xff]
    %v841 = vld [vmem:[#allocation2 + $0x120] sm:$0xff]
    %v842 = vld [vmem:[#allocation2 + $0x128] sm:$0xff]
    %v843 = vld [vmem:[#allocation2 + $0x130] sm:$0xff]
    %v844 = vld [vmem:[#allocation2 + $0x138] sm:$0xff]
    %v845 = vld [vmem:[#allocation2 + $0x140] sm:$0xff]
    %v846 = vld [vmem:[#allocation2 + $0x148] sm:$0xff]
    %v847 = vld [vmem:[#allocation2 + $0x150] sm:$0xff]
    %v848 = vld [vmem:[#allocation2 + $0x158] sm:$0xff]
    %v849 = vld [vmem:[#allocation2 + $0x160] sm:$0xff]
    %v850 = vld [vmem:[#allocation2 + $0x168] sm:$0xff]
    %v851 = vld [vmem:[#allocation2 + $0x170] sm:$0xff]
    %v852 = vld [vmem:[#allocation2 + $0x178] sm:$0xff]
    %v853 = vld [vmem:[#allocation2 + $0x180] sm:$0xff]
    %v854 = vld [vmem:[#allocation2 + $0x188] sm:$0xff]
    %v855 = vld [vmem:[#allocation2 + $0x190] sm:$0xff]
    %v856 = vld [vmem:[#allocation2 + $0x198] sm:$0xff]
    %v857 = vld [vmem:[#allocation2 + $0x1a0] sm:$0xff]
    %v858 = vld [vmem:[#allocation2 + $0x1a8] sm:$0xff]
    %v859 = vld [vmem:[#allocation2 + $0x1b0] sm:$0xff]
    %v860 = vld [vmem:[#allocation2 + $0x1b8] sm:$0xff]
    %v861 = vld [vmem:[#allocation2 + $0x1c0] sm:$0xff]
    %v862 = vld [vmem:[#allocation2 + $0x1c8] sm:$0xff]
    %v863 = vld [vmem:[#allocation2 + $0x1d0] sm:$0xff]
    %v864 = vld [vmem:[#allocation2 + $0x1d8] sm:$0xff]
    %v865 = vld [vmem:[#allocation2 + $0x1e0] sm:$0xff]
    %v866 = vld [vmem:[#allocation2 + $0x1e8] sm:$0xff]
    %v867 = vld [vmem:[#allocation2 + $0x1f0] sm:$0xff]
    %v868 = vld [vmem:[#allocation2 + $0x1f8] sm:$0xff]
    %v869 = vld [vmem:[#allocation2 + $0x200] sm:$0xff]
    %v870 = vld [vmem:[#allocation2 + $0x208] sm:$0xff]
    %v871 = vld [vmem:[#allocation2 + $0x210] sm:$0xff]
    %v872 = vld [vmem:[#allocation2 + $0x218] sm:$0xff]
    %v873 = vld [vmem:[#allocation2 + $0x220] sm:$0xff]
    %v874 = vld [vmem:[#allocation2 + $0x228] sm:$0xff]
    %v875 = vld [vmem:[#allocation2 + $0x230] sm:$0xff]
    %v876 = vld [vmem:[#allocation2 + $0x238] sm:$0xff]
    %v877 = vld [vmem:[#allocation2 + $0x240] sm:$0xff]
    %v878 = vld [vmem:[#allocation2 + $0x248] sm:$0xff]
    %v879 = vld [vmem:[#allocation2 + $0x250] sm:$0xff]
    %v880 = vld [vmem:[#allocation2 + $0x258] sm:$0xff]
    %v881 = vld [vmem:[#allocation2 + $0x260] sm:$0xff]
    %v882 = vld [vmem:[#allocation2 + $0x268] sm:$0xff]
    %v883 = vld [vmem:[#allocation2 + $0x270] sm:$0xff]
    %v884 = vld [vmem:[#allocation2 + $0x278] sm:$0xff]
    %v885 = vld [vmem:[#allocation2 + $0x280] sm:$0xff]
    %v886 = vld [vmem:[#allocation2 + $0x288] sm:$0xff]
    %v887 = vld [vmem:[#allocation2 + $0x290] sm:$0xff]
    %v888 = vld [vmem:[#allocation2 + $0x298] sm:$0xff]
    %v889 = vld [vmem:[#allocation2 + $0x2a0] sm:$0xff]
    %v890 = vld [vmem:[#allocation2 + $0x2a8] sm:$0xff]
    %v891 = vld [vmem:[#allocation2 + $0x2b0] sm:$0xff]
    %v892 = vld [vmem:[#allocation2 + $0x2b8] sm:$0xff]
    %v893 = vld [vmem:[#allocation2 + $0x2c0] sm:$0xff]
    %v894 = vld [vmem:[#allocation2 + $0x2c8] sm:$0xff]
    %v895 = vld [vmem:[#allocation2 + $0x2d0] sm:$0xff]
    %v896 = vld [vmem:[#allocation2 + $0x2d8] sm:$0xff]
    %v897 = vld [vmem:[#allocation2 + $0x2e0] sm:$0xff]
    %v898 = vld [vmem:[#allocation2 + $0x2e8] sm:$0xff]
    %v899 = vld [vmem:[#allocation2 + $0x2f0] sm:$0xff]
    %v900 = vld [vmem:[#allocation2 + $0x2f8] sm:$0xff]
    %v901 = vld [vmem:[#allocation2 + $0x300] sm:$0xff]
    %v902 = vld [vmem:[#allocation2 + $0x308] sm:$0xff]
    %v903 = vld [vmem:[#allocation2 + $0x310] sm:$0xff]
    %v904 = vld [vmem:[#allocation2 + $0x318] sm:$0xff]
    %v905 = vld [vmem:[#allocation2 + $0x320] sm:$0xff]
    %v906 = vld [vmem:[#allocation2 + $0x328] sm:$0xff]
    %v907 = vld [vmem:[#allocation2 + $0x330] sm:$0xff]
    %v908 = vld [vmem:[#allocation2 + $0x338] sm:$0xff]
    %v909 = vld [vmem:[#allocation2 + $0x340] sm:$0xff]
    %v910 = vld [vmem:[#allocation2 + $0x348] sm:$0xff]
    %v911 = vld [vmem:[#allocation2 + $0x350] sm:$0xff]
    %v912 = vld [vmem:[#allocation2 + $0x358] sm:$0xff]
    %v913 = vld [vmem:[#allocation2 + $0x360] sm:$0xff]
    %v914 = vld [vmem:[#allocation2 + $0x368] sm:$0xff]
    %v915 = vld [vmem:[#allocation2 + $0x370] sm:$0xff]
    %v916 = vld [vmem:[#allocation2 + $0x378] sm:$0xff]
    %v917 = vld [vmem:[#allocation2 + $0x380] sm:$0xff]
    %v918 = vld [vmem:[#allocation2 + $0x388] sm:$0xff]
    %v919 = vld [vmem:[#allocation2 + $0x390] sm:$0xff]
    %v920 = vld [vmem:[#allocation2 + $0x398] sm:$0xff]
    %v921 = vld [vmem:[#allocation2 + $0x3a0] sm:$0xff]
    %v922 = vld [vmem:[#allocation2 + $0x3a8] sm:$0xff]
    %v923 = vld [vmem:[#allocation2 + $0x3b0] sm:$0xff]
    %v924 = vld [vmem:[#allocation2 + $0x3b8] sm:$0xff]
    %v925 = vld [vmem:[#allocation2 + $0x3c0] sm:$0xff]
    %v926 = vld [vmem:[#allocation2 + $0x3c8] sm:$0xff]
    %v927 = vld [vmem:[#allocation2 + $0x3d0] sm:$0xff]
    %v928 = vld [vmem:[#allocation2 + $0x3d8] sm:$0xff]
    %v929 = vld [vmem:[#allocation2 + $0x3e0] sm:$0xff]
    %v930 = vld [vmem:[#allocation2 + $0x3e8] sm:$0xff]
    %v931 = vld [vmem:[#allocation2 + $0x3f0] sm:$0xff]
    %v932 = vld [vmem:[#allocation2 + $0x3f8] sm:$0xff]
    %v933 = vld [vmem:[#allocation2 + $0x400] sm:$0xff]
    %v934 = vld [vmem:[#allocation2 + $0x408] sm:$0xff]
    %v935 = vld [vmem:[#allocation2 + $0x410] sm:$0xff]
    %v936 = vld [vmem:[#allocation2 + $0x418] sm:$0xff]
    %v937 = vld [vmem:[#allocation2 + $0x420] sm:$0xff]
    %v938 = vld [vmem:[#allocation2 + $0x428] sm:$0xff]
    %v939 = vld [vmem:[#allocation2 + $0x430] sm:$0xff]
    %v940 = vld [vmem:[#allocation2 + $0x438] sm:$0xff]
    %v941 = vld [vmem:[#allocation2 + $0x440] sm:$0xff]
    %v942 = vld [vmem:[#allocation2 + $0x448] sm:$0xff]
    %v943 = vld [vmem:[#allocation2 + $0x450] sm:$0xff]
    %v944 = vld [vmem:[#allocation2 + $0x458] sm:$0xff]
    %v945 = vld [vmem:[#allocation2 + $0x460] sm:$0xff]
    %v946 = vld [vmem:[#allocation2 + $0x468] sm:$0xff]
    %v947 = vld [vmem:[#allocation2 + $0x470] sm:$0xff]
    %v948 = vld [vmem:[#allocation2 + $0x478] sm:$0xff]
    %v949 = vld [vmem:[#allocation2 + $0x480] sm:$0xff]
    %v950 = vld [vmem:[#allocation2 + $0x488] sm:$0xff]
    %v951 = vld [vmem:[#allocation2 + $0x490] sm:$0xff]
    %v952 = vld [vmem:[#allocation2 + $0x498] sm:$0xff]
    %v953 = vld [vmem:[#allocation2 + $0x4a0] sm:$0xff]
    %v954 = vld [vmem:[#allocation2 + $0x4a8] sm:$0xff]
    %v955 = vld [vmem:[#allocation2 + $0x4b0] sm:$0xff]
    %v956 = vld [vmem:[#allocation2 + $0x4b8] sm:$0xff]
    %v957 = vld [vmem:[#allocation2 + $0x4c0] sm:$0xff]
    %v958 = vld [vmem:[#allocation2 + $0x4c8] sm:$0xff]
    %v959 = vld [vmem:[#allocation2 + $0x4d0] sm:$0xff]
    %v960 = vld [vmem:[#allocation2 + $0x4d8] sm:$0xff]
    %v961 = vld [vmem:[#allocation2 + $0x4e0] sm:$0xff]
    %v962 = vld [vmem:[#allocation2 + $0x4e8] sm:$0xff]
    %v963 = vld [vmem:[#allocation2 + $0x4f0] sm:$0xff]
    %v964 = vld [vmem:[#allocation2 + $0x4f8] sm:$0xff]
    %v965 = vld [vmem:[#allocation2 + $0x500] sm:$0xff]
    %v966 = vld [vmem:[#allocation2 + $0x508] sm:$0xff]
    %v967 = vld [vmem:[#allocation2 + $0x510] sm:$0xff]
    %v968 = vld [vmem:[#allocation2 + $0x518] sm:$0xff]
    %v969 = vld [vmem:[#allocation2 + $0x520] sm:$0xff]
    %v970 = vld [vmem:[#allocation2 + $0x528] sm:$0xff]
    %v971 = vld [vmem:[#allocation2 + $0x530] sm:$0xff]
    %v972 = vld [vmem:[#allocation2 + $0x538] sm:$0xff]
    %v973 = vld [vmem:[#allocation2 + $0x540] sm:$0xff]
    %v974 = vld [vmem:[#allocation2 + $0x548] sm:$0xff]
    %v975 = vld [vmem:[#allocation2 + $0x550] sm:$0xff]
    %v976 = vld [vmem:[#allocation2 + $0x558] sm:$0xff]
    %v977 = vld [vmem:[#allocation2 + $0x560] sm:$0xff]
    %v978 = vld [vmem:[#allocation2 + $0x568] sm:$0xff]
    %v979 = vld [vmem:[#allocation2 + $0x570] sm:$0xff]
    %v980 = vld [vmem:[#allocation2 + $0x578] sm:$0xff]
    %v981 = vld [vmem:[#allocation2 + $0x580] sm:$0xff]
    %v982 = vld [vmem:[#allocation2 + $0x588] sm:$0xff]
    %v983 = vld [vmem:[#allocation2 + $0x590] sm:$0xff]
    %v984 = vld [vmem:[#allocation2 + $0x598] sm:$0xff]
    %v985 = vld [vmem:[#allocation2 + $0x5a0] sm:$0xff]
    %v986 = vld [vmem:[#allocation2 + $0x5a8] sm:$0xff]
    %v987 = vld [vmem:[#allocation2 + $0x5b0] sm:$0xff]
    %v988 = vld [vmem:[#allocation2 + $0x5b8] sm:$0xff]
    %v989 = vld [vmem:[#allocation2 + $0x5c0] sm:$0xff]
    %v990 = vld [vmem:[#allocation2 + $0x5c8] sm:$0xff]
    %v991 = vld [vmem:[#allocation2 + $0x5d0] sm:$0xff]
    %v992 = vld [vmem:[#allocation2 + $0x5d8] sm:$0xff]
    %v993 = vld [vmem:[#allocation2 + $0x5e0] sm:$0xff]
    %v994 = vld [vmem:[#allocation2 + $0x5e8] sm:$0xff]
    %v995 = vld [vmem:[#allocation2 + $0x5f0] sm:$0xff]
    %v996 = vld [vmem:[#allocation2 + $0x5f8] sm:$0xff]
    %v997 = vld [vmem:[#allocation2 + $0x600] sm:$0xff]
    %v998 = vld [vmem:[#allocation2 + $0x608] sm:$0xff]
    %v999 = vld [vmem:[#allocation2 + $0x610] sm:$0xff]
    %v1000 = vld [vmem:[#allocation2 + $0x618] sm:$0xff]
    %v1001 = vld [vmem:[#allocation2 + $0x620] sm:$0xff]
    %v1002 = vld [vmem:[#allocation2 + $0x628] sm:$0xff]
    %v1003 = vld [vmem:[#allocation2 + $0x630] sm:$0xff]
    %v1004 = vld [vmem:[#allocation2 + $0x638] sm:$0xff]
    %v1005 = vld [vmem:[#allocation2 + $0x640] sm:$0xff]
    %v1006 = vld [vmem:[#allocation2 + $0x648] sm:$0xff]
    %v1007 = vld [vmem:[#allocation2 + $0x650] sm:$0xff]
    %v1008 = vld [vmem:[#allocation2 + $0x658] sm:$0xff]
    %v1009 = vld [vmem:[#allocation2 + $0x660] sm:$0xff]
    %v1010 = vld [vmem:[#allocation2 + $0x668] sm:$0xff]
    %v1011 = vld [vmem:[#allocation2 + $0x670] sm:$0xff]
    %v1012 = vld [vmem:[#allocation2 + $0x678] sm:$0xff]
    %v1013 = vld [vmem:[#allocation2 + $0x680] sm:$0xff]
    %v1014 = vld [vmem:[#allocation2 + $0x688] sm:$0xff]
    %v1015 = vld [vmem:[#allocation2 + $0x690] sm:$0xff]
    %v1016 = vld [vmem:[#allocation2 + $0x698] sm:$0xff]
    %v1017 = vld [vmem:[#allocation2 + $0x6a0] sm:$0xff]
    %v1018 = vld [vmem:[#allocation2 + $0x6a8] sm:$0xff]
    %v1019 = vld [vmem:[#allocation2 + $0x6b0] sm:$0xff]
    %v1020 = vld [vmem:[#allocation2 + $0x6b8] sm:$0xff]
    %v1021 = vld [vmem:[#allocation2 + $0x6c0] sm:$0xff]
    %v1022 = vld [vmem:[#allocation2 + $0x6c8] sm:$0xff]
    %v1023 = vld [vmem:[#allocation2 + $0x6d0] sm:$0xff]
    %v1024 = vld [vmem:[#allocation2 + $0x6d8] sm:$0xff]
    %v1025 = vld [vmem:[#allocation2 + $0x6e0] sm:$0xff]
    %v1026 = vld [vmem:[#allocation2 + $0x6e8] sm:$0xff]
    %v1027 = vld [vmem:[#allocation2 + $0x6f0] sm:$0xff]
    %v1028 = vld [vmem:[#allocation2 + $0x6f8] sm:$0xff]
    %v1029 = vld [vmem:[#allocation2 + $0x700] sm:$0xff]
    %v1030 = vld [vmem:[#allocation2 + $0x708] sm:$0xff]
    %v1031 = vld [vmem:[#allocation2 + $0x710] sm:$0xff]
    %v1032 = vld [vmem:[#allocation2 + $0x718] sm:$0xff]
    %v1033 = vld [vmem:[#allocation2 + $0x720] sm:$0xff]
    %v1034 = vld [vmem:[#allocation2 + $0x728] sm:$0xff]
    %v1035 = vld [vmem:[#allocation2 + $0x730] sm:$0xff]
    %v1036 = vld [vmem:[#allocation2 + $0x738] sm:$0xff]
    %v1037 = vld [vmem:[#allocation2 + $0x740] sm:$0xff]
    %v1038 = vld [vmem:[#allocation2 + $0x748] sm:$0xff]
    %v1039 = vld [vmem:[#allocation2 + $0x750] sm:$0xff]
    %v1040 = vld [vmem:[#allocation2 + $0x758] sm:$0xff]
    %v1041 = vld [vmem:[#allocation2 + $0x760] sm:$0xff]
    %v1042 = vld [vmem:[#allocation2 + $0x768] sm:$0xff]
    %v1043 = vld [vmem:[#allocation2 + $0x770] sm:$0xff]
    %v1044 = vld [vmem:[#allocation2 + $0x778] sm:$0xff]
    %v1045 = vld [vmem:[#allocation2 + $0x780] sm:$0xff]
    %v1046 = vld [vmem:[#allocation2 + $0x788] sm:$0xff]
    %v1047 = vld [vmem:[#allocation2 + $0x790] sm:$0xff]
    %v1048 = vld [vmem:[#allocation2 + $0x798] sm:$0xff]
    %v1049 = vld [vmem:[#allocation2 + $0x7a0] sm:$0xff]
    %v1050 = vld [vmem:[#allocation2 + $0x7a8] sm:$0xff]
    %v1051 = vld [vmem:[#allocation2 + $0x7b0] sm:$0xff]
    %v1052 = vld [vmem:[#allocation2 + $0x7b8] sm:$0xff]
    %v1053 = vld [vmem:[#allocation2 + $0x7c0] sm:$0xff]
    %v1054 = vld [vmem:[#allocation2 + $0x7c8] sm:$0xff]
    %v1055 = vld [vmem:[#allocation2 + $0x7d0] sm:$0xff]
    %v1056 = vld [vmem:[#allocation2 + $0x7d8] sm:$0xff]
    %v1057 = vld [vmem:[#allocation2 + $0x7e0] sm:$0xff]
    %v1058 = vld [vmem:[#allocation2 + $0x7e8] sm:$0xff]
    %v1059 = vld [vmem:[#allocation2 + $0x7f0] sm:$0xff]
    %v1060 = vld [vmem:[#allocation2 + $0x7f8] sm:$0xff]
    %v1061 = vld [vmem:[#allocation2 + $0x800] sm:$0xff]
    %v1062 = vld [vmem:[#allocation2 + $0x808] sm:$0xff]
    %v1063 = vld [vmem:[#allocation2 + $0x810] sm:$0xff]
    %v1064 = vld [vmem:[#allocation2 + $0x818] sm:$0xff]
    %v1065 = vld [vmem:[#allocation2 + $0x820] sm:$0xff]
    %v1066 = vld [vmem:[#allocation2 + $0x828] sm:$0xff]
    %v1067 = vld [vmem:[#allocation2 + $0x830] sm:$0xff]
    %v1068 = vld [vmem:[#allocation2 + $0x838] sm:$0xff]
    %v1069 = vld [vmem:[#allocation2 + $0x840] sm:$0xff]
    %v1070 = vld [vmem:[#allocation2 + $0x848] sm:$0xff]
    %v1071 = vld [vmem:[#allocation2 + $0x850] sm:$0xff]
    %v1072 = vld [vmem:[#allocation2 + $0x858] sm:$0xff]
    %v1073 = vld [vmem:[#allocation2 + $0x860] sm:$0xff]
    %v1074 = vld [vmem:[#allocation2 + $0x868] sm:$0xff]
    %v1075 = vld [vmem:[#allocation2 + $0x870] sm:$0xff]
    %v1076 = vld [vmem:[#allocation2 + $0x878] sm:$0xff]
    %v1077 = vld [vmem:[#allocation2 + $0x880] sm:$0xff]
    %v1078 = vld [vmem:[#allocation2 + $0x888] sm:$0xff]
    %v1079 = vld [vmem:[#allocation2 + $0x890] sm:$0xff]
    %v1080 = vld [vmem:[#allocation2 + $0x898] sm:$0xff]
    %v1081 = vld [vmem:[#allocation2 + $0x8a0] sm:$0xff]
    %v1082 = vld [vmem:[#allocation2 + $0x8a8] sm:$0xff]
    %v1083 = vld [vmem:[#allocation2 + $0x8b0] sm:$0xff]
    %v1084 = vld [vmem:[#allocation2 + $0x8b8] sm:$0xff]
    %v1085 = vld [vmem:[#allocation2 + $0x8c0] sm:$0xff]
    %v1086 = vld [vmem:[#allocation2 + $0x8c8] sm:$0xff]
    %v1087 = vld [vmem:[#allocation2 + $0x8d0] sm:$0xff]
    %v1088 = vld [vmem:[#allocation2 + $0x8d8] sm:$0xff]
    %v1089 = vld [vmem:[#allocation2 + $0x8e0] sm:$0xff]
    %v1090 = vld [vmem:[#allocation2 + $0x8e8] sm:$0xff]
    %v1091 = vld [vmem:[#allocation2 + $0x8f0] sm:$0xff]
    %v1092 = vld [vmem:[#allocation2 + $0x8f8] sm:$0xff]
    %v1093 = vld [vmem:[#allocation2 + $0x900] sm:$0xff]
    %v1094 = vld [vmem:[#allocation2 + $0x908] sm:$0xff]
    %v1095 = vld [vmem:[#allocation2 + $0x910] sm:$0xff]
    %v1096 = vld [vmem:[#allocation2 + $0x918] sm:$0xff]
    %v1097 = vld [vmem:[#allocation2 + $0x920] sm:$0xff]
    %v1098 = vld [vmem:[#allocation2 + $0x928] sm:$0xff]
    %v1099 = vld [vmem:[#allocation2 + $0x930] sm:$0xff]
    %v1100 = vld [vmem:[#allocation2 + $0x938] sm:$0xff]
    %v1101 = vld [vmem:[#allocation2 + $0x940] sm:$0xff]
    %v1102 = vld [vmem:[#allocation2 + $0x948] sm:$0xff]
    %v1103 = vld [vmem:[#allocation2 + $0x950] sm:$0xff]
    %v1104 = vld [vmem:[#allocation2 + $0x958] sm:$0xff]
    %v1105 = vld [vmem:[#allocation2 + $0x960] sm:$0xff]
    %v1106 = vld [vmem:[#allocation2 + $0x968] sm:$0xff]
    %v1107 = vld [vmem:[#allocation2 + $0x970] sm:$0xff]
    %v1108 = vld [vmem:[#allocation2 + $0x978] sm:$0xff]
    %v1109 = vld [vmem:[#allocation2 + $0x980] sm:$0xff]
    %v1110 = vld [vmem:[#allocation2 + $0x988] sm:$0xff]
    %v1111 = vld [vmem:[#allocation2 + $0x990] sm:$0xff]
    %v1112 = vld [vmem:[#allocation2 + $0x998] sm:$0xff]
    %v1113 = vld [vmem:[#allocation2 + $0x9a0] sm:$0xff]
    %v1114 = vld [vmem:[#allocation2 + $0x9a8] sm:$0xff]
    %v1115 = vld [vmem:[#allocation2 + $0x9b0] sm:$0xff]
    %v1116 = vld [vmem:[#allocation2 + $0x9b8] sm:$0xff]
    %v1117 = vld [vmem:[#allocation2 + $0x9c0] sm:$0xff]
    %v1118 = vld [vmem:[#allocation2 + $0x9c8] sm:$0xff]
    %v1119 = vld [vmem:[#allocation2 + $0x9d0] sm:$0xff]
    %v1120 = vld [vmem:[#allocation2 + $0x9d8] sm:$0xff]
    %v1121 = vld [vmem:[#allocation2 + $0x9e0] sm:$0xff]
    %v1122 = vld [vmem:[#allocation2 + $0x9e8] sm:$0xff]
    %v1123 = vld [vmem:[#allocation2 + $0x9f0] sm:$0xff]
    %v1124 = vld [vmem:[#allocation2 + $0x9f8] sm:$0xff]
    %v1125 = vld [vmem:[#allocation2 + $0xa00] sm:$0xff]
    %v1126 = vld [vmem:[#allocation2 + $0xa08] sm:$0xff]
    %v1127 = vld [vmem:[#allocation2 + $0xa10] sm:$0xff]
    %v1128 = vld [vmem:[#allocation2 + $0xa18] sm:$0xff]
    %v1129 = vld [vmem:[#allocation2 + $0xa20] sm:$0xff]
    %v1130 = vld [vmem:[#allocation2 + $0xa28] sm:$0xff]
    %v1131 = vld [vmem:[#allocation2 + $0xa30] sm:$0xff]
    %v1132 = vld [vmem:[#allocation2 + $0xa38] sm:$0xff]
    %v1133 = vld [vmem:[#allocation2 + $0xa40] sm:$0xff]
    %v1134 = vld [vmem:[#allocation2 + $0xa48] sm:$0xff]
    %v1135 = vld [vmem:[#allocation2 + $0xa50] sm:$0xff]
    %v1136 = vld [vmem:[#allocation2 + $0xa58] sm:$0xff]
    %v1137 = vld [vmem:[#allocation2 + $0xa60] sm:$0xff]
    %v1138 = vld [vmem:[#allocation2 + $0xa68] sm:$0xff]
    %v1139 = vld [vmem:[#allocation2 + $0xa70] sm:$0xff]
    %v1140 = vld [vmem:[#allocation2 + $0xa78] sm:$0xff]
    %v1141 = vld [vmem:[#allocation2 + $0xa80] sm:$0xff]
    %v1142 = vld [vmem:[#allocation2 + $0xa88] sm:$0xff]
    %v1143 = vld [vmem:[#allocation2 + $0xa90] sm:$0xff]
    %v1144 = vld [vmem:[#allocation2 + $0xa98] sm:$0xff]
    %v1145 = vld [vmem:[#allocation2 + $0xaa0] sm:$0xff]
    %v1146 = vld [vmem:[#allocation2 + $0xaa8] sm:$0xff]
    %v1147 = vld [vmem:[#allocation2 + $0xab0] sm:$0xff]
    %v1148 = vld [vmem:[#allocation2 + $0xab8] sm:$0xff]
    %v1149 = vld [vmem:[#allocation2 + $0xac0] sm:$0xff]
    %v1150 = vld [vmem:[#allocation2 + $0xac8] sm:$0xff]
    %v1151 = vld [vmem:[#allocation2 + $0xad0] sm:$0xff]
    %v1152 = vld [vmem:[#allocation2 + $0xad8] sm:$0xff]
    %v1153 = vld [vmem:[#allocation2 + $0xae0] sm:$0xff]
    %v1154 = vld [vmem:[#allocation2 + $0xae8] sm:$0xff]
    %v1155 = vld [vmem:[#allocation2 + $0xaf0] sm:$0xff]
    %v1156 = vld [vmem:[#allocation2 + $0xaf8] sm:$0xff]
    %v1157 = vld [vmem:[#allocation2 + $0xb00] sm:$0xff]
    %v1158 = vld [vmem:[#allocation2 + $0xb08] sm:$0xff]
    %v1159 = vld [vmem:[#allocation2 + $0xb10] sm:$0xff]
    %v1160 = vld [vmem:[#allocation2 + $0xb18] sm:$0xff]
    %v1161 = vld [vmem:[#allocation2 + $0xb20] sm:$0xff]
    %v1162 = vld [vmem:[#allocation2 + $0xb28] sm:$0xff]
    %v1163 = vld [vmem:[#allocation2 + $0xb30] sm:$0xff]
    %v1164 = vld [vmem:[#allocation2 + $0xb38] sm:$0xff]
    %v1165 = vld [vmem:[#allocation2 + $0xb40] sm:$0xff]
    %v1166 = vld [vmem:[#allocation2 + $0xb48] sm:$0xff]
    %v1167 = vld [vmem:[#allocation2 + $0xb50] sm:$0xff]
    %v1168 = vld [vmem:[#allocation2 + $0xb58] sm:$0xff]
    %v1169 = vld [vmem:[#allocation2 + $0xb60] sm:$0xff]
    %v1170 = vld [vmem:[#allocation2 + $0xb68] sm:$0xff]
    %v1171 = vld [vmem:[#allocation2 + $0xb70] sm:$0xff]
    %v1172 = vld [vmem:[#allocation2 + $0xb78] sm:$0xff]
    %v1173 = vld [vmem:[#allocation2 + $0xb80] sm:$0xff]
    %v1174 = vld [vmem:[#allocation2 + $0xb88] sm:$0xff]
    %v1175 = vld [vmem:[#allocation2 + $0xb90] sm:$0xff]
    %v1176 = vld [vmem:[#allocation2 + $0xb98] sm:$0xff]
    %v1177 = vld [vmem:[#allocation2 + $0xba0] sm:$0xff]
    %v1178 = vld [vmem:[#allocation2 + $0xba8] sm:$0xff]
    %v1179 = vld [vmem:[#allocation2 + $0xbb0] sm:$0xff]
    %v1180 = vld [vmem:[#allocation2 + $0xbb8] sm:$0xff]
    %v1181 = vld [vmem:[#allocation2 + $0xbc0] sm:$0xff]
    %v1182 = vld [vmem:[#allocation2 + $0xbc8] sm:$0xff]
    %v1183 = vld [vmem:[#allocation2 + $0xbd0] sm:$0xff]
    %v1184 = vld [vmem:[#allocation2 + $0xbd8] sm:$0xff]
    %v1185 = vld [vmem:[#allocation2 + $0xbe0] sm:$0xff]
    %v1186 = vld [vmem:[#allocation2 + $0xbe8] sm:$0xff]
    %v1187 = vld [vmem:[#allocation2 + $0xbf0] sm:$0xff]
    %v1188 = vld [vmem:[#allocation2 + $0xbf8] sm:$0xff]
    %v1189 = vld [vmem:[#allocation2 + $0xc00] sm:$0xff]
    %v1190 = vld [vmem:[#allocation2 + $0xc08] sm:$0xff]
    %v1191 = vld [vmem:[#allocation2 + $0xc10] sm:$0xff]
    %v1192 = vld [vmem:[#allocation2 + $0xc18] sm:$0xff]
    %v1193 = vld [vmem:[#allocation2 + $0xc20] sm:$0xff]
    %v1194 = vld [vmem:[#allocation2 + $0xc28] sm:$0xff]
    %v1195 = vld [vmem:[#allocation2 + $0xc30] sm:$0xff]
    %v1196 = vld [vmem:[#allocation2 + $0xc38] sm:$0xff]
    %v1197 = vld [vmem:[#allocation2 + $0xc40] sm:$0xff]
    %v1198 = vld [vmem:[#allocation2 + $0xc48] sm:$0xff]
    %v1199 = vld [vmem:[#allocation2 + $0xc50] sm:$0xff]
    %v1200 = vld [vmem:[#allocation2 + $0xc58] sm:$0xff]
    %v1201 = vld [vmem:[#allocation2 + $0xc60] sm:$0xff]
    %v1202 = vld [vmem:[#allocation2 + $0xc68] sm:$0xff]
    %v1203 = vld [vmem:[#allocation2 + $0xc70] sm:$0xff]
    %v1204 = vld [vmem:[#allocation2 + $0xc78] sm:$0xff]
    %v1205 = vld [vmem:[#allocation2 + $0xc80] sm:$0xff]
    %v1206 = vld [vmem:[#allocation2 + $0xc88] sm:$0xff]
    %v1207 = vld [vmem:[#allocation2 + $0xc90] sm:$0xff]
    %v1208 = vld [vmem:[#allocation2 + $0xc98] sm:$0xff]
    %v1209 = vld [vmem:[#allocation2 + $0xca0] sm:$0xff]
    %v1210 = vld [vmem:[#allocation2 + $0xca8] sm:$0xff]
    %v1211 = vld [vmem:[#allocation2 + $0xcb0] sm:$0xff]
    %v1212 = vld [vmem:[#allocation2 + $0xcb8] sm:$0xff]
    %v1213 = vld [vmem:[#allocation2 + $0xcc0] sm:$0xff]
    %v1214 = vld [vmem:[#allocation2 + $0xcc8] sm:$0xff]
    %v1215 = vld [vmem:[#allocation2 + $0xcd0] sm:$0xff]
    %v1216 = vld [vmem:[#allocation2 + $0xcd8] sm:$0xff]
    %v1217 = vld [vmem:[#allocation2 + $0xce0] sm:$0xff]
    %v1218 = vld [vmem:[#allocation2 + $0xce8] sm:$0xff]
    %v1219 = vld [vmem:[#allocation2 + $0xcf0] sm:$0xff]
    %v1220 = vld [vmem:[#allocation2 + $0xcf8] sm:$0xff]
    %v1221 = vld [vmem:[#allocation2 + $0xd00] sm:$0xff]
    %v1222 = vld [vmem:[#allocation2 + $0xd08] sm:$0xff]
    %v1223 = vld [vmem:[#allocation2 + $0xd10] sm:$0xff]
    %v1224 = vld [vmem:[#allocation2 + $0xd18] sm:$0xff]
    %v1225 = vld [vmem:[#allocation2 + $0xd20] sm:$0xff]
    %v1226 = vld [vmem:[#allocation2 + $0xd28] sm:$0xff]
    %v1227 = vld [vmem:[#allocation2 + $0xd30] sm:$0xff]
    %v1228 = vld [vmem:[#allocation2 + $0xd38] sm:$0xff]
    %v1229 = vld [vmem:[#allocation2 + $0xd40] sm:$0xff]
    %v1230 = vld [vmem:[#allocation2 + $0xd48] sm:$0xff]
    %v1231 = vld [vmem:[#allocation2 + $0xd50] sm:$0xff]
    %v1232 = vld [vmem:[#allocation2 + $0xd58] sm:$0xff]
    %v1233 = vld [vmem:[#allocation2 + $0xd60] sm:$0xff]
    %v1234 = vld [vmem:[#allocation2 + $0xd68] sm:$0xff]
    %v1235 = vld [vmem:[#allocation2 + $0xd70] sm:$0xff]
    %v1236 = vld [vmem:[#allocation2 + $0xd78] sm:$0xff]
    %v1237 = vld [vmem:[#allocation2 + $0xd80] sm:$0xff]
    %v1238 = vld [vmem:[#allocation2 + $0xd88] sm:$0xff]
    %v1239 = vld [vmem:[#allocation2 + $0xd90] sm:$0xff]
    %v1240 = vld [vmem:[#allocation2 + $0xd98] sm:$0xff]
    %v1241 = vld [vmem:[#allocation2 + $0xda0] sm:$0xff]
    %v1242 = vld [vmem:[#allocation2 + $0xda8] sm:$0xff]
    %v1243 = vld [vmem:[#allocation2 + $0xdb0] sm:$0xff]
    %v1244 = vld [vmem:[#allocation2 + $0xdb8] sm:$0xff]
    %v1245 = vld [vmem:[#allocation2 + $0xdc0] sm:$0xff]
    %v1246 = vld [vmem:[#allocation2 + $0xdc8] sm:$0xff]
    %v1247 = vld [vmem:[#allocation2 + $0xdd0] sm:$0xff]
    %v1248 = vld [vmem:[#allocation2 + $0xdd8] sm:$0xff]
    %v1249 = vld [vmem:[#allocation2 + $0xde0] sm:$0xff]
    %v1250 = vld [vmem:[#allocation2 + $0xde8] sm:$0xff]
    %v1251 = vld [vmem:[#allocation2 + $0xdf0] sm:$0xff]
    %v1252 = vld [vmem:[#allocation2 + $0xdf8] sm:$0xff]
    %v1253 = vld [vmem:[#allocation2 + $0xe00] sm:$0xff]
    %v1254 = vld [vmem:[#allocation2 + $0xe08] sm:$0xff]
    %v1255 = vld [vmem:[#allocation2 + $0xe10] sm:$0xff]
    %v1256 = vld [vmem:[#allocation2 + $0xe18] sm:$0xff]
    %v1257 = vld [vmem:[#allocation2 + $0xe20] sm:$0xff]
    %v1258 = vld [vmem:[#allocation2 + $0xe28] sm:$0xff]
    %v1259 = vld [vmem:[#allocation2 + $0xe30] sm:$0xff]
    %v1260 = vld [vmem:[#allocation2 + $0xe38] sm:$0xff]
    %v1261 = vld [vmem:[#allocation2 + $0xe40] sm:$0xff]
    %v1262 = vld [vmem:[#allocation2 + $0xe48] sm:$0xff]
    %v1263 = vld [vmem:[#allocation2 + $0xe50] sm:$0xff]
    %v1264 = vld [vmem:[#allocation2 + $0xe58] sm:$0xff]
    %v1265 = vld [vmem:[#allocation2 + $0xe60] sm:$0xff]
    %v1266 = vld [vmem:[#allocation2 + $0xe68] sm:$0xff]
    %v1267 = vld [vmem:[#allocation2 + $0xe70] sm:$0xff]
    %v1268 = vld [vmem:[#allocation2 + $0xe78] sm:$0xff]
    %v1269 = vld [vmem:[#allocation2 + $0xe80] sm:$0xff]
    %v1270 = vld [vmem:[#allocation2 + $0xe88] sm:$0xff]
    %v1271 = vld [vmem:[#allocation2 + $0xe90] sm:$0xff]
    %v1272 = vld [vmem:[#allocation2 + $0xe98] sm:$0xff]
    %v1273 = vld [vmem:[#allocation2 + $0xea0] sm:$0xff]
    %v1274 = vld [vmem:[#allocation2 + $0xea8] sm:$0xff]
    %v1275 = vld [vmem:[#allocation2 + $0xeb0] sm:$0xff]
    %v1276 = vld [vmem:[#allocation2 + $0xeb8] sm:$0xff]
    %v1277 = vld [vmem:[#allocation2 + $0xec0] sm:$0xff]
    %v1278 = vld [vmem:[#allocation2 + $0xec8] sm:$0xff]
    %v1279 = vld [vmem:[#allocation2 + $0xed0] sm:$0xff]
    %v1280 = vld [vmem:[#allocation2 + $0xed8] sm:$0xff]
    %v1281 = vld [vmem:[#allocation2 + $0xee0] sm:$0xff]
    %v1282 = vld [vmem:[#allocation2 + $0xee8] sm:$0xff]
    %v1283 = vld [vmem:[#allocation2 + $0xef0] sm:$0xff]
    %v1284 = vld [vmem:[#allocation2 + $0xef8] sm:$0xff]
    %v1285 = vld [vmem:[#allocation2 + $0xf00] sm:$0xff]
    %v1286 = vld [vmem:[#allocation2 + $0xf08] sm:$0xff]
    %v1287 = vld [vmem:[#allocation2 + $0xf10] sm:$0xff]
    %v1288 = vld [vmem:[#allocation2 + $0xf18] sm:$0xff]
    %v1289 = vld [vmem:[#allocation2 + $0xf20] sm:$0xff]
    %v1290 = vld [vmem:[#allocation2 + $0xf28] sm:$0xff]
    %v1291 = vld [vmem:[#allocation2 + $0xf30] sm:$0xff]
    %v1292 = vld [vmem:[#allocation2 + $0xf38] sm:$0xff]
    %v1293 = vld [vmem:[#allocation2 + $0xf40] sm:$0xff]
    %v1294 = vld [vmem:[#allocation2 + $0xf48] sm:$0xff]
    %v1295 = vld [vmem:[#allocation2 + $0xf50] sm:$0xff]
    %v1296 = vld [vmem:[#allocation2 + $0xf58] sm:$0xff]
    %v1297 = vld [vmem:[#allocation2 + $0xf60] sm:$0xff]
    %v1298 = vld [vmem:[#allocation2 + $0xf68] sm:$0xff]
    %v1299 = vld [vmem:[#allocation2 + $0xf70] sm:$0xff]
    %v1300 = vld [vmem:[#allocation2 + $0xf78] sm:$0xff]
    %v1301 = vld [vmem:[#allocation2 + $0xf80] sm:$0xff]
    %v1302 = vld [vmem:[#allocation2 + $0xf88] sm:$0xff]
    %v1303 = vld [vmem:[#allocation2 + $0xf90] sm:$0xff]
    %v1304 = vld [vmem:[#allocation2 + $0xf98] sm:$0xff]
    %v1305 = vld [vmem:[#allocation2 + $0xfa0] sm:$0xff]
    %v1306 = vld [vmem:[#allocation2 + $0xfa8] sm:$0xff]
    %v1307 = vld [vmem:[#allocation2 + $0xfb0] sm:$0xff]
    %v1308 = vld [vmem:[#allocation2 + $0xfb8] sm:$0xff]
    %v1309 = vld [vmem:[#allocation2 + $0xfc0] sm:$0xff]
    %v1310 = vld [vmem:[#allocation2 + $0xfc8] sm:$0xff]
    %v1311 = vld [vmem:[#allocation2 + $0xfd0] sm:$0xff]
    %v1312 = vld [vmem:[#allocation2 + $0xfd8] sm:$0xff]
    %v1313 = vld [vmem:[#allocation2 + $0xfe0] sm:$0xff]
    %v1314 = vld [vmem:[#allocation2 + $0xfe8] sm:$0xff]
    %v1315 = vld [vmem:[#allocation2 + $0xff0] sm:$0xff]
    %v1316 = vld [vmem:[#allocation2 + $0xff8] sm:$0xff]
    %v1829 = vunpack.c.l.b16 %v805
    %v1830 = vunpack.c.h.b16 %v805
    %v1831 = vunpack.c.l.b16 %v806
    %v1832 = vunpack.c.h.b16 %v806
    %v1833 = vunpack.c.l.b16 %v807
    %v1834 = vunpack.c.h.b16 %v807
    %v1835 = vunpack.c.l.b16 %v808
    %v1836 = vunpack.c.h.b16 %v808
    %v1837 = vunpack.c.l.b16 %v809
    %v1838 = vunpack.c.h.b16 %v809
    %v1839 = vunpack.c.l.b16 %v810
    %v1840 = vunpack.c.h.b16 %v810
    %v1841 = vunpack.c.l.b16 %v811
    %v1842 = vunpack.c.h.b16 %v811
    %v1843 = vunpack.c.l.b16 %v812
    %v1844 = vunpack.c.h.b16 %v812
    %v1845 = vunpack.c.l.b16 %v813
    %v1846 = vunpack.c.h.b16 %v813
    %v1847 = vunpack.c.l.b16 %v814
    %v1848 = vunpack.c.h.b16 %v814
    %v1849 = vunpack.c.l.b16 %v815
    %v1850 = vunpack.c.h.b16 %v815
    %v1851 = vunpack.c.l.b16 %v816
    %v1852 = vunpack.c.h.b16 %v816
    %v1853 = vunpack.c.l.b16 %v817
    %v1854 = vunpack.c.h.b16 %v817
    %v1855 = vunpack.c.l.b16 %v818
    %v1856 = vunpack.c.h.b16 %v818
    %v1857 = vunpack.c.l.b16 %v819
    %v1858 = vunpack.c.h.b16 %v819
    %v1859 = vunpack.c.l.b16 %v820
    %v1860 = vunpack.c.h.b16 %v820
    %v1861 = vunpack.c.l.b16 %v821
    %v1862 = vunpack.c.h.b16 %v821
    %v1863 = vunpack.c.l.b16 %v822
    %v1864 = vunpack.c.h.b16 %v822
    %v1865 = vunpack.c.l.b16 %v823
    %v1866 = vunpack.c.h.b16 %v823
    %v1867 = vunpack.c.l.b16 %v824
    %v1868 = vunpack.c.h.b16 %v824
    %v1869 = vunpack.c.l.b16 %v825
    %v1870 = vunpack.c.h.b16 %v825
    %v1871 = vunpack.c.l.b16 %v826
    %v1872 = vunpack.c.h.b16 %v826
    %v1873 = vunpack.c.l.b16 %v827
    %v1874 = vunpack.c.h.b16 %v827
    %v1875 = vunpack.c.l.b16 %v828
    %v1876 = vunpack.c.h.b16 %v828
    %v1877 = vunpack.c.l.b16 %v829
    %v1878 = vunpack.c.h.b16 %v829
    %v1879 = vunpack.c.l.b16 %v830
    %v1880 = vunpack.c.h.b16 %v830
    %v1881 = vunpack.c.l.b16 %v831
    %v1882 = vunpack.c.h.b16 %v831
    %v1883 = vunpack.c.l.b16 %v832
    %v1884 = vunpack.c.h.b16 %v832
    %v1885 = vunpack.c.l.b16 %v833
    %v1886 = vunpack.c.h.b16 %v833
    %v1887 = vunpack.c.l.b16 %v834
    %v1888 = vunpack.c.h.b16 %v834
    %v1889 = vunpack.c.l.b16 %v835
    %v1890 = vunpack.c.h.b16 %v835
    %v1891 = vunpack.c.l.b16 %v836
    %v1892 = vunpack.c.h.b16 %v836
    %v1893 = vunpack.c.l.b16 %v837
    %v1894 = vunpack.c.h.b16 %v837
    %v1895 = vunpack.c.l.b16 %v838
    %v1896 = vunpack.c.h.b16 %v838
    %v1897 = vunpack.c.l.b16 %v839
    %v1898 = vunpack.c.h.b16 %v839
    %v1899 = vunpack.c.l.b16 %v840
    %v1900 = vunpack.c.h.b16 %v840
    %v1901 = vunpack.c.l.b16 %v841
    %v1902 = vunpack.c.h.b16 %v841
    %v1903 = vunpack.c.l.b16 %v842
    %v1904 = vunpack.c.h.b16 %v842
    %v1905 = vunpack.c.l.b16 %v843
    %v1906 = vunpack.c.h.b16 %v843
    %v1907 = vunpack.c.l.b16 %v844
    %v1908 = vunpack.c.h.b16 %v844
    %v1909 = vunpack.c.l.b16 %v845
    %v1910 = vunpack.c.h.b16 %v845
    %v1911 = vunpack.c.l.b16 %v846
    %v1912 = vunpack.c.h.b16 %v846
    %v1913 = vunpack.c.l.b16 %v847
    %v1914 = vunpack.c.h.b16 %v847
    %v1915 = vunpack.c.l.b16 %v848
    %v1916 = vunpack.c.h.b16 %v848
    %v1917 = vunpack.c.l.b16 %v849
    %v1918 = vunpack.c.h.b16 %v849
    %v1919 = vunpack.c.l.b16 %v850
    %v1920 = vunpack.c.h.b16 %v850
    %v1921 = vunpack.c.l.b16 %v851
    %v1922 = vunpack.c.h.b16 %v851
    %v1923 = vunpack.c.l.b16 %v852
    %v1924 = vunpack.c.h.b16 %v852
    %v1925 = vunpack.c.l.b16 %v853
    %v1926 = vunpack.c.h.b16 %v853
    %v1927 = vunpack.c.l.b16 %v854
    %v1928 = vunpack.c.h.b16 %v854
    %v1929 = vunpack.c.l.b16 %v855
    %v1930 = vunpack.c.h.b16 %v855
    %v1931 = vunpack.c.l.b16 %v856
    %v1932 = vunpack.c.h.b16 %v856
    %v1933 = vunpack.c.l.b16 %v857
    %v1934 = vunpack.c.h.b16 %v857
    %v1935 = vunpack.c.l.b16 %v858
    %v1936 = vunpack.c.h.b16 %v858
    %v1937 = vunpack.c.l.b16 %v859
    %v1938 = vunpack.c.h.b16 %v859
    %v1939 = vunpack.c.l.b16 %v860
    %v1940 = vunpack.c.h.b16 %v860
    %v1941 = vunpack.c.l.b16 %v861
    %v1942 = vunpack.c.h.b16 %v861
    %v1943 = vunpack.c.l.b16 %v862
    %v1944 = vunpack.c.h.b16 %v862
    %v1945 = vunpack.c.l.b16 %v863
    %v1946 = vunpack.c.h.b16 %v863
    %v1947 = vunpack.c.l.b16 %v864
    %v1948 = vunpack.c.h.b16 %v864
    %v1949 = vunpack.c.l.b16 %v865
    %v1950 = vunpack.c.h.b16 %v865
    %v1951 = vunpack.c.l.b16 %v866
    %v1952 = vunpack.c.h.b16 %v866
    %v1953 = vunpack.c.l.b16 %v867
    %v1954 = vunpack.c.h.b16 %v867
    %v1955 = vunpack.c.l.b16 %v868
    %v1956 = vunpack.c.h.b16 %v868
    %v1957 = vunpack.c.l.b16 %v869
    %v1958 = vunpack.c.h.b16 %v869
    %v1959 = vunpack.c.l.b16 %v870
    %v1960 = vunpack.c.h.b16 %v870
    %v1961 = vunpack.c.l.b16 %v871
    %v1962 = vunpack.c.h.b16 %v871
    %v1963 = vunpack.c.l.b16 %v872
    %v1964 = vunpack.c.h.b16 %v872
    %v1965 = vunpack.c.l.b16 %v873
    %v1966 = vunpack.c.h.b16 %v873
    %v1967 = vunpack.c.l.b16 %v874
    %v1968 = vunpack.c.h.b16 %v874
    %v1969 = vunpack.c.l.b16 %v875
    %v1970 = vunpack.c.h.b16 %v875
    %v1971 = vunpack.c.l.b16 %v876
    %v1972 = vunpack.c.h.b16 %v876
    %v1973 = vunpack.c.l.b16 %v877
    %v1974 = vunpack.c.h.b16 %v877
    %v1975 = vunpack.c.l.b16 %v878
    %v1976 = vunpack.c.h.b16 %v878
    %v1977 = vunpack.c.l.b16 %v879
    %v1978 = vunpack.c.h.b16 %v879
    %v1979 = vunpack.c.l.b16 %v880
    %v1980 = vunpack.c.h.b16 %v880
    %v1981 = vunpack.c.l.b16 %v881
    %v1982 = vunpack.c.h.b16 %v881
    %v1983 = vunpack.c.l.b16 %v882
    %v1984 = vunpack.c.h.b16 %v882
    %v1985 = vunpack.c.l.b16 %v883
    %v1986 = vunpack.c.h.b16 %v883
    %v1987 = vunpack.c.l.b16 %v884
    %v1988 = vunpack.c.h.b16 %v884
    %v1989 = vunpack.c.l.b16 %v885
    %v1990 = vunpack.c.h.b16 %v885
    %v1991 = vunpack.c.l.b16 %v886
    %v1992 = vunpack.c.h.b16 %v886
    %v1993 = vunpack.c.l.b16 %v887
    %v1994 = vunpack.c.h.b16 %v887
    %v1995 = vunpack.c.l.b16 %v888
    %v1996 = vunpack.c.h.b16 %v888
    %v1997 = vunpack.c.l.b16 %v889
    %v1998 = vunpack.c.h.b16 %v889
    %v1999 = vunpack.c.l.b16 %v890
    %v2000 = vunpack.c.h.b16 %v890
    %v2001 = vunpack.c.l.b16 %v891
    %v2002 = vunpack.c.h.b16 %v891
    %v2003 = vunpack.c.l.b16 %v892
    %v2004 = vunpack.c.h.b16 %v892
    %v2005 = vunpack.c.l.b16 %v893
    %v2006 = vunpack.c.h.b16 %v893
    %v2007 = vunpack.c.l.b16 %v894
    %v2008 = vunpack.c.h.b16 %v894
    %v2009 = vunpack.c.l.b16 %v895
    %v2010 = vunpack.c.h.b16 %v895
    %v2011 = vunpack.c.l.b16 %v896
    %v2012 = vunpack.c.h.b16 %v896
    %v2013 = vunpack.c.l.b16 %v897
    %v2014 = vunpack.c.h.b16 %v897
    %v2015 = vunpack.c.l.b16 %v898
    %v2016 = vunpack.c.h.b16 %v898
    %v2017 = vunpack.c.l.b16 %v899
    %v2018 = vunpack.c.h.b16 %v899
    %v2019 = vunpack.c.l.b16 %v900
    %v2020 = vunpack.c.h.b16 %v900
    %v2021 = vunpack.c.l.b16 %v901
    %v2022 = vunpack.c.h.b16 %v901
    %v2023 = vunpack.c.l.b16 %v902
    %v2024 = vunpack.c.h.b16 %v902
    %v2025 = vunpack.c.l.b16 %v903
    %v2026 = vunpack.c.h.b16 %v903
    %v2027 = vunpack.c.l.b16 %v904
    %v2028 = vunpack.c.h.b16 %v904
    %v2029 = vunpack.c.l.b16 %v905
    %v2030 = vunpack.c.h.b16 %v905
    %v2031 = vunpack.c.l.b16 %v906
    %v2032 = vunpack.c.h.b16 %v906
    %v2033 = vunpack.c.l.b16 %v907
    %v2034 = vunpack.c.h.b16 %v907
    %v2035 = vunpack.c.l.b16 %v908
    %v2036 = vunpack.c.h.b16 %v908
    %v2037 = vunpack.c.l.b16 %v909
    %v2038 = vunpack.c.h.b16 %v909
    %v2039 = vunpack.c.l.b16 %v910
    %v2040 = vunpack.c.h.b16 %v910
    %v2041 = vunpack.c.l.b16 %v911
    %v2042 = vunpack.c.h.b16 %v911
    %v2043 = vunpack.c.l.b16 %v912
    %v2044 = vunpack.c.h.b16 %v912
    %v2045 = vunpack.c.l.b16 %v913
    %v2046 = vunpack.c.h.b16 %v913
    %v2047 = vunpack.c.l.b16 %v914
    %v2048 = vunpack.c.h.b16 %v914
    %v2049 = vunpack.c.l.b16 %v915
    %v2050 = vunpack.c.h.b16 %v915
    %v2051 = vunpack.c.l.b16 %v916
    %v2052 = vunpack.c.h.b16 %v916
    %v2053 = vunpack.c.l.b16 %v917
    %v2054 = vunpack.c.h.b16 %v917
    %v2055 = vunpack.c.l.b16 %v918
    %v2056 = vunpack.c.h.b16 %v918
    %v2057 = vunpack.c.l.b16 %v919
    %v2058 = vunpack.c.h.b16 %v919
    %v2059 = vunpack.c.l.b16 %v920
    %v2060 = vunpack.c.h.b16 %v920
    %v2061 = vunpack.c.l.b16 %v921
    %v2062 = vunpack.c.h.b16 %v921
    %v2063 = vunpack.c.l.b16 %v922
    %v2064 = vunpack.c.h.b16 %v922
    %v2065 = vunpack.c.l.b16 %v923
    %v2066 = vunpack.c.h.b16 %v923
    %v2067 = vunpack.c.l.b16 %v924
    %v2068 = vunpack.c.h.b16 %v924
    %v2069 = vunpack.c.l.b16 %v925
    %v2070 = vunpack.c.h.b16 %v925
    %v2071 = vunpack.c.l.b16 %v926
    %v2072 = vunpack.c.h.b16 %v926
    %v2073 = vunpack.c.l.b16 %v927
    %v2074 = vunpack.c.h.b16 %v927
    %v2075 = vunpack.c.l.b16 %v928
    %v2076 = vunpack.c.h.b16 %v928
    %v2077 = vunpack.c.l.b16 %v929
    %v2078 = vunpack.c.h.b16 %v929
    %v2079 = vunpack.c.l.b16 %v930
    %v2080 = vunpack.c.h.b16 %v930
    %v2081 = vunpack.c.l.b16 %v931
    %v2082 = vunpack.c.h.b16 %v931
    %v2083 = vunpack.c.l.b16 %v932
    %v2084 = vunpack.c.h.b16 %v932
    %v2085 = vunpack.c.l.b16 %v933
    %v2086 = vunpack.c.h.b16 %v933
    %v2087 = vunpack.c.l.b16 %v934
    %v2088 = vunpack.c.h.b16 %v934
    %v2089 = vunpack.c.l.b16 %v935
    %v2090 = vunpack.c.h.b16 %v935
    %v2091 = vunpack.c.l.b16 %v936
    %v2092 = vunpack.c.h.b16 %v936
    %v2093 = vunpack.c.l.b16 %v937
    %v2094 = vunpack.c.h.b16 %v937
    %v2095 = vunpack.c.l.b16 %v938
    %v2096 = vunpack.c.h.b16 %v938
    %v2097 = vunpack.c.l.b16 %v939
    %v2098 = vunpack.c.h.b16 %v939
    %v2099 = vunpack.c.l.b16 %v940
    %v2100 = vunpack.c.h.b16 %v940
    %v2101 = vunpack.c.l.b16 %v941
    %v2102 = vunpack.c.h.b16 %v941
    %v2103 = vunpack.c.l.b16 %v942
    %v2104 = vunpack.c.h.b16 %v942
    %v2105 = vunpack.c.l.b16 %v943
    %v2106 = vunpack.c.h.b16 %v943
    %v2107 = vunpack.c.l.b16 %v944
    %v2108 = vunpack.c.h.b16 %v944
    %v2109 = vunpack.c.l.b16 %v945
    %v2110 = vunpack.c.h.b16 %v945
    %v2111 = vunpack.c.l.b16 %v946
    %v2112 = vunpack.c.h.b16 %v946
    %v2113 = vunpack.c.l.b16 %v947
    %v2114 = vunpack.c.h.b16 %v947
    %v2115 = vunpack.c.l.b16 %v948
    %v2116 = vunpack.c.h.b16 %v948
    %v2117 = vunpack.c.l.b16 %v949
    %v2118 = vunpack.c.h.b16 %v949
    %v2119 = vunpack.c.l.b16 %v950
    %v2120 = vunpack.c.h.b16 %v950
    %v2121 = vunpack.c.l.b16 %v951
    %v2122 = vunpack.c.h.b16 %v951
    %v2123 = vunpack.c.l.b16 %v952
    %v2124 = vunpack.c.h.b16 %v952
    %v2125 = vunpack.c.l.b16 %v953
    %v2126 = vunpack.c.h.b16 %v953
    %v2127 = vunpack.c.l.b16 %v954
    %v2128 = vunpack.c.h.b16 %v954
    %v2129 = vunpack.c.l.b16 %v955
    %v2130 = vunpack.c.h.b16 %v955
    %v2131 = vunpack.c.l.b16 %v956
    %v2132 = vunpack.c.h.b16 %v956
    %v2133 = vunpack.c.l.b16 %v957
    %v2134 = vunpack.c.h.b16 %v957
    %v2135 = vunpack.c.l.b16 %v958
    %v2136 = vunpack.c.h.b16 %v958
    %v2137 = vunpack.c.l.b16 %v959
    %v2138 = vunpack.c.h.b16 %v959
    %v2139 = vunpack.c.l.b16 %v960
    %v2140 = vunpack.c.h.b16 %v960
    %v2141 = vunpack.c.l.b16 %v961
    %v2142 = vunpack.c.h.b16 %v961
    %v2143 = vunpack.c.l.b16 %v962
    %v2144 = vunpack.c.h.b16 %v962
    %v2145 = vunpack.c.l.b16 %v963
    %v2146 = vunpack.c.h.b16 %v963
    %v2147 = vunpack.c.l.b16 %v964
    %v2148 = vunpack.c.h.b16 %v964
    %v2149 = vunpack.c.l.b16 %v965
    %v2150 = vunpack.c.h.b16 %v965
    %v2151 = vunpack.c.l.b16 %v966
    %v2152 = vunpack.c.h.b16 %v966
    %v2153 = vunpack.c.l.b16 %v967
    %v2154 = vunpack.c.h.b16 %v967
    %v2155 = vunpack.c.l.b16 %v968
    %v2156 = vunpack.c.h.b16 %v968
    %v2157 = vunpack.c.l.b16 %v969
    %v2158 = vunpack.c.h.b16 %v969
    %v2159 = vunpack.c.l.b16 %v970
    %v2160 = vunpack.c.h.b16 %v970
    %v2161 = vunpack.c.l.b16 %v971
    %v2162 = vunpack.c.h.b16 %v971
    %v2163 = vunpack.c.l.b16 %v972
    %v2164 = vunpack.c.h.b16 %v972
    %v2165 = vunpack.c.l.b16 %v973
    %v2166 = vunpack.c.h.b16 %v973
    %v2167 = vunpack.c.l.b16 %v974
    %v2168 = vunpack.c.h.b16 %v974
    %v2169 = vunpack.c.l.b16 %v975
    %v2170 = vunpack.c.h.b16 %v975
    %v2171 = vunpack.c.l.b16 %v976
    %v2172 = vunpack.c.h.b16 %v976
    %v2173 = vunpack.c.l.b16 %v977
    %v2174 = vunpack.c.h.b16 %v977
    %v2175 = vunpack.c.l.b16 %v978
    %v2176 = vunpack.c.h.b16 %v978
    %v2177 = vunpack.c.l.b16 %v979
    %v2178 = vunpack.c.h.b16 %v979
    %v2179 = vunpack.c.l.b16 %v980
    %v2180 = vunpack.c.h.b16 %v980
    %v2181 = vunpack.c.l.b16 %v981
    %v2182 = vunpack.c.h.b16 %v981
    %v2183 = vunpack.c.l.b16 %v982
    %v2184 = vunpack.c.h.b16 %v982
    %v2185 = vunpack.c.l.b16 %v983
    %v2186 = vunpack.c.h.b16 %v983
    %v2187 = vunpack.c.l.b16 %v984
    %v2188 = vunpack.c.h.b16 %v984
    %v2189 = vunpack.c.l.b16 %v985
    %v2190 = vunpack.c.h.b16 %v985
    %v2191 = vunpack.c.l.b16 %v986
    %v2192 = vunpack.c.h.b16 %v986
    %v2193 = vunpack.c.l.b16 %v987
    %v2194 = vunpack.c.h.b16 %v987
    %v2195 = vunpack.c.l.b16 %v988
    %v2196 = vunpack.c.h.b16 %v988
    %v2197 = vunpack.c.l.b16 %v989
    %v2198 = vunpack.c.h.b16 %v989
    %v2199 = vunpack.c.l.b16 %v990
    %v2200 = vunpack.c.h.b16 %v990
    %v2201 = vunpack.c.l.b16 %v991
    %v2202 = vunpack.c.h.b16 %v991
    %v2203 = vunpack.c.l.b16 %v992
    %v2204 = vunpack.c.h.b16 %v992
    %v2205 = vunpack.c.l.b16 %v993
    %v2206 = vunpack.c.h.b16 %v993
    %v2207 = vunpack.c.l.b16 %v994
    %v2208 = vunpack.c.h.b16 %v994
    %v2209 = vunpack.c.l.b16 %v995
    %v2210 = vunpack.c.h.b16 %v995
    %v2211 = vunpack.c.l.b16 %v996
    %v2212 = vunpack.c.h.b16 %v996
    %v2213 = vunpack.c.l.b16 %v997
    %v2214 = vunpack.c.h.b16 %v997
    %v2215 = vunpack.c.l.b16 %v998
    %v2216 = vunpack.c.h.b16 %v998
    %v2217 = vunpack.c.l.b16 %v999
    %v2218 = vunpack.c.h.b16 %v999
    %v2219 = vunpack.c.l.b16 %v1000
    %v2220 = vunpack.c.h.b16 %v1000
    %v2221 = vunpack.c.l.b16 %v1001
    %v2222 = vunpack.c.h.b16 %v1001
    %v2223 = vunpack.c.l.b16 %v1002
    %v2224 = vunpack.c.h.b16 %v1002
    %v2225 = vunpack.c.l.b16 %v1003
    %v2226 = vunpack.c.h.b16 %v1003
    %v2227 = vunpack.c.l.b16 %v1004
    %v2228 = vunpack.c.h.b16 %v1004
    %v2229 = vunpack.c.l.b16 %v1005
    %v2230 = vunpack.c.h.b16 %v1005
    %v2231 = vunpack.c.l.b16 %v1006
    %v2232 = vunpack.c.h.b16 %v1006
    %v2233 = vunpack.c.l.b16 %v1007
    %v2234 = vunpack.c.h.b16 %v1007
    %v2235 = vunpack.c.l.b16 %v1008
    %v2236 = vunpack.c.h.b16 %v1008
    %v2237 = vunpack.c.l.b16 %v1009
    %v2238 = vunpack.c.h.b16 %v1009
    %v2239 = vunpack.c.l.b16 %v1010
    %v2240 = vunpack.c.h.b16 %v1010
    %v2241 = vunpack.c.l.b16 %v1011
    %v2242 = vunpack.c.h.b16 %v1011
    %v2243 = vunpack.c.l.b16 %v1012
    %v2244 = vunpack.c.h.b16 %v1012
    %v2245 = vunpack.c.l.b16 %v1013
    %v2246 = vunpack.c.h.b16 %v1013
    %v2247 = vunpack.c.l.b16 %v1014
    %v2248 = vunpack.c.h.b16 %v1014
    %v2249 = vunpack.c.l.b16 %v1015
    %v2250 = vunpack.c.h.b16 %v1015
    %v2251 = vunpack.c.l.b16 %v1016
    %v2252 = vunpack.c.h.b16 %v1016
    %v2253 = vunpack.c.l.b16 %v1017
    %v2254 = vunpack.c.h.b16 %v1017
    %v2255 = vunpack.c.l.b16 %v1018
    %v2256 = vunpack.c.h.b16 %v1018
    %v2257 = vunpack.c.l.b16 %v1019
    %v2258 = vunpack.c.h.b16 %v1019
    %v2259 = vunpack.c.l.b16 %v1020
    %v2260 = vunpack.c.h.b16 %v1020
    %v2261 = vunpack.c.l.b16 %v1021
    %v2262 = vunpack.c.h.b16 %v1021
    %v2263 = vunpack.c.l.b16 %v1022
    %v2264 = vunpack.c.h.b16 %v1022
    %v2265 = vunpack.c.l.b16 %v1023
    %v2266 = vunpack.c.h.b16 %v1023
    %v2267 = vunpack.c.l.b16 %v1024
    %v2268 = vunpack.c.h.b16 %v1024
    %v2269 = vunpack.c.l.b16 %v1025
    %v2270 = vunpack.c.h.b16 %v1025
    %v2271 = vunpack.c.l.b16 %v1026
    %v2272 = vunpack.c.h.b16 %v1026
    %v2273 = vunpack.c.l.b16 %v1027
    %v2274 = vunpack.c.h.b16 %v1027
    %v2275 = vunpack.c.l.b16 %v1028
    %v2276 = vunpack.c.h.b16 %v1028
    %v2277 = vunpack.c.l.b16 %v1029
    %v2278 = vunpack.c.h.b16 %v1029
    %v2279 = vunpack.c.l.b16 %v1030
    %v2280 = vunpack.c.h.b16 %v1030
    %v2281 = vunpack.c.l.b16 %v1031
    %v2282 = vunpack.c.h.b16 %v1031
    %v2283 = vunpack.c.l.b16 %v1032
    %v2284 = vunpack.c.h.b16 %v1032
    %v2285 = vunpack.c.l.b16 %v1033
    %v2286 = vunpack.c.h.b16 %v1033
    %v2287 = vunpack.c.l.b16 %v1034
    %v2288 = vunpack.c.h.b16 %v1034
    %v2289 = vunpack.c.l.b16 %v1035
    %v2290 = vunpack.c.h.b16 %v1035
    %v2291 = vunpack.c.l.b16 %v1036
    %v2292 = vunpack.c.h.b16 %v1036
    %v2293 = vunpack.c.l.b16 %v1037
    %v2294 = vunpack.c.h.b16 %v1037
    %v2295 = vunpack.c.l.b16 %v1038
    %v2296 = vunpack.c.h.b16 %v1038
    %v2297 = vunpack.c.l.b16 %v1039
    %v2298 = vunpack.c.h.b16 %v1039
    %v2299 = vunpack.c.l.b16 %v1040
    %v2300 = vunpack.c.h.b16 %v1040
    %v2301 = vunpack.c.l.b16 %v1041
    %v2302 = vunpack.c.h.b16 %v1041
    %v2303 = vunpack.c.l.b16 %v1042
    %v2304 = vunpack.c.h.b16 %v1042
    %v2305 = vunpack.c.l.b16 %v1043
    %v2306 = vunpack.c.h.b16 %v1043
    %v2307 = vunpack.c.l.b16 %v1044
    %v2308 = vunpack.c.h.b16 %v1044
    %v2309 = vunpack.c.l.b16 %v1045
    %v2310 = vunpack.c.h.b16 %v1045
    %v2311 = vunpack.c.l.b16 %v1046
    %v2312 = vunpack.c.h.b16 %v1046
    %v2313 = vunpack.c.l.b16 %v1047
    %v2314 = vunpack.c.h.b16 %v1047
    %v2315 = vunpack.c.l.b16 %v1048
    %v2316 = vunpack.c.h.b16 %v1048
    %v2317 = vunpack.c.l.b16 %v1049
    %v2318 = vunpack.c.h.b16 %v1049
    %v2319 = vunpack.c.l.b16 %v1050
    %v2320 = vunpack.c.h.b16 %v1050
    %v2321 = vunpack.c.l.b16 %v1051
    %v2322 = vunpack.c.h.b16 %v1051
    %v2323 = vunpack.c.l.b16 %v1052
    %v2324 = vunpack.c.h.b16 %v1052
    %v2325 = vunpack.c.l.b16 %v1053
    %v2326 = vunpack.c.h.b16 %v1053
    %v2327 = vunpack.c.l.b16 %v1054
    %v2328 = vunpack.c.h.b16 %v1054
    %v2329 = vunpack.c.l.b16 %v1055
    %v2330 = vunpack.c.h.b16 %v1055
    %v2331 = vunpack.c.l.b16 %v1056
    %v2332 = vunpack.c.h.b16 %v1056
    %v2333 = vunpack.c.l.b16 %v1057
    %v2334 = vunpack.c.h.b16 %v1057
    %v2335 = vunpack.c.l.b16 %v1058
    %v2336 = vunpack.c.h.b16 %v1058
    %v2337 = vunpack.c.l.b16 %v1059
    %v2338 = vunpack.c.h.b16 %v1059
    %v2339 = vunpack.c.l.b16 %v1060
    %v2340 = vunpack.c.h.b16 %v1060
    %v2341 = vunpack.c.l.b16 %v1061
    %v2342 = vunpack.c.h.b16 %v1061
    %v2343 = vunpack.c.l.b16 %v1062
    %v2344 = vunpack.c.h.b16 %v1062
    %v2345 = vunpack.c.l.b16 %v1063
    %v2346 = vunpack.c.h.b16 %v1063
    %v2347 = vunpack.c.l.b16 %v1064
    %v2348 = vunpack.c.h.b16 %v1064
    %v2349 = vunpack.c.l.b16 %v1065
    %v2350 = vunpack.c.h.b16 %v1065
    %v2351 = vunpack.c.l.b16 %v1066
    %v2352 = vunpack.c.h.b16 %v1066
    %v2353 = vunpack.c.l.b16 %v1067
    %v2354 = vunpack.c.h.b16 %v1067
    %v2355 = vunpack.c.l.b16 %v1068
    %v2356 = vunpack.c.h.b16 %v1068
    %v2357 = vunpack.c.l.b16 %v1069
    %v2358 = vunpack.c.h.b16 %v1069
    %v2359 = vunpack.c.l.b16 %v1070
    %v2360 = vunpack.c.h.b16 %v1070
    %v2361 = vunpack.c.l.b16 %v1071
    %v2362 = vunpack.c.h.b16 %v1071
    %v2363 = vunpack.c.l.b16 %v1072
    %v2364 = vunpack.c.h.b16 %v1072
    %v2365 = vunpack.c.l.b16 %v1073
    %v2366 = vunpack.c.h.b16 %v1073
    %v2367 = vunpack.c.l.b16 %v1074
    %v2368 = vunpack.c.h.b16 %v1074
    %v2369 = vunpack.c.l.b16 %v1075
    %v2370 = vunpack.c.h.b16 %v1075
    %v2371 = vunpack.c.l.b16 %v1076
    %v2372 = vunpack.c.h.b16 %v1076
    %v2373 = vunpack.c.l.b16 %v1077
    %v2374 = vunpack.c.h.b16 %v1077
    %v2375 = vunpack.c.l.b16 %v1078
    %v2376 = vunpack.c.h.b16 %v1078
    %v2377 = vunpack.c.l.b16 %v1079
    %v2378 = vunpack.c.h.b16 %v1079
    %v2379 = vunpack.c.l.b16 %v1080
    %v2380 = vunpack.c.h.b16 %v1080
    %v2381 = vunpack.c.l.b16 %v1081
    %v2382 = vunpack.c.h.b16 %v1081
    %v2383 = vunpack.c.l.b16 %v1082
    %v2384 = vunpack.c.h.b16 %v1082
    %v2385 = vunpack.c.l.b16 %v1083
    %v2386 = vunpack.c.h.b16 %v1083
    %v2387 = vunpack.c.l.b16 %v1084
    %v2388 = vunpack.c.h.b16 %v1084
    %v2389 = vunpack.c.l.b16 %v1085
    %v2390 = vunpack.c.h.b16 %v1085
    %v2391 = vunpack.c.l.b16 %v1086
    %v2392 = vunpack.c.h.b16 %v1086
    %v2393 = vunpack.c.l.b16 %v1087
    %v2394 = vunpack.c.h.b16 %v1087
    %v2395 = vunpack.c.l.b16 %v1088
    %v2396 = vunpack.c.h.b16 %v1088
    %v2397 = vunpack.c.l.b16 %v1089
    %v2398 = vunpack.c.h.b16 %v1089
    %v2399 = vunpack.c.l.b16 %v1090
    %v2400 = vunpack.c.h.b16 %v1090
    %v2401 = vunpack.c.l.b16 %v1091
    %v2402 = vunpack.c.h.b16 %v1091
    %v2403 = vunpack.c.l.b16 %v1092
    %v2404 = vunpack.c.h.b16 %v1092
    %v2405 = vunpack.c.l.b16 %v1093
    %v2406 = vunpack.c.h.b16 %v1093
    %v2407 = vunpack.c.l.b16 %v1094
    %v2408 = vunpack.c.h.b16 %v1094
    %v2409 = vunpack.c.l.b16 %v1095
    %v2410 = vunpack.c.h.b16 %v1095
    %v2411 = vunpack.c.l.b16 %v1096
    %v2412 = vunpack.c.h.b16 %v1096
    %v2413 = vunpack.c.l.b16 %v1097
    %v2414 = vunpack.c.h.b16 %v1097
    %v2415 = vunpack.c.l.b16 %v1098
    %v2416 = vunpack.c.h.b16 %v1098
    %v2417 = vunpack.c.l.b16 %v1099
    %v2418 = vunpack.c.h.b16 %v1099
    %v2419 = vunpack.c.l.b16 %v1100
    %v2420 = vunpack.c.h.b16 %v1100
    %v2421 = vunpack.c.l.b16 %v1101
    %v2422 = vunpack.c.h.b16 %v1101
    %v2423 = vunpack.c.l.b16 %v1102
    %v2424 = vunpack.c.h.b16 %v1102
    %v2425 = vunpack.c.l.b16 %v1103
    %v2426 = vunpack.c.h.b16 %v1103
    %v2427 = vunpack.c.l.b16 %v1104
    %v2428 = vunpack.c.h.b16 %v1104
    %v2429 = vunpack.c.l.b16 %v1105
    %v2430 = vunpack.c.h.b16 %v1105
    %v2431 = vunpack.c.l.b16 %v1106
    %v2432 = vunpack.c.h.b16 %v1106
    %v2433 = vunpack.c.l.b16 %v1107
    %v2434 = vunpack.c.h.b16 %v1107
    %v2435 = vunpack.c.l.b16 %v1108
    %v2436 = vunpack.c.h.b16 %v1108
    %v2437 = vunpack.c.l.b16 %v1109
    %v2438 = vunpack.c.h.b16 %v1109
    %v2439 = vunpack.c.l.b16 %v1110
    %v2440 = vunpack.c.h.b16 %v1110
    %v2441 = vunpack.c.l.b16 %v1111
    %v2442 = vunpack.c.h.b16 %v1111
    %v2443 = vunpack.c.l.b16 %v1112
    %v2444 = vunpack.c.h.b16 %v1112
    %v2445 = vunpack.c.l.b16 %v1113
    %v2446 = vunpack.c.h.b16 %v1113
    %v2447 = vunpack.c.l.b16 %v1114
    %v2448 = vunpack.c.h.b16 %v1114
    %v2449 = vunpack.c.l.b16 %v1115
    %v2450 = vunpack.c.h.b16 %v1115
    %v2451 = vunpack.c.l.b16 %v1116
    %v2452 = vunpack.c.h.b16 %v1116
    %v2453 = vunpack.c.l.b16 %v1117
    %v2454 = vunpack.c.h.b16 %v1117
    %v2455 = vunpack.c.l.b16 %v1118
    %v2456 = vunpack.c.h.b16 %v1118
    %v2457 = vunpack.c.l.b16 %v1119
    %v2458 = vunpack.c.h.b16 %v1119
    %v2459 = vunpack.c.l.b16 %v1120
    %v2460 = vunpack.c.h.b16 %v1120
    %v2461 = vunpack.c.l.b16 %v1121
    %v2462 = vunpack.c.h.b16 %v1121
    %v2463 = vunpack.c.l.b16 %v1122
    %v2464 = vunpack.c.h.b16 %v1122
    %v2465 = vunpack.c.l.b16 %v1123
    %v2466 = vunpack.c.h.b16 %v1123
    %v2467 = vunpack.c.l.b16 %v1124
    %v2468 = vunpack.c.h.b16 %v1124
    %v2469 = vunpack.c.l.b16 %v1125
    %v2470 = vunpack.c.h.b16 %v1125
    %v2471 = vunpack.c.l.b16 %v1126
    %v2472 = vunpack.c.h.b16 %v1126
    %v2473 = vunpack.c.l.b16 %v1127
    %v2474 = vunpack.c.h.b16 %v1127
    %v2475 = vunpack.c.l.b16 %v1128
    %v2476 = vunpack.c.h.b16 %v1128
    %v2477 = vunpack.c.l.b16 %v1129
    %v2478 = vunpack.c.h.b16 %v1129
    %v2479 = vunpack.c.l.b16 %v1130
    %v2480 = vunpack.c.h.b16 %v1130
    %v2481 = vunpack.c.l.b16 %v1131
    %v2482 = vunpack.c.h.b16 %v1131
    %v2483 = vunpack.c.l.b16 %v1132
    %v2484 = vunpack.c.h.b16 %v1132
    %v2485 = vunpack.c.l.b16 %v1133
    %v2486 = vunpack.c.h.b16 %v1133
    %v2487 = vunpack.c.l.b16 %v1134
    %v2488 = vunpack.c.h.b16 %v1134
    %v2489 = vunpack.c.l.b16 %v1135
    %v2490 = vunpack.c.h.b16 %v1135
    %v2491 = vunpack.c.l.b16 %v1136
    %v2492 = vunpack.c.h.b16 %v1136
    %v2493 = vunpack.c.l.b16 %v1137
    %v2494 = vunpack.c.h.b16 %v1137
    %v2495 = vunpack.c.l.b16 %v1138
    %v2496 = vunpack.c.h.b16 %v1138
    %v2497 = vunpack.c.l.b16 %v1139
    %v2498 = vunpack.c.h.b16 %v1139
    %v2499 = vunpack.c.l.b16 %v1140
    %v2500 = vunpack.c.h.b16 %v1140
    %v2501 = vunpack.c.l.b16 %v1141
    %v2502 = vunpack.c.h.b16 %v1141
    %v2503 = vunpack.c.l.b16 %v1142
    %v2504 = vunpack.c.h.b16 %v1142
    %v2505 = vunpack.c.l.b16 %v1143
    %v2506 = vunpack.c.h.b16 %v1143
    %v2507 = vunpack.c.l.b16 %v1144
    %v2508 = vunpack.c.h.b16 %v1144
    %v2509 = vunpack.c.l.b16 %v1145
    %v2510 = vunpack.c.h.b16 %v1145
    %v2511 = vunpack.c.l.b16 %v1146
    %v2512 = vunpack.c.h.b16 %v1146
    %v2513 = vunpack.c.l.b16 %v1147
    %v2514 = vunpack.c.h.b16 %v1147
    %v2515 = vunpack.c.l.b16 %v1148
    %v2516 = vunpack.c.h.b16 %v1148
    %v2517 = vunpack.c.l.b16 %v1149
    %v2518 = vunpack.c.h.b16 %v1149
    %v2519 = vunpack.c.l.b16 %v1150
    %v2520 = vunpack.c.h.b16 %v1150
    %v2521 = vunpack.c.l.b16 %v1151
    %v2522 = vunpack.c.h.b16 %v1151
    %v2523 = vunpack.c.l.b16 %v1152
    %v2524 = vunpack.c.h.b16 %v1152
    %v2525 = vunpack.c.l.b16 %v1153
    %v2526 = vunpack.c.h.b16 %v1153
    %v2527 = vunpack.c.l.b16 %v1154
    %v2528 = vunpack.c.h.b16 %v1154
    %v2529 = vunpack.c.l.b16 %v1155
    %v2530 = vunpack.c.h.b16 %v1155
    %v2531 = vunpack.c.l.b16 %v1156
    %v2532 = vunpack.c.h.b16 %v1156
    %v2533 = vunpack.c.l.b16 %v1157
    %v2534 = vunpack.c.h.b16 %v1157
    %v2535 = vunpack.c.l.b16 %v1158
    %v2536 = vunpack.c.h.b16 %v1158
    %v2537 = vunpack.c.l.b16 %v1159
    %v2538 = vunpack.c.h.b16 %v1159
    %v2539 = vunpack.c.l.b16 %v1160
    %v2540 = vunpack.c.h.b16 %v1160
    %v2541 = vunpack.c.l.b16 %v1161
    %v2542 = vunpack.c.h.b16 %v1161
    %v2543 = vunpack.c.l.b16 %v1162
    %v2544 = vunpack.c.h.b16 %v1162
    %v2545 = vunpack.c.l.b16 %v1163
    %v2546 = vunpack.c.h.b16 %v1163
    %v2547 = vunpack.c.l.b16 %v1164
    %v2548 = vunpack.c.h.b16 %v1164
    %v2549 = vunpack.c.l.b16 %v1165
    %v2550 = vunpack.c.h.b16 %v1165
    %v2551 = vunpack.c.l.b16 %v1166
    %v2552 = vunpack.c.h.b16 %v1166
    %v2553 = vunpack.c.l.b16 %v1167
    %v2554 = vunpack.c.h.b16 %v1167
    %v2555 = vunpack.c.l.b16 %v1168
    %v2556 = vunpack.c.h.b16 %v1168
    %v2557 = vunpack.c.l.b16 %v1169
    %v2558 = vunpack.c.h.b16 %v1169
    %v2559 = vunpack.c.l.b16 %v1170
    %v2560 = vunpack.c.h.b16 %v1170
    %v2561 = vunpack.c.l.b16 %v1171
    %v2562 = vunpack.c.h.b16 %v1171
    %v2563 = vunpack.c.l.b16 %v1172
    %v2564 = vunpack.c.h.b16 %v1172
    %v2565 = vunpack.c.l.b16 %v1173
    %v2566 = vunpack.c.h.b16 %v1173
    %v2567 = vunpack.c.l.b16 %v1174
    %v2568 = vunpack.c.h.b16 %v1174
    %v2569 = vunpack.c.l.b16 %v1175
    %v2570 = vunpack.c.h.b16 %v1175
    %v2571 = vunpack.c.l.b16 %v1176
    %v2572 = vunpack.c.h.b16 %v1176
    %v2573 = vunpack.c.l.b16 %v1177
    %v2574 = vunpack.c.h.b16 %v1177
    %v2575 = vunpack.c.l.b16 %v1178
    %v2576 = vunpack.c.h.b16 %v1178
    %v2577 = vunpack.c.l.b16 %v1179
    %v2578 = vunpack.c.h.b16 %v1179
    %v2579 = vunpack.c.l.b16 %v1180
    %v2580 = vunpack.c.h.b16 %v1180
    %v2581 = vunpack.c.l.b16 %v1181
    %v2582 = vunpack.c.h.b16 %v1181
    %v2583 = vunpack.c.l.b16 %v1182
    %v2584 = vunpack.c.h.b16 %v1182
    %v2585 = vunpack.c.l.b16 %v1183
    %v2586 = vunpack.c.h.b16 %v1183
    %v2587 = vunpack.c.l.b16 %v1184
    %v2588 = vunpack.c.h.b16 %v1184
    %v2589 = vunpack.c.l.b16 %v1185
    %v2590 = vunpack.c.h.b16 %v1185
    %v2591 = vunpack.c.l.b16 %v1186
    %v2592 = vunpack.c.h.b16 %v1186
    %v2593 = vunpack.c.l.b16 %v1187
    %v2594 = vunpack.c.h.b16 %v1187
    %v2595 = vunpack.c.l.b16 %v1188
    %v2596 = vunpack.c.h.b16 %v1188
    %v2597 = vunpack.c.l.b16 %v1189
    %v2598 = vunpack.c.h.b16 %v1189
    %v2599 = vunpack.c.l.b16 %v1190
    %v2600 = vunpack.c.h.b16 %v1190
    %v2601 = vunpack.c.l.b16 %v1191
    %v2602 = vunpack.c.h.b16 %v1191
    %v2603 = vunpack.c.l.b16 %v1192
    %v2604 = vunpack.c.h.b16 %v1192
    %v2605 = vunpack.c.l.b16 %v1193
    %v2606 = vunpack.c.h.b16 %v1193
    %v2607 = vunpack.c.l.b16 %v1194
    %v2608 = vunpack.c.h.b16 %v1194
    %v2609 = vunpack.c.l.b16 %v1195
    %v2610 = vunpack.c.h.b16 %v1195
    %v2611 = vunpack.c.l.b16 %v1196
    %v2612 = vunpack.c.h.b16 %v1196
    %v2613 = vunpack.c.l.b16 %v1197
    %v2614 = vunpack.c.h.b16 %v1197
    %v2615 = vunpack.c.l.b16 %v1198
    %v2616 = vunpack.c.h.b16 %v1198
    %v2617 = vunpack.c.l.b16 %v1199
    %v2618 = vunpack.c.h.b16 %v1199
    %v2619 = vunpack.c.l.b16 %v1200
    %v2620 = vunpack.c.h.b16 %v1200
    %v2621 = vunpack.c.l.b16 %v1201
    %v2622 = vunpack.c.h.b16 %v1201
    %v2623 = vunpack.c.l.b16 %v1202
    %v2624 = vunpack.c.h.b16 %v1202
    %v2625 = vunpack.c.l.b16 %v1203
    %v2626 = vunpack.c.h.b16 %v1203
    %v2627 = vunpack.c.l.b16 %v1204
    %v2628 = vunpack.c.h.b16 %v1204
    %v2629 = vunpack.c.l.b16 %v1205
    %v2630 = vunpack.c.h.b16 %v1205
    %v2631 = vunpack.c.l.b16 %v1206
    %v2632 = vunpack.c.h.b16 %v1206
    %v2633 = vunpack.c.l.b16 %v1207
    %v2634 = vunpack.c.h.b16 %v1207
    %v2635 = vunpack.c.l.b16 %v1208
    %v2636 = vunpack.c.h.b16 %v1208
    %v2637 = vunpack.c.l.b16 %v1209
    %v2638 = vunpack.c.h.b16 %v1209
    %v2639 = vunpack.c.l.b16 %v1210
    %v2640 = vunpack.c.h.b16 %v1210
    %v2641 = vunpack.c.l.b16 %v1211
    %v2642 = vunpack.c.h.b16 %v1211
    %v2643 = vunpack.c.l.b16 %v1212
    %v2644 = vunpack.c.h.b16 %v1212
    %v2645 = vunpack.c.l.b16 %v1213
    %v2646 = vunpack.c.h.b16 %v1213
    %v2647 = vunpack.c.l.b16 %v1214
    %v2648 = vunpack.c.h.b16 %v1214
    %v2649 = vunpack.c.l.b16 %v1215
    %v2650 = vunpack.c.h.b16 %v1215
    %v2651 = vunpack.c.l.b16 %v1216
    %v2652 = vunpack.c.h.b16 %v1216
    %v2653 = vunpack.c.l.b16 %v1217
    %v2654 = vunpack.c.h.b16 %v1217
    %v2655 = vunpack.c.l.b16 %v1218
    %v2656 = vunpack.c.h.b16 %v1218
    %v2657 = vunpack.c.l.b16 %v1219
    %v2658 = vunpack.c.h.b16 %v1219
    %v2659 = vunpack.c.l.b16 %v1220
    %v2660 = vunpack.c.h.b16 %v1220
    %v2661 = vunpack.c.l.b16 %v1221
    %v2662 = vunpack.c.h.b16 %v1221
    %v2663 = vunpack.c.l.b16 %v1222
    %v2664 = vunpack.c.h.b16 %v1222
    %v2665 = vunpack.c.l.b16 %v1223
    %v2666 = vunpack.c.h.b16 %v1223
    %v2667 = vunpack.c.l.b16 %v1224
    %v2668 = vunpack.c.h.b16 %v1224
    %v2669 = vunpack.c.l.b16 %v1225
    %v2670 = vunpack.c.h.b16 %v1225
    %v2671 = vunpack.c.l.b16 %v1226
    %v2672 = vunpack.c.h.b16 %v1226
    %v2673 = vunpack.c.l.b16 %v1227
    %v2674 = vunpack.c.h.b16 %v1227
    %v2675 = vunpack.c.l.b16 %v1228
    %v2676 = vunpack.c.h.b16 %v1228
    %v2677 = vunpack.c.l.b16 %v1229
    %v2678 = vunpack.c.h.b16 %v1229
    %v2679 = vunpack.c.l.b16 %v1230
    %v2680 = vunpack.c.h.b16 %v1230
    %v2681 = vunpack.c.l.b16 %v1231
    %v2682 = vunpack.c.h.b16 %v1231
    %v2683 = vunpack.c.l.b16 %v1232
    %v2684 = vunpack.c.h.b16 %v1232
    %v2685 = vunpack.c.l.b16 %v1233
    %v2686 = vunpack.c.h.b16 %v1233
    %v2687 = vunpack.c.l.b16 %v1234
    %v2688 = vunpack.c.h.b16 %v1234
    %v2689 = vunpack.c.l.b16 %v1235
    %v2690 = vunpack.c.h.b16 %v1235
    %v2691 = vunpack.c.l.b16 %v1236
    %v2692 = vunpack.c.h.b16 %v1236
    %v2693 = vunpack.c.l.b16 %v1237
    %v2694 = vunpack.c.h.b16 %v1237
    %v2695 = vunpack.c.l.b16 %v1238
    %v2696 = vunpack.c.h.b16 %v1238
    %v2697 = vunpack.c.l.b16 %v1239
    %v2698 = vunpack.c.h.b16 %v1239
    %v2699 = vunpack.c.l.b16 %v1240
    %v2700 = vunpack.c.h.b16 %v1240
    %v2701 = vunpack.c.l.b16 %v1241
    %v2702 = vunpack.c.h.b16 %v1241
    %v2703 = vunpack.c.l.b16 %v1242
    %v2704 = vunpack.c.h.b16 %v1242
    %v2705 = vunpack.c.l.b16 %v1243
    %v2706 = vunpack.c.h.b16 %v1243
    %v2707 = vunpack.c.l.b16 %v1244
    %v2708 = vunpack.c.h.b16 %v1244
    %v2709 = vunpack.c.l.b16 %v1245
    %v2710 = vunpack.c.h.b16 %v1245
    %v2711 = vunpack.c.l.b16 %v1246
    %v2712 = vunpack.c.h.b16 %v1246
    %v2713 = vunpack.c.l.b16 %v1247
    %v2714 = vunpack.c.h.b16 %v1247
    %v2715 = vunpack.c.l.b16 %v1248
    %v2716 = vunpack.c.h.b16 %v1248
    %v2717 = vunpack.c.l.b16 %v1249
    %v2718 = vunpack.c.h.b16 %v1249
    %v2719 = vunpack.c.l.b16 %v1250
    %v2720 = vunpack.c.h.b16 %v1250
    %v2721 = vunpack.c.l.b16 %v1251
    %v2722 = vunpack.c.h.b16 %v1251
    %v2723 = vunpack.c.l.b16 %v1252
    %v2724 = vunpack.c.h.b16 %v1252
    %v2725 = vunpack.c.l.b16 %v1253
    %v2726 = vunpack.c.h.b16 %v1253
    %v2727 = vunpack.c.l.b16 %v1254
    %v2728 = vunpack.c.h.b16 %v1254
    %v2729 = vunpack.c.l.b16 %v1255
    %v2730 = vunpack.c.h.b16 %v1255
    %v2731 = vunpack.c.l.b16 %v1256
    %v2732 = vunpack.c.h.b16 %v1256
    %v2733 = vunpack.c.l.b16 %v1257
    %v2734 = vunpack.c.h.b16 %v1257
    %v2735 = vunpack.c.l.b16 %v1258
    %v2736 = vunpack.c.h.b16 %v1258
    %v2737 = vunpack.c.l.b16 %v1259
    %v2738 = vunpack.c.h.b16 %v1259
    %v2739 = vunpack.c.l.b16 %v1260
    %v2740 = vunpack.c.h.b16 %v1260
    %v2741 = vunpack.c.l.b16 %v1261
    %v2742 = vunpack.c.h.b16 %v1261
    %v2743 = vunpack.c.l.b16 %v1262
    %v2744 = vunpack.c.h.b16 %v1262
    %v2745 = vunpack.c.l.b16 %v1263
    %v2746 = vunpack.c.h.b16 %v1263
    %v2747 = vunpack.c.l.b16 %v1264
    %v2748 = vunpack.c.h.b16 %v1264
    %v2749 = vunpack.c.l.b16 %v1265
    %v2750 = vunpack.c.h.b16 %v1265
    %v2751 = vunpack.c.l.b16 %v1266
    %v2752 = vunpack.c.h.b16 %v1266
    %v2753 = vunpack.c.l.b16 %v1267
    %v2754 = vunpack.c.h.b16 %v1267
    %v2755 = vunpack.c.l.b16 %v1268
    %v2756 = vunpack.c.h.b16 %v1268
    %v2757 = vunpack.c.l.b16 %v1269
    %v2758 = vunpack.c.h.b16 %v1269
    %v2759 = vunpack.c.l.b16 %v1270
    %v2760 = vunpack.c.h.b16 %v1270
    %v2761 = vunpack.c.l.b16 %v1271
    %v2762 = vunpack.c.h.b16 %v1271
    %v2763 = vunpack.c.l.b16 %v1272
    %v2764 = vunpack.c.h.b16 %v1272
    %v2765 = vunpack.c.l.b16 %v1273
    %v2766 = vunpack.c.h.b16 %v1273
    %v2767 = vunpack.c.l.b16 %v1274
    %v2768 = vunpack.c.h.b16 %v1274
    %v2769 = vunpack.c.l.b16 %v1275
    %v2770 = vunpack.c.h.b16 %v1275
    %v2771 = vunpack.c.l.b16 %v1276
    %v2772 = vunpack.c.h.b16 %v1276
    %v2773 = vunpack.c.l.b16 %v1277
    %v2774 = vunpack.c.h.b16 %v1277
    %v2775 = vunpack.c.l.b16 %v1278
    %v2776 = vunpack.c.h.b16 %v1278
    %v2777 = vunpack.c.l.b16 %v1279
    %v2778 = vunpack.c.h.b16 %v1279
    %v2779 = vunpack.c.l.b16 %v1280
    %v2780 = vunpack.c.h.b16 %v1280
    %v2781 = vunpack.c.l.b16 %v1281
    %v2782 = vunpack.c.h.b16 %v1281
    %v2783 = vunpack.c.l.b16 %v1282
    %v2784 = vunpack.c.h.b16 %v1282
    %v2785 = vunpack.c.l.b16 %v1283
    %v2786 = vunpack.c.h.b16 %v1283
    %v2787 = vunpack.c.l.b16 %v1284
    %v2788 = vunpack.c.h.b16 %v1284
    %v2789 = vunpack.c.l.b16 %v1285
    %v2790 = vunpack.c.h.b16 %v1285
    %v2791 = vunpack.c.l.b16 %v1286
    %v2792 = vunpack.c.h.b16 %v1286
    %v2793 = vunpack.c.l.b16 %v1287
    %v2794 = vunpack.c.h.b16 %v1287
    %v2795 = vunpack.c.l.b16 %v1288
    %v2796 = vunpack.c.h.b16 %v1288
    %v2797 = vunpack.c.l.b16 %v1289
    %v2798 = vunpack.c.h.b16 %v1289
    %v2799 = vunpack.c.l.b16 %v1290
    %v2800 = vunpack.c.h.b16 %v1290
    %v2801 = vunpack.c.l.b16 %v1291
    %v2802 = vunpack.c.h.b16 %v1291
    %v2803 = vunpack.c.l.b16 %v1292
    %v2804 = vunpack.c.h.b16 %v1292
    %v2805 = vunpack.c.l.b16 %v1293
    %v2806 = vunpack.c.h.b16 %v1293
    %v2807 = vunpack.c.l.b16 %v1294
    %v2808 = vunpack.c.h.b16 %v1294
    %v2809 = vunpack.c.l.b16 %v1295
    %v2810 = vunpack.c.h.b16 %v1295
    %v2811 = vunpack.c.l.b16 %v1296
    %v2812 = vunpack.c.h.b16 %v1296
    %v2813 = vunpack.c.l.b16 %v1297
    %v2814 = vunpack.c.h.b16 %v1297
    %v2815 = vunpack.c.l.b16 %v1298
    %v2816 = vunpack.c.h.b16 %v1298
    %v2817 = vunpack.c.l.b16 %v1299
    %v2818 = vunpack.c.h.b16 %v1299
    %v2819 = vunpack.c.l.b16 %v1300
    %v2820 = vunpack.c.h.b16 %v1300
    %v2821 = vunpack.c.l.b16 %v1301
    %v2822 = vunpack.c.h.b16 %v1301
    %v2823 = vunpack.c.l.b16 %v1302
    %v2824 = vunpack.c.h.b16 %v1302
    %v2825 = vunpack.c.l.b16 %v1303
    %v2826 = vunpack.c.h.b16 %v1303
    %v2827 = vunpack.c.l.b16 %v1304
    %v2828 = vunpack.c.h.b16 %v1304
    %v2829 = vunpack.c.l.b16 %v1305
    %v2830 = vunpack.c.h.b16 %v1305
    %v2831 = vunpack.c.l.b16 %v1306
    %v2832 = vunpack.c.h.b16 %v1306
    %v2833 = vunpack.c.l.b16 %v1307
    %v2834 = vunpack.c.h.b16 %v1307
    %v2835 = vunpack.c.l.b16 %v1308
    %v2836 = vunpack.c.h.b16 %v1308
    %v2837 = vunpack.c.l.b16 %v1309
    %v2838 = vunpack.c.h.b16 %v1309
    %v2839 = vunpack.c.l.b16 %v1310
    %v2840 = vunpack.c.h.b16 %v1310
    %v2841 = vunpack.c.l.b16 %v1311
    %v2842 = vunpack.c.h.b16 %v1311
    %v2843 = vunpack.c.l.b16 %v1312
    %v2844 = vunpack.c.h.b16 %v1312
    %v2845 = vunpack.c.l.b16 %v1313
    %v2846 = vunpack.c.h.b16 %v1313
    %v2847 = vunpack.c.l.b16 %v1314
    %v2848 = vunpack.c.h.b16 %v1314
    %v2849 = vunpack.c.l.b16 %v1315
    %v2850 = vunpack.c.h.b16 %v1315
    %v2851 = vunpack.c.l.b16 %v1316
    %v2852 = vunpack.c.h.b16 %v1316
    %v2853 = vpack.c.b16 %v1837, %v1829
    %v2854 = vpack.c.b16 %v1838, %v1830
    %v2855 = vpack.c.b16 %v1839, %v1831
    %v2856 = vpack.c.b16 %v1840, %v1832
    %v2857 = vpack.c.b16 %v1841, %v1833
    %v2858 = vpack.c.b16 %v1842, %v1834
    %v2859 = vpack.c.b16 %v1843, %v1835
    %v2860 = vpack.c.b16 %v1844, %v1836
    %v2861 = vpack.c.b16 %v1853, %v1845
    %v2862 = vpack.c.b16 %v1854, %v1846
    %v2863 = vpack.c.b16 %v1855, %v1847
    %v2864 = vpack.c.b16 %v1856, %v1848
    %v2865 = vpack.c.b16 %v1857, %v1849
    %v2866 = vpack.c.b16 %v1858, %v1850
    %v2867 = vpack.c.b16 %v1859, %v1851
    %v2868 = vpack.c.b16 %v1860, %v1852
    %v2869 = vpack.c.b16 %v1869, %v1861
    %v2870 = vpack.c.b16 %v1870, %v1862
    %v2871 = vpack.c.b16 %v1871, %v1863
    %v2872 = vpack.c.b16 %v1872, %v1864
    %v2873 = vpack.c.b16 %v1873, %v1865
    %v2874 = vpack.c.b16 %v1874, %v1866
    %v2875 = vpack.c.b16 %v1875, %v1867
    %v2876 = vpack.c.b16 %v1876, %v1868
    %v2877 = vpack.c.b16 %v1885, %v1877
    %v2878 = vpack.c.b16 %v1886, %v1878
    %v2879 = vpack.c.b16 %v1887, %v1879
    %v2880 = vpack.c.b16 %v1888, %v1880
    %v2881 = vpack.c.b16 %v1889, %v1881
    %v2882 = vpack.c.b16 %v1890, %v1882
    %v2883 = vpack.c.b16 %v1891, %v1883
    %v2884 = vpack.c.b16 %v1892, %v1884
    %v2885 = vpack.c.b16 %v1901, %v1893
    %v2886 = vpack.c.b16 %v1902, %v1894
    %v2887 = vpack.c.b16 %v1903, %v1895
    %v2888 = vpack.c.b16 %v1904, %v1896
    %v2889 = vpack.c.b16 %v1905, %v1897
    %v2890 = vpack.c.b16 %v1906, %v1898
    %v2891 = vpack.c.b16 %v1907, %v1899
    %v2892 = vpack.c.b16 %v1908, %v1900
    %v2893 = vpack.c.b16 %v1917, %v1909
    %v2894 = vpack.c.b16 %v1918, %v1910
    %v2895 = vpack.c.b16 %v1919, %v1911
    %v2896 = vpack.c.b16 %v1920, %v1912
    %v2897 = vpack.c.b16 %v1921, %v1913
    %v2898 = vpack.c.b16 %v1922, %v1914
    %v2899 = vpack.c.b16 %v1923, %v1915
    %v2900 = vpack.c.b16 %v1924, %v1916
    %v2901 = vpack.c.b16 %v1933, %v1925
    %v2902 = vpack.c.b16 %v1934, %v1926
    %v2903 = vpack.c.b16 %v1935, %v1927
    %v2904 = vpack.c.b16 %v1936, %v1928
    %v2905 = vpack.c.b16 %v1937, %v1929
    %v2906 = vpack.c.b16 %v1938, %v1930
    %v2907 = vpack.c.b16 %v1939, %v1931
    %v2908 = vpack.c.b16 %v1940, %v1932
    %v2909 = vpack.c.b16 %v1949, %v1941
    %v2910 = vpack.c.b16 %v1950, %v1942
    %v2911 = vpack.c.b16 %v1951, %v1943
    %v2912 = vpack.c.b16 %v1952, %v1944
    %v2913 = vpack.c.b16 %v1953, %v1945
    %v2914 = vpack.c.b16 %v1954, %v1946
    %v2915 = vpack.c.b16 %v1955, %v1947
    %v2916 = vpack.c.b16 %v1956, %v1948
    %v2917 = vpack.c.b16 %v1965, %v1957
    %v2918 = vpack.c.b16 %v1966, %v1958
    %v2919 = vpack.c.b16 %v1967, %v1959
    %v2920 = vpack.c.b16 %v1968, %v1960
    %v2921 = vpack.c.b16 %v1969, %v1961
    %v2922 = vpack.c.b16 %v1970, %v1962
    %v2923 = vpack.c.b16 %v1971, %v1963
    %v2924 = vpack.c.b16 %v1972, %v1964
    %v2925 = vpack.c.b16 %v1981, %v1973
    %v2926 = vpack.c.b16 %v1982, %v1974
    %v2927 = vpack.c.b16 %v1983, %v1975
    %v2928 = vpack.c.b16 %v1984, %v1976
    %v2929 = vpack.c.b16 %v1985, %v1977
    %v2930 = vpack.c.b16 %v1986, %v1978
    %v2931 = vpack.c.b16 %v1987, %v1979
    %v2932 = vpack.c.b16 %v1988, %v1980
    %v2933 = vpack.c.b16 %v1997, %v1989
    %v2934 = vpack.c.b16 %v1998, %v1990
    %v2935 = vpack.c.b16 %v1999, %v1991
    %v2936 = vpack.c.b16 %v2000, %v1992
    %v2937 = vpack.c.b16 %v2001, %v1993
    %v2938 = vpack.c.b16 %v2002, %v1994
    %v2939 = vpack.c.b16 %v2003, %v1995
    %v2940 = vpack.c.b16 %v2004, %v1996
    %v2941 = vpack.c.b16 %v2013, %v2005
    %v2942 = vpack.c.b16 %v2014, %v2006
    %v2943 = vpack.c.b16 %v2015, %v2007
    %v2944 = vpack.c.b16 %v2016, %v2008
    %v2945 = vpack.c.b16 %v2017, %v2009
    %v2946 = vpack.c.b16 %v2018, %v2010
    %v2947 = vpack.c.b16 %v2019, %v2011
    %v2948 = vpack.c.b16 %v2020, %v2012
    %v2949 = vpack.c.b16 %v2029, %v2021
    %v2950 = vpack.c.b16 %v2030, %v2022
    %v2951 = vpack.c.b16 %v2031, %v2023
    %v2952 = vpack.c.b16 %v2032, %v2024
    %v2953 = vpack.c.b16 %v2033, %v2025
    %v2954 = vpack.c.b16 %v2034, %v2026
    %v2955 = vpack.c.b16 %v2035, %v2027
    %v2956 = vpack.c.b16 %v2036, %v2028
    %v2957 = vpack.c.b16 %v2045, %v2037
    %v2958 = vpack.c.b16 %v2046, %v2038
    %v2959 = vpack.c.b16 %v2047, %v2039
    %v2960 = vpack.c.b16 %v2048, %v2040
    %v2961 = vpack.c.b16 %v2049, %v2041
    %v2962 = vpack.c.b16 %v2050, %v2042
    %v2963 = vpack.c.b16 %v2051, %v2043
    %v2964 = vpack.c.b16 %v2052, %v2044
    %v2965 = vpack.c.b16 %v2061, %v2053
    %v2966 = vpack.c.b16 %v2062, %v2054
    %v2967 = vpack.c.b16 %v2063, %v2055
    %v2968 = vpack.c.b16 %v2064, %v2056
    %v2969 = vpack.c.b16 %v2065, %v2057
    %v2970 = vpack.c.b16 %v2066, %v2058
    %v2971 = vpack.c.b16 %v2067, %v2059
    %v2972 = vpack.c.b16 %v2068, %v2060
    %v2973 = vpack.c.b16 %v2077, %v2069
    %v2974 = vpack.c.b16 %v2078, %v2070
    %v2975 = vpack.c.b16 %v2079, %v2071
    %v2976 = vpack.c.b16 %v2080, %v2072
    %v2977 = vpack.c.b16 %v2081, %v2073
    %v2978 = vpack.c.b16 %v2082, %v2074
    %v2979 = vpack.c.b16 %v2083, %v2075
    %v2980 = vpack.c.b16 %v2084, %v2076
    %v2981 = vpack.c.b16 %v2093, %v2085
    %v2982 = vpack.c.b16 %v2094, %v2086
    %v2983 = vpack.c.b16 %v2095, %v2087
    %v2984 = vpack.c.b16 %v2096, %v2088
    %v2985 = vpack.c.b16 %v2097, %v2089
    %v2986 = vpack.c.b16 %v2098, %v2090
    %v2987 = vpack.c.b16 %v2099, %v2091
    %v2988 = vpack.c.b16 %v2100, %v2092
    %v2989 = vpack.c.b16 %v2109, %v2101
    %v2990 = vpack.c.b16 %v2110, %v2102
    %v2991 = vpack.c.b16 %v2111, %v2103
    %v2992 = vpack.c.b16 %v2112, %v2104
    %v2993 = vpack.c.b16 %v2113, %v2105
    %v2994 = vpack.c.b16 %v2114, %v2106
    %v2995 = vpack.c.b16 %v2115, %v2107
    %v2996 = vpack.c.b16 %v2116, %v2108
    %v2997 = vpack.c.b16 %v2125, %v2117
    %v2998 = vpack.c.b16 %v2126, %v2118
    %v2999 = vpack.c.b16 %v2127, %v2119
    %v3000 = vpack.c.b16 %v2128, %v2120
    %v3001 = vpack.c.b16 %v2129, %v2121
    %v3002 = vpack.c.b16 %v2130, %v2122
    %v3003 = vpack.c.b16 %v2131, %v2123
    %v3004 = vpack.c.b16 %v2132, %v2124
    %v3005 = vpack.c.b16 %v2141, %v2133
    %v3006 = vpack.c.b16 %v2142, %v2134
    %v3007 = vpack.c.b16 %v2143, %v2135
    %v3008 = vpack.c.b16 %v2144, %v2136
    %v3009 = vpack.c.b16 %v2145, %v2137
    %v3010 = vpack.c.b16 %v2146, %v2138
    %v3011 = vpack.c.b16 %v2147, %v2139
    %v3012 = vpack.c.b16 %v2148, %v2140
    %v3013 = vpack.c.b16 %v2157, %v2149
    %v3014 = vpack.c.b16 %v2158, %v2150
    %v3015 = vpack.c.b16 %v2159, %v2151
    %v3016 = vpack.c.b16 %v2160, %v2152
    %v3017 = vpack.c.b16 %v2161, %v2153
    %v3018 = vpack.c.b16 %v2162, %v2154
    %v3019 = vpack.c.b16 %v2163, %v2155
    %v3020 = vpack.c.b16 %v2164, %v2156
    %v3021 = vpack.c.b16 %v2173, %v2165
    %v3022 = vpack.c.b16 %v2174, %v2166
    %v3023 = vpack.c.b16 %v2175, %v2167
    %v3024 = vpack.c.b16 %v2176, %v2168
    %v3025 = vpack.c.b16 %v2177, %v2169
    %v3026 = vpack.c.b16 %v2178, %v2170
    %v3027 = vpack.c.b16 %v2179, %v2171
    %v3028 = vpack.c.b16 %v2180, %v2172
    %v3029 = vpack.c.b16 %v2189, %v2181
    %v3030 = vpack.c.b16 %v2190, %v2182
    %v3031 = vpack.c.b16 %v2191, %v2183
    %v3032 = vpack.c.b16 %v2192, %v2184
    %v3033 = vpack.c.b16 %v2193, %v2185
    %v3034 = vpack.c.b16 %v2194, %v2186
    %v3035 = vpack.c.b16 %v2195, %v2187
    %v3036 = vpack.c.b16 %v2196, %v2188
    %v3037 = vpack.c.b16 %v2205, %v2197
    %v3038 = vpack.c.b16 %v2206, %v2198
    %v3039 = vpack.c.b16 %v2207, %v2199
    %v3040 = vpack.c.b16 %v2208, %v2200
    %v3041 = vpack.c.b16 %v2209, %v2201
    %v3042 = vpack.c.b16 %v2210, %v2202
    %v3043 = vpack.c.b16 %v2211, %v2203
    %v3044 = vpack.c.b16 %v2212, %v2204
    %v3045 = vpack.c.b16 %v2221, %v2213
    %v3046 = vpack.c.b16 %v2222, %v2214
    %v3047 = vpack.c.b16 %v2223, %v2215
    %v3048 = vpack.c.b16 %v2224, %v2216
    %v3049 = vpack.c.b16 %v2225, %v2217
    %v3050 = vpack.c.b16 %v2226, %v2218
    %v3051 = vpack.c.b16 %v2227, %v2219
    %v3052 = vpack.c.b16 %v2228, %v2220
    %v3053 = vpack.c.b16 %v2237, %v2229
    %v3054 = vpack.c.b16 %v2238, %v2230
    %v3055 = vpack.c.b16 %v2239, %v2231
    %v3056 = vpack.c.b16 %v2240, %v2232
    %v3057 = vpack.c.b16 %v2241, %v2233
    %v3058 = vpack.c.b16 %v2242, %v2234
    %v3059 = vpack.c.b16 %v2243, %v2235
    %v3060 = vpack.c.b16 %v2244, %v2236
    %v3061 = vpack.c.b16 %v2253, %v2245
    %v3062 = vpack.c.b16 %v2254, %v2246
    %v3063 = vpack.c.b16 %v2255, %v2247
    %v3064 = vpack.c.b16 %v2256, %v2248
    %v3065 = vpack.c.b16 %v2257, %v2249
    %v3066 = vpack.c.b16 %v2258, %v2250
    %v3067 = vpack.c.b16 %v2259, %v2251
    %v3068 = vpack.c.b16 %v2260, %v2252
    %v3069 = vpack.c.b16 %v2269, %v2261
    %v3070 = vpack.c.b16 %v2270, %v2262
    %v3071 = vpack.c.b16 %v2271, %v2263
    %v3072 = vpack.c.b16 %v2272, %v2264
    %v3073 = vpack.c.b16 %v2273, %v2265
    %v3074 = vpack.c.b16 %v2274, %v2266
    %v3075 = vpack.c.b16 %v2275, %v2267
    %v3076 = vpack.c.b16 %v2276, %v2268
    %v3077 = vpack.c.b16 %v2285, %v2277
    %v3078 = vpack.c.b16 %v2286, %v2278
    %v3079 = vpack.c.b16 %v2287, %v2279
    %v3080 = vpack.c.b16 %v2288, %v2280
    %v3081 = vpack.c.b16 %v2289, %v2281
    %v3082 = vpack.c.b16 %v2290, %v2282
    %v3083 = vpack.c.b16 %v2291, %v2283
    %v3084 = vpack.c.b16 %v2292, %v2284
    %v3085 = vpack.c.b16 %v2301, %v2293
    %v3086 = vpack.c.b16 %v2302, %v2294
    %v3087 = vpack.c.b16 %v2303, %v2295
    %v3088 = vpack.c.b16 %v2304, %v2296
    %v3089 = vpack.c.b16 %v2305, %v2297
    %v3090 = vpack.c.b16 %v2306, %v2298
    %v3091 = vpack.c.b16 %v2307, %v2299
    %v3092 = vpack.c.b16 %v2308, %v2300
    %v3093 = vpack.c.b16 %v2317, %v2309
    %v3094 = vpack.c.b16 %v2318, %v2310
    %v3095 = vpack.c.b16 %v2319, %v2311
    %v3096 = vpack.c.b16 %v2320, %v2312
    %v3097 = vpack.c.b16 %v2321, %v2313
    %v3098 = vpack.c.b16 %v2322, %v2314
    %v3099 = vpack.c.b16 %v2323, %v2315
    %v3100 = vpack.c.b16 %v2324, %v2316
    %v3101 = vpack.c.b16 %v2333, %v2325
    %v3102 = vpack.c.b16 %v2334, %v2326
    %v3103 = vpack.c.b16 %v2335, %v2327
    %v3104 = vpack.c.b16 %v2336, %v2328
    %v3105 = vpack.c.b16 %v2337, %v2329
    %v3106 = vpack.c.b16 %v2338, %v2330
    %v3107 = vpack.c.b16 %v2339, %v2331
    %v3108 = vpack.c.b16 %v2340, %v2332
    %v3109 = vpack.c.b16 %v2349, %v2341
    %v3110 = vpack.c.b16 %v2350, %v2342
    %v3111 = vpack.c.b16 %v2351, %v2343
    %v3112 = vpack.c.b16 %v2352, %v2344
    %v3113 = vpack.c.b16 %v2353, %v2345
    %v3114 = vpack.c.b16 %v2354, %v2346
    %v3115 = vpack.c.b16 %v2355, %v2347
    %v3116 = vpack.c.b16 %v2356, %v2348
    %v3117 = vpack.c.b16 %v2365, %v2357
    %v3118 = vpack.c.b16 %v2366, %v2358
    %v3119 = vpack.c.b16 %v2367, %v2359
    %v3120 = vpack.c.b16 %v2368, %v2360
    %v3121 = vpack.c.b16 %v2369, %v2361
    %v3122 = vpack.c.b16 %v2370, %v2362
    %v3123 = vpack.c.b16 %v2371, %v2363
    %v3124 = vpack.c.b16 %v2372, %v2364
    %v3125 = vpack.c.b16 %v2381, %v2373
    %v3126 = vpack.c.b16 %v2382, %v2374
    %v3127 = vpack.c.b16 %v2383, %v2375
    %v3128 = vpack.c.b16 %v2384, %v2376
    %v3129 = vpack.c.b16 %v2385, %v2377
    %v3130 = vpack.c.b16 %v2386, %v2378
    %v3131 = vpack.c.b16 %v2387, %v2379
    %v3132 = vpack.c.b16 %v2388, %v2380
    %v3133 = vpack.c.b16 %v2397, %v2389
    %v3134 = vpack.c.b16 %v2398, %v2390
    %v3135 = vpack.c.b16 %v2399, %v2391
    %v3136 = vpack.c.b16 %v2400, %v2392
    %v3137 = vpack.c.b16 %v2401, %v2393
    %v3138 = vpack.c.b16 %v2402, %v2394
    %v3139 = vpack.c.b16 %v2403, %v2395
    %v3140 = vpack.c.b16 %v2404, %v2396
    %v3141 = vpack.c.b16 %v2413, %v2405
    %v3142 = vpack.c.b16 %v2414, %v2406
    %v3143 = vpack.c.b16 %v2415, %v2407
    %v3144 = vpack.c.b16 %v2416, %v2408
    %v3145 = vpack.c.b16 %v2417, %v2409
    %v3146 = vpack.c.b16 %v2418, %v2410
    %v3147 = vpack.c.b16 %v2419, %v2411
    %v3148 = vpack.c.b16 %v2420, %v2412
    %v3149 = vpack.c.b16 %v2429, %v2421
    %v3150 = vpack.c.b16 %v2430, %v2422
    %v3151 = vpack.c.b16 %v2431, %v2423
    %v3152 = vpack.c.b16 %v2432, %v2424
    %v3153 = vpack.c.b16 %v2433, %v2425
    %v3154 = vpack.c.b16 %v2434, %v2426
    %v3155 = vpack.c.b16 %v2435, %v2427
    %v3156 = vpack.c.b16 %v2436, %v2428
    %v3157 = vpack.c.b16 %v2445, %v2437
    %v3158 = vpack.c.b16 %v2446, %v2438
    %v3159 = vpack.c.b16 %v2447, %v2439
    %v3160 = vpack.c.b16 %v2448, %v2440
    %v3161 = vpack.c.b16 %v2449, %v2441
    %v3162 = vpack.c.b16 %v2450, %v2442
    %v3163 = vpack.c.b16 %v2451, %v2443
    %v3164 = vpack.c.b16 %v2452, %v2444
    %v3165 = vpack.c.b16 %v2461, %v2453
    %v3166 = vpack.c.b16 %v2462, %v2454
    %v3167 = vpack.c.b16 %v2463, %v2455
    %v3168 = vpack.c.b16 %v2464, %v2456
    %v3169 = vpack.c.b16 %v2465, %v2457
    %v3170 = vpack.c.b16 %v2466, %v2458
    %v3171 = vpack.c.b16 %v2467, %v2459
    %v3172 = vpack.c.b16 %v2468, %v2460
    %v3173 = vpack.c.b16 %v2477, %v2469
    %v3174 = vpack.c.b16 %v2478, %v2470
    %v3175 = vpack.c.b16 %v2479, %v2471
    %v3176 = vpack.c.b16 %v2480, %v2472
    %v3177 = vpack.c.b16 %v2481, %v2473
    %v3178 = vpack.c.b16 %v2482, %v2474
    %v3179 = vpack.c.b16 %v2483, %v2475
    %v3180 = vpack.c.b16 %v2484, %v2476
    %v3181 = vpack.c.b16 %v2493, %v2485
    %v3182 = vpack.c.b16 %v2494, %v2486
    %v3183 = vpack.c.b16 %v2495, %v2487
    %v3184 = vpack.c.b16 %v2496, %v2488
    %v3185 = vpack.c.b16 %v2497, %v2489
    %v3186 = vpack.c.b16 %v2498, %v2490
    %v3187 = vpack.c.b16 %v2499, %v2491
    %v3188 = vpack.c.b16 %v2500, %v2492
    %v3189 = vpack.c.b16 %v2509, %v2501
    %v3190 = vpack.c.b16 %v2510, %v2502
    %v3191 = vpack.c.b16 %v2511, %v2503
    %v3192 = vpack.c.b16 %v2512, %v2504
    %v3193 = vpack.c.b16 %v2513, %v2505
    %v3194 = vpack.c.b16 %v2514, %v2506
    %v3195 = vpack.c.b16 %v2515, %v2507
    %v3196 = vpack.c.b16 %v2516, %v2508
    %v3197 = vpack.c.b16 %v2525, %v2517
    %v3198 = vpack.c.b16 %v2526, %v2518
    %v3199 = vpack.c.b16 %v2527, %v2519
    %v3200 = vpack.c.b16 %v2528, %v2520
    %v3201 = vpack.c.b16 %v2529, %v2521
    %v3202 = vpack.c.b16 %v2530, %v2522
    %v3203 = vpack.c.b16 %v2531, %v2523
    %v3204 = vpack.c.b16 %v2532, %v2524
    %v3205 = vpack.c.b16 %v2541, %v2533
    %v3206 = vpack.c.b16 %v2542, %v2534
    %v3207 = vpack.c.b16 %v2543, %v2535
    %v3208 = vpack.c.b16 %v2544, %v2536
    %v3209 = vpack.c.b16 %v2545, %v2537
    %v3210 = vpack.c.b16 %v2546, %v2538
    %v3211 = vpack.c.b16 %v2547, %v2539
    %v3212 = vpack.c.b16 %v2548, %v2540
    %v3213 = vpack.c.b16 %v2557, %v2549
    %v3214 = vpack.c.b16 %v2558, %v2550
    %v3215 = vpack.c.b16 %v2559, %v2551
    %v3216 = vpack.c.b16 %v2560, %v2552
    %v3217 = vpack.c.b16 %v2561, %v2553
    %v3218 = vpack.c.b16 %v2562, %v2554
    %v3219 = vpack.c.b16 %v2563, %v2555
    %v3220 = vpack.c.b16 %v2564, %v2556
    %v3221 = vpack.c.b16 %v2573, %v2565
    %v3222 = vpack.c.b16 %v2574, %v2566
    %v3223 = vpack.c.b16 %v2575, %v2567
    %v3224 = vpack.c.b16 %v2576, %v2568
    %v3225 = vpack.c.b16 %v2577, %v2569
    %v3226 = vpack.c.b16 %v2578, %v2570
    %v3227 = vpack.c.b16 %v2579, %v2571
    %v3228 = vpack.c.b16 %v2580, %v2572
    %v3229 = vpack.c.b16 %v2589, %v2581
    %v3230 = vpack.c.b16 %v2590, %v2582
    %v3231 = vpack.c.b16 %v2591, %v2583
    %v3232 = vpack.c.b16 %v2592, %v2584
    %v3233 = vpack.c.b16 %v2593, %v2585
    %v3234 = vpack.c.b16 %v2594, %v2586
    %v3235 = vpack.c.b16 %v2595, %v2587
    %v3236 = vpack.c.b16 %v2596, %v2588
    %v3237 = vpack.c.b16 %v2605, %v2597
    %v3238 = vpack.c.b16 %v2606, %v2598
    %v3239 = vpack.c.b16 %v2607, %v2599
    %v3240 = vpack.c.b16 %v2608, %v2600
    %v3241 = vpack.c.b16 %v2609, %v2601
    %v3242 = vpack.c.b16 %v2610, %v2602
    %v3243 = vpack.c.b16 %v2611, %v2603
    %v3244 = vpack.c.b16 %v2612, %v2604
    %v3245 = vpack.c.b16 %v2621, %v2613
    %v3246 = vpack.c.b16 %v2622, %v2614
    %v3247 = vpack.c.b16 %v2623, %v2615
    %v3248 = vpack.c.b16 %v2624, %v2616
    %v3249 = vpack.c.b16 %v2625, %v2617
    %v3250 = vpack.c.b16 %v2626, %v2618
    %v3251 = vpack.c.b16 %v2627, %v2619
    %v3252 = vpack.c.b16 %v2628, %v2620
    %v3253 = vpack.c.b16 %v2637, %v2629
    %v3254 = vpack.c.b16 %v2638, %v2630
    %v3255 = vpack.c.b16 %v2639, %v2631
    %v3256 = vpack.c.b16 %v2640, %v2632
    %v3257 = vpack.c.b16 %v2641, %v2633
    %v3258 = vpack.c.b16 %v2642, %v2634
    %v3259 = vpack.c.b16 %v2643, %v2635
    %v3260 = vpack.c.b16 %v2644, %v2636
    %v3261 = vpack.c.b16 %v2653, %v2645
    %v3262 = vpack.c.b16 %v2654, %v2646
    %v3263 = vpack.c.b16 %v2655, %v2647
    %v3264 = vpack.c.b16 %v2656, %v2648
    %v3265 = vpack.c.b16 %v2657, %v2649
    %v3266 = vpack.c.b16 %v2658, %v2650
    %v3267 = vpack.c.b16 %v2659, %v2651
    %v3268 = vpack.c.b16 %v2660, %v2652
    %v3269 = vpack.c.b16 %v2669, %v2661
    %v3270 = vpack.c.b16 %v2670, %v2662
    %v3271 = vpack.c.b16 %v2671, %v2663
    %v3272 = vpack.c.b16 %v2672, %v2664
    %v3273 = vpack.c.b16 %v2673, %v2665
    %v3274 = vpack.c.b16 %v2674, %v2666
    %v3275 = vpack.c.b16 %v2675, %v2667
    %v3276 = vpack.c.b16 %v2676, %v2668
    %v3277 = vpack.c.b16 %v2685, %v2677
    %v3278 = vpack.c.b16 %v2686, %v2678
    %v3279 = vpack.c.b16 %v2687, %v2679
    %v3280 = vpack.c.b16 %v2688, %v2680
    %v3281 = vpack.c.b16 %v2689, %v2681
    %v3282 = vpack.c.b16 %v2690, %v2682
    %v3283 = vpack.c.b16 %v2691, %v2683
    %v3284 = vpack.c.b16 %v2692, %v2684
    %v3285 = vpack.c.b16 %v2701, %v2693
    %v3286 = vpack.c.b16 %v2702, %v2694
    %v3287 = vpack.c.b16 %v2703, %v2695
    %v3288 = vpack.c.b16 %v2704, %v2696
    %v3289 = vpack.c.b16 %v2705, %v2697
    %v3290 = vpack.c.b16 %v2706, %v2698
    %v3291 = vpack.c.b16 %v2707, %v2699
    %v3292 = vpack.c.b16 %v2708, %v2700
    %v3293 = vpack.c.b16 %v2717, %v2709
    %v3294 = vpack.c.b16 %v2718, %v2710
    %v3295 = vpack.c.b16 %v2719, %v2711
    %v3296 = vpack.c.b16 %v2720, %v2712
    %v3297 = vpack.c.b16 %v2721, %v2713
    %v3298 = vpack.c.b16 %v2722, %v2714
    %v3299 = vpack.c.b16 %v2723, %v2715
    %v3300 = vpack.c.b16 %v2724, %v2716
    %v3301 = vpack.c.b16 %v2733, %v2725
    %v3302 = vpack.c.b16 %v2734, %v2726
    %v3303 = vpack.c.b16 %v2735, %v2727
    %v3304 = vpack.c.b16 %v2736, %v2728
    %v3305 = vpack.c.b16 %v2737, %v2729
    %v3306 = vpack.c.b16 %v2738, %v2730
    %v3307 = vpack.c.b16 %v2739, %v2731
    %v3308 = vpack.c.b16 %v2740, %v2732
    %v3309 = vpack.c.b16 %v2749, %v2741
    %v3310 = vpack.c.b16 %v2750, %v2742
    %v3311 = vpack.c.b16 %v2751, %v2743
    %v3312 = vpack.c.b16 %v2752, %v2744
    %v3313 = vpack.c.b16 %v2753, %v2745
    %v3314 = vpack.c.b16 %v2754, %v2746
    %v3315 = vpack.c.b16 %v2755, %v2747
    %v3316 = vpack.c.b16 %v2756, %v2748
    %v3317 = vpack.c.b16 %v2765, %v2757
    %v3318 = vpack.c.b16 %v2766, %v2758
    %v3319 = vpack.c.b16 %v2767, %v2759
    %v3320 = vpack.c.b16 %v2768, %v2760
    %v3321 = vpack.c.b16 %v2769, %v2761
    %v3322 = vpack.c.b16 %v2770, %v2762
    %v3323 = vpack.c.b16 %v2771, %v2763
    %v3324 = vpack.c.b16 %v2772, %v2764
    %v3325 = vpack.c.b16 %v2781, %v2773
    %v3326 = vpack.c.b16 %v2782, %v2774
    %v3327 = vpack.c.b16 %v2783, %v2775
    %v3328 = vpack.c.b16 %v2784, %v2776
    %v3329 = vpack.c.b16 %v2785, %v2777
    %v3330 = vpack.c.b16 %v2786, %v2778
    %v3331 = vpack.c.b16 %v2787, %v2779
    %v3332 = vpack.c.b16 %v2788, %v2780
    %v3333 = vpack.c.b16 %v2797, %v2789
    %v3334 = vpack.c.b16 %v2798, %v2790
    %v3335 = vpack.c.b16 %v2799, %v2791
    %v3336 = vpack.c.b16 %v2800, %v2792
    %v3337 = vpack.c.b16 %v2801, %v2793
    %v3338 = vpack.c.b16 %v2802, %v2794
    %v3339 = vpack.c.b16 %v2803, %v2795
    %v3340 = vpack.c.b16 %v2804, %v2796
    %v3341 = vpack.c.b16 %v2813, %v2805
    %v3342 = vpack.c.b16 %v2814, %v2806
    %v3343 = vpack.c.b16 %v2815, %v2807
    %v3344 = vpack.c.b16 %v2816, %v2808
    %v3345 = vpack.c.b16 %v2817, %v2809
    %v3346 = vpack.c.b16 %v2818, %v2810
    %v3347 = vpack.c.b16 %v2819, %v2811
    %v3348 = vpack.c.b16 %v2820, %v2812
    %v3349 = vpack.c.b16 %v2829, %v2821
    %v3350 = vpack.c.b16 %v2830, %v2822
    %v3351 = vpack.c.b16 %v2831, %v2823
    %v3352 = vpack.c.b16 %v2832, %v2824
    %v3353 = vpack.c.b16 %v2833, %v2825
    %v3354 = vpack.c.b16 %v2834, %v2826
    %v3355 = vpack.c.b16 %v2835, %v2827
    %v3356 = vpack.c.b16 %v2836, %v2828
    %v3357 = vpack.c.b16 %v2845, %v2837
    %v3358 = vpack.c.b16 %v2846, %v2838
    %v3359 = vpack.c.b16 %v2847, %v2839
    %v3360 = vpack.c.b16 %v2848, %v2840
    %v3361 = vpack.c.b16 %v2849, %v2841
    %v3362 = vpack.c.b16 %v2850, %v2842
    %v3363 = vpack.c.b16 %v2851, %v2843
    %v3364 = vpack.c.b16 %v2852, %v2844
    %3877 = vmatprep.subr.bf16.mxu0 %v2910
    %3878 = vmatpush1.bf16.msra.mxu0 %v2909
    %3879 = vmatprep.subr.bf16.mxu0 %v2902
    %3880 = vmatpush1.bf16.msra.mxu0 %v2901
    %3881 = vmatprep.subr.bf16.mxu0 %v2894
    %3882 = vmatpush1.bf16.msra.mxu0 %v2893
    %3883 = vmatprep.subr.bf16.mxu0 %v2886
    %3884 = vmatpush1.bf16.msra.mxu0 %v2885
    %3885 = vmatprep.subr.bf16.mxu0 %v2878
    %3886 = vmatpush1.bf16.msra.mxu0 %v2877
    %3887 = vmatprep.subr.bf16.mxu0 %v2870
    %3888 = vmatpush1.bf16.msra.mxu0 %v2869
    %3889 = vmatprep.subr.bf16.mxu0 %v2862
    %3890 = vmatpush1.bf16.msra.mxu0 %v2861
    %3891 = vmatprep.subr.bf16.mxu0 %v2854
    %3892 = vmatpush1.bf16.msra.mxu0 %v2853
    %3893 = vmatprep.subr.bf16.mxu0 %v2974
    %3894 = vmatpush2.bf16.msra.mxu0 %v2973
    %3895 = vmatprep.subr.bf16.mxu0 %v2966
    %3896 = vmatpush2.bf16.msra.mxu0 %v2965
    %3897 = vmatprep.subr.bf16.mxu0 %v2958
    %3898 = vmatpush2.bf16.msra.mxu0 %v2957
    %3899 = vmatprep.subr.bf16.mxu0 %v2950
    %3900 = vmatpush2.bf16.msra.mxu0 %v2949
    %3901 = vmatprep.subr.bf16.mxu0 %v2942
    %3902 = vmatpush2.bf16.msra.mxu0 %v2941
    %3903 = vmatprep.subr.bf16.mxu0 %v2934
    %3904 = vmatpush2.bf16.msra.mxu0 %v2933
    %3905 = vmatprep.subr.bf16.mxu0 %v2926
    %3906 = vmatpush2.bf16.msra.mxu0 %v2925
    %3907 = vmatprep.subr.bf16.mxu0 %v2918
    %3908 = vmatpush2.bf16.msra.mxu0 %v2917
    %3909 = vmatprep.mubr.bf16.mxu0 %v794
    %3910 = vmatmul.mubr.bf16.gmra.mxu0 %v793
    %v3911 = vpop.f32.mrf.mxu0
    %v3912 = vadd.f32 0.0, %v3911
    %v3913 = vpop.f32.mrf.mxu0
    %v3914 = vadd.f32 0.0, %v3913
    %v3915 = vpop.f32.mrf.mxu0
    %v3916 = vpop.f32.mrf.mxu0
    %3917 = vdwg.mxu0
    %3918 = vmatprep.subr.bf16.mxu0 %v3038
    %3919 = vmatpush1.bf16.msra.mxu0 %v3037
    %3920 = vmatprep.subr.bf16.mxu0 %v3030
    %3921 = vmatpush1.bf16.msra.mxu0 %v3029
    %3922 = vmatprep.subr.bf16.mxu0 %v3022
    %3923 = vmatpush1.bf16.msra.mxu0 %v3021
    %3924 = vmatprep.subr.bf16.mxu0 %v3014
    %3925 = vmatpush1.bf16.msra.mxu0 %v3013
    %3926 = vmatprep.subr.bf16.mxu0 %v3006
    %3927 = vmatpush1.bf16.msra.mxu0 %v3005
    %3928 = vmatprep.subr.bf16.mxu0 %v2998
    %3929 = vmatpush1.bf16.msra.mxu0 %v2997
    %3930 = vmatprep.subr.bf16.mxu0 %v2990
    %3931 = vmatpush1.bf16.msra.mxu0 %v2989
    %3932 = vmatprep.subr.bf16.mxu0 %v2982
    %3933 = vmatpush1.bf16.msra.mxu0 %v2981
    %3934 = vmatprep.subr.bf16.mxu0 %v3102
    %3935 = vmatpush2.bf16.msra.mxu0 %v3101
    %3936 = vmatprep.subr.bf16.mxu0 %v3094
    %3937 = vmatpush2.bf16.msra.mxu0 %v3093
    %3938 = vmatprep.subr.bf16.mxu0 %v3086
    %3939 = vmatpush2.bf16.msra.mxu0 %v3085
    %3940 = vmatprep.subr.bf16.mxu0 %v3078
    %3941 = vmatpush2.bf16.msra.mxu0 %v3077
    %3942 = vmatprep.subr.bf16.mxu0 %v3070
    %3943 = vmatpush2.bf16.msra.mxu0 %v3069
    %3944 = vmatprep.subr.bf16.mxu0 %v3062
    %3945 = vmatpush2.bf16.msra.mxu0 %v3061
    %3946 = vmatprep.subr.bf16.mxu0 %v3054
    %3947 = vmatpush2.bf16.msra.mxu0 %v3053
    %3948 = vmatprep.subr.bf16.mxu0 %v3046
    %3949 = vmatpush2.bf16.msra.mxu0 %v3045
    %3950 = vmatprep.mubr.bf16.mxu0 %v796
    %3951 = vmatmul.mubr.bf16.gmra.mxu0 %v795
    %v3952 = vpop.f32.mrf.mxu0
    %v3953 = vadd.f32 %v3912, %v3952
    %v3954 = vpop.f32.mrf.mxu0
    %v3955 = vadd.f32 %v3914, %v3954
    %v3956 = vpop.f32.mrf.mxu0
    %v3957 = vpop.f32.mrf.mxu0
    %3958 = vdwg.mxu0
    %3959 = vmatprep.subr.bf16.mxu0 %v3166
    %3960 = vmatpush1.bf16.msra.mxu0 %v3165
    %3961 = vmatprep.subr.bf16.mxu0 %v3158
    %3962 = vmatpush1.bf16.msra.mxu0 %v3157
    %3963 = vmatprep.subr.bf16.mxu0 %v3150
    %3964 = vmatpush1.bf16.msra.mxu0 %v3149
    %3965 = vmatprep.subr.bf16.mxu0 %v3142
    %3966 = vmatpush1.bf16.msra.mxu0 %v3141
    %3967 = vmatprep.subr.bf16.mxu0 %v3134
    %3968 = vmatpush1.bf16.msra.mxu0 %v3133
    %3969 = vmatprep.subr.bf16.mxu0 %v3126
    %3970 = vmatpush1.bf16.msra.mxu0 %v3125
    %3971 = vmatprep.subr.bf16.mxu0 %v3118
    %3972 = vmatpush1.bf16.msra.mxu0 %v3117
    %3973 = vmatprep.subr.bf16.mxu0 %v3110
    %3974 = vmatpush1.bf16.msra.mxu0 %v3109
    %3975 = vmatprep.subr.bf16.mxu0 %v3230
    %3976 = vmatpush2.bf16.msra.mxu0 %v3229
    %3977 = vmatprep.subr.bf16.mxu0 %v3222
    %3978 = vmatpush2.bf16.msra.mxu0 %v3221
    %3979 = vmatprep.subr.bf16.mxu0 %v3214
    %3980 = vmatpush2.bf16.msra.mxu0 %v3213
    %3981 = vmatprep.subr.bf16.mxu0 %v3206
    %3982 = vmatpush2.bf16.msra.mxu0 %v3205
    %3983 = vmatprep.subr.bf16.mxu0 %v3198
    %3984 = vmatpush2.bf16.msra.mxu0 %v3197
    %3985 = vmatprep.subr.bf16.mxu0 %v3190
    %3986 = vmatpush2.bf16.msra.mxu0 %v3189
    %3987 = vmatprep.subr.bf16.mxu0 %v3182
    %3988 = vmatpush2.bf16.msra.mxu0 %v3181
    %3989 = vmatprep.subr.bf16.mxu0 %v3174
    %3990 = vmatpush2.bf16.msra.mxu0 %v3173
    %3991 = vmatprep.mubr.bf16.mxu0 %v798
    %3992 = vmatmul.mubr.bf16.gmra.mxu0 %v797
    %v3993 = vpop.f32.mrf.mxu0
    %v3994 = vadd.f32 %v3953, %v3993
    %v3995 = vpop.f32.mrf.mxu0
    %v3996 = vadd.f32 %v3955, %v3995
    %v3997 = vpop.f32.mrf.mxu0
    %v3998 = vpop.f32.mrf.mxu0
    %3999 = vdwg.mxu0
    %4000 = vmatprep.subr.bf16.mxu0 %v3294
    %4001 = vmatpush1.bf16.msra.mxu0 %v3293
    %4002 = vmatprep.subr.bf16.mxu0 %v3286
    %4003 = vmatpush1.bf16.msra.mxu0 %v3285
    %4004 = vmatprep.subr.bf16.mxu0 %v3278
    %4005 = vmatpush1.bf16.msra.mxu0 %v3277
    %4006 = vmatprep.subr.bf16.mxu0 %v3270
    %4007 = vmatpush1.bf16.msra.mxu0 %v3269
    %4008 = vmatprep.subr.bf16.mxu0 %v3262
    %4009 = vmatpush1.bf16.msra.mxu0 %v3261
    %4010 = vmatprep.subr.bf16.mxu0 %v3254
    %4011 = vmatpush1.bf16.msra.mxu0 %v3253
    %4012 = vmatprep.subr.bf16.mxu0 %v3246
    %4013 = vmatpush1.bf16.msra.mxu0 %v3245
    %4014 = vmatprep.subr.bf16.mxu0 %v3238
    %4015 = vmatpush1.bf16.msra.mxu0 %v3237
    %4016 = vmatprep.subr.bf16.mxu0 %v3358
    %4017 = vmatpush2.bf16.msra.mxu0 %v3357
    %4018 = vmatprep.subr.bf16.mxu0 %v3350
    %4019 = vmatpush2.bf16.msra.mxu0 %v3349
    %4020 = vmatprep.subr.bf16.mxu0 %v3342
    %4021 = vmatpush2.bf16.msra.mxu0 %v3341
    %4022 = vmatprep.subr.bf16.mxu0 %v3334
    %4023 = vmatpush2.bf16.msra.mxu0 %v3333
    %4024 = vmatprep.subr.bf16.mxu0 %v3326
    %4025 = vmatpush2.bf16.msra.mxu0 %v3325
    %4026 = vmatprep.subr.bf16.mxu0 %v3318
    %4027 = vmatpush2.bf16.msra.mxu0 %v3317
    %4028 = vmatprep.subr.bf16.mxu0 %v3310
    %4029 = vmatpush2.bf16.msra.mxu0 %v3309
    %4030 = vmatprep.subr.bf16.mxu0 %v3302
    %4031 = vmatpush2.bf16.msra.mxu0 %v3301
    %4032 = vmatprep.mubr.bf16.mxu0 %v800
    %4033 = vmatmul.mubr.bf16.gmra.mxu0 %v799
    %v4034 = vpop.f32.mrf.mxu0
    %v4035 = vadd.f32 %v3994, %v4034
    %v4036 = vpop.f32.mrf.mxu0
    %v4037 = vadd.f32 %v3996, %v4036
    %v4038 = vpop.f32.mrf.mxu0
    %v4039 = vpop.f32.mrf.mxu0
    %4040 = vdwg.mxu0
    %4041 = vmatprep.subr.bf16.mxu0 %v2912
    %4042 = vmatpush1.bf16.msra.mxu0 %v2911
    %4043 = vmatprep.subr.bf16.mxu0 %v2904
    %4044 = vmatpush1.bf16.msra.mxu0 %v2903
    %4045 = vmatprep.subr.bf16.mxu0 %v2896
    %4046 = vmatpush1.bf16.msra.mxu0 %v2895
    %4047 = vmatprep.subr.bf16.mxu0 %v2888
    %4048 = vmatpush1.bf16.msra.mxu0 %v2887
    %4049 = vmatprep.subr.bf16.mxu0 %v2880
    %4050 = vmatpush1.bf16.msra.mxu0 %v2879
    %4051 = vmatprep.subr.bf16.mxu0 %v2872
    %4052 = vmatpush1.bf16.msra.mxu0 %v2871
    %4053 = vmatprep.subr.bf16.mxu0 %v2864
    %4054 = vmatpush1.bf16.msra.mxu0 %v2863
    %4055 = vmatprep.subr.bf16.mxu0 %v2856
    %4056 = vmatpush1.bf16.msra.mxu0 %v2855
    %4057 = vmatprep.subr.bf16.mxu0 %v2976
    %4058 = vmatpush2.bf16.msra.mxu0 %v2975
    %4059 = vmatprep.subr.bf16.mxu0 %v2968
    %4060 = vmatpush2.bf16.msra.mxu0 %v2967
    %4061 = vmatprep.subr.bf16.mxu0 %v2960
    %4062 = vmatpush2.bf16.msra.mxu0 %v2959
    %4063 = vmatprep.subr.bf16.mxu0 %v2952
    %4064 = vmatpush2.bf16.msra.mxu0 %v2951
    %4065 = vmatprep.subr.bf16.mxu0 %v2944
    %4066 = vmatpush2.bf16.msra.mxu0 %v2943
    %4067 = vmatprep.subr.bf16.mxu0 %v2936
    %4068 = vmatpush2.bf16.msra.mxu0 %v2935
    %4069 = vmatprep.subr.bf16.mxu0 %v2928
    %4070 = vmatpush2.bf16.msra.mxu0 %v2927
    %4071 = vmatprep.subr.bf16.mxu0 %v2920
    %4072 = vmatpush2.bf16.msra.mxu0 %v2919
    %4073 = vmatprep.mubr.bf16.mxu0 %v794
    %4074 = vmatmul.mubr.bf16.gmra.mxu0 %v793
    %v4075 = vpop.f32.mrf.mxu0
    %v4076 = vadd.f32 0.0, %v4075
    %v4077 = vpop.f32.mrf.mxu0
    %v4078 = vadd.f32 0.0, %v4077
    %v4079 = vpop.f32.mrf.mxu0
    %v4080 = vpop.f32.mrf.mxu0
    %4081 = vdwg.mxu0
    %4082 = vmatprep.subr.bf16.mxu0 %v3040
    %4083 = vmatpush1.bf16.msra.mxu0 %v3039
    %4084 = vmatprep.subr.bf16.mxu0 %v3032
    %4085 = vmatpush1.bf16.msra.mxu0 %v3031
    %4086 = vmatprep.subr.bf16.mxu0 %v3024
    %4087 = vmatpush1.bf16.msra.mxu0 %v3023
    %4088 = vmatprep.subr.bf16.mxu0 %v3016
    %4089 = vmatpush1.bf16.msra.mxu0 %v3015
    %4090 = vmatprep.subr.bf16.mxu0 %v3008
    %4091 = vmatpush1.bf16.msra.mxu0 %v3007
    %4092 = vmatprep.subr.bf16.mxu0 %v3000
    %4093 = vmatpush1.bf16.msra.mxu0 %v2999
    %4094 = vmatprep.subr.bf16.mxu0 %v2992
    %4095 = vmatpush1.bf16.msra.mxu0 %v2991
    %4096 = vmatprep.subr.bf16.mxu0 %v2984
    %4097 = vmatpush1.bf16.msra.mxu0 %v2983
    %4098 = vmatprep.subr.bf16.mxu0 %v3104
    %4099 = vmatpush2.bf16.msra.mxu0 %v3103
    %4100 = vmatprep.subr.bf16.mxu0 %v3096
    %4101 = vmatpush2.bf16.msra.mxu0 %v3095
    %4102 = vmatprep.subr.bf16.mxu0 %v3088
    %4103 = vmatpush2.bf16.msra.mxu0 %v3087
    %4104 = vmatprep.subr.bf16.mxu0 %v3080
    %4105 = vmatpush2.bf16.msra.mxu0 %v3079
    %4106 = vmatprep.subr.bf16.mxu0 %v3072
    %4107 = vmatpush2.bf16.msra.mxu0 %v3071
    %4108 = vmatprep.subr.bf16.mxu0 %v3064
    %4109 = vmatpush2.bf16.msra.mxu0 %v3063
    %4110 = vmatprep.subr.bf16.mxu0 %v3056
    %4111 = vmatpush2.bf16.msra.mxu0 %v3055
    %4112 = vmatprep.subr.bf16.mxu0 %v3048
    %4113 = vmatpush2.bf16.msra.mxu0 %v3047
    %4114 = vmatprep.mubr.bf16.mxu0 %v796
    %4115 = vmatmul.mubr.bf16.gmra.mxu0 %v795
    %v4116 = vpop.f32.mrf.mxu0
    %v4117 = vadd.f32 %v4076, %v4116
    %v4118 = vpop.f32.mrf.mxu0
    %v4119 = vadd.f32 %v4078, %v4118
    %v4120 = vpop.f32.mrf.mxu0
    %v4121 = vpop.f32.mrf.mxu0
    %4122 = vdwg.mxu0
    %4123 = vmatprep.subr.bf16.mxu0 %v3168
    %4124 = vmatpush1.bf16.msra.mxu0 %v3167
    %4125 = vmatprep.subr.bf16.mxu0 %v3160
    %4126 = vmatpush1.bf16.msra.mxu0 %v3159
    %4127 = vmatprep.subr.bf16.mxu0 %v3152
    %4128 = vmatpush1.bf16.msra.mxu0 %v3151
    %4129 = vmatprep.subr.bf16.mxu0 %v3144
    %4130 = vmatpush1.bf16.msra.mxu0 %v3143
    %4131 = vmatprep.subr.bf16.mxu0 %v3136
    %4132 = vmatpush1.bf16.msra.mxu0 %v3135
    %4133 = vmatprep.subr.bf16.mxu0 %v3128
    %4134 = vmatpush1.bf16.msra.mxu0 %v3127
    %4135 = vmatprep.subr.bf16.mxu0 %v3120
    %4136 = vmatpush1.bf16.msra.mxu0 %v3119
    %4137 = vmatprep.subr.bf16.mxu0 %v3112
    %4138 = vmatpush1.bf16.msra.mxu0 %v3111
    %4139 = vmatprep.subr.bf16.mxu0 %v3232
    %4140 = vmatpush2.bf16.msra.mxu0 %v3231
    %4141 = vmatprep.subr.bf16.mxu0 %v3224
    %4142 = vmatpush2.bf16.msra.mxu0 %v3223
    %4143 = vmatprep.subr.bf16.mxu0 %v3216
    %4144 = vmatpush2.bf16.msra.mxu0 %v3215
    %4145 = vmatprep.subr.bf16.mxu0 %v3208
    %4146 = vmatpush2.bf16.msra.mxu0 %v3207
    %4147 = vmatprep.subr.bf16.mxu0 %v3200
    %4148 = vmatpush2.bf16.msra.mxu0 %v3199
    %4149 = vmatprep.subr.bf16.mxu0 %v3192
    %4150 = vmatpush2.bf16.msra.mxu0 %v3191
    %4151 = vmatprep.subr.bf16.mxu0 %v3184
    %4152 = vmatpush2.bf16.msra.mxu0 %v3183
    %4153 = vmatprep.subr.bf16.mxu0 %v3176
    %4154 = vmatpush2.bf16.msra.mxu0 %v3175
    %4155 = vmatprep.mubr.bf16.mxu0 %v798
    %4156 = vmatmul.mubr.bf16.gmra.mxu0 %v797
    %v4157 = vpop.f32.mrf.mxu0
    %v4158 = vadd.f32 %v4117, %v4157
    %v4159 = vpop.f32.mrf.mxu0
    %v4160 = vadd.f32 %v4119, %v4159
    %v4161 = vpop.f32.mrf.mxu0
    %v4162 = vpop.f32.mrf.mxu0
    %4163 = vdwg.mxu0
    %4164 = vmatprep.subr.bf16.mxu0 %v3296
    %4165 = vmatpush1.bf16.msra.mxu0 %v3295
    %4166 = vmatprep.subr.bf16.mxu0 %v3288
    %4167 = vmatpush1.bf16.msra.mxu0 %v3287
    %4168 = vmatprep.subr.bf16.mxu0 %v3280
    %4169 = vmatpush1.bf16.msra.mxu0 %v3279
    %4170 = vmatprep.subr.bf16.mxu0 %v3272
    %4171 = vmatpush1.bf16.msra.mxu0 %v3271
    %4172 = vmatprep.subr.bf16.mxu0 %v3264
    %4173 = vmatpush1.bf16.msra.mxu0 %v3263
    %4174 = vmatprep.subr.bf16.mxu0 %v3256
    %4175 = vmatpush1.bf16.msra.mxu0 %v3255
    %4176 = vmatprep.subr.bf16.mxu0 %v3248
    %4177 = vmatpush1.bf16.msra.mxu0 %v3247
    %4178 = vmatprep.subr.bf16.mxu0 %v3240
    %4179 = vmatpush1.bf16.msra.mxu0 %v3239
    %4180 = vmatprep.subr.bf16.mxu0 %v3360
    %4181 = vmatpush2.bf16.msra.mxu0 %v3359
    %4182 = vmatprep.subr.bf16.mxu0 %v3352
    %4183 = vmatpush2.bf16.msra.mxu0 %v3351
    %4184 = vmatprep.subr.bf16.mxu0 %v3344
    %4185 = vmatpush2.bf16.msra.mxu0 %v3343
    %4186 = vmatprep.subr.bf16.mxu0 %v3336
    %4187 = vmatpush2.bf16.msra.mxu0 %v3335
    %4188 = vmatprep.subr.bf16.mxu0 %v3328
    %4189 = vmatpush2.bf16.msra.mxu0 %v3327
    %4190 = vmatprep.subr.bf16.mxu0 %v3320
    %4191 = vmatpush2.bf16.msra.mxu0 %v3319
    %4192 = vmatprep.subr.bf16.mxu0 %v3312
    %4193 = vmatpush2.bf16.msra.mxu0 %v3311
    %4194 = vmatprep.subr.bf16.mxu0 %v3304
    %4195 = vmatpush2.bf16.msra.mxu0 %v3303
    %4196 = vmatprep.mubr.bf16.mxu0 %v800
    %4197 = vmatmul.mubr.bf16.gmra.mxu0 %v799
    %v4198 = vpop.f32.mrf.mxu0
    %v4199 = vadd.f32 %v4158, %v4198
    %v4200 = vpop.f32.mrf.mxu0
    %v4201 = vadd.f32 %v4160, %v4200
    %v4202 = vpop.f32.mrf.mxu0
    %v4203 = vpop.f32.mrf.mxu0
    %4204 = vdwg.mxu0
    %4205 = vmatprep.subr.bf16.mxu0 %v2914
    %4206 = vmatpush1.bf16.msra.mxu0 %v2913
    %4207 = vmatprep.subr.bf16.mxu0 %v2906
    %4208 = vmatpush1.bf16.msra.mxu0 %v2905
    %4209 = vmatprep.subr.bf16.mxu0 %v2898
    %4210 = vmatpush1.bf16.msra.mxu0 %v2897
    %4211 = vmatprep.subr.bf16.mxu0 %v2890
    %4212 = vmatpush1.bf16.msra.mxu0 %v2889
    %4213 = vmatprep.subr.bf16.mxu0 %v2882
    %4214 = vmatpush1.bf16.msra.mxu0 %v2881
    %4215 = vmatprep.subr.bf16.mxu0 %v2874
    %4216 = vmatpush1.bf16.msra.mxu0 %v2873
    %4217 = vmatprep.subr.bf16.mxu0 %v2866
    %4218 = vmatpush1.bf16.msra.mxu0 %v2865
    %4219 = vmatprep.subr.bf16.mxu0 %v2858
    %4220 = vmatpush1.bf16.msra.mxu0 %v2857
    %4221 = vmatprep.subr.bf16.mxu0 %v2978
    %4222 = vmatpush2.bf16.msra.mxu0 %v2977
    %4223 = vmatprep.subr.bf16.mxu0 %v2970
    %4224 = vmatpush2.bf16.msra.mxu0 %v2969
    %4225 = vmatprep.subr.bf16.mxu0 %v2962
    %4226 = vmatpush2.bf16.msra.mxu0 %v2961
    %4227 = vmatprep.subr.bf16.mxu0 %v2954
    %4228 = vmatpush2.bf16.msra.mxu0 %v2953
    %4229 = vmatprep.subr.bf16.mxu0 %v2946
    %4230 = vmatpush2.bf16.msra.mxu0 %v2945
    %4231 = vmatprep.subr.bf16.mxu0 %v2938
    %4232 = vmatpush2.bf16.msra.mxu0 %v2937
    %4233 = vmatprep.subr.bf16.mxu0 %v2930
    %4234 = vmatpush2.bf16.msra.mxu0 %v2929
    %4235 = vmatprep.subr.bf16.mxu0 %v2922
    %4236 = vmatpush2.bf16.msra.mxu0 %v2921
    %4237 = vmatprep.mubr.bf16.mxu0 %v794
    %4238 = vmatmul.mubr.bf16.gmra.mxu0 %v793
    %v4239 = vpop.f32.mrf.mxu0
    %v4240 = vadd.f32 0.0, %v4239
    %v4241 = vpop.f32.mrf.mxu0
    %v4242 = vadd.f32 0.0, %v4241
    %v4243 = vpop.f32.mrf.mxu0
    %v4244 = vpop.f32.mrf.mxu0
    %4245 = vdwg.mxu0
    %4246 = vmatprep.subr.bf16.mxu0 %v3042
    %4247 = vmatpush1.bf16.msra.mxu0 %v3041
    %4248 = vmatprep.subr.bf16.mxu0 %v3034
    %4249 = vmatpush1.bf16.msra.mxu0 %v3033
    %4250 = vmatprep.subr.bf16.mxu0 %v3026
    %4251 = vmatpush1.bf16.msra.mxu0 %v3025
    %4252 = vmatprep.subr.bf16.mxu0 %v3018
    %4253 = vmatpush1.bf16.msra.mxu0 %v3017
    %4254 = vmatprep.subr.bf16.mxu0 %v3010
    %4255 = vmatpush1.bf16.msra.mxu0 %v3009
    %4256 = vmatprep.subr.bf16.mxu0 %v3002
    %4257 = vmatpush1.bf16.msra.mxu0 %v3001
    %4258 = vmatprep.subr.bf16.mxu0 %v2994
    %4259 = vmatpush1.bf16.msra.mxu0 %v2993
    %4260 = vmatprep.subr.bf16.mxu0 %v2986
    %4261 = vmatpush1.bf16.msra.mxu0 %v2985
    %4262 = vmatprep.subr.bf16.mxu0 %v3106
    %4263 = vmatpush2.bf16.msra.mxu0 %v3105
    %4264 = vmatprep.subr.bf16.mxu0 %v3098
    %4265 = vmatpush2.bf16.msra.mxu0 %v3097
    %4266 = vmatprep.subr.bf16.mxu0 %v3090
    %4267 = vmatpush2.bf16.msra.mxu0 %v3089
    %4268 = vmatprep.subr.bf16.mxu0 %v3082
    %4269 = vmatpush2.bf16.msra.mxu0 %v3081
    %4270 = vmatprep.subr.bf16.mxu0 %v3074
    %4271 = vmatpush2.bf16.msra.mxu0 %v3073
    %4272 = vmatprep.subr.bf16.mxu0 %v3066
    %4273 = vmatpush2.bf16.msra.mxu0 %v3065
    %4274 = vmatprep.subr.bf16.mxu0 %v3058
    %4275 = vmatpush2.bf16.msra.mxu0 %v3057
    %4276 = vmatprep.subr.bf16.mxu0 %v3050
    %4277 = vmatpush2.bf16.msra.mxu0 %v3049
    %4278 = vmatprep.mubr.bf16.mxu0 %v796
    %4279 = vmatmul.mubr.bf16.gmra.mxu0 %v795
    %v4280 = vpop.f32.mrf.mxu0
    %v4281 = vadd.f32 %v4240, %v4280
    %v4282 = vpop.f32.mrf.mxu0
    %v4283 = vadd.f32 %v4242, %v4282
    %v4284 = vpop.f32.mrf.mxu0
    %v4285 = vpop.f32.mrf.mxu0
    %4286 = vdwg.mxu0
    %4287 = vmatprep.subr.bf16.mxu0 %v3170
    %4288 = vmatpush1.bf16.msra.mxu0 %v3169
    %4289 = vmatprep.subr.bf16.mxu0 %v3162
    %4290 = vmatpush1.bf16.msra.mxu0 %v3161
    %4291 = vmatprep.subr.bf16.mxu0 %v3154
    %4292 = vmatpush1.bf16.msra.mxu0 %v3153
    %4293 = vmatprep.subr.bf16.mxu0 %v3146
    %4294 = vmatpush1.bf16.msra.mxu0 %v3145
    %4295 = vmatprep.subr.bf16.mxu0 %v3138
    %4296 = vmatpush1.bf16.msra.mxu0 %v3137
    %4297 = vmatprep.subr.bf16.mxu0 %v3130
    %4298 = vmatpush1.bf16.msra.mxu0 %v3129
    %4299 = vmatprep.subr.bf16.mxu0 %v3122
    %4300 = vmatpush1.bf16.msra.mxu0 %v3121
    %4301 = vmatprep.subr.bf16.mxu0 %v3114
    %4302 = vmatpush1.bf16.msra.mxu0 %v3113
    %4303 = vmatprep.subr.bf16.mxu0 %v3234
    %4304 = vmatpush2.bf16.msra.mxu0 %v3233
    %4305 = vmatprep.subr.bf16.mxu0 %v3226
    %4306 = vmatpush2.bf16.msra.mxu0 %v3225
    %4307 = vmatprep.subr.bf16.mxu0 %v3218
    %4308 = vmatpush2.bf16.msra.mxu0 %v3217
    %4309 = vmatprep.subr.bf16.mxu0 %v3210
    %4310 = vmatpush2.bf16.msra.mxu0 %v3209
    %4311 = vmatprep.subr.bf16.mxu0 %v3202
    %4312 = vmatpush2.bf16.msra.mxu0 %v3201
    %4313 = vmatprep.subr.bf16.mxu0 %v3194
    %4314 = vmatpush2.bf16.msra.mxu0 %v3193
    %4315 = vmatprep.subr.bf16.mxu0 %v3186
    %4316 = vmatpush2.bf16.msra.mxu0 %v3185
    %4317 = vmatprep.subr.bf16.mxu0 %v3178
    %4318 = vmatpush2.bf16.msra.mxu0 %v3177
    %4319 = vmatprep.mubr.bf16.mxu0 %v798
    %4320 = vmatmul.mubr.bf16.gmra.mxu0 %v797
    %v4321 = vpop.f32.mrf.mxu0
    %v4322 = vadd.f32 %v4281, %v4321
    %v4323 = vpop.f32.mrf.mxu0
    %v4324 = vadd.f32 %v4283, %v4323
    %v4325 = vpop.f32.mrf.mxu0
    %v4326 = vpop.f32.mrf.mxu0
    %4327 = vdwg.mxu0
    %4328 = vmatprep.subr.bf16.mxu0 %v3298
    %4329 = vmatpush1.bf16.msra.mxu0 %v3297
    %4330 = vmatprep.subr.bf16.mxu0 %v3290
    %4331 = vmatpush1.bf16.msra.mxu0 %v3289
    %4332 = vmatprep.subr.bf16.mxu0 %v3282
    %4333 = vmatpush1.bf16.msra.mxu0 %v3281
    %4334 = vmatprep.subr.bf16.mxu0 %v3274
    %4335 = vmatpush1.bf16.msra.mxu0 %v3273
    %4336 = vmatprep.subr.bf16.mxu0 %v3266
    %4337 = vmatpush1.bf16.msra.mxu0 %v3265
    %4338 = vmatprep.subr.bf16.mxu0 %v3258
    %4339 = vmatpush1.bf16.msra.mxu0 %v3257
    %4340 = vmatprep.subr.bf16.mxu0 %v3250
    %4341 = vmatpush1.bf16.msra.mxu0 %v3249
    %4342 = vmatprep.subr.bf16.mxu0 %v3242
    %4343 = vmatpush1.bf16.msra.mxu0 %v3241
    %4344 = vmatprep.subr.bf16.mxu0 %v3362
    %4345 = vmatpush2.bf16.msra.mxu0 %v3361
    %4346 = vmatprep.subr.bf16.mxu0 %v3354
    %4347 = vmatpush2.bf16.msra.mxu0 %v3353
    %4348 = vmatprep.subr.bf16.mxu0 %v3346
    %4349 = vmatpush2.bf16.msra.mxu0 %v3345
    %4350 = vmatprep.subr.bf16.mxu0 %v3338
    %4351 = vmatpush2.bf16.msra.mxu0 %v3337
    %4352 = vmatprep.subr.bf16.mxu0 %v3330
    %4353 = vmatpush2.bf16.msra.mxu0 %v3329
    %4354 = vmatprep.subr.bf16.mxu0 %v3322
    %4355 = vmatpush2.bf16.msra.mxu0 %v3321
    %4356 = vmatprep.subr.bf16.mxu0 %v3314
    %4357 = vmatpush2.bf16.msra.mxu0 %v3313
    %4358 = vmatprep.subr.bf16.mxu0 %v3306
    %4359 = vmatpush2.bf16.msra.mxu0 %v3305
    %4360 = vmatprep.mubr.bf16.mxu0 %v800
    %4361 = vmatmul.mubr.bf16.gmra.mxu0 %v799
    %v4362 = vpop.f32.mrf.mxu0
    %v4363 = vadd.f32 %v4322, %v4362
    %v4364 = vpop.f32.mrf.mxu0
    %v4365 = vadd.f32 %v4324, %v4364
    %v4366 = vpop.f32.mrf.mxu0
    %v4367 = vpop.f32.mrf.mxu0
    %4368 = vdwg.mxu0
    %4369 = vmatprep.subr.bf16.mxu0 %v2916
    %4370 = vmatpush1.bf16.msra.mxu0 %v2915
    %4371 = vmatprep.subr.bf16.mxu0 %v2908
    %4372 = vmatpush1.bf16.msra.mxu0 %v2907
    %4373 = vmatprep.subr.bf16.mxu0 %v2900
    %4374 = vmatpush1.bf16.msra.mxu0 %v2899
    %4375 = vmatprep.subr.bf16.mxu0 %v2892
    %4376 = vmatpush1.bf16.msra.mxu0 %v2891
    %4377 = vmatprep.subr.bf16.mxu0 %v2884
    %4378 = vmatpush1.bf16.msra.mxu0 %v2883
    %4379 = vmatprep.subr.bf16.mxu0 %v2876
    %4380 = vmatpush1.bf16.msra.mxu0 %v2875
    %4381 = vmatprep.subr.bf16.mxu0 %v2868
    %4382 = vmatpush1.bf16.msra.mxu0 %v2867
    %4383 = vmatprep.subr.bf16.mxu0 %v2860
    %4384 = vmatpush1.bf16.msra.mxu0 %v2859
    %4385 = vmatprep.subr.bf16.mxu0 %v2980
    %4386 = vmatpush2.bf16.msra.mxu0 %v2979
    %4387 = vmatprep.subr.bf16.mxu0 %v2972
    %4388 = vmatpush2.bf16.msra.mxu0 %v2971
    %4389 = vmatprep.subr.bf16.mxu0 %v2964
    %4390 = vmatpush2.bf16.msra.mxu0 %v2963
    %4391 = vmatprep.subr.bf16.mxu0 %v2956
    %4392 = vmatpush2.bf16.msra.mxu0 %v2955
    %4393 = vmatprep.subr.bf16.mxu0 %v2948
    %4394 = vmatpush2.bf16.msra.mxu0 %v2947
    %4395 = vmatprep.subr.bf16.mxu0 %v2940
    %4396 = vmatpush2.bf16.msra.mxu0 %v2939
    %4397 = vmatprep.subr.bf16.mxu0 %v2932
    %4398 = vmatpush2.bf16.msra.mxu0 %v2931
    %4399 = vmatprep.subr.bf16.mxu0 %v2924
    %4400 = vmatpush2.bf16.msra.mxu0 %v2923
    %4401 = vmatprep.mubr.bf16.mxu0 %v794
    %4402 = vmatmul.mubr.bf16.gmra.mxu0 %v793
    %v4403 = vpop.f32.mrf.mxu0
    %v4404 = vadd.f32 0.0, %v4403
    %v4405 = vpop.f32.mrf.mxu0
    %v4406 = vadd.f32 0.0, %v4405
    %v4407 = vpop.f32.mrf.mxu0
    %v4408 = vpop.f32.mrf.mxu0
    %4409 = vdwg.mxu0
    %4410 = vmatprep.subr.bf16.mxu0 %v3044
    %4411 = vmatpush1.bf16.msra.mxu0 %v3043
    %4412 = vmatprep.subr.bf16.mxu0 %v3036
    %4413 = vmatpush1.bf16.msra.mxu0 %v3035
    %4414 = vmatprep.subr.bf16.mxu0 %v3028
    %4415 = vmatpush1.bf16.msra.mxu0 %v3027
    %4416 = vmatprep.subr.bf16.mxu0 %v3020
    %4417 = vmatpush1.bf16.msra.mxu0 %v3019
    %4418 = vmatprep.subr.bf16.mxu0 %v3012
    %4419 = vmatpush1.bf16.msra.mxu0 %v3011
    %4420 = vmatprep.subr.bf16.mxu0 %v3004
    %4421 = vmatpush1.bf16.msra.mxu0 %v3003
    %4422 = vmatprep.subr.bf16.mxu0 %v2996
    %4423 = vmatpush1.bf16.msra.mxu0 %v2995
    %4424 = vmatprep.subr.bf16.mxu0 %v2988
    %4425 = vmatpush1.bf16.msra.mxu0 %v2987
    %4426 = vmatprep.subr.bf16.mxu0 %v3108
    %4427 = vmatpush2.bf16.msra.mxu0 %v3107
    %4428 = vmatprep.subr.bf16.mxu0 %v3100
    %4429 = vmatpush2.bf16.msra.mxu0 %v3099
    %4430 = vmatprep.subr.bf16.mxu0 %v3092
    %4431 = vmatpush2.bf16.msra.mxu0 %v3091
    %4432 = vmatprep.subr.bf16.mxu0 %v3084
    %4433 = vmatpush2.bf16.msra.mxu0 %v3083
    %4434 = vmatprep.subr.bf16.mxu0 %v3076
    %4435 = vmatpush2.bf16.msra.mxu0 %v3075
    %4436 = vmatprep.subr.bf16.mxu0 %v3068
    %4437 = vmatpush2.bf16.msra.mxu0 %v3067
    %4438 = vmatprep.subr.bf16.mxu0 %v3060
    %4439 = vmatpush2.bf16.msra.mxu0 %v3059
    %4440 = vmatprep.subr.bf16.mxu0 %v3052
    %4441 = vmatpush2.bf16.msra.mxu0 %v3051
    %4442 = vmatprep.mubr.bf16.mxu0 %v796
    %4443 = vmatmul.mubr.bf16.gmra.mxu0 %v795
    %v4444 = vpop.f32.mrf.mxu0
    %v4445 = vadd.f32 %v4404, %v4444
    %v4446 = vpop.f32.mrf.mxu0
    %v4447 = vadd.f32 %v4406, %v4446
    %v4448 = vpop.f32.mrf.mxu0
    %v4449 = vpop.f32.mrf.mxu0
    %4450 = vdwg.mxu0
    %4451 = vmatprep.subr.bf16.mxu0 %v3172
    %4452 = vmatpush1.bf16.msra.mxu0 %v3171
    %4453 = vmatprep.subr.bf16.mxu0 %v3164
    %4454 = vmatpush1.bf16.msra.mxu0 %v3163
    %4455 = vmatprep.subr.bf16.mxu0 %v3156
    %4456 = vmatpush1.bf16.msra.mxu0 %v3155
    %4457 = vmatprep.subr.bf16.mxu0 %v3148
    %4458 = vmatpush1.bf16.msra.mxu0 %v3147
    %4459 = vmatprep.subr.bf16.mxu0 %v3140
    %4460 = vmatpush1.bf16.msra.mxu0 %v3139
    %4461 = vmatprep.subr.bf16.mxu0 %v3132
    %4462 = vmatpush1.bf16.msra.mxu0 %v3131
    %4463 = vmatprep.subr.bf16.mxu0 %v3124
    %4464 = vmatpush1.bf16.msra.mxu0 %v3123
    %4465 = vmatprep.subr.bf16.mxu0 %v3116
    %4466 = vmatpush1.bf16.msra.mxu0 %v3115
    %4467 = vmatprep.subr.bf16.mxu0 %v3236
    %4468 = vmatpush2.bf16.msra.mxu0 %v3235
    %4469 = vmatprep.subr.bf16.mxu0 %v3228
    %4470 = vmatpush2.bf16.msra.mxu0 %v3227
    %4471 = vmatprep.subr.bf16.mxu0 %v3220
    %4472 = vmatpush2.bf16.msra.mxu0 %v3219
    %4473 = vmatprep.subr.bf16.mxu0 %v3212
    %4474 = vmatpush2.bf16.msra.mxu0 %v3211
    %4475 = vmatprep.subr.bf16.mxu0 %v3204
    %4476 = vmatpush2.bf16.msra.mxu0 %v3203
    %4477 = vmatprep.subr.bf16.mxu0 %v3196
    %4478 = vmatpush2.bf16.msra.mxu0 %v3195
    %4479 = vmatprep.subr.bf16.mxu0 %v3188
    %4480 = vmatpush2.bf16.msra.mxu0 %v3187
    %4481 = vmatprep.subr.bf16.mxu0 %v3180
    %4482 = vmatpush2.bf16.msra.mxu0 %v3179
    %4483 = vmatprep.mubr.bf16.mxu0 %v798
    %4484 = vmatmul.mubr.bf16.gmra.mxu0 %v797
    %v4485 = vpop.f32.mrf.mxu0
    %v4486 = vadd.f32 %v4445, %v4485
    %v4487 = vpop.f32.mrf.mxu0
    %v4488 = vadd.f32 %v4447, %v4487
    %v4489 = vpop.f32.mrf.mxu0
    %v4490 = vpop.f32.mrf.mxu0
    %4491 = vdwg.mxu0
    %4492 = vmatprep.subr.bf16.mxu0 %v3300
    %4493 = vmatpush1.bf16.msra.mxu0 %v3299
    %4494 = vmatprep.subr.bf16.mxu0 %v3292
    %4495 = vmatpush1.bf16.msra.mxu0 %v3291
    %4496 = vmatprep.subr.bf16.mxu0 %v3284
    %4497 = vmatpush1.bf16.msra.mxu0 %v3283
    %4498 = vmatprep.subr.bf16.mxu0 %v3276
    %4499 = vmatpush1.bf16.msra.mxu0 %v3275
    %4500 = vmatprep.subr.bf16.mxu0 %v3268
    %4501 = vmatpush1.bf16.msra.mxu0 %v3267
    %4502 = vmatprep.subr.bf16.mxu0 %v3260
    %4503 = vmatpush1.bf16.msra.mxu0 %v3259
    %4504 = vmatprep.subr.bf16.mxu0 %v3252
    %4505 = vmatpush1.bf16.msra.mxu0 %v3251
    %4506 = vmatprep.subr.bf16.mxu0 %v3244
    %4507 = vmatpush1.bf16.msra.mxu0 %v3243
    %4508 = vmatprep.subr.bf16.mxu0 %v3364
    %4509 = vmatpush2.bf16.msra.mxu0 %v3363
    %4510 = vmatprep.subr.bf16.mxu0 %v3356
    %4511 = vmatpush2.bf16.msra.mxu0 %v3355
    %4512 = vmatprep.subr.bf16.mxu0 %v3348
    %4513 = vmatpush2.bf16.msra.mxu0 %v3347
    %4514 = vmatprep.subr.bf16.mxu0 %v3340
    %4515 = vmatpush2.bf16.msra.mxu0 %v3339
    %4516 = vmatprep.subr.bf16.mxu0 %v3332
    %4517 = vmatpush2.bf16.msra.mxu0 %v3331
    %4518 = vmatprep.subr.bf16.mxu0 %v3324
    %4519 = vmatpush2.bf16.msra.mxu0 %v3323
    %4520 = vmatprep.subr.bf16.mxu0 %v3316
    %4521 = vmatpush2.bf16.msra.mxu0 %v3315
    %4522 = vmatprep.subr.bf16.mxu0 %v3308
    %4523 = vmatpush2.bf16.msra.mxu0 %v3307
    %4524 = vmatprep.mubr.bf16.mxu0 %v800
    %4525 = vmatmul.mubr.bf16.gmra.mxu0 %v799
    %v4526 = vpop.f32.mrf.mxu0
    %v4527 = vadd.f32 %v4486, %v4526
    %v4528 = vpop.f32.mrf.mxu0
    %v4529 = vadd.f32 %v4488, %v4528
    %v4530 = vpop.f32.mrf.mxu0
    %v4531 = vpop.f32.mrf.mxu0
    %4532 = vdwg.mxu0
    %s4533 = scalar_lea.vmem [#allocation13], 16
    %v4534 = vld [vmem:[%s4533] ss:$2 sm:$0xff]
    %s4535 = scalar_lea.vmem [#allocation13], 17
    %v4536 = vld [vmem:[%s4535] ss:$2 sm:$0xff]
    %v4537 = vrot.slane %v4035, 4
    %v4538 = vadd.f32 %v4035, %v4537
    %v4539 = vrot.slane %v4538, 2
    %v4540 = vadd.f32 %v4538, %v4539
    %v4541 = vrot.slane %v4540, 1
    %v4542 = vadd.f32 %v4540, %v4541
    %v4543 = vrot.slane %v4037, 4
    %v4544 = vadd.f32 %v4037, %v4543
    %v4545 = vrot.slane %v4544, 2
    %v4546 = vadd.f32 %v4544, %v4545
    %v4547 = vrot.slane %v4546, 1
    %v4548 = vadd.f32 %v4546, %v4547
    %v4549 = vrot.slane %v4199, 4
    %v4550 = vadd.f32 %v4199, %v4549
    %v4551 = vrot.slane %v4550, 2
    %v4552 = vadd.f32 %v4550, %v4551
    %v4553 = vrot.slane %v4552, 1
    %v4554 = vadd.f32 %v4552, %v4553
    %v4555 = vrot.slane %v4201, 4
    %v4556 = vadd.f32 %v4201, %v4555
    %v4557 = vrot.slane %v4556, 2
    %v4558 = vadd.f32 %v4556, %v4557
    %v4559 = vrot.slane %v4558, 1
    %v4560 = vadd.f32 %v4558, %v4559
    %v4561 = vrot.slane %v4363, 4
    %v4562 = vadd.f32 %v4363, %v4561
    %v4563 = vrot.slane %v4562, 2
    %v4564 = vadd.f32 %v4562, %v4563
    %v4565 = vrot.slane %v4564, 1
    %v4566 = vadd.f32 %v4564, %v4565
    %v4567 = vrot.slane %v4365, 4
    %v4568 = vadd.f32 %v4365, %v4567
    %v4569 = vrot.slane %v4568, 2
    %v4570 = vadd.f32 %v4568, %v4569
    %v4571 = vrot.slane %v4570, 1
    %v4572 = vadd.f32 %v4570, %v4571
    %v4573 = vrot.slane %v4527, 4
    %v4574 = vadd.f32 %v4527, %v4573
    %v4575 = vrot.slane %v4574, 2
    %v4576 = vadd.f32 %v4574, %v4575
    %v4577 = vrot.slane %v4576, 1
    %v4578 = vadd.f32 %v4576, %v4577
    %v4579 = vrot.slane %v4529, 4
    %v4580 = vadd.f32 %v4529, %v4579
    %v4581 = vrot.slane %v4580, 2
    %v4582 = vadd.f32 %v4580, %v4581
    %v4583 = vrot.slane %v4582, 1
    %v4584 = vadd.f32 %v4582, %v4583
    %v4585 = vmul.f32 %v4542, 0.125
    %v4586 = vmul.f32 %v4548, 0.125
    %v4587 = vmul.f32 %v4554, 0.125
    %v4588 = vmul.f32 %v4560, 0.125
    %v4589 = vmul.f32 %v4566, 0.125
    %v4590 = vmul.f32 %v4572, 0.125
    %v4591 = vmul.f32 %v4578, 0.125
    %v4592 = vmul.f32 %v4584, 0.125
    %v4593 = vmul.f32 %v4035, %v4035
    %v4594 = vmul.f32 %v4037, %v4037
    %v4595 = vmul.f32 %v4199, %v4199
    %v4596 = vmul.f32 %v4201, %v4201
    %v4597 = vmul.f32 %v4363, %v4363
    %v4598 = vmul.f32 %v4365, %v4365
    %v4599 = vmul.f32 %v4527, %v4527
    %v4600 = vmul.f32 %v4529, %v4529
    %v4601 = vrot.slane %v4593, 4
    %v4602 = vadd.f32 %v4593, %v4601
    %v4603 = vrot.slane %v4602, 2
    %v4604 = vadd.f32 %v4602, %v4603
    %v4605 = vrot.slane %v4604, 1
    %v4606 = vadd.f32 %v4604, %v4605
    %v4607 = vrot.slane %v4594, 4
    %v4608 = vadd.f32 %v4594, %v4607
    %v4609 = vrot.slane %v4608, 2
    %v4610 = vadd.f32 %v4608, %v4609
    %v4611 = vrot.slane %v4610, 1
    %v4612 = vadd.f32 %v4610, %v4611
    %v4613 = vrot.slane %v4595, 4
    %v4614 = vadd.f32 %v4595, %v4613
    %v4615 = vrot.slane %v4614, 2
    %v4616 = vadd.f32 %v4614, %v4615
    %v4617 = vrot.slane %v4616, 1
    %v4618 = vadd.f32 %v4616, %v4617
    %v4619 = vrot.slane %v4596, 4
    %v4620 = vadd.f32 %v4596, %v4619
    %v4621 = vrot.slane %v4620, 2
    %v4622 = vadd.f32 %v4620, %v4621
    %v4623 = vrot.slane %v4622, 1
    %v4624 = vadd.f32 %v4622, %v4623
    %v4625 = vrot.slane %v4597, 4
    %v4626 = vadd.f32 %v4597, %v4625
    %v4627 = vrot.slane %v4626, 2
    %v4628 = vadd.f32 %v4626, %v4627
    %v4629 = vrot.slane %v4628, 1
    %v4630 = vadd.f32 %v4628, %v4629
    %v4631 = vrot.slane %v4598, 4
    %v4632 = vadd.f32 %v4598, %v4631
    %v4633 = vrot.slane %v4632, 2
    %v4634 = vadd.f32 %v4632, %v4633
    %v4635 = vrot.slane %v4634, 1
    %v4636 = vadd.f32 %v4634, %v4635
    %v4637 = vrot.slane %v4599, 4
    %v4638 = vadd.f32 %v4599, %v4637
    %v4639 = vrot.slane %v4638, 2
    %v4640 = vadd.f32 %v4638, %v4639
    %v4641 = vrot.slane %v4640, 1
    %v4642 = vadd.f32 %v4640, %v4641
    %v4643 = vrot.slane %v4600, 4
    %v4644 = vadd.f32 %v4600, %v4643
    %v4645 = vrot.slane %v4644, 2
    %v4646 = vadd.f32 %v4644, %v4645
    %v4647 = vrot.slane %v4646, 1
    %v4648 = vadd.f32 %v4646, %v4647
    %v4649 = vmul.f32 %v4606, 0.125
    %v4650 = vmul.f32 %v4612, 0.125
    %v4651 = vmul.f32 %v4618, 0.125
    %v4652 = vmul.f32 %v4624, 0.125
    %v4653 = vmul.f32 %v4630, 0.125
    %v4654 = vmul.f32 %v4636, 0.125
    %v4655 = vmul.f32 %v4642, 0.125
    %v4656 = vmul.f32 %v4648, 0.125
    %v4657 = vmul.f32 %v4585, %v4585
    %v4658 = vmul.f32 %v4586, %v4586
    %v4659 = vmul.f32 %v4587, %v4587
    %v4660 = vmul.f32 %v4588, %v4588
    %v4661 = vmul.f32 %v4589, %v4589
    %v4662 = vmul.f32 %v4590, %v4590
    %v4663 = vmul.f32 %v4591, %v4591
    %v4664 = vmul.f32 %v4592, %v4592
    %v4665 = vsub.f32 %v4649, %v4657
    %v4666 = vsub.f32 %v4650, %v4658
    %v4667 = vsub.f32 %v4651, %v4659
    %v4668 = vsub.f32 %v4652, %v4660
    %v4669 = vsub.f32 %v4653, %v4661
    %v4670 = vsub.f32 %v4654, %v4662
    %v4671 = vsub.f32 %v4655, %v4663
    %v4672 = vsub.f32 %v4656, %v4664
    %v4673 = vadd.f32 %v4665, 1e-05
    %v4674 = vadd.f32 %v4666, 1e-05
    %v4675 = vadd.f32 %v4667, 1e-05
    %v4676 = vadd.f32 %v4668, 1e-05
    %v4677 = vadd.f32 %v4669, 1e-05
    %v4678 = vadd.f32 %v4670, 1e-05
    %v4679 = vadd.f32 %v4671, 1e-05
    %v4680 = vadd.f32 %v4672, 1e-05
    %v4681 = vrsqrt.pop %v4673
    %v4682 = vrsqrt.pop %v4674
    %v4683 = vrsqrt.pop %v4675
    %v4684 = vrsqrt.pop %v4676
    %v4685 = vrsqrt.pop %v4677
    %v4686 = vrsqrt.pop %v4678
    %v4687 = vrsqrt.pop %v4679
    %v4688 = vrsqrt.pop %v4680
    %v4697 = vcombine.low %v4681, %v4682
    %v4698 = vcombine.low %v4683, %v4684
    %v4699 = vcombine.low %v4685, %v4686
    %v4700 = vcombine.low %v4687, %v4688
    %v4702 = vunpack.c.l.s4 1966171168
    %v4703 = vunpack.c.0.s8 %v4702
    %v4704 = vlaneseq
    %v4705 = vshrl.u32 %v4704, 7
    %v4706 = vsub.s32 %v4703, %v4705
    %v4707 = vrot.slane %v4697, %v4706
    %v4709 = vunpack.c.l.s4 1966171168
    %v4710 = vunpack.c.0.s8 %v4709
    %v4711 = vlaneseq
    %v4712 = vshrl.u32 %v4711, 7
    %v4713 = vsub.s32 %v4710, %v4712
    %v4714 = vrot.slane %v4698, %v4713
    %v4716 = vunpack.c.l.s4 1966171168
    %v4717 = vunpack.c.0.s8 %v4716
    %v4718 = vlaneseq
    %v4719 = vshrl.u32 %v4718, 7
    %v4720 = vsub.s32 %v4717, %v4719
    %v4721 = vrot.slane %v4699, %v4720
    %v4723 = vunpack.c.l.s4 1966171168
    %v4724 = vunpack.c.0.s8 %v4723
    %v4725 = vlaneseq
    %v4726 = vshrl.u32 %v4725, 7
    %v4727 = vsub.s32 %v4724, %v4726
    %v4728 = vrot.slane %v4700, %v4727
    %v4729 = vcombine.low %v4707, %v4714
    %v4730 = vcombine.low %v4721, %v4728
    %v4732 = vunpack.c.l.s4 1966171168
    %v4733 = vunpack.c.0.s8 %v4732
    %v4734 = vlaneseq
    %v4735 = vshrl.u32 %v4734, 7
    %v4736 = vsub.s32 %v4733, %v4735
    %v4737 = vrot.slane %v4729, %v4736
    %v4739 = vunpack.c.l.s4 1966171168
    %v4740 = vunpack.c.0.s8 %v4739
    %v4741 = vlaneseq
    %v4742 = vshrl.u32 %v4741, 7
    %v4743 = vsub.s32 %v4740, %v4742
    %v4744 = vrot.slane %v4730, %v4743
    %v4745 = vcombine.low %v4737, %v4744
    %v4747 = vmul.f32 %v4534, %v4745
    %v4749 = vlaneseq
    %v4750 = vshrl.u32 %v4749, 7
    %v4751 = vsub.s32 0, %v4750
    %v4752 = vrot.slane %v4747, %v4751
    %v4753 = vlaneseq
    %v4754 = vshrl.u32 %v4753, 7
    %v4755 = vsub.s32 1, %v4754
    %v4756 = vrot.slane %v4747, %v4755
    %v4757 = vlaneseq
    %v4758 = vshrl.u32 %v4757, 7
    %v4759 = vsub.s32 2, %v4758
    %v4760 = vrot.slane %v4747, %v4759
    %v4761 = vlaneseq
    %v4762 = vshrl.u32 %v4761, 7
    %v4763 = vsub.s32 3, %v4762
    %v4764 = vrot.slane %v4747, %v4763
    %v4765 = vlaneseq
    %v4766 = vshrl.u32 %v4765, 7
    %v4767 = vsub.s32 4, %v4766
    %v4768 = vrot.slane %v4747, %v4767
    %v4769 = vlaneseq
    %v4770 = vshrl.u32 %v4769, 7
    %v4771 = vsub.s32 5, %v4770
    %v4772 = vrot.slane %v4747, %v4771
    %v4773 = vlaneseq
    %v4774 = vshrl.u32 %v4773, 7
    %v4775 = vsub.s32 6, %v4774
    %v4776 = vrot.slane %v4747, %v4775
    %v4777 = vlaneseq
    %v4778 = vshrl.u32 %v4777, 7
    %v4779 = vsub.s32 7, %v4778
    %v4780 = vrot.slane %v4747, %v4779
    %v4789 = vmul.f32 %v4585, %v4752
    %v4790 = vmul.f32 %v4586, %v4756
    %v4791 = vmul.f32 %v4587, %v4760
    %v4792 = vmul.f32 %v4588, %v4764
    %v4793 = vmul.f32 %v4589, %v4768
    %v4794 = vmul.f32 %v4590, %v4772
    %v4795 = vmul.f32 %v4591, %v4776
    %v4796 = vmul.f32 %v4592, %v4780
    %v4805 = vcombine.low %v4789, %v4790
    %v4806 = vcombine.low %v4791, %v4792
    %v4807 = vcombine.low %v4793, %v4794
    %v4808 = vcombine.low %v4795, %v4796
    %v4810 = vunpack.c.l.s4 1966171168
    %v4811 = vunpack.c.0.s8 %v4810
    %v4812 = vlaneseq
    %v4813 = vshrl.u32 %v4812, 7
    %v4814 = vsub.s32 %v4811, %v4813
    %v4815 = vrot.slane %v4805, %v4814
    %v4817 = vunpack.c.l.s4 1966171168
    %v4818 = vunpack.c.0.s8 %v4817
    %v4819 = vlaneseq
    %v4820 = vshrl.u32 %v4819, 7
    %v4821 = vsub.s32 %v4818, %v4820
    %v4822 = vrot.slane %v4806, %v4821
    %v4824 = vunpack.c.l.s4 1966171168
    %v4825 = vunpack.c.0.s8 %v4824
    %v4826 = vlaneseq
    %v4827 = vshrl.u32 %v4826, 7
    %v4828 = vsub.s32 %v4825, %v4827
    %v4829 = vrot.slane %v4807, %v4828
    %v4831 = vunpack.c.l.s4 1966171168
    %v4832 = vunpack.c.0.s8 %v4831
    %v4833 = vlaneseq
    %v4834 = vshrl.u32 %v4833, 7
    %v4835 = vsub.s32 %v4832, %v4834
    %v4836 = vrot.slane %v4808, %v4835
    %v4837 = vcombine.low %v4815, %v4822
    %v4838 = vcombine.low %v4829, %v4836
    %v4840 = vunpack.c.l.s4 1966171168
    %v4841 = vunpack.c.0.s8 %v4840
    %v4842 = vlaneseq
    %v4843 = vshrl.u32 %v4842, 7
    %v4844 = vsub.s32 %v4841, %v4843
    %v4845 = vrot.slane %v4837, %v4844
    %v4847 = vunpack.c.l.s4 1966171168
    %v4848 = vunpack.c.0.s8 %v4847
    %v4849 = vlaneseq
    %v4850 = vshrl.u32 %v4849, 7
    %v4851 = vsub.s32 %v4848, %v4850
    %v4852 = vrot.slane %v4838, %v4851
    %v4853 = vcombine.low %v4845, %v4852
    %v4855 = vsub.f32 %v4536, %v4853
    %v4856 = vmul.f32 %v4035, %v4752
    %v4857 = vmul.f32 %v4037, %v4756
    %v4858 = vmul.f32 %v4199, %v4760
    %v4859 = vmul.f32 %v4201, %v4764
    %v4860 = vmul.f32 %v4363, %v4768
    %v4861 = vmul.f32 %v4365, %v4772
    %v4862 = vmul.f32 %v4527, %v4776
    %v4863 = vmul.f32 %v4529, %v4780
    %v4865 = vlaneseq
    %v4866 = vshrl.u32 %v4865, 7
    %v4867 = vsub.s32 0, %v4866
    %v4868 = vrot.slane %v4855, %v4867
    %v4869 = vlaneseq
    %v4870 = vshrl.u32 %v4869, 7
    %v4871 = vsub.s32 1, %v4870
    %v4872 = vrot.slane %v4855, %v4871
    %v4873 = vlaneseq
    %v4874 = vshrl.u32 %v4873, 7
    %v4875 = vsub.s32 2, %v4874
    %v4876 = vrot.slane %v4855, %v4875
    %v4877 = vlaneseq
    %v4878 = vshrl.u32 %v4877, 7
    %v4879 = vsub.s32 3, %v4878
    %v4880 = vrot.slane %v4855, %v4879
    %v4881 = vlaneseq
    %v4882 = vshrl.u32 %v4881, 7
    %v4883 = vsub.s32 4, %v4882
    %v4884 = vrot.slane %v4855, %v4883
    %v4885 = vlaneseq
    %v4886 = vshrl.u32 %v4885, 7
    %v4887 = vsub.s32 5, %v4886
    %v4888 = vrot.slane %v4855, %v4887
    %v4889 = vlaneseq
    %v4890 = vshrl.u32 %v4889, 7
    %v4891 = vsub.s32 6, %v4890
    %v4892 = vrot.slane %v4855, %v4891
    %v4893 = vlaneseq
    %v4894 = vshrl.u32 %v4893, 7
    %v4895 = vsub.s32 7, %v4894
    %v4896 = vrot.slane %v4855, %v4895
    %v4905 = vadd.f32 %v4856, %v4868
    %v4906 = vadd.f32 %v4857, %v4872
    %v4907 = vadd.f32 %v4858, %v4876
    %v4908 = vadd.f32 %v4859, %v4880
    %v4909 = vadd.f32 %v4860, %v4884
    %v4910 = vadd.f32 %v4861, %v4888
    %v4911 = vadd.f32 %v4862, %v4892
    %v4912 = vadd.f32 %v4863, %v4896
    %v4913 = vmul.f32 %v4905, 0.2
    %v4914 = vmul.f32 %v4906, 0.2
    %v4915 = vmul.f32 %v4907, 0.2
    %v4916 = vmul.f32 %v4908, 0.2
    %v4917 = vmul.f32 %v4909, 0.2
    %v4918 = vmul.f32 %v4910, 0.2
    %v4919 = vmul.f32 %v4911, 0.2
    %v4920 = vmul.f32 %v4912, 0.2
    %v4921 = vmax.f32 %v4905, %v4913
    %v4922 = vmax.f32 %v4906, %v4914
    %v4923 = vmax.f32 %v4907, %v4915
    %v4924 = vmax.f32 %v4908, %v4916
    %v4925 = vmax.f32 %v4909, %v4917
    %v4926 = vmax.f32 %v4910, %v4918
    %v4927 = vmax.f32 %v4911, %v4919
    %v4928 = vmax.f32 %v4912, %v4920
    %v4929 = vpack.c.bf16 %v4921, %v4921
    %v4930 = vpack.c.bf16 %v4922, %v4922
    %v4931 = vpack.c.bf16 %v4923, %v4923
    %v4932 = vpack.c.bf16 %v4924, %v4924
    %v4933 = vpack.c.bf16 %v4925, %v4925
    %v4934 = vpack.c.bf16 %v4926, %v4926
    %v4935 = vpack.c.bf16 %v4927, %v4927
    %v4936 = vpack.c.bf16 %v4928, %v4928
    %s4937 = smul.u32 %s801, 4
    %s4938 = sshll.u32 %s4937, 4
    %4939 = dma.done %s84, %s4938
    %v4940 = vld [vmem:[#allocation3] sm:$0xff]
    %v4941 = vld [vmem:[#allocation3 + $0x8] sm:$0xff]
    %v4942 = vld [vmem:[#allocation3 + $0x10] sm:$0xff]
    %v4943 = vld [vmem:[#allocation3 + $0x18] sm:$0xff]
    %v4944 = vld [vmem:[#allocation3 + $0x20] sm:$0xff]
    %v4945 = vld [vmem:[#allocation3 + $0x28] sm:$0xff]
    %v4946 = vld [vmem:[#allocation3 + $0x30] sm:$0xff]
    %v4947 = vld [vmem:[#allocation3 + $0x38] sm:$0xff]
    %v4948 = vld [vmem:[#allocation3 + $0x40] sm:$0xff]
    %v4949 = vld [vmem:[#allocation3 + $0x48] sm:$0xff]
    %v4950 = vld [vmem:[#allocation3 + $0x50] sm:$0xff]
    %v4951 = vld [vmem:[#allocation3 + $0x58] sm:$0xff]
    %v4952 = vld [vmem:[#allocation3 + $0x60] sm:$0xff]
    %v4953 = vld [vmem:[#allocation3 + $0x68] sm:$0xff]
    %v4954 = vld [vmem:[#allocation3 + $0x70] sm:$0xff]
    %v4955 = vld [vmem:[#allocation3 + $0x78] sm:$0xff]
    %v4956 = vld [vmem:[#allocation3 + $0x80] sm:$0xff]
    %v4957 = vld [vmem:[#allocation3 + $0x88] sm:$0xff]
    %v4958 = vld [vmem:[#allocation3 + $0x90] sm:$0xff]
    %v4959 = vld [vmem:[#allocation3 + $0x98] sm:$0xff]
    %v4960 = vld [vmem:[#allocation3 + $0xa0] sm:$0xff]
    %v4961 = vld [vmem:[#allocation3 + $0xa8] sm:$0xff]
    %v4962 = vld [vmem:[#allocation3 + $0xb0] sm:$0xff]
    %v4963 = vld [vmem:[#allocation3 + $0xb8] sm:$0xff]
    %v4964 = vld [vmem:[#allocation3 + $0xc0] sm:$0xff]
    %v4965 = vld [vmem:[#allocation3 + $0xc8] sm:$0xff]
    %v4966 = vld [vmem:[#allocation3 + $0xd0] sm:$0xff]
    %v4967 = vld [vmem:[#allocation3 + $0xd8] sm:$0xff]
    %v4968 = vld [vmem:[#allocation3 + $0xe0] sm:$0xff]
    %v4969 = vld [vmem:[#allocation3 + $0xe8] sm:$0xff]
    %v4970 = vld [vmem:[#allocation3 + $0xf0] sm:$0xff]
    %v4971 = vld [vmem:[#allocation3 + $0xf8] sm:$0xff]
    %v4972 = vld [vmem:[#allocation3 + $0x100] sm:$0xff]
    %v4973 = vld [vmem:[#allocation3 + $0x108] sm:$0xff]
    %v4974 = vld [vmem:[#allocation3 + $0x110] sm:$0xff]
    %v4975 = vld [vmem:[#allocation3 + $0x118] sm:$0xff]
    %v4976 = vld [vmem:[#allocation3 + $0x120] sm:$0xff]
    %v4977 = vld [vmem:[#allocation3 + $0x128] sm:$0xff]
    %v4978 = vld [vmem:[#allocation3 + $0x130] sm:$0xff]
    %v4979 = vld [vmem:[#allocation3 + $0x138] sm:$0xff]
    %v4980 = vld [vmem:[#allocation3 + $0x140] sm:$0xff]
    %v4981 = vld [vmem:[#allocation3 + $0x148] sm:$0xff]
    %v4982 = vld [vmem:[#allocation3 + $0x150] sm:$0xff]
    %v4983 = vld [vmem:[#allocation3 + $0x158] sm:$0xff]
    %v4984 = vld [vmem:[#allocation3 + $0x160] sm:$0xff]
    %v4985 = vld [vmem:[#allocation3 + $0x168] sm:$0xff]
    %v4986 = vld [vmem:[#allocation3 + $0x170] sm:$0xff]
    %v4987 = vld [vmem:[#allocation3 + $0x178] sm:$0xff]
    %v4988 = vld [vmem:[#allocation3 + $0x180] sm:$0xff]
    %v4989 = vld [vmem:[#allocation3 + $0x188] sm:$0xff]
    %v4990 = vld [vmem:[#allocation3 + $0x190] sm:$0xff]
    %v4991 = vld [vmem:[#allocation3 + $0x198] sm:$0xff]
    %v4992 = vld [vmem:[#allocation3 + $0x1a0] sm:$0xff]
    %v4993 = vld [vmem:[#allocation3 + $0x1a8] sm:$0xff]
    %v4994 = vld [vmem:[#allocation3 + $0x1b0] sm:$0xff]
    %v4995 = vld [vmem:[#allocation3 + $0x1b8] sm:$0xff]
    %v4996 = vld [vmem:[#allocation3 + $0x1c0] sm:$0xff]
    %v4997 = vld [vmem:[#allocation3 + $0x1c8] sm:$0xff]
    %v4998 = vld [vmem:[#allocation3 + $0x1d0] sm:$0xff]
    %v4999 = vld [vmem:[#allocation3 + $0x1d8] sm:$0xff]
    %v5000 = vld [vmem:[#allocation3 + $0x1e0] sm:$0xff]
    %v5001 = vld [vmem:[#allocation3 + $0x1e8] sm:$0xff]
    %v5002 = vld [vmem:[#allocation3 + $0x1f0] sm:$0xff]
    %v5003 = vld [vmem:[#allocation3 + $0x1f8] sm:$0xff]
    %v5004 = vld [vmem:[#allocation3 + $0x200] sm:$0xff]
    %v5005 = vld [vmem:[#allocation3 + $0x208] sm:$0xff]
    %v5006 = vld [vmem:[#allocation3 + $0x210] sm:$0xff]
    %v5007 = vld [vmem:[#allocation3 + $0x218] sm:$0xff]
    %v5008 = vld [vmem:[#allocation3 + $0x220] sm:$0xff]
    %v5009 = vld [vmem:[#allocation3 + $0x228] sm:$0xff]
    %v5010 = vld [vmem:[#allocation3 + $0x230] sm:$0xff]
    %v5011 = vld [vmem:[#allocation3 + $0x238] sm:$0xff]
    %v5012 = vld [vmem:[#allocation3 + $0x240] sm:$0xff]
    %v5013 = vld [vmem:[#allocation3 + $0x248] sm:$0xff]
    %v5014 = vld [vmem:[#allocation3 + $0x250] sm:$0xff]
    %v5015 = vld [vmem:[#allocation3 + $0x258] sm:$0xff]
    %v5016 = vld [vmem:[#allocation3 + $0x260] sm:$0xff]
    %v5017 = vld [vmem:[#allocation3 + $0x268] sm:$0xff]
    %v5018 = vld [vmem:[#allocation3 + $0x270] sm:$0xff]
    %v5019 = vld [vmem:[#allocation3 + $0x278] sm:$0xff]
    %v5020 = vld [vmem:[#allocation3 + $0x280] sm:$0xff]
    %v5021 = vld [vmem:[#allocation3 + $0x288] sm:$0xff]
    %v5022 = vld [vmem:[#allocation3 + $0x290] sm:$0xff]
    %v5023 = vld [vmem:[#allocation3 + $0x298] sm:$0xff]
    %v5024 = vld [vmem:[#allocation3 + $0x2a0] sm:$0xff]
    %v5025 = vld [vmem:[#allocation3 + $0x2a8] sm:$0xff]
    %v5026 = vld [vmem:[#allocation3 + $0x2b0] sm:$0xff]
    %v5027 = vld [vmem:[#allocation3 + $0x2b8] sm:$0xff]
    %v5028 = vld [vmem:[#allocation3 + $0x2c0] sm:$0xff]
    %v5029 = vld [vmem:[#allocation3 + $0x2c8] sm:$0xff]
    %v5030 = vld [vmem:[#allocation3 + $0x2d0] sm:$0xff]
    %v5031 = vld [vmem:[#allocation3 + $0x2d8] sm:$0xff]
    %v5032 = vld [vmem:[#allocation3 + $0x2e0] sm:$0xff]
    %v5033 = vld [vmem:[#allocation3 + $0x2e8] sm:$0xff]
    %v5034 = vld [vmem:[#allocation3 + $0x2f0] sm:$0xff]
    %v5035 = vld [vmem:[#allocation3 + $0x2f8] sm:$0xff]
    %v5036 = vld [vmem:[#allocation3 + $0x300] sm:$0xff]
    %v5037 = vld [vmem:[#allocation3 + $0x308] sm:$0xff]
    %v5038 = vld [vmem:[#allocation3 + $0x310] sm:$0xff]
    %v5039 = vld [vmem:[#allocation3 + $0x318] sm:$0xff]
    %v5040 = vld [vmem:[#allocation3 + $0x320] sm:$0xff]
    %v5041 = vld [vmem:[#allocation3 + $0x328] sm:$0xff]
    %v5042 = vld [vmem:[#allocation3 + $0x330] sm:$0xff]
    %v5043 = vld [vmem:[#allocation3 + $0x338] sm:$0xff]
    %v5044 = vld [vmem:[#allocation3 + $0x340] sm:$0xff]
    %v5045 = vld [vmem:[#allocation3 + $0x348] sm:$0xff]
    %v5046 = vld [vmem:[#allocation3 + $0x350] sm:$0xff]
    %v5047 = vld [vmem:[#allocation3 + $0x358] sm:$0xff]
    %v5048 = vld [vmem:[#allocation3 + $0x360] sm:$0xff]
    %v5049 = vld [vmem:[#allocation3 + $0x368] sm:$0xff]
    %v5050 = vld [vmem:[#allocation3 + $0x370] sm:$0xff]
    %v5051 = vld [vmem:[#allocation3 + $0x378] sm:$0xff]
    %v5052 = vld [vmem:[#allocation3 + $0x380] sm:$0xff]
    %v5053 = vld [vmem:[#allocation3 + $0x388] sm:$0xff]
    %v5054 = vld [vmem:[#allocation3 + $0x390] sm:$0xff]
    %v5055 = vld [vmem:[#allocation3 + $0x398] sm:$0xff]
    %v5056 = vld [vmem:[#allocation3 + $0x3a0] sm:$0xff]
    %v5057 = vld [vmem:[#allocation3 + $0x3a8] sm:$0xff]
    %v5058 = vld [vmem:[#allocation3 + $0x3b0] sm:$0xff]
    %v5059 = vld [vmem:[#allocation3 + $0x3b8] sm:$0xff]
    %v5060 = vld [vmem:[#allocation3 + $0x3c0] sm:$0xff]
    %v5061 = vld [vmem:[#allocation3 + $0x3c8] sm:$0xff]
    %v5062 = vld [vmem:[#allocation3 + $0x3d0] sm:$0xff]
    %v5063 = vld [vmem:[#allocation3 + $0x3d8] sm:$0xff]
    %v5064 = vld [vmem:[#allocation3 + $0x3e0] sm:$0xff]
    %v5065 = vld [vmem:[#allocation3 + $0x3e8] sm:$0xff]
    %v5066 = vld [vmem:[#allocation3 + $0x3f0] sm:$0xff]
    %v5067 = vld [vmem:[#allocation3 + $0x3f8] sm:$0xff]
    %v5068 = vld [vmem:[#allocation3 + $0x400] sm:$0xff]
    %v5069 = vld [vmem:[#allocation3 + $0x408] sm:$0xff]
    %v5070 = vld [vmem:[#allocation3 + $0x410] sm:$0xff]
    %v5071 = vld [vmem:[#allocation3 + $0x418] sm:$0xff]
    %v5072 = vld [vmem:[#allocation3 + $0x420] sm:$0xff]
    %v5073 = vld [vmem:[#allocation3 + $0x428] sm:$0xff]
    %v5074 = vld [vmem:[#allocation3 + $0x430] sm:$0xff]
    %v5075 = vld [vmem:[#allocation3 + $0x438] sm:$0xff]
    %v5076 = vld [vmem:[#allocation3 + $0x440] sm:$0xff]
    %v5077 = vld [vmem:[#allocation3 + $0x448] sm:$0xff]
    %v5078 = vld [vmem:[#allocation3 + $0x450] sm:$0xff]
    %v5079 = vld [vmem:[#allocation3 + $0x458] sm:$0xff]
    %v5080 = vld [vmem:[#allocation3 + $0x460] sm:$0xff]
    %v5081 = vld [vmem:[#allocation3 + $0x468] sm:$0xff]
    %v5082 = vld [vmem:[#allocation3 + $0x470] sm:$0xff]
    %v5083 = vld [vmem:[#allocation3 + $0x478] sm:$0xff]
    %v5084 = vld [vmem:[#allocation3 + $0x480] sm:$0xff]
    %v5085 = vld [vmem:[#allocation3 + $0x488] sm:$0xff]
    %v5086 = vld [vmem:[#allocation3 + $0x490] sm:$0xff]
    %v5087 = vld [vmem:[#allocation3 + $0x498] sm:$0xff]
    %v5088 = vld [vmem:[#allocation3 + $0x4a0] sm:$0xff]
    %v5089 = vld [vmem:[#allocation3 + $0x4a8] sm:$0xff]
    %v5090 = vld [vmem:[#allocation3 + $0x4b0] sm:$0xff]
    %v5091 = vld [vmem:[#allocation3 + $0x4b8] sm:$0xff]
    %v5092 = vld [vmem:[#allocation3 + $0x4c0] sm:$0xff]
    %v5093 = vld [vmem:[#allocation3 + $0x4c8] sm:$0xff]
    %v5094 = vld [vmem:[#allocation3 + $0x4d0] sm:$0xff]
    %v5095 = vld [vmem:[#allocation3 + $0x4d8] sm:$0xff]
    %v5096 = vld [vmem:[#allocation3 + $0x4e0] sm:$0xff]
    %v5097 = vld [vmem:[#allocation3 + $0x4e8] sm:$0xff]
    %v5098 = vld [vmem:[#allocation3 + $0x4f0] sm:$0xff]
    %v5099 = vld [vmem:[#allocation3 + $0x4f8] sm:$0xff]
    %v5100 = vld [vmem:[#allocation3 + $0x500] sm:$0xff]
    %v5101 = vld [vmem:[#allocation3 + $0x508] sm:$0xff]
    %v5102 = vld [vmem:[#allocation3 + $0x510] sm:$0xff]
    %v5103 = vld [vmem:[#allocation3 + $0x518] sm:$0xff]
    %v5104 = vld [vmem:[#allocation3 + $0x520] sm:$0xff]
    %v5105 = vld [vmem:[#allocation3 + $0x528] sm:$0xff]
    %v5106 = vld [vmem:[#allocation3 + $0x530] sm:$0xff]
    %v5107 = vld [vmem:[#allocation3 + $0x538] sm:$0xff]
    %v5108 = vld [vmem:[#allocation3 + $0x540] sm:$0xff]
    %v5109 = vld [vmem:[#allocation3 + $0x548] sm:$0xff]
    %v5110 = vld [vmem:[#allocation3 + $0x550] sm:$0xff]
    %v5111 = vld [vmem:[#allocation3 + $0x558] sm:$0xff]
    %v5112 = vld [vmem:[#allocation3 + $0x560] sm:$0xff]
    %v5113 = vld [vmem:[#allocation3 + $0x568] sm:$0xff]
    %v5114 = vld [vmem:[#allocation3 + $0x570] sm:$0xff]
    %v5115 = vld [vmem:[#allocation3 + $0x578] sm:$0xff]
    %v5116 = vld [vmem:[#allocation3 + $0x580] sm:$0xff]
    %v5117 = vld [vmem:[#allocation3 + $0x588] sm:$0xff]
    %v5118 = vld [vmem:[#allocation3 + $0x590] sm:$0xff]
    %v5119 = vld [vmem:[#allocation3 + $0x598] sm:$0xff]
    %v5120 = vld [vmem:[#allocation3 + $0x5a0] sm:$0xff]
    %v5121 = vld [vmem:[#allocation3 + $0x5a8] sm:$0xff]
    %v5122 = vld [vmem:[#allocation3 + $0x5b0] sm:$0xff]
    %v5123 = vld [vmem:[#allocation3 + $0x5b8] sm:$0xff]
    %v5124 = vld [vmem:[#allocation3 + $0x5c0] sm:$0xff]
    %v5125 = vld [vmem:[#allocation3 + $0x5c8] sm:$0xff]
    %v5126 = vld [vmem:[#allocation3 + $0x5d0] sm:$0xff]
    %v5127 = vld [vmem:[#allocation3 + $0x5d8] sm:$0xff]
    %v5128 = vld [vmem:[#allocation3 + $0x5e0] sm:$0xff]
    %v5129 = vld [vmem:[#allocation3 + $0x5e8] sm:$0xff]
    %v5130 = vld [vmem:[#allocation3 + $0x5f0] sm:$0xff]
    %v5131 = vld [vmem:[#allocation3 + $0x5f8] sm:$0xff]
    %v5132 = vld [vmem:[#allocation3 + $0x600] sm:$0xff]
    %v5133 = vld [vmem:[#allocation3 + $0x608] sm:$0xff]
    %v5134 = vld [vmem:[#allocation3 + $0x610] sm:$0xff]
    %v5135 = vld [vmem:[#allocation3 + $0x618] sm:$0xff]
    %v5136 = vld [vmem:[#allocation3 + $0x620] sm:$0xff]
    %v5137 = vld [vmem:[#allocation3 + $0x628] sm:$0xff]
    %v5138 = vld [vmem:[#allocation3 + $0x630] sm:$0xff]
    %v5139 = vld [vmem:[#allocation3 + $0x638] sm:$0xff]
    %v5140 = vld [vmem:[#allocation3 + $0x640] sm:$0xff]
    %v5141 = vld [vmem:[#allocation3 + $0x648] sm:$0xff]
    %v5142 = vld [vmem:[#allocation3 + $0x650] sm:$0xff]
    %v5143 = vld [vmem:[#allocation3 + $0x658] sm:$0xff]
    %v5144 = vld [vmem:[#allocation3 + $0x660] sm:$0xff]
    %v5145 = vld [vmem:[#allocation3 + $0x668] sm:$0xff]
    %v5146 = vld [vmem:[#allocation3 + $0x670] sm:$0xff]
    %v5147 = vld [vmem:[#allocation3 + $0x678] sm:$0xff]
    %v5148 = vld [vmem:[#allocation3 + $0x680] sm:$0xff]
    %v5149 = vld [vmem:[#allocation3 + $0x688] sm:$0xff]
    %v5150 = vld [vmem:[#allocation3 + $0x690] sm:$0xff]
    %v5151 = vld [vmem:[#allocation3 + $0x698] sm:$0xff]
    %v5152 = vld [vmem:[#allocation3 + $0x6a0] sm:$0xff]
    %v5153 = vld [vmem:[#allocation3 + $0x6a8] sm:$0xff]
    %v5154 = vld [vmem:[#allocation3 + $0x6b0] sm:$0xff]
    %v5155 = vld [vmem:[#allocation3 + $0x6b8] sm:$0xff]
    %v5156 = vld [vmem:[#allocation3 + $0x6c0] sm:$0xff]
    %v5157 = vld [vmem:[#allocation3 + $0x6c8] sm:$0xff]
    %v5158 = vld [vmem:[#allocation3 + $0x6d0] sm:$0xff]
    %v5159 = vld [vmem:[#allocation3 + $0x6d8] sm:$0xff]
    %v5160 = vld [vmem:[#allocation3 + $0x6e0] sm:$0xff]
    %v5161 = vld [vmem:[#allocation3 + $0x6e8] sm:$0xff]
    %v5162 = vld [vmem:[#allocation3 + $0x6f0] sm:$0xff]
    %v5163 = vld [vmem:[#allocation3 + $0x6f8] sm:$0xff]
    %v5164 = vld [vmem:[#allocation3 + $0x700] sm:$0xff]
    %v5165 = vld [vmem:[#allocation3 + $0x708] sm:$0xff]
    %v5166 = vld [vmem:[#allocation3 + $0x710] sm:$0xff]
    %v5167 = vld [vmem:[#allocation3 + $0x718] sm:$0xff]
    %v5168 = vld [vmem:[#allocation3 + $0x720] sm:$0xff]
    %v5169 = vld [vmem:[#allocation3 + $0x728] sm:$0xff]
    %v5170 = vld [vmem:[#allocation3 + $0x730] sm:$0xff]
    %v5171 = vld [vmem:[#allocation3 + $0x738] sm:$0xff]
    %v5172 = vld [vmem:[#allocation3 + $0x740] sm:$0xff]
    %v5173 = vld [vmem:[#allocation3 + $0x748] sm:$0xff]
    %v5174 = vld [vmem:[#allocation3 + $0x750] sm:$0xff]
    %v5175 = vld [vmem:[#allocation3 + $0x758] sm:$0xff]
    %v5176 = vld [vmem:[#allocation3 + $0x760] sm:$0xff]
    %v5177 = vld [vmem:[#allocation3 + $0x768] sm:$0xff]
    %v5178 = vld [vmem:[#allocation3 + $0x770] sm:$0xff]
    %v5179 = vld [vmem:[#allocation3 + $0x778] sm:$0xff]
    %v5180 = vld [vmem:[#allocation3 + $0x780] sm:$0xff]
    %v5181 = vld [vmem:[#allocation3 + $0x788] sm:$0xff]
    %v5182 = vld [vmem:[#allocation3 + $0x790] sm:$0xff]
    %v5183 = vld [vmem:[#allocation3 + $0x798] sm:$0xff]
    %v5184 = vld [vmem:[#allocation3 + $0x7a0] sm:$0xff]
    %v5185 = vld [vmem:[#allocation3 + $0x7a8] sm:$0xff]
    %v5186 = vld [vmem:[#allocation3 + $0x7b0] sm:$0xff]
    %v5187 = vld [vmem:[#allocation3 + $0x7b8] sm:$0xff]
    %v5188 = vld [vmem:[#allocation3 + $0x7c0] sm:$0xff]
    %v5189 = vld [vmem:[#allocation3 + $0x7c8] sm:$0xff]
    %v5190 = vld [vmem:[#allocation3 + $0x7d0] sm:$0xff]
    %v5191 = vld [vmem:[#allocation3 + $0x7d8] sm:$0xff]
    %v5192 = vld [vmem:[#allocation3 + $0x7e0] sm:$0xff]
    %v5193 = vld [vmem:[#allocation3 + $0x7e8] sm:$0xff]
    %v5194 = vld [vmem:[#allocation3 + $0x7f0] sm:$0xff]
    %v5195 = vld [vmem:[#allocation3 + $0x7f8] sm:$0xff]
    %v5452 = vunpack.c.l.b16 %v4940
    %v5453 = vunpack.c.h.b16 %v4940
    %v5454 = vunpack.c.l.b16 %v4941
    %v5455 = vunpack.c.h.b16 %v4941
    %v5456 = vunpack.c.l.b16 %v4942
    %v5457 = vunpack.c.h.b16 %v4942
    %v5458 = vunpack.c.l.b16 %v4943
    %v5459 = vunpack.c.h.b16 %v4943
    %v5460 = vunpack.c.l.b16 %v4944
    %v5461 = vunpack.c.h.b16 %v4944
    %v5462 = vunpack.c.l.b16 %v4945
    %v5463 = vunpack.c.h.b16 %v4945
    %v5464 = vunpack.c.l.b16 %v4946
    %v5465 = vunpack.c.h.b16 %v4946
    %v5466 = vunpack.c.l.b16 %v4947
    %v5467 = vunpack.c.h.b16 %v4947
    %v5468 = vunpack.c.l.b16 %v4948
    %v5469 = vunpack.c.h.b16 %v4948
    %v5470 = vunpack.c.l.b16 %v4949
    %v5471 = vunpack.c.h.b16 %v4949
    %v5472 = vunpack.c.l.b16 %v4950
    %v5473 = vunpack.c.h.b16 %v4950
    %v5474 = vunpack.c.l.b16 %v4951
    %v5475 = vunpack.c.h.b16 %v4951
    %v5476 = vunpack.c.l.b16 %v4952
    %v5477 = vunpack.c.h.b16 %v4952
    %v5478 = vunpack.c.l.b16 %v4953
    %v5479 = vunpack.c.h.b16 %v4953
    %v5480 = vunpack.c.l.b16 %v4954
    %v5481 = vunpack.c.h.b16 %v4954
    %v5482 = vunpack.c.l.b16 %v4955
    %v5483 = vunpack.c.h.b16 %v4955
    %v5484 = vunpack.c.l.b16 %v4956
    %v5485 = vunpack.c.h.b16 %v4956
    %v5486 = vunpack.c.l.b16 %v4957
    %v5487 = vunpack.c.h.b16 %v4957
    %v5488 = vunpack.c.l.b16 %v4958
    %v5489 = vunpack.c.h.b16 %v4958
    %v5490 = vunpack.c.l.b16 %v4959
    %v5491 = vunpack.c.h.b16 %v4959
    %v5492 = vunpack.c.l.b16 %v4960
    %v5493 = vunpack.c.h.b16 %v4960
    %v5494 = vunpack.c.l.b16 %v4961
    %v5495 = vunpack.c.h.b16 %v4961
    %v5496 = vunpack.c.l.b16 %v4962
    %v5497 = vunpack.c.h.b16 %v4962
    %v5498 = vunpack.c.l.b16 %v4963
    %v5499 = vunpack.c.h.b16 %v4963
    %v5500 = vunpack.c.l.b16 %v4964
    %v5501 = vunpack.c.h.b16 %v4964
    %v5502 = vunpack.c.l.b16 %v4965
    %v5503 = vunpack.c.h.b16 %v4965
    %v5504 = vunpack.c.l.b16 %v4966
    %v5505 = vunpack.c.h.b16 %v4966
    %v5506 = vunpack.c.l.b16 %v4967
    %v5507 = vunpack.c.h.b16 %v4967
    %v5508 = vunpack.c.l.b16 %v4968
    %v5509 = vunpack.c.h.b16 %v4968
    %v5510 = vunpack.c.l.b16 %v4969
    %v5511 = vunpack.c.h.b16 %v4969
    %v5512 = vunpack.c.l.b16 %v4970
    %v5513 = vunpack.c.h.b16 %v4970
    %v5514 = vunpack.c.l.b16 %v4971
    %v5515 = vunpack.c.h.b16 %v4971
    %v5516 = vunpack.c.l.b16 %v4972
    %v5517 = vunpack.c.h.b16 %v4972
    %v5518 = vunpack.c.l.b16 %v4973
    %v5519 = vunpack.c.h.b16 %v4973
    %v5520 = vunpack.c.l.b16 %v4974
    %v5521 = vunpack.c.h.b16 %v4974
    %v5522 = vunpack.c.l.b16 %v4975
    %v5523 = vunpack.c.h.b16 %v4975
    %v5524 = vunpack.c.l.b16 %v4976
    %v5525 = vunpack.c.h.b16 %v4976
    %v5526 = vunpack.c.l.b16 %v4977
    %v5527 = vunpack.c.h.b16 %v4977
    %v5528 = vunpack.c.l.b16 %v4978
    %v5529 = vunpack.c.h.b16 %v4978
    %v5530 = vunpack.c.l.b16 %v4979
    %v5531 = vunpack.c.h.b16 %v4979
    %v5532 = vunpack.c.l.b16 %v4980
    %v5533 = vunpack.c.h.b16 %v4980
    %v5534 = vunpack.c.l.b16 %v4981
    %v5535 = vunpack.c.h.b16 %v4981
    %v5536 = vunpack.c.l.b16 %v4982
    %v5537 = vunpack.c.h.b16 %v4982
    %v5538 = vunpack.c.l.b16 %v4983
    %v5539 = vunpack.c.h.b16 %v4983
    %v5540 = vunpack.c.l.b16 %v4984
    %v5541 = vunpack.c.h.b16 %v4984
    %v5542 = vunpack.c.l.b16 %v4985
    %v5543 = vunpack.c.h.b16 %v4985
    %v5544 = vunpack.c.l.b16 %v4986
    %v5545 = vunpack.c.h.b16 %v4986
    %v5546 = vunpack.c.l.b16 %v4987
    %v5547 = vunpack.c.h.b16 %v4987
    %v5548 = vunpack.c.l.b16 %v4988
    %v5549 = vunpack.c.h.b16 %v4988
    %v5550 = vunpack.c.l.b16 %v4989
    %v5551 = vunpack.c.h.b16 %v4989
    %v5552 = vunpack.c.l.b16 %v4990
    %v5553 = vunpack.c.h.b16 %v4990
    %v5554 = vunpack.c.l.b16 %v4991
    %v5555 = vunpack.c.h.b16 %v4991
    %v5556 = vunpack.c.l.b16 %v4992
    %v5557 = vunpack.c.h.b16 %v4992
    %v5558 = vunpack.c.l.b16 %v4993
    %v5559 = vunpack.c.h.b16 %v4993
    %v5560 = vunpack.c.l.b16 %v4994
    %v5561 = vunpack.c.h.b16 %v4994
    %v5562 = vunpack.c.l.b16 %v4995
    %v5563 = vunpack.c.h.b16 %v4995
    %v5564 = vunpack.c.l.b16 %v4996
    %v5565 = vunpack.c.h.b16 %v4996
    %v5566 = vunpack.c.l.b16 %v4997
    %v5567 = vunpack.c.h.b16 %v4997
    %v5568 = vunpack.c.l.b16 %v4998
    %v5569 = vunpack.c.h.b16 %v4998
    %v5570 = vunpack.c.l.b16 %v4999
    %v5571 = vunpack.c.h.b16 %v4999
    %v5572 = vunpack.c.l.b16 %v5000
    %v5573 = vunpack.c.h.b16 %v5000
    %v5574 = vunpack.c.l.b16 %v5001
    %v5575 = vunpack.c.h.b16 %v5001
    %v5576 = vunpack.c.l.b16 %v5002
    %v5577 = vunpack.c.h.b16 %v5002
    %v5578 = vunpack.c.l.b16 %v5003
    %v5579 = vunpack.c.h.b16 %v5003
    %v5580 = vunpack.c.l.b16 %v5004
    %v5581 = vunpack.c.h.b16 %v5004
    %v5582 = vunpack.c.l.b16 %v5005
    %v5583 = vunpack.c.h.b16 %v5005
    %v5584 = vunpack.c.l.b16 %v5006
    %v5585 = vunpack.c.h.b16 %v5006
    %v5586 = vunpack.c.l.b16 %v5007
    %v5587 = vunpack.c.h.b16 %v5007
    %v5588 = vunpack.c.l.b16 %v5008
    %v5589 = vunpack.c.h.b16 %v5008
    %v5590 = vunpack.c.l.b16 %v5009
    %v5591 = vunpack.c.h.b16 %v5009
    %v5592 = vunpack.c.l.b16 %v5010
    %v5593 = vunpack.c.h.b16 %v5010
    %v5594 = vunpack.c.l.b16 %v5011
    %v5595 = vunpack.c.h.b16 %v5011
    %v5596 = vunpack.c.l.b16 %v5012
    %v5597 = vunpack.c.h.b16 %v5012
    %v5598 = vunpack.c.l.b16 %v5013
    %v5599 = vunpack.c.h.b16 %v5013
    %v5600 = vunpack.c.l.b16 %v5014
    %v5601 = vunpack.c.h.b16 %v5014
    %v5602 = vunpack.c.l.b16 %v5015
    %v5603 = vunpack.c.h.b16 %v5015
    %v5604 = vunpack.c.l.b16 %v5016
    %v5605 = vunpack.c.h.b16 %v5016
    %v5606 = vunpack.c.l.b16 %v5017
    %v5607 = vunpack.c.h.b16 %v5017
    %v5608 = vunpack.c.l.b16 %v5018
    %v5609 = vunpack.c.h.b16 %v5018
    %v5610 = vunpack.c.l.b16 %v5019
    %v5611 = vunpack.c.h.b16 %v5019
    %v5612 = vunpack.c.l.b16 %v5020
    %v5613 = vunpack.c.h.b16 %v5020
    %v5614 = vunpack.c.l.b16 %v5021
    %v5615 = vunpack.c.h.b16 %v5021
    %v5616 = vunpack.c.l.b16 %v5022
    %v5617 = vunpack.c.h.b16 %v5022
    %v5618 = vunpack.c.l.b16 %v5023
    %v5619 = vunpack.c.h.b16 %v5023
    %v5620 = vunpack.c.l.b16 %v5024
    %v5621 = vunpack.c.h.b16 %v5024
    %v5622 = vunpack.c.l.b16 %v5025
    %v5623 = vunpack.c.h.b16 %v5025
    %v5624 = vunpack.c.l.b16 %v5026
    %v5625 = vunpack.c.h.b16 %v5026
    %v5626 = vunpack.c.l.b16 %v5027
    %v5627 = vunpack.c.h.b16 %v5027
    %v5628 = vunpack.c.l.b16 %v5028
    %v5629 = vunpack.c.h.b16 %v5028
    %v5630 = vunpack.c.l.b16 %v5029
    %v5631 = vunpack.c.h.b16 %v5029
    %v5632 = vunpack.c.l.b16 %v5030
    %v5633 = vunpack.c.h.b16 %v5030
    %v5634 = vunpack.c.l.b16 %v5031
    %v5635 = vunpack.c.h.b16 %v5031
    %v5636 = vunpack.c.l.b16 %v5032
    %v5637 = vunpack.c.h.b16 %v5032
    %v5638 = vunpack.c.l.b16 %v5033
    %v5639 = vunpack.c.h.b16 %v5033
    %v5640 = vunpack.c.l.b16 %v5034
    %v5641 = vunpack.c.h.b16 %v5034
    %v5642 = vunpack.c.l.b16 %v5035
    %v5643 = vunpack.c.h.b16 %v5035
    %v5644 = vunpack.c.l.b16 %v5036
    %v5645 = vunpack.c.h.b16 %v5036
    %v5646 = vunpack.c.l.b16 %v5037
    %v5647 = vunpack.c.h.b16 %v5037
    %v5648 = vunpack.c.l.b16 %v5038
    %v5649 = vunpack.c.h.b16 %v5038
    %v5650 = vunpack.c.l.b16 %v5039
    %v5651 = vunpack.c.h.b16 %v5039
    %v5652 = vunpack.c.l.b16 %v5040
    %v5653 = vunpack.c.h.b16 %v5040
    %v5654 = vunpack.c.l.b16 %v5041
    %v5655 = vunpack.c.h.b16 %v5041
    %v5656 = vunpack.c.l.b16 %v5042
    %v5657 = vunpack.c.h.b16 %v5042
    %v5658 = vunpack.c.l.b16 %v5043
    %v5659 = vunpack.c.h.b16 %v5043
    %v5660 = vunpack.c.l.b16 %v5044
    %v5661 = vunpack.c.h.b16 %v5044
    %v5662 = vunpack.c.l.b16 %v5045
    %v5663 = vunpack.c.h.b16 %v5045
    %v5664 = vunpack.c.l.b16 %v5046
    %v5665 = vunpack.c.h.b16 %v5046
    %v5666 = vunpack.c.l.b16 %v5047
    %v5667 = vunpack.c.h.b16 %v5047
    %v5668 = vunpack.c.l.b16 %v5048
    %v5669 = vunpack.c.h.b16 %v5048
    %v5670 = vunpack.c.l.b16 %v5049
    %v5671 = vunpack.c.h.b16 %v5049
    %v5672 = vunpack.c.l.b16 %v5050
    %v5673 = vunpack.c.h.b16 %v5050
    %v5674 = vunpack.c.l.b16 %v5051
    %v5675 = vunpack.c.h.b16 %v5051
    %v5676 = vunpack.c.l.b16 %v5052
    %v5677 = vunpack.c.h.b16 %v5052
    %v5678 = vunpack.c.l.b16 %v5053
    %v5679 = vunpack.c.h.b16 %v5053
    %v5680 = vunpack.c.l.b16 %v5054
    %v5681 = vunpack.c.h.b16 %v5054
    %v5682 = vunpack.c.l.b16 %v5055
    %v5683 = vunpack.c.h.b16 %v5055
    %v5684 = vunpack.c.l.b16 %v5056
    %v5685 = vunpack.c.h.b16 %v5056
    %v5686 = vunpack.c.l.b16 %v5057
    %v5687 = vunpack.c.h.b16 %v5057
    %v5688 = vunpack.c.l.b16 %v5058
    %v5689 = vunpack.c.h.b16 %v5058
    %v5690 = vunpack.c.l.b16 %v5059
    %v5691 = vunpack.c.h.b16 %v5059
    %v5692 = vunpack.c.l.b16 %v5060
    %v5693 = vunpack.c.h.b16 %v5060
    %v5694 = vunpack.c.l.b16 %v5061
    %v5695 = vunpack.c.h.b16 %v5061
    %v5696 = vunpack.c.l.b16 %v5062
    %v5697 = vunpack.c.h.b16 %v5062
    %v5698 = vunpack.c.l.b16 %v5063
    %v5699 = vunpack.c.h.b16 %v5063
    %v5700 = vunpack.c.l.b16 %v5064
    %v5701 = vunpack.c.h.b16 %v5064
    %v5702 = vunpack.c.l.b16 %v5065
    %v5703 = vunpack.c.h.b16 %v5065
    %v5704 = vunpack.c.l.b16 %v5066
    %v5705 = vunpack.c.h.b16 %v5066
    %v5706 = vunpack.c.l.b16 %v5067
    %v5707 = vunpack.c.h.b16 %v5067
    %v5708 = vunpack.c.l.b16 %v5068
    %v5709 = vunpack.c.h.b16 %v5068
    %v5710 = vunpack.c.l.b16 %v5069
    %v5711 = vunpack.c.h.b16 %v5069
    %v5712 = vunpack.c.l.b16 %v5070
    %v5713 = vunpack.c.h.b16 %v5070
    %v5714 = vunpack.c.l.b16 %v5071
    %v5715 = vunpack.c.h.b16 %v5071
    %v5716 = vunpack.c.l.b16 %v5072
    %v5717 = vunpack.c.h.b16 %v5072
    %v5718 = vunpack.c.l.b16 %v5073
    %v5719 = vunpack.c.h.b16 %v5073
    %v5720 = vunpack.c.l.b16 %v5074
    %v5721 = vunpack.c.h.b16 %v5074
    %v5722 = vunpack.c.l.b16 %v5075
    %v5723 = vunpack.c.h.b16 %v5075
    %v5724 = vunpack.c.l.b16 %v5076
    %v5725 = vunpack.c.h.b16 %v5076
    %v5726 = vunpack.c.l.b16 %v5077
    %v5727 = vunpack.c.h.b16 %v5077
    %v5728 = vunpack.c.l.b16 %v5078
    %v5729 = vunpack.c.h.b16 %v5078
    %v5730 = vunpack.c.l.b16 %v5079
    %v5731 = vunpack.c.h.b16 %v5079
    %v5732 = vunpack.c.l.b16 %v5080
    %v5733 = vunpack.c.h.b16 %v5080
    %v5734 = vunpack.c.l.b16 %v5081
    %v5735 = vunpack.c.h.b16 %v5081
    %v5736 = vunpack.c.l.b16 %v5082
    %v5737 = vunpack.c.h.b16 %v5082
    %v5738 = vunpack.c.l.b16 %v5083
    %v5739 = vunpack.c.h.b16 %v5083
    %v5740 = vunpack.c.l.b16 %v5084
    %v5741 = vunpack.c.h.b16 %v5084
    %v5742 = vunpack.c.l.b16 %v5085
    %v5743 = vunpack.c.h.b16 %v5085
    %v5744 = vunpack.c.l.b16 %v5086
    %v5745 = vunpack.c.h.b16 %v5086
    %v5746 = vunpack.c.l.b16 %v5087
    %v5747 = vunpack.c.h.b16 %v5087
    %v5748 = vunpack.c.l.b16 %v5088
    %v5749 = vunpack.c.h.b16 %v5088
    %v5750 = vunpack.c.l.b16 %v5089
    %v5751 = vunpack.c.h.b16 %v5089
    %v5752 = vunpack.c.l.b16 %v5090
    %v5753 = vunpack.c.h.b16 %v5090
    %v5754 = vunpack.c.l.b16 %v5091
    %v5755 = vunpack.c.h.b16 %v5091
    %v5756 = vunpack.c.l.b16 %v5092
    %v5757 = vunpack.c.h.b16 %v5092
    %v5758 = vunpack.c.l.b16 %v5093
    %v5759 = vunpack.c.h.b16 %v5093
    %v5760 = vunpack.c.l.b16 %v5094
    %v5761 = vunpack.c.h.b16 %v5094
    %v5762 = vunpack.c.l.b16 %v5095
    %v5763 = vunpack.c.h.b16 %v5095
    %v5764 = vunpack.c.l.b16 %v5096
    %v5765 = vunpack.c.h.b16 %v5096
    %v5766 = vunpack.c.l.b16 %v5097
    %v5767 = vunpack.c.h.b16 %v5097
    %v5768 = vunpack.c.l.b16 %v5098
    %v5769 = vunpack.c.h.b16 %v5098
    %v5770 = vunpack.c.l.b16 %v5099
    %v5771 = vunpack.c.h.b16 %v5099
    %v5772 = vunpack.c.l.b16 %v5100
    %v5773 = vunpack.c.h.b16 %v5100
    %v5774 = vunpack.c.l.b16 %v5101
    %v5775 = vunpack.c.h.b16 %v5101
    %v5776 = vunpack.c.l.b16 %v5102
    %v5777 = vunpack.c.h.b16 %v5102
    %v5778 = vunpack.c.l.b16 %v5103
    %v5779 = vunpack.c.h.b16 %v5103
    %v5780 = vunpack.c.l.b16 %v5104
    %v5781 = vunpack.c.h.b16 %v5104
    %v5782 = vunpack.c.l.b16 %v5105
    %v5783 = vunpack.c.h.b16 %v5105
    %v5784 = vunpack.c.l.b16 %v5106
    %v5785 = vunpack.c.h.b16 %v5106
    %v5786 = vunpack.c.l.b16 %v5107
    %v5787 = vunpack.c.h.b16 %v5107
    %v5788 = vunpack.c.l.b16 %v5108
    %v5789 = vunpack.c.h.b16 %v5108
    %v5790 = vunpack.c.l.b16 %v5109
    %v5791 = vunpack.c.h.b16 %v5109
    %v5792 = vunpack.c.l.b16 %v5110
    %v5793 = vunpack.c.h.b16 %v5110
    %v5794 = vunpack.c.l.b16 %v5111
    %v5795 = vunpack.c.h.b16 %v5111
    %v5796 = vunpack.c.l.b16 %v5112
    %v5797 = vunpack.c.h.b16 %v5112
    %v5798 = vunpack.c.l.b16 %v5113
    %v5799 = vunpack.c.h.b16 %v5113
    %v5800 = vunpack.c.l.b16 %v5114
    %v5801 = vunpack.c.h.b16 %v5114
    %v5802 = vunpack.c.l.b16 %v5115
    %v5803 = vunpack.c.h.b16 %v5115
    %v5804 = vunpack.c.l.b16 %v5116
    %v5805 = vunpack.c.h.b16 %v5116
    %v5806 = vunpack.c.l.b16 %v5117
    %v5807 = vunpack.c.h.b16 %v5117
    %v5808 = vunpack.c.l.b16 %v5118
    %v5809 = vunpack.c.h.b16 %v5118
    %v5810 = vunpack.c.l.b16 %v5119
    %v5811 = vunpack.c.h.b16 %v5119
    %v5812 = vunpack.c.l.b16 %v5120
    %v5813 = vunpack.c.h.b16 %v5120
    %v5814 = vunpack.c.l.b16 %v5121
    %v5815 = vunpack.c.h.b16 %v5121
    %v5816 = vunpack.c.l.b16 %v5122
    %v5817 = vunpack.c.h.b16 %v5122
    %v5818 = vunpack.c.l.b16 %v5123
    %v5819 = vunpack.c.h.b16 %v5123
    %v5820 = vunpack.c.l.b16 %v5124
    %v5821 = vunpack.c.h.b16 %v5124
    %v5822 = vunpack.c.l.b16 %v5125
    %v5823 = vunpack.c.h.b16 %v5125
    %v5824 = vunpack.c.l.b16 %v5126
    %v5825 = vunpack.c.h.b16 %v5126
    %v5826 = vunpack.c.l.b16 %v5127
    %v5827 = vunpack.c.h.b16 %v5127
    %v5828 = vunpack.c.l.b16 %v5128
    %v5829 = vunpack.c.h.b16 %v5128
    %v5830 = vunpack.c.l.b16 %v5129
    %v5831 = vunpack.c.h.b16 %v5129
    %v5832 = vunpack.c.l.b16 %v5130
    %v5833 = vunpack.c.h.b16 %v5130
    %v5834 = vunpack.c.l.b16 %v5131
    %v5835 = vunpack.c.h.b16 %v5131
    %v5836 = vunpack.c.l.b16 %v5132
    %v5837 = vunpack.c.h.b16 %v5132
    %v5838 = vunpack.c.l.b16 %v5133
    %v5839 = vunpack.c.h.b16 %v5133
    %v5840 = vunpack.c.l.b16 %v5134
    %v5841 = vunpack.c.h.b16 %v5134
    %v5842 = vunpack.c.l.b16 %v5135
    %v5843 = vunpack.c.h.b16 %v5135
    %v5844 = vunpack.c.l.b16 %v5136
    %v5845 = vunpack.c.h.b16 %v5136
    %v5846 = vunpack.c.l.b16 %v5137
    %v5847 = vunpack.c.h.b16 %v5137
    %v5848 = vunpack.c.l.b16 %v5138
    %v5849 = vunpack.c.h.b16 %v5138
    %v5850 = vunpack.c.l.b16 %v5139
    %v5851 = vunpack.c.h.b16 %v5139
    %v5852 = vunpack.c.l.b16 %v5140
    %v5853 = vunpack.c.h.b16 %v5140
    %v5854 = vunpack.c.l.b16 %v5141
    %v5855 = vunpack.c.h.b16 %v5141
    %v5856 = vunpack.c.l.b16 %v5142
    %v5857 = vunpack.c.h.b16 %v5142
    %v5858 = vunpack.c.l.b16 %v5143
    %v5859 = vunpack.c.h.b16 %v5143
    %v5860 = vunpack.c.l.b16 %v5144
    %v5861 = vunpack.c.h.b16 %v5144
    %v5862 = vunpack.c.l.b16 %v5145
    %v5863 = vunpack.c.h.b16 %v5145
    %v5864 = vunpack.c.l.b16 %v5146
    %v5865 = vunpack.c.h.b16 %v5146
    %v5866 = vunpack.c.l.b16 %v5147
    %v5867 = vunpack.c.h.b16 %v5147
    %v5868 = vunpack.c.l.b16 %v5148
    %v5869 = vunpack.c.h.b16 %v5148
    %v5870 = vunpack.c.l.b16 %v5149
    %v5871 = vunpack.c.h.b16 %v5149
    %v5872 = vunpack.c.l.b16 %v5150
    %v5873 = vunpack.c.h.b16 %v5150
    %v5874 = vunpack.c.l.b16 %v5151
    %v5875 = vunpack.c.h.b16 %v5151
    %v5876 = vunpack.c.l.b16 %v5152
    %v5877 = vunpack.c.h.b16 %v5152
    %v5878 = vunpack.c.l.b16 %v5153
    %v5879 = vunpack.c.h.b16 %v5153
    %v5880 = vunpack.c.l.b16 %v5154
    %v5881 = vunpack.c.h.b16 %v5154
    %v5882 = vunpack.c.l.b16 %v5155
    %v5883 = vunpack.c.h.b16 %v5155
    %v5884 = vunpack.c.l.b16 %v5156
    %v5885 = vunpack.c.h.b16 %v5156
    %v5886 = vunpack.c.l.b16 %v5157
    %v5887 = vunpack.c.h.b16 %v5157
    %v5888 = vunpack.c.l.b16 %v5158
    %v5889 = vunpack.c.h.b16 %v5158
    %v5890 = vunpack.c.l.b16 %v5159
    %v5891 = vunpack.c.h.b16 %v5159
    %v5892 = vunpack.c.l.b16 %v5160
    %v5893 = vunpack.c.h.b16 %v5160
    %v5894 = vunpack.c.l.b16 %v5161
    %v5895 = vunpack.c.h.b16 %v5161
    %v5896 = vunpack.c.l.b16 %v5162
    %v5897 = vunpack.c.h.b16 %v5162
    %v5898 = vunpack.c.l.b16 %v5163
    %v5899 = vunpack.c.h.b16 %v5163
    %v5900 = vunpack.c.l.b16 %v5164
    %v5901 = vunpack.c.h.b16 %v5164
    %v5902 = vunpack.c.l.b16 %v5165
    %v5903 = vunpack.c.h.b16 %v5165
    %v5904 = vunpack.c.l.b16 %v5166
    %v5905 = vunpack.c.h.b16 %v5166
    %v5906 = vunpack.c.l.b16 %v5167
    %v5907 = vunpack.c.h.b16 %v5167
    %v5908 = vunpack.c.l.b16 %v5168
    %v5909 = vunpack.c.h.b16 %v5168
    %v5910 = vunpack.c.l.b16 %v5169
    %v5911 = vunpack.c.h.b16 %v5169
    %v5912 = vunpack.c.l.b16 %v5170
    %v5913 = vunpack.c.h.b16 %v5170
    %v5914 = vunpack.c.l.b16 %v5171
    %v5915 = vunpack.c.h.b16 %v5171
    %v5916 = vunpack.c.l.b16 %v5172
    %v5917 = vunpack.c.h.b16 %v5172
    %v5918 = vunpack.c.l.b16 %v5173
    %v5919 = vunpack.c.h.b16 %v5173
    %v5920 = vunpack.c.l.b16 %v5174
    %v5921 = vunpack.c.h.b16 %v5174
    %v5922 = vunpack.c.l.b16 %v5175
    %v5923 = vunpack.c.h.b16 %v5175
    %v5924 = vunpack.c.l.b16 %v5176
    %v5925 = vunpack.c.h.b16 %v5176
    %v5926 = vunpack.c.l.b16 %v5177
    %v5927 = vunpack.c.h.b16 %v5177
    %v5928 = vunpack.c.l.b16 %v5178
    %v5929 = vunpack.c.h.b16 %v5178
    %v5930 = vunpack.c.l.b16 %v5179
    %v5931 = vunpack.c.h.b16 %v5179
    %v5932 = vunpack.c.l.b16 %v5180
    %v5933 = vunpack.c.h.b16 %v5180
    %v5934 = vunpack.c.l.b16 %v5181
    %v5935 = vunpack.c.h.b16 %v5181
    %v5936 = vunpack.c.l.b16 %v5182
    %v5937 = vunpack.c.h.b16 %v5182
    %v5938 = vunpack.c.l.b16 %v5183
    %v5939 = vunpack.c.h.b16 %v5183
    %v5940 = vunpack.c.l.b16 %v5184
    %v5941 = vunpack.c.h.b16 %v5184
    %v5942 = vunpack.c.l.b16 %v5185
    %v5943 = vunpack.c.h.b16 %v5185
    %v5944 = vunpack.c.l.b16 %v5186
    %v5945 = vunpack.c.h.b16 %v5186
    %v5946 = vunpack.c.l.b16 %v5187
    %v5947 = vunpack.c.h.b16 %v5187
    %v5948 = vunpack.c.l.b16 %v5188
    %v5949 = vunpack.c.h.b16 %v5188
    %v5950 = vunpack.c.l.b16 %v5189
    %v5951 = vunpack.c.h.b16 %v5189
    %v5952 = vunpack.c.l.b16 %v5190
    %v5953 = vunpack.c.h.b16 %v5190
    %v5954 = vunpack.c.l.b16 %v5191
    %v5955 = vunpack.c.h.b16 %v5191
    %v5956 = vunpack.c.l.b16 %v5192
    %v5957 = vunpack.c.h.b16 %v5192
    %v5958 = vunpack.c.l.b16 %v5193
    %v5959 = vunpack.c.h.b16 %v5193
    %v5960 = vunpack.c.l.b16 %v5194
    %v5961 = vunpack.c.h.b16 %v5194
    %v5962 = vunpack.c.l.b16 %v5195
    %v5963 = vunpack.c.h.b16 %v5195
    %v5964 = vpack.c.b16 %v5456, %v5452
    %v5965 = vpack.c.b16 %v5457, %v5453
    %v5966 = vpack.c.b16 %v5458, %v5454
    %v5967 = vpack.c.b16 %v5459, %v5455
    %v5968 = vpack.c.b16 %v5464, %v5460
    %v5969 = vpack.c.b16 %v5465, %v5461
    %v5970 = vpack.c.b16 %v5466, %v5462
    %v5971 = vpack.c.b16 %v5467, %v5463
    %v5972 = vpack.c.b16 %v5472, %v5468
    %v5973 = vpack.c.b16 %v5473, %v5469
    %v5974 = vpack.c.b16 %v5474, %v5470
    %v5975 = vpack.c.b16 %v5475, %v5471
    %v5976 = vpack.c.b16 %v5480, %v5476
    %v5977 = vpack.c.b16 %v5481, %v5477
    %v5978 = vpack.c.b16 %v5482, %v5478
    %v5979 = vpack.c.b16 %v5483, %v5479
    %v5980 = vpack.c.b16 %v5488, %v5484
    %v5981 = vpack.c.b16 %v5489, %v5485
    %v5982 = vpack.c.b16 %v5490, %v5486
    %v5983 = vpack.c.b16 %v5491, %v5487
    %v5984 = vpack.c.b16 %v5496, %v5492
    %v5985 = vpack.c.b16 %v5497, %v5493
    %v5986 = vpack.c.b16 %v5498, %v5494
    %v5987 = vpack.c.b16 %v5499, %v5495
    %v5988 = vpack.c.b16 %v5504, %v5500
    %v5989 = vpack.c.b16 %v5505, %v5501
    %v5990 = vpack.c.b16 %v5506, %v5502
    %v5991 = vpack.c.b16 %v5507, %v5503
    %v5992 = vpack.c.b16 %v5512, %v5508
    %v5993 = vpack.c.b16 %v5513, %v5509
    %v5994 = vpack.c.b16 %v5514, %v5510
    %v5995 = vpack.c.b16 %v5515, %v5511
    %v5996 = vpack.c.b16 %v5520, %v5516
    %v5997 = vpack.c.b16 %v5521, %v5517
    %v5998 = vpack.c.b16 %v5522, %v5518
    %v5999 = vpack.c.b16 %v5523, %v5519
    %v6000 = vpack.c.b16 %v5528, %v5524
    %v6001 = vpack.c.b16 %v5529, %v5525
    %v6002 = vpack.c.b16 %v5530, %v5526
    %v6003 = vpack.c.b16 %v5531, %v5527
    %v6004 = vpack.c.b16 %v5536, %v5532
    %v6005 = vpack.c.b16 %v5537, %v5533
    %v6006 = vpack.c.b16 %v5538, %v5534
    %v6007 = vpack.c.b16 %v5539, %v5535
    %v6008 = vpack.c.b16 %v5544, %v5540
    %v6009 = vpack.c.b16 %v5545, %v5541
    %v6010 = vpack.c.b16 %v5546, %v5542
    %v6011 = vpack.c.b16 %v5547, %v5543
    %v6012 = vpack.c.b16 %v5552, %v5548
    %v6013 = vpack.c.b16 %v5553, %v5549
    %v6014 = vpack.c.b16 %v5554, %v5550
    %v6015 = vpack.c.b16 %v5555, %v5551
    %v6016 = vpack.c.b16 %v5560, %v5556
    %v6017 = vpack.c.b16 %v5561, %v5557
    %v6018 = vpack.c.b16 %v5562, %v5558
    %v6019 = vpack.c.b16 %v5563, %v5559
    %v6020 = vpack.c.b16 %v5568, %v5564
    %v6021 = vpack.c.b16 %v5569, %v5565
    %v6022 = vpack.c.b16 %v5570, %v5566
    %v6023 = vpack.c.b16 %v5571, %v5567
    %v6024 = vpack.c.b16 %v5576, %v5572
    %v6025 = vpack.c.b16 %v5577, %v5573
    %v6026 = vpack.c.b16 %v5578, %v5574
    %v6027 = vpack.c.b16 %v5579, %v5575
    %v6028 = vpack.c.b16 %v5584, %v5580
    %v6029 = vpack.c.b16 %v5585, %v5581
    %v6030 = vpack.c.b16 %v5586, %v5582
    %v6031 = vpack.c.b16 %v5587, %v5583
    %v6032 = vpack.c.b16 %v5592, %v5588
    %v6033 = vpack.c.b16 %v5593, %v5589
    %v6034 = vpack.c.b16 %v5594, %v5590
    %v6035 = vpack.c.b16 %v5595, %v5591
    %v6036 = vpack.c.b16 %v5600, %v5596
    %v6037 = vpack.c.b16 %v5601, %v5597
    %v6038 = vpack.c.b16 %v5602, %v5598
    %v6039 = vpack.c.b16 %v5603, %v5599
    %v6040 = vpack.c.b16 %v5608, %v5604
    %v6041 = vpack.c.b16 %v5609, %v5605
    %v6042 = vpack.c.b16 %v5610, %v5606
    %v6043 = vpack.c.b16 %v5611, %v5607
    %v6044 = vpack.c.b16 %v5616, %v5612
    %v6045 = vpack.c.b16 %v5617, %v5613
    %v6046 = vpack.c.b16 %v5618, %v5614
    %v6047 = vpack.c.b16 %v5619, %v5615
    %v6048 = vpack.c.b16 %v5624, %v5620
    %v6049 = vpack.c.b16 %v5625, %v5621
    %v6050 = vpack.c.b16 %v5626, %v5622
    %v6051 = vpack.c.b16 %v5627, %v5623
    %v6052 = vpack.c.b16 %v5632, %v5628
    %v6053 = vpack.c.b16 %v5633, %v5629
    %v6054 = vpack.c.b16 %v5634, %v5630
    %v6055 = vpack.c.b16 %v5635, %v5631
    %v6056 = vpack.c.b16 %v5640, %v5636
    %v6057 = vpack.c.b16 %v5641, %v5637
    %v6058 = vpack.c.b16 %v5642, %v5638
    %v6059 = vpack.c.b16 %v5643, %v5639
    %v6060 = vpack.c.b16 %v5648, %v5644
    %v6061 = vpack.c.b16 %v5649, %v5645
    %v6062 = vpack.c.b16 %v5650, %v5646
    %v6063 = vpack.c.b16 %v5651, %v5647
    %v6064 = vpack.c.b16 %v5656, %v5652
    %v6065 = vpack.c.b16 %v5657, %v5653
    %v6066 = vpack.c.b16 %v5658, %v5654
    %v6067 = vpack.c.b16 %v5659, %v5655
    %v6068 = vpack.c.b16 %v5664, %v5660
    %v6069 = vpack.c.b16 %v5665, %v5661
    %v6070 = vpack.c.b16 %v5666, %v5662
    %v6071 = vpack.c.b16 %v5667, %v5663
    %v6072 = vpack.c.b16 %v5672, %v5668
    %v6073 = vpack.c.b16 %v5673, %v5669
    %v6074 = vpack.c.b16 %v5674, %v5670
    %v6075 = vpack.c.b16 %v5675, %v5671
    %v6076 = vpack.c.b16 %v5680, %v5676
    %v6077 = vpack.c.b16 %v5681, %v5677
    %v6078 = vpack.c.b16 %v5682, %v5678
    %v6079 = vpack.c.b16 %v5683, %v5679
    %v6080 = vpack.c.b16 %v5688, %v5684
    %v6081 = vpack.c.b16 %v5689, %v5685
    %v6082 = vpack.c.b16 %v5690, %v5686
    %v6083 = vpack.c.b16 %v5691, %v5687
    %v6084 = vpack.c.b16 %v5696, %v5692
    %v6085 = vpack.c.b16 %v5697, %v5693
    %v6086 = vpack.c.b16 %v5698, %v5694
    %v6087 = vpack.c.b16 %v5699, %v5695
    %v6088 = vpack.c.b16 %v5704, %v5700
    %v6089 = vpack.c.b16 %v5705, %v5701
    %v6090 = vpack.c.b16 %v5706, %v5702
    %v6091 = vpack.c.b16 %v5707, %v5703
    %v6092 = vpack.c.b16 %v5712, %v5708
    %v6093 = vpack.c.b16 %v5713, %v5709
    %v6094 = vpack.c.b16 %v5714, %v5710
    %v6095 = vpack.c.b16 %v5715, %v5711
    %v6096 = vpack.c.b16 %v5720, %v5716
    %v6097 = vpack.c.b16 %v5721, %v5717
    %v6098 = vpack.c.b16 %v5722, %v5718
    %v6099 = vpack.c.b16 %v5723, %v5719
    %v6100 = vpack.c.b16 %v5728, %v5724
    %v6101 = vpack.c.b16 %v5729, %v5725
    %v6102 = vpack.c.b16 %v5730, %v5726
    %v6103 = vpack.c.b16 %v5731, %v5727
    %v6104 = vpack.c.b16 %v5736, %v5732
    %v6105 = vpack.c.b16 %v5737, %v5733
    %v6106 = vpack.c.b16 %v5738, %v5734
    %v6107 = vpack.c.b16 %v5739, %v5735
    %v6108 = vpack.c.b16 %v5744, %v5740
    %v6109 = vpack.c.b16 %v5745, %v5741
    %v6110 = vpack.c.b16 %v5746, %v5742
    %v6111 = vpack.c.b16 %v5747, %v5743
    %v6112 = vpack.c.b16 %v5752, %v5748
    %v6113 = vpack.c.b16 %v5753, %v5749
    %v6114 = vpack.c.b16 %v5754, %v5750
    %v6115 = vpack.c.b16 %v5755, %v5751
    %v6116 = vpack.c.b16 %v5760, %v5756
    %v6117 = vpack.c.b16 %v5761, %v5757
    %v6118 = vpack.c.b16 %v5762, %v5758
    %v6119 = vpack.c.b16 %v5763, %v5759
    %v6120 = vpack.c.b16 %v5768, %v5764
    %v6121 = vpack.c.b16 %v5769, %v5765
    %v6122 = vpack.c.b16 %v5770, %v5766
    %v6123 = vpack.c.b16 %v5771, %v5767
    %v6124 = vpack.c.b16 %v5776, %v5772
    %v6125 = vpack.c.b16 %v5777, %v5773
    %v6126 = vpack.c.b16 %v5778, %v5774
    %v6127 = vpack.c.b16 %v5779, %v5775
    %v6128 = vpack.c.b16 %v5784, %v5780
    %v6129 = vpack.c.b16 %v5785, %v5781
    %v6130 = vpack.c.b16 %v5786, %v5782
    %v6131 = vpack.c.b16 %v5787, %v5783
    %v6132 = vpack.c.b16 %v5792, %v5788
    %v6133 = vpack.c.b16 %v5793, %v5789
    %v6134 = vpack.c.b16 %v5794, %v5790
    %v6135 = vpack.c.b16 %v5795, %v5791
    %v6136 = vpack.c.b16 %v5800, %v5796
    %v6137 = vpack.c.b16 %v5801, %v5797
    %v6138 = vpack.c.b16 %v5802, %v5798
    %v6139 = vpack.c.b16 %v5803, %v5799
    %v6140 = vpack.c.b16 %v5808, %v5804
    %v6141 = vpack.c.b16 %v5809, %v5805
    %v6142 = vpack.c.b16 %v5810, %v5806
    %v6143 = vpack.c.b16 %v5811, %v5807
    %v6144 = vpack.c.b16 %v5816, %v5812
    %v6145 = vpack.c.b16 %v5817, %v5813
    %v6146 = vpack.c.b16 %v5818, %v5814
    %v6147 = vpack.c.b16 %v5819, %v5815
    %v6148 = vpack.c.b16 %v5824, %v5820
    %v6149 = vpack.c.b16 %v5825, %v5821
    %v6150 = vpack.c.b16 %v5826, %v5822
    %v6151 = vpack.c.b16 %v5827, %v5823
    %v6152 = vpack.c.b16 %v5832, %v5828
    %v6153 = vpack.c.b16 %v5833, %v5829
    %v6154 = vpack.c.b16 %v5834, %v5830
    %v6155 = vpack.c.b16 %v5835, %v5831
    %v6156 = vpack.c.b16 %v5840, %v5836
    %v6157 = vpack.c.b16 %v5841, %v5837
    %v6158 = vpack.c.b16 %v5842, %v5838
    %v6159 = vpack.c.b16 %v5843, %v5839
    %v6160 = vpack.c.b16 %v5848, %v5844
    %v6161 = vpack.c.b16 %v5849, %v5845
    %v6162 = vpack.c.b16 %v5850, %v5846
    %v6163 = vpack.c.b16 %v5851, %v5847
    %v6164 = vpack.c.b16 %v5856, %v5852
    %v6165 = vpack.c.b16 %v5857, %v5853
    %v6166 = vpack.c.b16 %v5858, %v5854
    %v6167 = vpack.c.b16 %v5859, %v5855
    %v6168 = vpack.c.b16 %v5864, %v5860
    %v6169 = vpack.c.b16 %v5865, %v5861
    %v6170 = vpack.c.b16 %v5866, %v5862
    %v6171 = vpack.c.b16 %v5867, %v5863
    %v6172 = vpack.c.b16 %v5872, %v5868
    %v6173 = vpack.c.b16 %v5873, %v5869
    %v6174 = vpack.c.b16 %v5874, %v5870
    %v6175 = vpack.c.b16 %v5875, %v5871
    %v6176 = vpack.c.b16 %v5880, %v5876
    %v6177 = vpack.c.b16 %v5881, %v5877
    %v6178 = vpack.c.b16 %v5882, %v5878
    %v6179 = vpack.c.b16 %v5883, %v5879
    %v6180 = vpack.c.b16 %v5888, %v5884
    %v6181 = vpack.c.b16 %v5889, %v5885
    %v6182 = vpack.c.b16 %v5890, %v5886
    %v6183 = vpack.c.b16 %v5891, %v5887
    %v6184 = vpack.c.b16 %v5896, %v5892
    %v6185 = vpack.c.b16 %v5897, %v5893
    %v6186 = vpack.c.b16 %v5898, %v5894
    %v6187 = vpack.c.b16 %v5899, %v5895
    %v6188 = vpack.c.b16 %v5904, %v5900
    %v6189 = vpack.c.b16 %v5905, %v5901
    %v6190 = vpack.c.b16 %v5906, %v5902
    %v6191 = vpack.c.b16 %v5907, %v5903
    %v6192 = vpack.c.b16 %v5912, %v5908
    %v6193 = vpack.c.b16 %v5913, %v5909
    %v6194 = vpack.c.b16 %v5914, %v5910
    %v6195 = vpack.c.b16 %v5915, %v5911
    %v6196 = vpack.c.b16 %v5920, %v5916
    %v6197 = vpack.c.b16 %v5921, %v5917
    %v6198 = vpack.c.b16 %v5922, %v5918
    %v6199 = vpack.c.b16 %v5923, %v5919
    %v6200 = vpack.c.b16 %v5928, %v5924
    %v6201 = vpack.c.b16 %v5929, %v5925
    %v6202 = vpack.c.b16 %v5930, %v5926
    %v6203 = vpack.c.b16 %v5931, %v5927
    %v6204 = vpack.c.b16 %v5936, %v5932
    %v6205 = vpack.c.b16 %v5937, %v5933
    %v6206 = vpack.c.b16 %v5938, %v5934
    %v6207 = vpack.c.b16 %v5939, %v5935
    %v6208 = vpack.c.b16 %v5944, %v5940
    %v6209 = vpack.c.b16 %v5945, %v5941
    %v6210 = vpack.c.b16 %v5946, %v5942
    %v6211 = vpack.c.b16 %v5947, %v5943
    %v6212 = vpack.c.b16 %v5952, %v5948
    %v6213 = vpack.c.b16 %v5953, %v5949
    %v6214 = vpack.c.b16 %v5954, %v5950
    %v6215 = vpack.c.b16 %v5955, %v5951
    %v6216 = vpack.c.b16 %v5960, %v5956
    %v6217 = vpack.c.b16 %v5961, %v5957
    %v6218 = vpack.c.b16 %v5962, %v5958
    %v6219 = vpack.c.b16 %v5963, %v5959
    %6476 = vmatprep.subr.bf16.mxu0 %v5993
    %6477 = vmatpush1.bf16.msra.mxu0 %v5992
    %6478 = vmatprep.subr.bf16.mxu0 %v5989
    %6479 = vmatpush1.bf16.msra.mxu0 %v5988
    %6480 = vmatprep.subr.bf16.mxu0 %v5985
    %6481 = vmatpush1.bf16.msra.mxu0 %v5984
    %6482 = vmatprep.subr.bf16.mxu0 %v5981
    %6483 = vmatpush1.bf16.msra.mxu0 %v5980
    %6484 = vmatprep.subr.bf16.mxu0 %v5977
    %6485 = vmatpush1.bf16.msra.mxu0 %v5976
    %6486 = vmatprep.subr.bf16.mxu0 %v5973
    %6487 = vmatpush1.bf16.msra.mxu0 %v5972
    %6488 = vmatprep.subr.bf16.mxu0 %v5969
    %6489 = vmatpush1.bf16.msra.mxu0 %v5968
    %6490 = vmatprep.subr.bf16.mxu0 %v5965
    %6491 = vmatpush1.bf16.msra.mxu0 %v5964
    %6492 = vmatprep.subr.bf16.mxu0 %v6025
    %6493 = vmatpush2.bf16.msra.mxu0 %v6024
    %6494 = vmatprep.subr.bf16.mxu0 %v6021
    %6495 = vmatpush2.bf16.msra.mxu0 %v6020
    %6496 = vmatprep.subr.bf16.mxu0 %v6017
    %6497 = vmatpush2.bf16.msra.mxu0 %v6016
    %6498 = vmatprep.subr.bf16.mxu0 %v6013
    %6499 = vmatpush2.bf16.msra.mxu0 %v6012
    %6500 = vmatprep.subr.bf16.mxu0 %v6009
    %6501 = vmatpush2.bf16.msra.mxu0 %v6008
    %6502 = vmatprep.subr.bf16.mxu0 %v6005
    %6503 = vmatpush2.bf16.msra.mxu0 %v6004
    %6504 = vmatprep.subr.bf16.mxu0 %v6001
    %6505 = vmatpush2.bf16.msra.mxu0 %v6000
    %6506 = vmatprep.subr.bf16.mxu0 %v5997
    %6507 = vmatpush2.bf16.msra.mxu0 %v5996
    %6508 = vmatprep.mubr.bf16.mxu0 %v4930
    %6509 = vmatmul.mubr.bf16.gmra.mxu0 %v4929
    %v6510 = vpop.f32.mrf.mxu0
    %v6511 = vadd.f32 0.0, %v6510
    %v6512 = vpop.f32.mrf.mxu0
    %v6513 = vadd.f32 0.0, %v6512
    %v6514 = vpop.f32.mrf.mxu0
    %v6515 = vpop.f32.mrf.mxu0
    %6516 = vdwg.mxu0
    %6517 = vmatprep.subr.bf16.mxu0 %v6057
    %6518 = vmatpush1.bf16.msra.mxu0 %v6056
    %6519 = vmatprep.subr.bf16.mxu0 %v6053
    %6520 = vmatpush1.bf16.msra.mxu0 %v6052
    %6521 = vmatprep.subr.bf16.mxu0 %v6049
    %6522 = vmatpush1.bf16.msra.mxu0 %v6048
    %6523 = vmatprep.subr.bf16.mxu0 %v6045
    %6524 = vmatpush1.bf16.msra.mxu0 %v6044
    %6525 = vmatprep.subr.bf16.mxu0 %v6041
    %6526 = vmatpush1.bf16.msra.mxu0 %v6040
    %6527 = vmatprep.subr.bf16.mxu0 %v6037
    %6528 = vmatpush1.bf16.msra.mxu0 %v6036
    %6529 = vmatprep.subr.bf16.mxu0 %v6033
    %6530 = vmatpush1.bf16.msra.mxu0 %v6032
    %6531 = vmatprep.subr.bf16.mxu0 %v6029
    %6532 = vmatpush1.bf16.msra.mxu0 %v6028
    %6533 = vmatprep.subr.bf16.mxu0 %v6089
    %6534 = vmatpush2.bf16.msra.mxu0 %v6088
    %6535 = vmatprep.subr.bf16.mxu0 %v6085
    %6536 = vmatpush2.bf16.msra.mxu0 %v6084
    %6537 = vmatprep.subr.bf16.mxu0 %v6081
    %6538 = vmatpush2.bf16.msra.mxu0 %v6080
    %6539 = vmatprep.subr.bf16.mxu0 %v6077
    %6540 = vmatpush2.bf16.msra.mxu0 %v6076
    %6541 = vmatprep.subr.bf16.mxu0 %v6073
    %6542 = vmatpush2.bf16.msra.mxu0 %v6072
    %6543 = vmatprep.subr.bf16.mxu0 %v6069
    %6544 = vmatpush2.bf16.msra.mxu0 %v6068
    %6545 = vmatprep.subr.bf16.mxu0 %v6065
    %6546 = vmatpush2.bf16.msra.mxu0 %v6064
    %6547 = vmatprep.subr.bf16.mxu0 %v6061
    %6548 = vmatpush2.bf16.msra.mxu0 %v6060
    %6549 = vmatprep.mubr.bf16.mxu0 %v4932
    %6550 = vmatmul.mubr.bf16.gmra.mxu0 %v4931
    %v6551 = vpop.f32.mrf.mxu0
    %v6552 = vadd.f32 %v6511, %v6551
    %v6553 = vpop.f32.mrf.mxu0
    %v6554 = vadd.f32 %v6513, %v6553
    %v6555 = vpop.f32.mrf.mxu0
    %v6556 = vpop.f32.mrf.mxu0
    %6557 = vdwg.mxu0
    %6558 = vmatprep.subr.bf16.mxu0 %v6121
    %6559 = vmatpush1.bf16.msra.mxu0 %v6120
    %6560 = vmatprep.subr.bf16.mxu0 %v6117
    %6561 = vmatpush1.bf16.msra.mxu0 %v6116
    %6562 = vmatprep.subr.bf16.mxu0 %v6113
    %6563 = vmatpush1.bf16.msra.mxu0 %v6112
    %6564 = vmatprep.subr.bf16.mxu0 %v6109
    %6565 = vmatpush1.bf16.msra.mxu0 %v6108
    %6566 = vmatprep.subr.bf16.mxu0 %v6105
    %6567 = vmatpush1.bf16.msra.mxu0 %v6104
    %6568 = vmatprep.subr.bf16.mxu0 %v6101
    %6569 = vmatpush1.bf16.msra.mxu0 %v6100
    %6570 = vmatprep.subr.bf16.mxu0 %v6097
    %6571 = vmatpush1.bf16.msra.mxu0 %v6096
    %6572 = vmatprep.subr.bf16.mxu0 %v6093
    %6573 = vmatpush1.bf16.msra.mxu0 %v6092
    %6574 = vmatprep.subr.bf16.mxu0 %v6153
    %6575 = vmatpush2.bf16.msra.mxu0 %v6152
    %6576 = vmatprep.subr.bf16.mxu0 %v6149
    %6577 = vmatpush2.bf16.msra.mxu0 %v6148
    %6578 = vmatprep.subr.bf16.mxu0 %v6145
    %6579 = vmatpush2.bf16.msra.mxu0 %v6144
    %6580 = vmatprep.subr.bf16.mxu0 %v6141
    %6581 = vmatpush2.bf16.msra.mxu0 %v6140
    %6582 = vmatprep.subr.bf16.mxu0 %v6137
    %6583 = vmatpush2.bf16.msra.mxu0 %v6136
    %6584 = vmatprep.subr.bf16.mxu0 %v6133
    %6585 = vmatpush2.bf16.msra.mxu0 %v6132
    %6586 = vmatprep.subr.bf16.mxu0 %v6129
    %6587 = vmatpush2.bf16.msra.mxu0 %v6128
    %6588 = vmatprep.subr.bf16.mxu0 %v6125
    %6589 = vmatpush2.bf16.msra.mxu0 %v6124
    %6590 = vmatprep.mubr.bf16.mxu0 %v4934
    %6591 = vmatmul.mubr.bf16.gmra.mxu0 %v4933
    %v6592 = vpop.f32.mrf.mxu0
    %v6593 = vadd.f32 %v6552, %v6592
    %v6594 = vpop.f32.mrf.mxu0
    %v6595 = vadd.f32 %v6554, %v6594
    %v6596 = vpop.f32.mrf.mxu0
    %v6597 = vpop.f32.mrf.mxu0
    %6598 = vdwg.mxu0
    %6599 = vmatprep.subr.bf16.mxu0 %v6185
    %6600 = vmatpush1.bf16.msra.mxu0 %v6184
    %6601 = vmatprep.subr.bf16.mxu0 %v6181
    %6602 = vmatpush1.bf16.msra.mxu0 %v6180
    %6603 = vmatprep.subr.bf16.mxu0 %v6177
    %6604 = vmatpush1.bf16.msra.mxu0 %v6176
    %6605 = vmatprep.subr.bf16.mxu0 %v6173
    %6606 = vmatpush1.bf16.msra.mxu0 %v6172
    %6607 = vmatprep.subr.bf16.mxu0 %v6169
    %6608 = vmatpush1.bf16.msra.mxu0 %v6168
    %6609 = vmatprep.subr.bf16.mxu0 %v6165
    %6610 = vmatpush1.bf16.msra.mxu0 %v6164
    %6611 = vmatprep.subr.bf16.mxu0 %v6161
    %6612 = vmatpush1.bf16.msra.mxu0 %v6160
    %6613 = vmatprep.subr.bf16.mxu0 %v6157
    %6614 = vmatpush1.bf16.msra.mxu0 %v6156
    %6615 = vmatprep.subr.bf16.mxu0 %v6217
    %6616 = vmatpush2.bf16.msra.mxu0 %v6216
    %6617 = vmatprep.subr.bf16.mxu0 %v6213
    %6618 = vmatpush2.bf16.msra.mxu0 %v6212
    %6619 = vmatprep.subr.bf16.mxu0 %v6209
    %6620 = vmatpush2.bf16.msra.mxu0 %v6208
    %6621 = vmatprep.subr.bf16.mxu0 %v6205
    %6622 = vmatpush2.bf16.msra.mxu0 %v6204
    %6623 = vmatprep.subr.bf16.mxu0 %v6201
    %6624 = vmatpush2.bf16.msra.mxu0 %v6200
    %6625 = vmatprep.subr.bf16.mxu0 %v6197
    %6626 = vmatpush2.bf16.msra.mxu0 %v6196
    %6627 = vmatprep.subr.bf16.mxu0 %v6193
    %6628 = vmatpush2.bf16.msra.mxu0 %v6192
    %6629 = vmatprep.subr.bf16.mxu0 %v6189
    %6630 = vmatpush2.bf16.msra.mxu0 %v6188
    %6631 = vmatprep.mubr.bf16.mxu0 %v4936
    %6632 = vmatmul.mubr.bf16.gmra.mxu0 %v4935
    %v6633 = vpop.f32.mrf.mxu0
    %v6634 = vadd.f32 %v6593, %v6633
    %v6635 = vpop.f32.mrf.mxu0
    %v6636 = vadd.f32 %v6595, %v6635
    %v6637 = vpop.f32.mrf.mxu0
    %v6638 = vpop.f32.mrf.mxu0
    %6639 = vdwg.mxu0
    %6640 = vmatprep.subr.bf16.mxu0 %v5995
    %6641 = vmatpush1.bf16.msra.mxu0 %v5994
    %6642 = vmatprep.subr.bf16.mxu0 %v5991
    %6643 = vmatpush1.bf16.msra.mxu0 %v5990
    %6644 = vmatprep.subr.bf16.mxu0 %v5987
    %6645 = vmatpush1.bf16.msra.mxu0 %v5986
    %6646 = vmatprep.subr.bf16.mxu0 %v5983
    %6647 = vmatpush1.bf16.msra.mxu0 %v5982
    %6648 = vmatprep.subr.bf16.mxu0 %v5979
    %6649 = vmatpush1.bf16.msra.mxu0 %v5978
    %6650 = vmatprep.subr.bf16.mxu0 %v5975
    %6651 = vmatpush1.bf16.msra.mxu0 %v5974
    %6652 = vmatprep.subr.bf16.mxu0 %v5971
    %6653 = vmatpush1.bf16.msra.mxu0 %v5970
    %6654 = vmatprep.subr.bf16.mxu0 %v5967
    %6655 = vmatpush1.bf16.msra.mxu0 %v5966
    %6656 = vmatprep.subr.bf16.mxu0 %v6027
    %6657 = vmatpush2.bf16.msra.mxu0 %v6026
    %6658 = vmatprep.subr.bf16.mxu0 %v6023
    %6659 = vmatpush2.bf16.msra.mxu0 %v6022
    %6660 = vmatprep.subr.bf16.mxu0 %v6019
    %6661 = vmatpush2.bf16.msra.mxu0 %v6018
    %6662 = vmatprep.subr.bf16.mxu0 %v6015
    %6663 = vmatpush2.bf16.msra.mxu0 %v6014
    %6664 = vmatprep.subr.bf16.mxu0 %v6011
    %6665 = vmatpush2.bf16.msra.mxu0 %v6010
    %6666 = vmatprep.subr.bf16.mxu0 %v6007
    %6667 = vmatpush2.bf16.msra.mxu0 %v6006
    %6668 = vmatprep.subr.bf16.mxu0 %v6003
    %6669 = vmatpush2.bf16.msra.mxu0 %v6002
    %6670 = vmatprep.subr.bf16.mxu0 %v5999
    %6671 = vmatpush2.bf16.msra.mxu0 %v5998
    %6672 = vmatprep.mubr.bf16.mxu0 %v4930
    %6673 = vmatmul.mubr.bf16.gmra.mxu0 %v4929
    %v6674 = vpop.f32.mrf.mxu0
    %v6675 = vadd.f32 0.0, %v6674
    %v6676 = vpop.f32.mrf.mxu0
    %v6677 = vadd.f32 0.0, %v6676
    %v6678 = vpop.f32.mrf.mxu0
    %v6679 = vpop.f32.mrf.mxu0
    %6680 = vdwg.mxu0
    %6681 = vmatprep.subr.bf16.mxu0 %v6059
    %6682 = vmatpush1.bf16.msra.mxu0 %v6058
    %6683 = vmatprep.subr.bf16.mxu0 %v6055
    %6684 = vmatpush1.bf16.msra.mxu0 %v6054
    %6685 = vmatprep.subr.bf16.mxu0 %v6051
    %6686 = vmatpush1.bf16.msra.mxu0 %v6050
    %6687 = vmatprep.subr.bf16.mxu0 %v6047
    %6688 = vmatpush1.bf16.msra.mxu0 %v6046
    %6689 = vmatprep.subr.bf16.mxu0 %v6043
    %6690 = vmatpush1.bf16.msra.mxu0 %v6042
    %6691 = vmatprep.subr.bf16.mxu0 %v6039
    %6692 = vmatpush1.bf16.msra.mxu0 %v6038
    %6693 = vmatprep.subr.bf16.mxu0 %v6035
    %6694 = vmatpush1.bf16.msra.mxu0 %v6034
    %6695 = vmatprep.subr.bf16.mxu0 %v6031
    %6696 = vmatpush1.bf16.msra.mxu0 %v6030
    %6697 = vmatprep.subr.bf16.mxu0 %v6091
    %6698 = vmatpush2.bf16.msra.mxu0 %v6090
    %6699 = vmatprep.subr.bf16.mxu0 %v6087
    %6700 = vmatpush2.bf16.msra.mxu0 %v6086
    %6701 = vmatprep.subr.bf16.mxu0 %v6083
    %6702 = vmatpush2.bf16.msra.mxu0 %v6082
    %6703 = vmatprep.subr.bf16.mxu0 %v6079
    %6704 = vmatpush2.bf16.msra.mxu0 %v6078
    %6705 = vmatprep.subr.bf16.mxu0 %v6075
    %6706 = vmatpush2.bf16.msra.mxu0 %v6074
    %6707 = vmatprep.subr.bf16.mxu0 %v6071
    %6708 = vmatpush2.bf16.msra.mxu0 %v6070
    %6709 = vmatprep.subr.bf16.mxu0 %v6067
    %6710 = vmatpush2.bf16.msra.mxu0 %v6066
    %6711 = vmatprep.subr.bf16.mxu0 %v6063
    %6712 = vmatpush2.bf16.msra.mxu0 %v6062
    %6713 = vmatprep.mubr.bf16.mxu0 %v4932
    %6714 = vmatmul.mubr.bf16.gmra.mxu0 %v4931
    %v6715 = vpop.f32.mrf.mxu0
    %v6716 = vadd.f32 %v6675, %v6715
    %v6717 = vpop.f32.mrf.mxu0
    %v6718 = vadd.f32 %v6677, %v6717
    %v6719 = vpop.f32.mrf.mxu0
    %v6720 = vpop.f32.mrf.mxu0
    %6721 = vdwg.mxu0
    %6722 = vmatprep.subr.bf16.mxu0 %v6123
    %6723 = vmatpush1.bf16.msra.mxu0 %v6122
    %6724 = vmatprep.subr.bf16.mxu0 %v6119
    %6725 = vmatpush1.bf16.msra.mxu0 %v6118
    %6726 = vmatprep.subr.bf16.mxu0 %v6115
    %6727 = vmatpush1.bf16.msra.mxu0 %v6114
    %6728 = vmatprep.subr.bf16.mxu0 %v6111
    %6729 = vmatpush1.bf16.msra.mxu0 %v6110
    %6730 = vmatprep.subr.bf16.mxu0 %v6107
    %6731 = vmatpush1.bf16.msra.mxu0 %v6106
    %6732 = vmatprep.subr.bf16.mxu0 %v6103
    %6733 = vmatpush1.bf16.msra.mxu0 %v6102
    %6734 = vmatprep.subr.bf16.mxu0 %v6099
    %6735 = vmatpush1.bf16.msra.mxu0 %v6098
    %6736 = vmatprep.subr.bf16.mxu0 %v6095
    %6737 = vmatpush1.bf16.msra.mxu0 %v6094
    %6738 = vmatprep.subr.bf16.mxu0 %v6155
    %6739 = vmatpush2.bf16.msra.mxu0 %v6154
    %6740 = vmatprep.subr.bf16.mxu0 %v6151
    %6741 = vmatpush2.bf16.msra.mxu0 %v6150
    %6742 = vmatprep.subr.bf16.mxu0 %v6147
    %6743 = vmatpush2.bf16.msra.mxu0 %v6146
    %6744 = vmatprep.subr.bf16.mxu0 %v6143
    %6745 = vmatpush2.bf16.msra.mxu0 %v6142
    %6746 = vmatprep.subr.bf16.mxu0 %v6139
    %6747 = vmatpush2.bf16.msra.mxu0 %v6138
    %6748 = vmatprep.subr.bf16.mxu0 %v6135
    %6749 = vmatpush2.bf16.msra.mxu0 %v6134
    %6750 = vmatprep.subr.bf16.mxu0 %v6131
    %6751 = vmatpush2.bf16.msra.mxu0 %v6130
    %6752 = vmatprep.subr.bf16.mxu0 %v6127
    %6753 = vmatpush2.bf16.msra.mxu0 %v6126
    %6754 = vmatprep.mubr.bf16.mxu0 %v4934
    %6755 = vmatmul.mubr.bf16.gmra.mxu0 %v4933
    %v6756 = vpop.f32.mrf.mxu0
    %v6757 = vadd.f32 %v6716, %v6756
    %v6758 = vpop.f32.mrf.mxu0
    %v6759 = vadd.f32 %v6718, %v6758
    %v6760 = vpop.f32.mrf.mxu0
    %v6761 = vpop.f32.mrf.mxu0
    %6762 = vdwg.mxu0
    %6763 = vmatprep.subr.bf16.mxu0 %v6187
    %6764 = vmatpush1.bf16.msra.mxu0 %v6186
    %6765 = vmatprep.subr.bf16.mxu0 %v6183
    %6766 = vmatpush1.bf16.msra.mxu0 %v6182
    %6767 = vmatprep.subr.bf16.mxu0 %v6179
    %6768 = vmatpush1.bf16.msra.mxu0 %v6178
    %6769 = vmatprep.subr.bf16.mxu0 %v6175
    %6770 = vmatpush1.bf16.msra.mxu0 %v6174
    %6771 = vmatprep.subr.bf16.mxu0 %v6171
    %6772 = vmatpush1.bf16.msra.mxu0 %v6170
    %6773 = vmatprep.subr.bf16.mxu0 %v6167
    %6774 = vmatpush1.bf16.msra.mxu0 %v6166
    %6775 = vmatprep.subr.bf16.mxu0 %v6163
    %6776 = vmatpush1.bf16.msra.mxu0 %v6162
    %6777 = vmatprep.subr.bf16.mxu0 %v6159
    %6778 = vmatpush1.bf16.msra.mxu0 %v6158
    %6779 = vmatprep.subr.bf16.mxu0 %v6219
    %6780 = vmatpush2.bf16.msra.mxu0 %v6218
    %6781 = vmatprep.subr.bf16.mxu0 %v6215
    %6782 = vmatpush2.bf16.msra.mxu0 %v6214
    %6783 = vmatprep.subr.bf16.mxu0 %v6211
    %6784 = vmatpush2.bf16.msra.mxu0 %v6210
    %6785 = vmatprep.subr.bf16.mxu0 %v6207
    %6786 = vmatpush2.bf16.msra.mxu0 %v6206
    %6787 = vmatprep.subr.bf16.mxu0 %v6203
    %6788 = vmatpush2.bf16.msra.mxu0 %v6202
    %6789 = vmatprep.subr.bf16.mxu0 %v6199
    %6790 = vmatpush2.bf16.msra.mxu0 %v6198
    %6791 = vmatprep.subr.bf16.mxu0 %v6195
    %6792 = vmatpush2.bf16.msra.mxu0 %v6194
    %6793 = vmatprep.subr.bf16.mxu0 %v6191
    %6794 = vmatpush2.bf16.msra.mxu0 %v6190
    %6795 = vmatprep.mubr.bf16.mxu0 %v4936
    %6796 = vmatmul.mubr.bf16.gmra.mxu0 %v4935
    %v6797 = vpop.f32.mrf.mxu0
    %v6798 = vadd.f32 %v6757, %v6797
    %v6799 = vpop.f32.mrf.mxu0
    %v6800 = vadd.f32 %v6759, %v6799
    %v6801 = vpop.f32.mrf.mxu0
    %v6802 = vpop.f32.mrf.mxu0
    %6803 = vdwg.mxu0
    %s6804 = scalar_lea.vmem [#allocation13], 32
    %v6805 = vld [vmem:[%s6804] ss:$2 sm:$0xf]
    %s6806 = scalar_lea.vmem [#allocation13], 33
    %v6807 = vld [vmem:[%s6806] ss:$2 sm:$0xf]
    %v6808 = vrot.slane %v6634, 4
    %v6809 = vadd.f32 %v6634, %v6808
    %v6810 = vrot.slane %v6809, 2
    %v6811 = vadd.f32 %v6809, %v6810
    %v6812 = vrot.slane %v6811, 1
    %v6813 = vadd.f32 %v6811, %v6812
    %v6814 = vrot.slane %v6636, 4
    %v6815 = vadd.f32 %v6636, %v6814
    %v6816 = vrot.slane %v6815, 2
    %v6817 = vadd.f32 %v6815, %v6816
    %v6818 = vrot.slane %v6817, 1
    %v6819 = vadd.f32 %v6817, %v6818
    %v6820 = vrot.slane %v6798, 4
    %v6821 = vadd.f32 %v6798, %v6820
    %v6822 = vrot.slane %v6821, 2
    %v6823 = vadd.f32 %v6821, %v6822
    %v6824 = vrot.slane %v6823, 1
    %v6825 = vadd.f32 %v6823, %v6824
    %v6826 = vrot.slane %v6800, 4
    %v6827 = vadd.f32 %v6800, %v6826
    %v6828 = vrot.slane %v6827, 2
    %v6829 = vadd.f32 %v6827, %v6828
    %v6830 = vrot.slane %v6829, 1
    %v6831 = vadd.f32 %v6829, %v6830
    %v6832 = vmul.f32 %v6813, 0.125
    %v6833 = vmul.f32 %v6819, 0.125
    %v6834 = vmul.f32 %v6825, 0.125
    %v6835 = vmul.f32 %v6831, 0.125
    %v6836 = vmul.f32 %v6634, %v6634
    %v6837 = vmul.f32 %v6636, %v6636
    %v6838 = vmul.f32 %v6798, %v6798
    %v6839 = vmul.f32 %v6800, %v6800
    %v6840 = vrot.slane %v6836, 4
    %v6841 = vadd.f32 %v6836, %v6840
    %v6842 = vrot.slane %v6841, 2
    %v6843 = vadd.f32 %v6841, %v6842
    %v6844 = vrot.slane %v6843, 1
    %v6845 = vadd.f32 %v6843, %v6844
    %v6846 = vrot.slane %v6837, 4
    %v6847 = vadd.f32 %v6837, %v6846
    %v6848 = vrot.slane %v6847, 2
    %v6849 = vadd.f32 %v6847, %v6848
    %v6850 = vrot.slane %v6849, 1
    %v6851 = vadd.f32 %v6849, %v6850
    %v6852 = vrot.slane %v6838, 4
    %v6853 = vadd.f32 %v6838, %v6852
    %v6854 = vrot.slane %v6853, 2
    %v6855 = vadd.f32 %v6853, %v6854
    %v6856 = vrot.slane %v6855, 1
    %v6857 = vadd.f32 %v6855, %v6856
    %v6858 = vrot.slane %v6839, 4
    %v6859 = vadd.f32 %v6839, %v6858
    %v6860 = vrot.slane %v6859, 2
    %v6861 = vadd.f32 %v6859, %v6860
    %v6862 = vrot.slane %v6861, 1
    %v6863 = vadd.f32 %v6861, %v6862
    %v6864 = vmul.f32 %v6845, 0.125
    %v6865 = vmul.f32 %v6851, 0.125
    %v6866 = vmul.f32 %v6857, 0.125
    %v6867 = vmul.f32 %v6863, 0.125
    %v6868 = vmul.f32 %v6832, %v6832
    %v6869 = vmul.f32 %v6833, %v6833
    %v6870 = vmul.f32 %v6834, %v6834
    %v6871 = vmul.f32 %v6835, %v6835
    %v6872 = vsub.f32 %v6864, %v6868
    %v6873 = vsub.f32 %v6865, %v6869
    %v6874 = vsub.f32 %v6866, %v6870
    %v6875 = vsub.f32 %v6867, %v6871
    %v6876 = vadd.f32 %v6872, 1e-05
    %v6877 = vadd.f32 %v6873, 1e-05
    %v6878 = vadd.f32 %v6874, 1e-05
    %v6879 = vadd.f32 %v6875, 1e-05
    %v6880 = vrsqrt.pop %v6876
    %v6881 = vrsqrt.pop %v6877
    %v6882 = vrsqrt.pop %v6878
    %v6883 = vrsqrt.pop %v6879
    %v6888 = vcombine.low %v6880, %v6881
    %v6889 = vcombine.low %v6882, %v6883
    %v6891 = vunpack.c.l.s4 1966171168
    %v6892 = vunpack.c.0.s8 %v6891
    %v6893 = vlaneseq
    %v6894 = vshrl.u32 %v6893, 7
    %v6895 = vsub.s32 %v6892, %v6894
    %v6896 = vrot.slane %v6888, %v6895
    %v6898 = vunpack.c.l.s4 1966171168
    %v6899 = vunpack.c.0.s8 %v6898
    %v6900 = vlaneseq
    %v6901 = vshrl.u32 %v6900, 7
    %v6902 = vsub.s32 %v6899, %v6901
    %v6903 = vrot.slane %v6889, %v6902
    %v6904 = vcombine.low %v6896, %v6903
    %v6906 = vunpack.c.l.s4 1966171168
    %v6907 = vunpack.c.0.s8 %v6906
    %v6908 = vlaneseq
    %v6909 = vshrl.u32 %v6908, 7
    %v6910 = vsub.s32 %v6907, %v6909
    %v6911 = vrot.slane %v6904, %v6910
    %v6913 = vmul.f32 %v6805, %v6911
    %v6915 = vlaneseq
    %v6916 = vshrl.u32 %v6915, 7
    %v6917 = vsub.s32 0, %v6916
    %v6918 = vrot.slane %v6913, %v6917
    %v6919 = vlaneseq
    %v6920 = vshrl.u32 %v6919, 7
    %v6921 = vsub.s32 1, %v6920
    %v6922 = vrot.slane %v6913, %v6921
    %v6923 = vlaneseq
    %v6924 = vshrl.u32 %v6923, 7
    %v6925 = vsub.s32 2, %v6924
    %v6926 = vrot.slane %v6913, %v6925
    %v6927 = vlaneseq
    %v6928 = vshrl.u32 %v6927, 7
    %v6929 = vsub.s32 3, %v6928
    %v6930 = vrot.slane %v6913, %v6929
    %v6935 = vmul.f32 %v6832, %v6918
    %v6936 = vmul.f32 %v6833, %v6922
    %v6937 = vmul.f32 %v6834, %v6926
    %v6938 = vmul.f32 %v6835, %v6930
    %v6943 = vcombine.low %v6935, %v6936
    %v6944 = vcombine.low %v6937, %v6938
    %v6946 = vunpack.c.l.s4 1966171168
    %v6947 = vunpack.c.0.s8 %v6946
    %v6948 = vlaneseq
    %v6949 = vshrl.u32 %v6948, 7
    %v6950 = vsub.s32 %v6947, %v6949
    %v6951 = vrot.slane %v6943, %v6950
    %v6953 = vunpack.c.l.s4 1966171168
    %v6954 = vunpack.c.0.s8 %v6953
    %v6955 = vlaneseq
    %v6956 = vshrl.u32 %v6955, 7
    %v6957 = vsub.s32 %v6954, %v6956
    %v6958 = vrot.slane %v6944, %v6957
    %v6959 = vcombine.low %v6951, %v6958
    %v6961 = vunpack.c.l.s4 1966171168
    %v6962 = vunpack.c.0.s8 %v6961
    %v6963 = vlaneseq
    %v6964 = vshrl.u32 %v6963, 7
    %v6965 = vsub.s32 %v6962, %v6964
    %v6966 = vrot.slane %v6959, %v6965
    %v6968 = vsub.f32 %v6807, %v6966
    %v6969 = vmul.f32 %v6634, %v6918
    %v6970 = vmul.f32 %v6636, %v6922
    %v6971 = vmul.f32 %v6798, %v6926
    %v6972 = vmul.f32 %v6800, %v6930
    %v6974 = vlaneseq
    %v6975 = vshrl.u32 %v6974, 7
    %v6976 = vsub.s32 0, %v6975
    %v6977 = vrot.slane %v6968, %v6976
    %v6978 = vlaneseq
    %v6979 = vshrl.u32 %v6978, 7
    %v6980 = vsub.s32 1, %v6979
    %v6981 = vrot.slane %v6968, %v6980
    %v6982 = vlaneseq
    %v6983 = vshrl.u32 %v6982, 7
    %v6984 = vsub.s32 2, %v6983
    %v6985 = vrot.slane %v6968, %v6984
    %v6986 = vlaneseq
    %v6987 = vshrl.u32 %v6986, 7
    %v6988 = vsub.s32 3, %v6987
    %v6989 = vrot.slane %v6968, %v6988
    %v6994 = vadd.f32 %v6969, %v6977
    %v6995 = vadd.f32 %v6970, %v6981
    %v6996 = vadd.f32 %v6971, %v6985
    %v6997 = vadd.f32 %v6972, %v6989
    %v6998 = vmul.f32 %v6994, 0.2
    %v6999 = vmul.f32 %v6995, 0.2
    %v7000 = vmul.f32 %v6996, 0.2
    %v7001 = vmul.f32 %v6997, 0.2
    %v7002 = vmax.f32 %v6994, %v6998
    %v7003 = vmax.f32 %v6995, %v6999
    %v7004 = vmax.f32 %v6996, %v7000
    %v7005 = vmax.f32 %v6997, %v7001
    %v7006 = vpack.c.bf16 %v7002, %v7002
    %v7007 = vpack.c.bf16 %v7003, %v7003
    %v7008 = vpack.c.bf16 %v7004, %v7004
    %v7009 = vpack.c.bf16 %v7005, %v7005
    %s7010 = smul.u32 4, 64
    %s7011 = smul.u32 %s7010, 2
    %s7012 = sshll.u32 %s7011, 4
    %7013 = dma.done %s96, %s7012
    %v7014 = vld [vmem:[#allocation4] sm:$0xff]
    %v7015 = vld [vmem:[#allocation4 + $0x8] sm:$0xff]
    %v7016 = vld [vmem:[#allocation4 + $0x10] sm:$0xff]
    %v7017 = vld [vmem:[#allocation4 + $0x18] sm:$0xff]
    %v7018 = vld [vmem:[#allocation4 + $0x20] sm:$0xff]
    %v7019 = vld [vmem:[#allocation4 + $0x28] sm:$0xff]
    %v7020 = vld [vmem:[#allocation4 + $0x30] sm:$0xff]
    %v7021 = vld [vmem:[#allocation4 + $0x38] sm:$0xff]
    %v7022 = vld [vmem:[#allocation4 + $0x40] sm:$0xff]
    %v7023 = vld [vmem:[#allocation4 + $0x48] sm:$0xff]
    %v7024 = vld [vmem:[#allocation4 + $0x50] sm:$0xff]
    %v7025 = vld [vmem:[#allocation4 + $0x58] sm:$0xff]
    %v7026 = vld [vmem:[#allocation4 + $0x60] sm:$0xff]
    %v7027 = vld [vmem:[#allocation4 + $0x68] sm:$0xff]
    %v7028 = vld [vmem:[#allocation4 + $0x70] sm:$0xff]
    %v7029 = vld [vmem:[#allocation4 + $0x78] sm:$0xff]
    %v7030 = vld [vmem:[#allocation4 + $0x80] sm:$0xff]
    %v7031 = vld [vmem:[#allocation4 + $0x88] sm:$0xff]
    %v7032 = vld [vmem:[#allocation4 + $0x90] sm:$0xff]
    %v7033 = vld [vmem:[#allocation4 + $0x98] sm:$0xff]
    %v7034 = vld [vmem:[#allocation4 + $0xa0] sm:$0xff]
    %v7035 = vld [vmem:[#allocation4 + $0xa8] sm:$0xff]
    %v7036 = vld [vmem:[#allocation4 + $0xb0] sm:$0xff]
    %v7037 = vld [vmem:[#allocation4 + $0xb8] sm:$0xff]
    %v7038 = vld [vmem:[#allocation4 + $0xc0] sm:$0xff]
    %v7039 = vld [vmem:[#allocation4 + $0xc8] sm:$0xff]
    %v7040 = vld [vmem:[#allocation4 + $0xd0] sm:$0xff]
    %v7041 = vld [vmem:[#allocation4 + $0xd8] sm:$0xff]
    %v7042 = vld [vmem:[#allocation4 + $0xe0] sm:$0xff]
    %v7043 = vld [vmem:[#allocation4 + $0xe8] sm:$0xff]
    %v7044 = vld [vmem:[#allocation4 + $0xf0] sm:$0xff]
    %v7045 = vld [vmem:[#allocation4 + $0xf8] sm:$0xff]
    %v7046 = vld [vmem:[#allocation4 + $0x100] sm:$0xff]
    %v7047 = vld [vmem:[#allocation4 + $0x108] sm:$0xff]
    %v7048 = vld [vmem:[#allocation4 + $0x110] sm:$0xff]
    %v7049 = vld [vmem:[#allocation4 + $0x118] sm:$0xff]
    %v7050 = vld [vmem:[#allocation4 + $0x120] sm:$0xff]
    %v7051 = vld [vmem:[#allocation4 + $0x128] sm:$0xff]
    %v7052 = vld [vmem:[#allocation4 + $0x130] sm:$0xff]
    %v7053 = vld [vmem:[#allocation4 + $0x138] sm:$0xff]
    %v7054 = vld [vmem:[#allocation4 + $0x140] sm:$0xff]
    %v7055 = vld [vmem:[#allocation4 + $0x148] sm:$0xff]
    %v7056 = vld [vmem:[#allocation4 + $0x150] sm:$0xff]
    %v7057 = vld [vmem:[#allocation4 + $0x158] sm:$0xff]
    %v7058 = vld [vmem:[#allocation4 + $0x160] sm:$0xff]
    %v7059 = vld [vmem:[#allocation4 + $0x168] sm:$0xff]
    %v7060 = vld [vmem:[#allocation4 + $0x170] sm:$0xff]
    %v7061 = vld [vmem:[#allocation4 + $0x178] sm:$0xff]
    %v7062 = vld [vmem:[#allocation4 + $0x180] sm:$0xff]
    %v7063 = vld [vmem:[#allocation4 + $0x188] sm:$0xff]
    %v7064 = vld [vmem:[#allocation4 + $0x190] sm:$0xff]
    %v7065 = vld [vmem:[#allocation4 + $0x198] sm:$0xff]
    %v7066 = vld [vmem:[#allocation4 + $0x1a0] sm:$0xff]
    %v7067 = vld [vmem:[#allocation4 + $0x1a8] sm:$0xff]
    %v7068 = vld [vmem:[#allocation4 + $0x1b0] sm:$0xff]
    %v7069 = vld [vmem:[#allocation4 + $0x1b8] sm:$0xff]
    %v7070 = vld [vmem:[#allocation4 + $0x1c0] sm:$0xff]
    %v7071 = vld [vmem:[#allocation4 + $0x1c8] sm:$0xff]
    %v7072 = vld [vmem:[#allocation4 + $0x1d0] sm:$0xff]
    %v7073 = vld [vmem:[#allocation4 + $0x1d8] sm:$0xff]
    %v7074 = vld [vmem:[#allocation4 + $0x1e0] sm:$0xff]
    %v7075 = vld [vmem:[#allocation4 + $0x1e8] sm:$0xff]
    %v7076 = vld [vmem:[#allocation4 + $0x1f0] sm:$0xff]
    %v7077 = vld [vmem:[#allocation4 + $0x1f8] sm:$0xff]
    %v7142 = vunpack.c.l.b16 %v7014
    %v7143 = vunpack.c.h.b16 %v7014
    %v7144 = vunpack.c.l.b16 %v7015
    %v7145 = vunpack.c.h.b16 %v7015
    %v7146 = vunpack.c.l.b16 %v7016
    %v7147 = vunpack.c.h.b16 %v7016
    %v7148 = vunpack.c.l.b16 %v7017
    %v7149 = vunpack.c.h.b16 %v7017
    %v7150 = vunpack.c.l.b16 %v7018
    %v7151 = vunpack.c.h.b16 %v7018
    %v7152 = vunpack.c.l.b16 %v7019
    %v7153 = vunpack.c.h.b16 %v7019
    %v7154 = vunpack.c.l.b16 %v7020
    %v7155 = vunpack.c.h.b16 %v7020
    %v7156 = vunpack.c.l.b16 %v7021
    %v7157 = vunpack.c.h.b16 %v7021
    %v7158 = vunpack.c.l.b16 %v7022
    %v7159 = vunpack.c.h.b16 %v7022
    %v7160 = vunpack.c.l.b16 %v7023
    %v7161 = vunpack.c.h.b16 %v7023
    %v7162 = vunpack.c.l.b16 %v7024
    %v7163 = vunpack.c.h.b16 %v7024
    %v7164 = vunpack.c.l.b16 %v7025
    %v7165 = vunpack.c.h.b16 %v7025
    %v7166 = vunpack.c.l.b16 %v7026
    %v7167 = vunpack.c.h.b16 %v7026
    %v7168 = vunpack.c.l.b16 %v7027
    %v7169 = vunpack.c.h.b16 %v7027
    %v7170 = vunpack.c.l.b16 %v7028
    %v7171 = vunpack.c.h.b16 %v7028
    %v7172 = vunpack.c.l.b16 %v7029
    %v7173 = vunpack.c.h.b16 %v7029
    %v7174 = vunpack.c.l.b16 %v7030
    %v7175 = vunpack.c.h.b16 %v7030
    %v7176 = vunpack.c.l.b16 %v7031
    %v7177 = vunpack.c.h.b16 %v7031
    %v7178 = vunpack.c.l.b16 %v7032
    %v7179 = vunpack.c.h.b16 %v7032
    %v7180 = vunpack.c.l.b16 %v7033
    %v7181 = vunpack.c.h.b16 %v7033
    %v7182 = vunpack.c.l.b16 %v7034
    %v7183 = vunpack.c.h.b16 %v7034
    %v7184 = vunpack.c.l.b16 %v7035
    %v7185 = vunpack.c.h.b16 %v7035
    %v7186 = vunpack.c.l.b16 %v7036
    %v7187 = vunpack.c.h.b16 %v7036
    %v7188 = vunpack.c.l.b16 %v7037
    %v7189 = vunpack.c.h.b16 %v7037
    %v7190 = vunpack.c.l.b16 %v7038
    %v7191 = vunpack.c.h.b16 %v7038
    %v7192 = vunpack.c.l.b16 %v7039
    %v7193 = vunpack.c.h.b16 %v7039
    %v7194 = vunpack.c.l.b16 %v7040
    %v7195 = vunpack.c.h.b16 %v7040
    %v7196 = vunpack.c.l.b16 %v7041
    %v7197 = vunpack.c.h.b16 %v7041
    %v7198 = vunpack.c.l.b16 %v7042
    %v7199 = vunpack.c.h.b16 %v7042
    %v7200 = vunpack.c.l.b16 %v7043
    %v7201 = vunpack.c.h.b16 %v7043
    %v7202 = vunpack.c.l.b16 %v7044
    %v7203 = vunpack.c.h.b16 %v7044
    %v7204 = vunpack.c.l.b16 %v7045
    %v7205 = vunpack.c.h.b16 %v7045
    %v7206 = vunpack.c.l.b16 %v7046
    %v7207 = vunpack.c.h.b16 %v7046
    %v7208 = vunpack.c.l.b16 %v7047
    %v7209 = vunpack.c.h.b16 %v7047
    %v7210 = vunpack.c.l.b16 %v7048
    %v7211 = vunpack.c.h.b16 %v7048
    %v7212 = vunpack.c.l.b16 %v7049
    %v7213 = vunpack.c.h.b16 %v7049
    %v7214 = vunpack.c.l.b16 %v7050
    %v7215 = vunpack.c.h.b16 %v7050
    %v7216 = vunpack.c.l.b16 %v7051
    %v7217 = vunpack.c.h.b16 %v7051
    %v7218 = vunpack.c.l.b16 %v7052
    %v7219 = vunpack.c.h.b16 %v7052
    %v7220 = vunpack.c.l.b16 %v7053
    %v7221 = vunpack.c.h.b16 %v7053
    %v7222 = vunpack.c.l.b16 %v7054
    %v7223 = vunpack.c.h.b16 %v7054
    %v7224 = vunpack.c.l.b16 %v7055
    %v7225 = vunpack.c.h.b16 %v7055
    %v7226 = vunpack.c.l.b16 %v7056
    %v7227 = vunpack.c.h.b16 %v7056
    %v7228 = vunpack.c.l.b16 %v7057
    %v7229 = vunpack.c.h.b16 %v7057
    %v7230 = vunpack.c.l.b16 %v7058
    %v7231 = vunpack.c.h.b16 %v7058
    %v7232 = vunpack.c.l.b16 %v7059
    %v7233 = vunpack.c.h.b16 %v7059
    %v7234 = vunpack.c.l.b16 %v7060
    %v7235 = vunpack.c.h.b16 %v7060
    %v7236 = vunpack.c.l.b16 %v7061
    %v7237 = vunpack.c.h.b16 %v7061
    %v7238 = vunpack.c.l.b16 %v7062
    %v7239 = vunpack.c.h.b16 %v7062
    %v7240 = vunpack.c.l.b16 %v7063
    %v7241 = vunpack.c.h.b16 %v7063
    %v7242 = vunpack.c.l.b16 %v7064
    %v7243 = vunpack.c.h.b16 %v7064
    %v7244 = vunpack.c.l.b16 %v7065
    %v7245 = vunpack.c.h.b16 %v7065
    %v7246 = vunpack.c.l.b16 %v7066
    %v7247 = vunpack.c.h.b16 %v7066
    %v7248 = vunpack.c.l.b16 %v7067
    %v7249 = vunpack.c.h.b16 %v7067
    %v7250 = vunpack.c.l.b16 %v7068
    %v7251 = vunpack.c.h.b16 %v7068
    %v7252 = vunpack.c.l.b16 %v7069
    %v7253 = vunpack.c.h.b16 %v7069
    %v7254 = vunpack.c.l.b16 %v7070
    %v7255 = vunpack.c.h.b16 %v7070
    %v7256 = vunpack.c.l.b16 %v7071
    %v7257 = vunpack.c.h.b16 %v7071
    %v7258 = vunpack.c.l.b16 %v7072
    %v7259 = vunpack.c.h.b16 %v7072
    %v7260 = vunpack.c.l.b16 %v7073
    %v7261 = vunpack.c.h.b16 %v7073
    %v7262 = vunpack.c.l.b16 %v7074
    %v7263 = vunpack.c.h.b16 %v7074
    %v7264 = vunpack.c.l.b16 %v7075
    %v7265 = vunpack.c.h.b16 %v7075
    %v7266 = vunpack.c.l.b16 %v7076
    %v7267 = vunpack.c.h.b16 %v7076
    %v7268 = vunpack.c.l.b16 %v7077
    %v7269 = vunpack.c.h.b16 %v7077
    %v7270 = vpack.c.b16 %v7144, %v7142
    %v7271 = vpack.c.b16 %v7145, %v7143
    %v7272 = vpack.c.b16 %v7148, %v7146
    %v7273 = vpack.c.b16 %v7149, %v7147
    %v7274 = vpack.c.b16 %v7152, %v7150
    %v7275 = vpack.c.b16 %v7153, %v7151
    %v7276 = vpack.c.b16 %v7156, %v7154
    %v7277 = vpack.c.b16 %v7157, %v7155
    %v7278 = vpack.c.b16 %v7160, %v7158
    %v7279 = vpack.c.b16 %v7161, %v7159
    %v7280 = vpack.c.b16 %v7164, %v7162
    %v7281 = vpack.c.b16 %v7165, %v7163
    %v7282 = vpack.c.b16 %v7168, %v7166
    %v7283 = vpack.c.b16 %v7169, %v7167
    %v7284 = vpack.c.b16 %v7172, %v7170
    %v7285 = vpack.c.b16 %v7173, %v7171
    %v7286 = vpack.c.b16 %v7176, %v7174
    %v7287 = vpack.c.b16 %v7177, %v7175
    %v7288 = vpack.c.b16 %v7180, %v7178
    %v7289 = vpack.c.b16 %v7181, %v7179
    %v7290 = vpack.c.b16 %v7184, %v7182
    %v7291 = vpack.c.b16 %v7185, %v7183
    %v7292 = vpack.c.b16 %v7188, %v7186
    %v7293 = vpack.c.b16 %v7189, %v7187
    %v7294 = vpack.c.b16 %v7192, %v7190
    %v7295 = vpack.c.b16 %v7193, %v7191
    %v7296 = vpack.c.b16 %v7196, %v7194
    %v7297 = vpack.c.b16 %v7197, %v7195
    %v7298 = vpack.c.b16 %v7200, %v7198
    %v7299 = vpack.c.b16 %v7201, %v7199
    %v7300 = vpack.c.b16 %v7204, %v7202
    %v7301 = vpack.c.b16 %v7205, %v7203
    %v7302 = vpack.c.b16 %v7208, %v7206
    %v7303 = vpack.c.b16 %v7209, %v7207
    %v7304 = vpack.c.b16 %v7212, %v7210
    %v7305 = vpack.c.b16 %v7213, %v7211
    %v7306 = vpack.c.b16 %v7216, %v7214
    %v7307 = vpack.c.b16 %v7217, %v7215
    %v7308 = vpack.c.b16 %v7220, %v7218
    %v7309 = vpack.c.b16 %v7221, %v7219
    %v7310 = vpack.c.b16 %v7224, %v7222
    %v7311 = vpack.c.b16 %v7225, %v7223
    %v7312 = vpack.c.b16 %v7228, %v7226
    %v7313 = vpack.c.b16 %v7229, %v7227
    %v7314 = vpack.c.b16 %v7232, %v7230
    %v7315 = vpack.c.b16 %v7233, %v7231
    %v7316 = vpack.c.b16 %v7236, %v7234
    %v7317 = vpack.c.b16 %v7237, %v7235
    %v7318 = vpack.c.b16 %v7240, %v7238
    %v7319 = vpack.c.b16 %v7241, %v7239
    %v7320 = vpack.c.b16 %v7244, %v7242
    %v7321 = vpack.c.b16 %v7245, %v7243
    %v7322 = vpack.c.b16 %v7248, %v7246
    %v7323 = vpack.c.b16 %v7249, %v7247
    %v7324 = vpack.c.b16 %v7252, %v7250
    %v7325 = vpack.c.b16 %v7253, %v7251
    %v7326 = vpack.c.b16 %v7256, %v7254
    %v7327 = vpack.c.b16 %v7257, %v7255
    %v7328 = vpack.c.b16 %v7260, %v7258
    %v7329 = vpack.c.b16 %v7261, %v7259
    %v7330 = vpack.c.b16 %v7264, %v7262
    %v7331 = vpack.c.b16 %v7265, %v7263
    %v7332 = vpack.c.b16 %v7268, %v7266
    %v7333 = vpack.c.b16 %v7269, %v7267
    %7398 = vmatprep.subr.bf16.mxu0 %v7285
    %7399 = vmatpush1.bf16.msra.mxu0 %v7284
    %7400 = vmatprep.subr.bf16.mxu0 %v7283
    %7401 = vmatpush1.bf16.msra.mxu0 %v7282
    %7402 = vmatprep.subr.bf16.mxu0 %v7281
    %7403 = vmatpush1.bf16.msra.mxu0 %v7280
    %7404 = vmatprep.subr.bf16.mxu0 %v7279
    %7405 = vmatpush1.bf16.msra.mxu0 %v7278
    %7406 = vmatprep.subr.bf16.mxu0 %v7277
    %7407 = vmatpush1.bf16.msra.mxu0 %v7276
    %7408 = vmatprep.subr.bf16.mxu0 %v7275
    %7409 = vmatpush1.bf16.msra.mxu0 %v7274
    %7410 = vmatprep.subr.bf16.mxu0 %v7273
    %7411 = vmatpush1.bf16.msra.mxu0 %v7272
    %7412 = vmatprep.subr.bf16.mxu0 %v7271
    %7413 = vmatpush1.bf16.msra.mxu0 %v7270
    %7414 = vmatprep.subr.bf16.mxu0 %v7301
    %7415 = vmatpush2.bf16.msra.mxu0 %v7300
    %7416 = vmatprep.subr.bf16.mxu0 %v7299
    %7417 = vmatpush2.bf16.msra.mxu0 %v7298
    %7418 = vmatprep.subr.bf16.mxu0 %v7297
    %7419 = vmatpush2.bf16.msra.mxu0 %v7296
    %7420 = vmatprep.subr.bf16.mxu0 %v7295
    %7421 = vmatpush2.bf16.msra.mxu0 %v7294
    %7422 = vmatprep.subr.bf16.mxu0 %v7293
    %7423 = vmatpush2.bf16.msra.mxu0 %v7292
    %7424 = vmatprep.subr.bf16.mxu0 %v7291
    %7425 = vmatpush2.bf16.msra.mxu0 %v7290
    %7426 = vmatprep.subr.bf16.mxu0 %v7289
    %7427 = vmatpush2.bf16.msra.mxu0 %v7288
    %7428 = vmatprep.subr.bf16.mxu0 %v7287
    %7429 = vmatpush2.bf16.msra.mxu0 %v7286
    %7430 = vmatprep.mubr.bf16.mxu0 %v7007
    %7431 = vmatmul.mubr.bf16.gmra.mxu0 %v7006
    %v7432 = vpop.f32.mrf.mxu0
    %v7433 = vadd.f32 0.0, %v7432
    %v7434 = vpop.f32.mrf.mxu0
    %v7435 = vadd.f32 0.0, %v7434
    %v7436 = vpop.f32.mrf.mxu0
    %v7437 = vpop.f32.mrf.mxu0
    %7438 = vdwg.mxu0
    %7439 = vmatprep.subr.bf16.mxu0 %v7317
    %7440 = vmatpush1.bf16.msra.mxu0 %v7316
    %7441 = vmatprep.subr.bf16.mxu0 %v7315
    %7442 = vmatpush1.bf16.msra.mxu0 %v7314
    %7443 = vmatprep.subr.bf16.mxu0 %v7313
    %7444 = vmatpush1.bf16.msra.mxu0 %v7312
    %7445 = vmatprep.subr.bf16.mxu0 %v7311
    %7446 = vmatpush1.bf16.msra.mxu0 %v7310
    %7447 = vmatprep.subr.bf16.mxu0 %v7309
    %7448 = vmatpush1.bf16.msra.mxu0 %v7308
    %7449 = vmatprep.subr.bf16.mxu0 %v7307
    %7450 = vmatpush1.bf16.msra.mxu0 %v7306
    %7451 = vmatprep.subr.bf16.mxu0 %v7305
    %7452 = vmatpush1.bf16.msra.mxu0 %v7304
    %7453 = vmatprep.subr.bf16.mxu0 %v7303
    %7454 = vmatpush1.bf16.msra.mxu0 %v7302
    %7455 = vmatprep.subr.bf16.mxu0 %v7333
    %7456 = vmatpush2.bf16.msra.mxu0 %v7332
    %7457 = vmatprep.subr.bf16.mxu0 %v7331
    %7458 = vmatpush2.bf16.msra.mxu0 %v7330
    %7459 = vmatprep.subr.bf16.mxu0 %v7329
    %7460 = vmatpush2.bf16.msra.mxu0 %v7328
    %7461 = vmatprep.subr.bf16.mxu0 %v7327
    %7462 = vmatpush2.bf16.msra.mxu0 %v7326
    %7463 = vmatprep.subr.bf16.mxu0 %v7325
    %7464 = vmatpush2.bf16.msra.mxu0 %v7324
    %7465 = vmatprep.subr.bf16.mxu0 %v7323
    %7466 = vmatpush2.bf16.msra.mxu0 %v7322
    %7467 = vmatprep.subr.bf16.mxu0 %v7321
    %7468 = vmatpush2.bf16.msra.mxu0 %v7320
    %7469 = vmatprep.subr.bf16.mxu0 %v7319
    %7470 = vmatpush2.bf16.msra.mxu0 %v7318
    %7471 = vmatprep.mubr.bf16.mxu0 %v7009
    %7472 = vmatmul.mubr.bf16.gmra.mxu0 %v7008
    %v7473 = vpop.f32.mrf.mxu0
    %v7474 = vadd.f32 %v7433, %v7473
    %v7475 = vpop.f32.mrf.mxu0
    %v7476 = vadd.f32 %v7435, %v7475
    %v7477 = vpop.f32.mrf.mxu0
    %v7478 = vpop.f32.mrf.mxu0
    %7479 = vdwg.mxu0
    %s7480 = scalar_lea.vmem [#allocation13], 40
    %v7481 = vld [vmem:[%s7480] ss:$2 sm:$0x3]
    %s7482 = scalar_lea.vmem [#allocation13], 41
    %v7483 = vld [vmem:[%s7482] ss:$2 sm:$0x3]
    %v7484 = vrot.slane %v7474, 4
    %v7485 = vadd.f32 %v7474, %v7484
    %v7486 = vrot.slane %v7485, 2
    %v7487 = vadd.f32 %v7485, %v7486
    %v7488 = vrot.slane %v7487, 1
    %v7489 = vadd.f32 %v7487, %v7488
    %v7490 = vrot.slane %v7476, 4
    %v7491 = vadd.f32 %v7476, %v7490
    %v7492 = vrot.slane %v7491, 2
    %v7493 = vadd.f32 %v7491, %v7492
    %v7494 = vrot.slane %v7493, 1
    %v7495 = vadd.f32 %v7493, %v7494
    %v7496 = vmul.f32 %v7489, 0.125
    %v7497 = vmul.f32 %v7495, 0.125
    %v7498 = vmul.f32 %v7474, %v7474
    %v7499 = vmul.f32 %v7476, %v7476
    %v7500 = vrot.slane %v7498, 4
    %v7501 = vadd.f32 %v7498, %v7500
    %v7502 = vrot.slane %v7501, 2
    %v7503 = vadd.f32 %v7501, %v7502
    %v7504 = vrot.slane %v7503, 1
    %v7505 = vadd.f32 %v7503, %v7504
    %v7506 = vrot.slane %v7499, 4
    %v7507 = vadd.f32 %v7499, %v7506
    %v7508 = vrot.slane %v7507, 2
    %v7509 = vadd.f32 %v7507, %v7508
    %v7510 = vrot.slane %v7509, 1
    %v7511 = vadd.f32 %v7509, %v7510
    %v7512 = vmul.f32 %v7505, 0.125
    %v7513 = vmul.f32 %v7511, 0.125
    %v7514 = vmul.f32 %v7496, %v7496
    %v7515 = vmul.f32 %v7497, %v7497
    %v7516 = vsub.f32 %v7512, %v7514
    %v7517 = vsub.f32 %v7513, %v7515
    %v7518 = vadd.f32 %v7516, 1e-05
    %v7519 = vadd.f32 %v7517, 1e-05
    %v7520 = vrsqrt.pop %v7518
    %v7521 = vrsqrt.pop %v7519
    %v7524 = vcombine.low %v7520, %v7521
    %v7526 = vunpack.c.l.s4 1966171168
    %v7527 = vunpack.c.0.s8 %v7526
    %v7528 = vlaneseq
    %v7529 = vshrl.u32 %v7528, 7
    %v7530 = vsub.s32 %v7527, %v7529
    %v7531 = vrot.slane %v7524, %v7530
    %v7533 = vunpack.c.l.s4 1966171168
    %v7534 = vunpack.c.0.s8 %v7533
    %v7535 = vlaneseq
    %v7536 = vshrl.u32 %v7535, 7
    %v7537 = vsub.s32 %v7534, %v7536
    %v7538 = vrot.slane %v7531, %v7537
    %v7540 = vmul.f32 %v7481, %v7538
    %v7542 = vlaneseq
    %v7543 = vshrl.u32 %v7542, 7
    %v7544 = vsub.s32 0, %v7543
    %v7545 = vrot.slane %v7540, %v7544
    %v7546 = vlaneseq
    %v7547 = vshrl.u32 %v7546, 7
    %v7548 = vsub.s32 1, %v7547
    %v7549 = vrot.slane %v7540, %v7548
    %v7552 = vmul.f32 %v7496, %v7545
    %v7553 = vmul.f32 %v7497, %v7549
    %v7556 = vcombine.low %v7552, %v7553
    %v7558 = vunpack.c.l.s4 1966171168
    %v7559 = vunpack.c.0.s8 %v7558
    %v7560 = vlaneseq
    %v7561 = vshrl.u32 %v7560, 7
    %v7562 = vsub.s32 %v7559, %v7561
    %v7563 = vrot.slane %v7556, %v7562
    %v7565 = vunpack.c.l.s4 1966171168
    %v7566 = vunpack.c.0.s8 %v7565
    %v7567 = vlaneseq
    %v7568 = vshrl.u32 %v7567, 7
    %v7569 = vsub.s32 %v7566, %v7568
    %v7570 = vrot.slane %v7563, %v7569
    %v7572 = vsub.f32 %v7483, %v7570
    %v7573 = vmul.f32 %v7474, %v7545
    %v7574 = vmul.f32 %v7476, %v7549
    %v7576 = vlaneseq
    %v7577 = vshrl.u32 %v7576, 7
    %v7578 = vsub.s32 0, %v7577
    %v7579 = vrot.slane %v7572, %v7578
    %v7580 = vlaneseq
    %v7581 = vshrl.u32 %v7580, 7
    %v7582 = vsub.s32 1, %v7581
    %v7583 = vrot.slane %v7572, %v7582
    %v7586 = vadd.f32 %v7573, %v7579
    %v7587 = vadd.f32 %v7574, %v7583
    %v7588 = vmul.f32 %v7586, 0.2
    %v7589 = vmul.f32 %v7587, 0.2
    %v7590 = vmax.f32 %v7586, %v7588
    %v7591 = vmax.f32 %v7587, %v7589
    %v7592 = vpack.c.bf16 %v7590, %v7590
    %v7593 = vpack.c.bf16 %v7591, %v7591
    %s7594 = smul.u32 4, 32
    %s7595 = smul.u32 %s7594, 1
    %s7596 = sshll.u32 %s7595, 4
    %7597 = dma.done %s108, %s7596
    %v7598 = vld [vmem:[#allocation5] sm:$0xf]
    %v7599 = vld [vmem:[#allocation5 + $0x4] sm:$0xf]
    %v7600 = vld [vmem:[#allocation5 + $0x8] sm:$0xf]
    %v7601 = vld [vmem:[#allocation5 + $0xc] sm:$0xf]
    %v7602 = vld [vmem:[#allocation5 + $0x10] sm:$0xf]
    %v7603 = vld [vmem:[#allocation5 + $0x14] sm:$0xf]
    %v7604 = vld [vmem:[#allocation5 + $0x18] sm:$0xf]
    %v7605 = vld [vmem:[#allocation5 + $0x1c] sm:$0xf]
    %v7606 = vld [vmem:[#allocation5 + $0x20] sm:$0xf]
    %v7607 = vld [vmem:[#allocation5 + $0x24] sm:$0xf]
    %v7608 = vld [vmem:[#allocation5 + $0x28] sm:$0xf]
    %v7609 = vld [vmem:[#allocation5 + $0x2c] sm:$0xf]
    %v7610 = vld [vmem:[#allocation5 + $0x30] sm:$0xf]
    %v7611 = vld [vmem:[#allocation5 + $0x34] sm:$0xf]
    %v7612 = vld [vmem:[#allocation5 + $0x38] sm:$0xf]
    %v7613 = vld [vmem:[#allocation5 + $0x3c] sm:$0xf]
    %v7614 = vld [vmem:[#allocation5 + $0x40] sm:$0xf]
    %v7615 = vld [vmem:[#allocation5 + $0x44] sm:$0xf]
    %v7616 = vld [vmem:[#allocation5 + $0x48] sm:$0xf]
    %v7617 = vld [vmem:[#allocation5 + $0x4c] sm:$0xf]
    %v7618 = vld [vmem:[#allocation5 + $0x50] sm:$0xf]
    %v7619 = vld [vmem:[#allocation5 + $0x54] sm:$0xf]
    %v7620 = vld [vmem:[#allocation5 + $0x58] sm:$0xf]
    %v7621 = vld [vmem:[#allocation5 + $0x5c] sm:$0xf]
    %v7622 = vld [vmem:[#allocation5 + $0x60] sm:$0xf]
    %v7623 = vld [vmem:[#allocation5 + $0x64] sm:$0xf]
    %v7624 = vld [vmem:[#allocation5 + $0x68] sm:$0xf]
    %v7625 = vld [vmem:[#allocation5 + $0x6c] sm:$0xf]
    %v7626 = vld [vmem:[#allocation5 + $0x70] sm:$0xf]
    %v7627 = vld [vmem:[#allocation5 + $0x74] sm:$0xf]
    %v7628 = vld [vmem:[#allocation5 + $0x78] sm:$0xf]
    %v7629 = vld [vmem:[#allocation5 + $0x7c] sm:$0xf]
    %v7662 = vunpack.c.l.b16 %v7598
    %v7663 = vunpack.c.l.b16 %v7599
    %v7664 = vunpack.c.l.b16 %v7600
    %v7665 = vunpack.c.l.b16 %v7601
    %v7666 = vunpack.c.l.b16 %v7602
    %v7667 = vunpack.c.l.b16 %v7603
    %v7668 = vunpack.c.l.b16 %v7604
    %v7669 = vunpack.c.l.b16 %v7605
    %v7670 = vunpack.c.l.b16 %v7606
    %v7671 = vunpack.c.l.b16 %v7607
    %v7672 = vunpack.c.l.b16 %v7608
    %v7673 = vunpack.c.l.b16 %v7609
    %v7674 = vunpack.c.l.b16 %v7610
    %v7675 = vunpack.c.l.b16 %v7611
    %v7676 = vunpack.c.l.b16 %v7612
    %v7677 = vunpack.c.l.b16 %v7613
    %v7678 = vunpack.c.l.b16 %v7614
    %v7679 = vunpack.c.l.b16 %v7615
    %v7680 = vunpack.c.l.b16 %v7616
    %v7681 = vunpack.c.l.b16 %v7617
    %v7682 = vunpack.c.l.b16 %v7618
    %v7683 = vunpack.c.l.b16 %v7619
    %v7684 = vunpack.c.l.b16 %v7620
    %v7685 = vunpack.c.l.b16 %v7621
    %v7686 = vunpack.c.l.b16 %v7622
    %v7687 = vunpack.c.l.b16 %v7623
    %v7688 = vunpack.c.l.b16 %v7624
    %v7689 = vunpack.c.l.b16 %v7625
    %v7690 = vunpack.c.l.b16 %v7626
    %v7691 = vunpack.c.l.b16 %v7627
    %v7692 = vunpack.c.l.b16 %v7628
    %v7693 = vunpack.c.l.b16 %v7629
    %v7694 = vpack.c.b16 %v7663, %v7662
    %v7695 = vpack.c.b16 %v7665, %v7664
    %v7696 = vpack.c.b16 %v7667, %v7666
    %v7697 = vpack.c.b16 %v7669, %v7668
    %v7698 = vpack.c.b16 %v7671, %v7670
    %v7699 = vpack.c.b16 %v7673, %v7672
    %v7700 = vpack.c.b16 %v7675, %v7674
    %v7701 = vpack.c.b16 %v7677, %v7676
    %v7702 = vpack.c.b16 %v7679, %v7678
    %v7703 = vpack.c.b16 %v7681, %v7680
    %v7704 = vpack.c.b16 %v7683, %v7682
    %v7705 = vpack.c.b16 %v7685, %v7684
    %v7706 = vpack.c.b16 %v7687, %v7686
    %v7707 = vpack.c.b16 %v7689, %v7688
    %v7708 = vpack.c.b16 %v7691, %v7690
    %v7709 = vpack.c.b16 %v7693, %v7692
    %7726 = vmatprep.subr.bf16.mxu0 0
    %7727 = vmatpush1.bf16.msra.mxu0 %v7701
    %7728 = vmatprep.subr.bf16.mxu0 0
    %7729 = vmatpush1.bf16.msra.mxu0 %v7700
    %7730 = vmatprep.subr.bf16.mxu0 0
    %7731 = vmatpush1.bf16.msra.mxu0 %v7699
    %7732 = vmatprep.subr.bf16.mxu0 0
    %7733 = vmatpush1.bf16.msra.mxu0 %v7698
    %7734 = vmatprep.subr.bf16.mxu0 0
    %7735 = vmatpush1.bf16.msra.mxu0 %v7697
    %7736 = vmatprep.subr.bf16.mxu0 0
    %7737 = vmatpush1.bf16.msra.mxu0 %v7696
    %7738 = vmatprep.subr.bf16.mxu0 0
    %7739 = vmatpush1.bf16.msra.mxu0 %v7695
    %7740 = vmatprep.subr.bf16.mxu0 0
    %7741 = vmatpush1.bf16.msra.mxu0 %v7694
    %7742 = vmatprep.subr.bf16.mxu0 0
    %7743 = vmatpush2.bf16.msra.mxu0 %v7709
    %7744 = vmatprep.subr.bf16.mxu0 0
    %7745 = vmatpush2.bf16.msra.mxu0 %v7708
    %7746 = vmatprep.subr.bf16.mxu0 0
    %7747 = vmatpush2.bf16.msra.mxu0 %v7707
    %7748 = vmatprep.subr.bf16.mxu0 0
    %7749 = vmatpush2.bf16.msra.mxu0 %v7706
    %7750 = vmatprep.subr.bf16.mxu0 0
    %7751 = vmatpush2.bf16.msra.mxu0 %v7705
    %7752 = vmatprep.subr.bf16.mxu0 0
    %7753 = vmatpush2.bf16.msra.mxu0 %v7704
    %7754 = vmatprep.subr.bf16.mxu0 0
    %7755 = vmatpush2.bf16.msra.mxu0 %v7703
    %7756 = vmatprep.subr.bf16.mxu0 0
    %7757 = vmatpush2.bf16.msra.mxu0 %v7702
    %7758 = vmatprep.mubr.bf16.mxu0 %v7593
    %7759 = vmatmul.mubr.bf16.gmra.mxu0 %v7592
    %v7760 = vpop.f32.mrf.mxu0
    %v7761 = vadd.f32 0.0, %v7760
    %v7762 = vpop.f32.mrf.mxu0
    %v7763 = vpop.f32.mrf.mxu0
    %v7764 = vpop.f32.mrf.mxu0
    %7765 = vdwg.mxu0
    %v7766 = vld [vmem:[#allocation13 + $0x2c] sm:$0x1]
    %v7767 = vld [vmem:[#allocation13 + $0x2d] sm:$0x1]
    %v7768 = vrot.slane %v7761, 4
    %v7769 = vadd.f32 %v7761, %v7768
    %v7770 = vrot.slane %v7769, 2
    %v7771 = vadd.f32 %v7769, %v7770
    %v7772 = vrot.slane %v7771, 1
    %v7773 = vadd.f32 %v7771, %v7772
    %v7774 = vmul.f32 %v7773, 0.125
    %v7775 = vmul.f32 %v7761, %v7761
    %v7776 = vrot.slane %v7775, 4
    %v7777 = vadd.f32 %v7775, %v7776
    %v7778 = vrot.slane %v7777, 2
    %v7779 = vadd.f32 %v7777, %v7778
    %v7780 = vrot.slane %v7779, 1
    %v7781 = vadd.f32 %v7779, %v7780
    %v7782 = vmul.f32 %v7781, 0.125
    %v7783 = vmul.f32 %v7774, %v7774
    %v7784 = vsub.f32 %v7782, %v7783
    %v7785 = vadd.f32 %v7784, 1e-05
    %v7786 = vrsqrt.pop %v7785
    %v7787 = vmul.f32 %v7766, %v7786
    %v7788 = vmul.f32 %v7774, %v7787
    %v7789 = vsub.f32 %v7767, %v7788
    %v7790 = vlaneseq
    %v7791 = vshrl.u32 %v7790, 7
    %v7792 = vsub.s32 0, %v7791
    %v7793 = vrot.slane %v7787, %v7792
    %v7794 = vmul.f32 %v7761, %v7793
    %v7795 = vlaneseq
    %v7796 = vshrl.u32 %v7795, 7
    %v7797 = vsub.s32 0, %v7796
    %v7798 = vrot.slane %v7789, %v7797
    %v7799 = vadd.f32 %v7794, %v7798
    %v7800 = vmul.f32 %v7799, 0.2
    %v7801 = vmax.f32 %v7799, %v7800
    %v7802 = vpack.c.bf16 %v7801, %v7801
    %s7803 = smul.u32 4, 16
    %s7804 = smul.u32 %s7803, 1
    %s7805 = sshll.u32 %s7804, 4
    %7806 = dma.done %s120, %s7805
    %v7807 = vld [vmem:[#allocation6] sm:$0xf]
    %v7808 = vld [vmem:[#allocation6 + $0x4] sm:$0xf]
    %v7809 = vld [vmem:[#allocation6 + $0x8] sm:$0xf]
    %v7810 = vld [vmem:[#allocation6 + $0xc] sm:$0xf]
    %v7811 = vld [vmem:[#allocation6 + $0x10] sm:$0xf]
    %v7812 = vld [vmem:[#allocation6 + $0x14] sm:$0xf]
    %v7813 = vld [vmem:[#allocation6 + $0x18] sm:$0xf]
    %v7814 = vld [vmem:[#allocation6 + $0x1c] sm:$0xf]
    %v7815 = vld [vmem:[#allocation6 + $0x20] sm:$0xf]
    %v7816 = vld [vmem:[#allocation6 + $0x24] sm:$0xf]
    %v7817 = vld [vmem:[#allocation6 + $0x28] sm:$0xf]
    %v7818 = vld [vmem:[#allocation6 + $0x2c] sm:$0xf]
    %v7819 = vld [vmem:[#allocation6 + $0x30] sm:$0xf]
    %v7820 = vld [vmem:[#allocation6 + $0x34] sm:$0xf]
    %v7821 = vld [vmem:[#allocation6 + $0x38] sm:$0xf]
    %v7822 = vld [vmem:[#allocation6 + $0x3c] sm:$0xf]
    %v7823 = vld [vmem:[#allocation14] sm:$0x1]
    %v7825 = vlaneseq
    %v7826 = vshrl.u32 %v7825, 7
    %v7827 = vsub.s32 0, %v7826
    %v7828 = vrot.slane %v7823, %v7827
    %v7846 = vunpack.c.l.b16 %v7807
    %v7847 = vunpack.c.l.b16 %v7808
    %v7848 = vunpack.c.l.b16 %v7809
    %v7849 = vunpack.c.l.b16 %v7810
    %v7850 = vunpack.c.l.b16 %v7811
    %v7851 = vunpack.c.l.b16 %v7812
    %v7852 = vunpack.c.l.b16 %v7813
    %v7853 = vunpack.c.l.b16 %v7814
    %v7854 = vunpack.c.l.b16 %v7815
    %v7855 = vunpack.c.l.b16 %v7816
    %v7856 = vunpack.c.l.b16 %v7817
    %v7857 = vunpack.c.l.b16 %v7818
    %v7858 = vunpack.c.l.b16 %v7819
    %v7859 = vunpack.c.l.b16 %v7820
    %v7860 = vunpack.c.l.b16 %v7821
    %v7861 = vunpack.c.l.b16 %v7822
    %v7862 = vpack.c.b16 %v7847, %v7846
    %v7863 = vpack.c.b16 %v7849, %v7848
    %v7864 = vpack.c.b16 %v7851, %v7850
    %v7865 = vpack.c.b16 %v7853, %v7852
    %v7866 = vpack.c.b16 %v7855, %v7854
    %v7867 = vpack.c.b16 %v7857, %v7856
    %v7868 = vpack.c.b16 %v7859, %v7858
    %v7869 = vpack.c.b16 %v7861, %v7860
    %7878 = vmatprep.subr.bf16.mxu0 0
    %7879 = vmatpush1.bf16.msra.mxu0 %v7869
    %7880 = vmatprep.subr.bf16.mxu0 0
    %7881 = vmatpush1.bf16.msra.mxu0 %v7868
    %7882 = vmatprep.subr.bf16.mxu0 0
    %7883 = vmatpush1.bf16.msra.mxu0 %v7867
    %7884 = vmatprep.subr.bf16.mxu0 0
    %7885 = vmatpush1.bf16.msra.mxu0 %v7866
    %7886 = vmatprep.subr.bf16.mxu0 0
    %7887 = vmatpush1.bf16.msra.mxu0 %v7865
    %7888 = vmatprep.subr.bf16.mxu0 0
    %7889 = vmatpush1.bf16.msra.mxu0 %v7864
    %7890 = vmatprep.subr.bf16.mxu0 0
    %7891 = vmatpush1.bf16.msra.mxu0 %v7863
    %7892 = vmatprep.subr.bf16.mxu0 0
    %7893 = vmatpush1.bf16.msra.mxu0 %v7862
    %7894 = vmatprep.subr.bf16.mxu0 0
    %7895 = vmatpush2.bf16.msra.mxu0 0
    %7896 = vmatprep.subr.bf16.mxu0 0
    %7897 = vmatpush2.bf16.msra.mxu0 0
    %7898 = vmatprep.subr.bf16.mxu0 0
    %7899 = vmatpush2.bf16.msra.mxu0 0
    %7900 = vmatprep.subr.bf16.mxu0 0
    %7901 = vmatpush2.bf16.msra.mxu0 0
    %7902 = vmatprep.subr.bf16.mxu0 0
    %7903 = vmatpush2.bf16.msra.mxu0 0
    %7904 = vmatprep.subr.bf16.mxu0 0
    %7905 = vmatpush2.bf16.msra.mxu0 0
    %7906 = vmatprep.subr.bf16.mxu0 0
    %7907 = vmatpush2.bf16.msra.mxu0 0
    %7908 = vmatprep.subr.bf16.mxu0 0
    %7909 = vmatpush2.bf16.msra.mxu0 0
    %7910 = vmatprep.mubr.bf16.mxu0 0
    %7911 = vmatmul.mubr.bf16.gmra.mxu0 %v7802
    %v7912 = vpop.f32.mrf.mxu0
    %v7913 = vadd.f32 %v7828, %v7912
    %v7914 = vpop.f32.mrf.mxu0
    %v7915 = vpop.f32.mrf.mxu0
    %v7916 = vpop.f32.mrf.mxu0
    %7917 = vdwg.mxu0
    %7918 = vst [vmem:[#allocation16] sm:$0xff] %v7913
    // Predicated region
    $region54: #{tpu_custom_call.1} parent=1 // pred_check
      _
    $region55: #{tpu_custom_call.1} parent=1 // pred_check_branch
      %7920 = sbr.rel (0) target = $region57
    $region56: #{tpu_custom_call.1} parent=1 // pred_region
      %s7922 = ssub.s32 128, 128
      %7923 = vsyncadd [#allocation10], %s7922
      %s7925 = sshll.u32 [#allocation16], 4
      %s7926 = int_to_ptr.vmem [resolvable:$true] %s7925
      %7928 = dma.vmem_to_hbm [thread:$0]  %s7926, 128, %s9, [#allocation10]
    $region57: #{tpu_custom_call.1} parent=1 // pred_fallthru
      _
    // Predicated region
    $region58: #{tpu_custom_call.1} parent=1 // pred_check
      _
    $region59: #{tpu_custom_call.1} parent=1 // pred_check_branch
      %7930 = sbr.rel (0) target = $region61
    $region60: #{tpu_custom_call.1} parent=1 // pred_region
      %7931 = dma.done [#allocation10], 128
    $region61: #{tpu_custom_call.1} parent=1 // pred_fallthru
      _
    %7932 = vsyncpa [#allocation9], 1
    %7933 = vsyncpa [#allocation12], 1
    %7934 = vsyncpa [#allocation15], 1
    %7935 = vsyncpa [#allocation10], 1
  %7936 = vsyncmov [#allocation7]
  %s7937 = vpop.sfrf %7936
  %p7938 = scmp.eq.s32.totalorder %s7937, 0
  %p7939 = pneg %p7938
  %7941 = shalt.err (%p7939)
  %s7942 = scalar_lea.sflag [#allocation7], 1
  %7943 = vsyncmov %s7942
  %s7944 = vpop.sfrf %7943
  %p7945 = scmp.eq.s32.totalorder %s7944, 0
  %p7946 = pneg %p7945
  %7948 = shalt.err (%p7946)
  %s7949 = scalar_lea.sflag [#allocation7], 2
  %7950 = vsyncmov %s7949
  %s7951 = vpop.sfrf %7950
  %p7952 = scmp.eq.s32.totalorder %s7951, 0
  %p7953 = pneg %p7952
  %7955 = shalt.err (%p7953)
  %s7956 = scalar_lea.sflag [#allocation7], 3
  %7957 = vsyncmov %s7956
  %s7958 = vpop.sfrf %7957
  %p7959 = scmp.eq.s32.totalorder %s7958, 0
  %p7960 = pneg %p7959
  %7962 = shalt.err (%p7960)
  %s7963 = scalar_lea.sflag [#allocation7], 4
  %7964 = vsyncmov %s7963
  %s7965 = vpop.sfrf %7964
  %p7966 = scmp.eq.s32.totalorder %s7965, 0
  %p7967 = pneg %p7966
  %7969 = shalt.err (%p7967)

</llo_original>
